<compile_context>
chip_gen: v5e
topology: v5e:2x2
jax: 0.10.0
libtpu: 0.0.40
codegen_flags: <defaults>
</compile_context>

<pallas_src>
import jax
import jax.numpy as jnp
from jax.experimental import pallas as pl
from jax.experimental.pallas import tpu as pltpu

KSIZE = 5      # conv kernel width
POOL = 5       # maxpool width
STRIDE = 2     # maxpool stride
MAX_BBLK = 4   # samples packed per grid step (selection matrices grow ~Bblk^2)
OUT_LANES = 128  # lane-dense output slab width (classes live on sublanes)


def final_time_steps(t, num_conv_blocks):
    for _ in range(num_conv_blocks):
        t = (t - POOL) // STRIDE + 1
    return t


def _slot_sizes(t0, num_blocks):
    """Per-block time length and per-sample slot width (>= T+2, power of two)."""
    ts = [t0]
    for _ in range(num_blocks):
        ts.append((ts[-1] - POOL) // STRIDE + 1)
    ss = [max(8, pl.next_power_of_2(t + 2)) for t in ts]
    return ts, ss


def _make_kernel(num_blocks, c, ws, t_final):
    kc = KSIZE * c

    def conv_same(h, w_flat, bias, stack_ref, width):
        """Conv1d(k=5, padding='same') for all sample slots packed along lanes.

        The 5 shifted copies are stored directly into the persistent VMEM
        im2col scratch (no concatenate temporaries); the <=2 edge lanes that a
        shifted store cannot cover are the true zero padding.  One bf16
        (C, 5C) @ (5C, width) MXU matmul with f32 accumulation follows.
        """
        hb = h.astype(jnp.bfloat16)
        edge = jnp.zeros((kc, 2), jnp.bfloat16)
        stack_ref[:, 0:2] = edge                       # left zero padding
        stack_ref[:, width - 2:width] = edge           # right zero padding
        for k in range(KSIZE):
            off = k - 2
            lo, hi = k * c, (k + 1) * c
            if off < 0:
                stack_ref[lo:hi, -off:width] = hb[:, 0:width + off]
            elif off == 0:
                stack_ref[lo:hi, 0:width] = hb
            else:
                stack_ref[lo:hi, 0:width - off] = hb[:, off:width]
        y = jnp.dot(w_flat, stack_ref[:, 0:width],
                    preferred_element_type=jnp.float32)
        return y + bias

    def kernel(*refs):
        (x_ref, w_in_ref, b_in_ref, w_blk_ref, b_blk_ref, masks_ref) = refs[:6]
        sel_refs = refs[6:6 + num_blocks]
        (g_ref, w1_ref, b1_ref, w2_ref, b2_ref,
         w3_ref, b3_ref) = refs[6 + num_blocks:13 + num_blocks]
        out_ref = refs[13 + num_blocks]
        stack_ref = refs[14 + num_blocks]

        # ---- input Conv1d(1 -> C, 'same'): channel 0 of x carries the signal
        width = ws[0]
        h = conv_same(x_ref[0], w_in_ref[...], b_in_ref[...], stack_ref, width)
        h = jnp.where(masks_ref[0, :, 0:width] > 0.5, h, 0.0)

        # ---- convolutional blocks ----
        for i in range(num_blocks):
            width = ws[i]
            w_flat = w_blk_ref[i]
            bias = b_blk_ref[i]
            mask = masks_ref[i, :, 0:width] > 0.5

            # ResidualBlock: conv -> relu -> conv (SAME weights/bias) -> +skip
            r = conv_same(h, w_flat, bias, stack_ref, width)
            r = jnp.where(mask, jnp.maximum(r, 0.0), 0.0)   # relu + re-zero pads
            r = conv_same(r, w_flat, bias, stack_ref, width)
            h = jnp.maximum(r + h, 0.0)                     # ConvolutionalBlock relu

            # MaxPool1d(5, stride=2): sliding max, then an exact f32 selection
            # matmul that does the stride-2 pick and re-lays every sample onto
            # the next (smaller) zero-gapped slot grid in one shot.
            l = width - (POOL - 1)
            fm = h[:, 0:l]
            for k in range(1, POOL):
                fm = jnp.maximum(fm, h[:, k:k + l])
            h = jnp.dot(fm, sel_refs[i][...],
                        preferred_element_type=jnp.float32)

        # ---- head: channel-major flatten folded into t_final column gathers
        acc = jnp.zeros((c, OUT_LANES), jnp.float32)
        for t in range(t_final):
            cols = jnp.dot(h, g_ref[t], preferred_element_type=jnp.float32)
            acc = acc + jnp.dot(w1_ref[t], cols,
                                preferred_element_type=jnp.float32)
        # TODO(synk): dropout_1 runs as eval-mode identity (no RNG masking).
        z = jnp.maximum(acc + b1_ref[...], 0.0)
        z = jnp.maximum(
            jnp.dot(w2_ref[...], z, preferred_element_type=jnp.float32)
            + b2_ref[...], 0.0)
        z = jnp.dot(w3_ref[...], z,
                    preferred_element_type=jnp.float32) + b3_ref[...]

        # log_softmax over classes (sublanes); samples live on lanes.
        m = jnp.max(z, axis=0, keepdims=True)
        zc = z - m
        lse = jnp.log(jnp.sum(jnp.exp(zc), axis=0, keepdims=True))
        out_ref[0] = zc - lse

    return kernel


def _const_spec(a):
    idx = (0,) * a.ndim
    return pl.BlockSpec(a.shape, lambda s: idx)


def resnet_eeg_forward(x, params):
    """x: (B, 1, T) float32 (PyTorch NCW). Returns (B, num_classes) log-probs."""
    b_total, cin, t0 = x.shape
    assert cin == 1, "model expects a single input channel"
    w_in = params["w_in"]                 # (C, 1, K) torch layout
    c = w_in.shape[0]
    num_blocks = params["w_blk"].shape[0]
    ncls = params["b3"].shape[0]
    f32 = jnp.float32

    # ---- geometry: pack Bblk samples along lanes, keep >=2 steps for v7x ----
    if b_total >= 2:
        bblk = min(MAX_BBLK, -(-b_total // 2))
    else:
        bblk = 1
    num_steps = -(-b_total // bblk)
    nb_pad = num_steps * bblk

    ts, ss = _slot_sizes(t0, num_blocks)          # per-block T and slot width
    ws = [bblk * s for s in ss]                   # packed lane widths
    t_final = ts[-1]

    # ---- input packing: (steps, C, W0); channel 0 holds the signal ---------
    xp = jnp.zeros((nb_pad, ss[0]), f32).at[:b_total, :t0].set(x[:, 0, :])
    xp = xp.reshape(num_steps, bblk * ss[0])
    x_in = jnp.zeros((num_steps, c, ws[0]), f32).at[:, 0, :].set(xp)

    # ---- conv weights flattened for im2col matmuls (bf16 on the MXU path) --
    w_in_flat = jnp.zeros((c, KSIZE * c), f32)
    w_in_flat = w_in_flat.at[:, jnp.arange(KSIZE) * c].set(w_in[:, 0, :])
    w_in_flat = w_in_flat.astype(jnp.bfloat16)
    b_in = params["b_in"].reshape(c, 1).astype(f32)
    w_blk = jnp.transpose(params["w_blk"], (0, 1, 3, 2)).reshape(
        num_blocks, c, KSIZE * c).astype(jnp.bfloat16)
    b_blk = params["b_blk"].reshape(num_blocks, c, 1).astype(f32)

    # ---- per-block data-lane masks, padded to W0 and stacked (one argument) -
    lane = jnp.arange(ws[0])
    masks = jnp.stack(
        [((lane < ws[i]) & ((lane % ss[i]) < ts[i])).astype(f32)
         for i in range(num_blocks)])[:, None, :]            # (nb, 1, W0)

    # ---- stride-2 pick + slot re-layout matrices (exact, f32) ---------------
    sels = []
    bidx = jnp.arange(bblk)
    for i in range(num_blocks):
        l = ws[i] - (POOL - 1)
        jidx = jnp.arange(ts[i + 1])
        src = (bidx[:, None] * ss[i] + STRIDE * jidx[None, :]).reshape(-1)
        dst = (bidx[:, None] * ss[i + 1] + jidx[None, :]).reshape(-1)
        sels.append(jnp.zeros((l, ws[i + 1]), f32).at[src, dst].set(1.0))

    # ---- head constants: column-gather matrix + W1 repacked per time step ---
    g = jnp.zeros((t_final, ws[-1], OUT_LANES), f32)
    for t in range(t_final):
        g = g.at[t, bidx * ss[-1] + t, bidx].set(1.0)
    w1p = jnp.transpose(params["w1"].reshape(c, c, t_final), (2, 0, 1)).astype(f32)
    b1 = params["b1"].reshape(c, 1).astype(f32)
    w2 = params["w2"].astype(f32)
    b2 = params["b2"].reshape(-1, 1).astype(f32)
    w3 = params["w3"].astype(f32)
    b3 = params["b3"].reshape(ncls, 1).astype(f32)

    inputs = (x_in, w_in_flat, b_in, w_blk, b_blk, masks, *sels,
              g, w1p, b1, w2, b2, w3, b3)
    in_specs = [pl.BlockSpec((1, c, ws[0]), lambda s: (s, 0, 0))]
    in_specs += [_const_spec(a) for a in inputs[1:]]

    out = pl.pallas_call(
        _make_kernel(num_blocks, c, ws, t_final),
        out_shape=jax.ShapeDtypeStruct((num_steps, ncls, OUT_LANES), f32),
        grid=(num_steps,),
        in_specs=in_specs,
        out_specs=pl.BlockSpec((1, ncls, OUT_LANES), lambda s: (s, 0, 0)),
        scratch_shapes=[pltpu.VMEM((KSIZE * c, ws[0]), jnp.bfloat16)],
        compiler_params=pltpu.CompilerParams(
            dimension_semantics=("parallel",)),
    )(*inputs)

    # Un-pack: samples are on lanes, classes on sublanes; trim padding lanes.
    logp = jnp.transpose(out[:, :, :bblk], (0, 2, 1)).reshape(nb_pad, ncls)
    return logp[:b_total]


def init_params(key, data_t_steps, num_conv_blocks=5, num_neurons=32,
                num_classes=5):
    """Deterministic synthetic parameters in PyTorch layouts."""
    c = num_neurons
    t_final = final_time_steps(data_t_steps, num_conv_blocks)
    keys = jax.random.split(key, 10)
    s = 0.1
    f32 = jnp.float32
    return dict(
        w_in=s * jax.random.normal(keys[0], (c, 1, KSIZE), f32),
        b_in=s * jax.random.normal(keys[1], (c,), f32),
        w_blk=s * jax.random.normal(keys[2], (num_conv_blocks, c, c, KSIZE), f32),
        b_blk=s * jax.random.normal(keys[3], (num_conv_blocks, c), f32),
        w1=s * jax.random.normal(keys[4], (c, c * t_final), f32),
        b1=s * jax.random.normal(keys[5], (c,), f32),
        w2=s * jax.random.normal(keys[6], (c // 2, c), f32),
        b2=s * jax.random.normal(keys[7], (c // 2,), f32),
        w3=s * jax.random.normal(keys[8], (num_classes, c // 2), f32),
        b3=s * jax.random.normal(keys[9], (num_classes,), f32),
    )


if __name__ == "__main__":
    B = 4               # exercises Bblk=2 samples per grid step over 2 steps
    T0 = 200            # data_t_steps
    NUM_BLOCKS = 5      # module default
    NEURONS = 32        # module default
    NCLS = 5            # module default

    key = jax.random.PRNGKey(0)
    pkey, xkey = jax.random.split(key)
    params = init_params(pkey, T0, NUM_BLOCKS, NEURONS, NCLS)
    x = jax.random.normal(xkey, (B, 1, T0), jnp.float32)

    y = jax.block_until_ready(resnet_eeg_forward(x, params))

    # sanity: shape, finiteness, and log-softmax normalization
    assert y.shape == (B, NCLS)
    assert bool(jnp.all(jnp.isfinite(y)))
    prob_sums = jnp.exp(y).sum(axis=-1)
    assert bool(jnp.all(jnp.abs(prob_sums - 1.0) < 1e-3))
    print("KERNEL_OK")
</pallas_src>

<mosaic_0001>
module attributes {stable_mosaic.version = 11 : i64} {
  func.func @kernel(%arg0: i32, %arg1: memref<1x32x512xf32, #tpu.memory_space<vmem>>, %arg2: memref<32x160xbf16, #tpu.memory_space<vmem>>, %arg3: memref<32x1xf32, #tpu.memory_space<vmem>>, %arg4: memref<5x32x160xbf16, #tpu.memory_space<vmem>>, %arg5: memref<5x32x1xf32, #tpu.memory_space<vmem>>, %arg6: memref<5x1x512xf32, #tpu.memory_space<vmem>>, %arg7: memref<508x256xf32, #tpu.memory_space<vmem>>, %arg8: memref<252x128xf32, #tpu.memory_space<vmem>>, %arg9: memref<124x64xf32, #tpu.memory_space<vmem>>, %arg10: memref<60x32xf32, #tpu.memory_space<vmem>>, %arg11: memref<28x16xf32, #tpu.memory_space<vmem>>, %arg12: memref<3x16x128xf32, #tpu.memory_space<vmem>>, %arg13: memref<3x32x32xf32, #tpu.memory_space<vmem>>, %arg14: memref<32x1xf32, #tpu.memory_space<vmem>>, %arg15: memref<16x32xf32, #tpu.memory_space<vmem>>, %arg16: memref<16x1xf32, #tpu.memory_space<vmem>>, %arg17: memref<5x16xf32, #tpu.memory_space<vmem>>, %arg18: memref<5x1xf32, #tpu.memory_space<vmem>>, %arg19: memref<1x5x128xf32, #tpu.memory_space<vmem>>, %arg20: memref<160x512xbf16, #tpu.memory_space<vmem>>) attributes {dimension_semantics = [#tpu.dimension_semantics<parallel>], iteration_bounds = array<i64: 2>, scalar_prefetch = 0 : i64, scratch_operands = 1 : i64, tpu.core_type = #tpu.core_type<tc>, window_params = [{transform_indices = @transform_0, window_bounds = array<i64: 1, 32, 512>}, {pipeline_mode = #tpu.pipeline_mode<synchronous>, transform_indices = @transform_1, window_bounds = array<i64: 32, 160>}, {pipeline_mode = #tpu.pipeline_mode<synchronous>, transform_indices = @transform_2, window_bounds = array<i64: 32, 1>}, {pipeline_mode = #tpu.pipeline_mode<synchronous>, transform_indices = @transform_3, window_bounds = array<i64: 5, 32, 160>}, {pipeline_mode = #tpu.pipeline_mode<synchronous>, transform_indices = @transform_4, window_bounds = array<i64: 5, 32, 1>}, {pipeline_mode = #tpu.pipeline_mode<synchronous>, transform_indices = @transform_5, window_bounds = array<i64: 5, 1, 512>}, {pipeline_mode = #tpu.pipeline_mode<synchronous>, transform_indices = @transform_6, window_bounds = array<i64: 508, 256>}, {pipeline_mode = #tpu.pipeline_mode<synchronous>, transform_indices = @transform_7, window_bounds = array<i64: 252, 128>}, {pipeline_mode = #tpu.pipeline_mode<synchronous>, transform_indices = @transform_8, window_bounds = array<i64: 124, 64>}, {pipeline_mode = #tpu.pipeline_mode<synchronous>, transform_indices = @transform_9, window_bounds = array<i64: 60, 32>}, {pipeline_mode = #tpu.pipeline_mode<synchronous>, transform_indices = @transform_10, window_bounds = array<i64: 28, 16>}, {pipeline_mode = #tpu.pipeline_mode<synchronous>, transform_indices = @transform_11, window_bounds = array<i64: 3, 16, 128>}, {pipeline_mode = #tpu.pipeline_mode<synchronous>, transform_indices = @transform_12, window_bounds = array<i64: 3, 32, 32>}, {pipeline_mode = #tpu.pipeline_mode<synchronous>, transform_indices = @transform_13, window_bounds = array<i64: 32, 1>}, {pipeline_mode = #tpu.pipeline_mode<synchronous>, transform_indices = @transform_14, window_bounds = array<i64: 16, 32>}, {pipeline_mode = #tpu.pipeline_mode<synchronous>, transform_indices = @transform_15, window_bounds = array<i64: 16, 1>}, {pipeline_mode = #tpu.pipeline_mode<synchronous>, transform_indices = @transform_16, window_bounds = array<i64: 5, 16>}, {pipeline_mode = #tpu.pipeline_mode<synchronous>, transform_indices = @transform_17, window_bounds = array<i64: 5, 1>}, {transform_indices = @transform_18, window_bounds = array<i64: 1, 5, 128>}]} {
    %c0 = arith.constant 0 : index
    %c0_0 = arith.constant 0 : index
    %c0_1 = arith.constant 0 : index
    %0 = vector.load %arg1[%c0, %c0_0, %c0_1] : memref<1x32x512xf32, #tpu.memory_space<vmem>>, vector<1x32x512xf32>
    %1 = vector.shape_cast %0 : vector<1x32x512xf32> to vector<32x512xf32>
    %c0_2 = arith.constant 0 : index
    %c0_3 = arith.constant 0 : index
    %2 = vector.load %arg2[%c0_2, %c0_3] : memref<32x160xbf16, #tpu.memory_space<vmem>>, vector<32x160xbf16>
    %c0_4 = arith.constant 0 : index
    %c0_5 = arith.constant 0 : index
    %3 = vector.load %arg3[%c0_4, %c0_5] : memref<32x1xf32, #tpu.memory_space<vmem>>, vector<32x1xf32>
    %4 = arith.truncf %1 : vector<32x512xf32> to vector<32x512xbf16>
    %cst = arith.constant 0.000000e+00 : bf16
    %5 = vector.broadcast %cst : bf16 to vector<160x2xbf16>
    %c0_6 = arith.constant 0 : index
    %c0_7 = arith.constant 0 : index
    %6 = vector.load %arg20[%c0_6, %c0_7] : memref<160x512xbf16, #tpu.memory_space<vmem>>, vector<160x2xbf16>
    tpu.vector_store %arg20[%c0_6, %c0_7], %5 {strides = array<i32>} : memref<160x512xbf16, #tpu.memory_space<vmem>>, vector<160x2xbf16>,
    %c0_8 = arith.constant 0 : index
    %c510 = arith.constant 510 : index
    %7 = vector.load %arg20[%c0_8, %c510] : memref<160x512xbf16, #tpu.memory_space<vmem>>, vector<160x2xbf16>
    tpu.vector_store %arg20[%c0_8, %c510], %5 {strides = array<i32>} : memref<160x512xbf16, #tpu.memory_space<vmem>>, vector<160x2xbf16>,
    %8 = vector.extract_strided_slice %4 {offsets = [0, 0], sizes = [32, 510], strides = [1, 1]} : vector<32x512xbf16> to vector<32x510xbf16>
    %c0_9 = arith.constant 0 : index
    %c2 = arith.constant 2 : index
    %9 = vector.load %arg20[%c0_9, %c2] : memref<160x512xbf16, #tpu.memory_space<vmem>>, vector<32x510xbf16>
    tpu.vector_store %arg20[%c0_9, %c2], %8 {strides = array<i32>} : memref<160x512xbf16, #tpu.memory_space<vmem>>, vector<32x510xbf16>,
    %10 = vector.extract_strided_slice %4 {offsets = [0, 0], sizes = [32, 511], strides = [1, 1]} : vector<32x512xbf16> to vector<32x511xbf16>
    %c32 = arith.constant 32 : index
    %c1 = arith.constant 1 : index
    %11 = vector.load %arg20[%c32, %c1] : memref<160x512xbf16, #tpu.memory_space<vmem>>, vector<32x511xbf16>
    tpu.vector_store %arg20[%c32, %c1], %10 {strides = array<i32>} : memref<160x512xbf16, #tpu.memory_space<vmem>>, vector<32x511xbf16>,
    %c64 = arith.constant 64 : index
    %c0_10 = arith.constant 0 : index
    %12 = vector.load %arg20[%c64, %c0_10] : memref<160x512xbf16, #tpu.memory_space<vmem>>, vector<32x512xbf16>
    tpu.vector_store %arg20[%c64, %c0_10], %4 {strides = array<i32>} : memref<160x512xbf16, #tpu.memory_space<vmem>>, vector<32x512xbf16>,
    %13 = vector.extract_strided_slice %4 {offsets = [0, 1], sizes = [32, 511], strides = [1, 1]} : vector<32x512xbf16> to vector<32x511xbf16>
    %c96 = arith.constant 96 : index
    %c0_11 = arith.constant 0 : index
    %14 = vector.load %arg20[%c96, %c0_11] : memref<160x512xbf16, #tpu.memory_space<vmem>>, vector<32x511xbf16>
    tpu.vector_store %arg20[%c96, %c0_11], %13 {strides = array<i32>} : memref<160x512xbf16, #tpu.memory_space<vmem>>, vector<32x511xbf16>,
    %15 = vector.extract_strided_slice %4 {offsets = [0, 2], sizes = [32, 510], strides = [1, 1]} : vector<32x512xbf16> to vector<32x510xbf16>
    %c128 = arith.constant 128 : index
    %c0_12 = arith.constant 0 : index
    %16 = vector.load %arg20[%c128, %c0_12] : memref<160x512xbf16, #tpu.memory_space<vmem>>, vector<32x510xbf16>
    tpu.vector_store %arg20[%c128, %c0_12], %15 {strides = array<i32>} : memref<160x512xbf16, #tpu.memory_space<vmem>>, vector<32x510xbf16>,
    %c0_13 = arith.constant 0 : index
    %c0_14 = arith.constant 0 : index
    %17 = vector.load %arg20[%c0_13, %c0_14] : memref<160x512xbf16, #tpu.memory_space<vmem>>, vector<160x512xbf16>
    %cst_15 = arith.constant dense<0.000000e+00> : vector<32x512xf32>
    %18 = tpu.matmul %2, %17, %cst_15 {dimension_numbers = #tpu.dot_dimension_numbers<[1], [0], [0], [1], [0, 0, 1, 1], [], []>} : vector<32x160xbf16>, vector<160x512xbf16>, vector<32x512xf32> -> vector<32x512xf32>
    %19 = vector.broadcast %3 : vector<32x1xf32> to vector<32x512xf32>
    %20 = arith.addf %18, %19 : vector<32x512xf32>
    %c0_16 = arith.constant 0 : index
    %c0_17 = arith.constant 0 : index
    %c0_18 = arith.constant 0 : index
    %21 = vector.load %arg6[%c0_16, %c0_17, %c0_18] : memref<5x1x512xf32, #tpu.memory_space<vmem>>, vector<1x1x512xf32>
    %22 = vector.shape_cast %21 : vector<1x1x512xf32> to vector<1x512xf32>
    %cst_19 = arith.constant 5.000000e-01 : f32
    %23 = vector.broadcast %cst_19 : f32 to vector<1x512xf32>
    %24 = arith.cmpf ogt, %22, %23 : vector<1x512xf32>
    %cst_20 = arith.constant 0.000000e+00 : f32
    %25 = vector.shape_cast %24 : vector<1x512xi1> to vector<1x512xi1>
    %26 = vector.broadcast %25 : vector<1x512xi1> to vector<32x512xi1>
    %27 = vector.broadcast %cst_20 : f32 to vector<32x512xf32>
    %28 = arith.select %26, %20, %27 : vector<32x512xi1>, vector<32x512xf32>
    %c0_21 = arith.constant 0 : index
    %c0_22 = arith.constant 0 : index
    %c0_23 = arith.constant 0 : index
    %29 = vector.load %arg4[%c0_21, %c0_22, %c0_23] : memref<5x32x160xbf16, #tpu.memory_space<vmem>>, vector<1x32x160xbf16>
    %30 = vector.shape_cast %29 : vector<1x32x160xbf16> to vector<32x160xbf16>
    %c0_24 = arith.constant 0 : index
    %c0_25 = arith.constant 0 : index
    %c0_26 = arith.constant 0 : index
    %31 = vector.load %arg5[%c0_24, %c0_25, %c0_26] : memref<5x32x1xf32, #tpu.memory_space<vmem>>, vector<1x32x1xf32>
    %32 = vector.shape_cast %31 : vector<1x32x1xf32> to vector<32x1xf32>
    %c0_27 = arith.constant 0 : index
    %c0_28 = arith.constant 0 : index
    %c0_29 = arith.constant 0 : index
    %33 = vector.load %arg6[%c0_27, %c0_28, %c0_29] : memref<5x1x512xf32, #tpu.memory_space<vmem>>, vector<1x1x512xf32>
    %34 = vector.shape_cast %33 : vector<1x1x512xf32> to vector<1x512xf32>
    %cst_30 = arith.constant 5.000000e-01 : f32
    %35 = vector.broadcast %cst_30 : f32 to vector<1x512xf32>
    %36 = arith.cmpf ogt, %34, %35 : vector<1x512xf32>
    %37 = arith.truncf %28 : vector<32x512xf32> to vector<32x512xbf16>
    %cst_31 = arith.constant 0.000000e+00 : bf16
    %38 = vector.broadcast %cst_31 : bf16 to vector<160x2xbf16>
    %c0_32 = arith.constant 0 : index
    %c0_33 = arith.constant 0 : index
    %39 = vector.load %arg20[%c0_32, %c0_33] : memref<160x512xbf16, #tpu.memory_space<vmem>>, vector<160x2xbf16>
    tpu.vector_store %arg20[%c0_32, %c0_33], %38 {strides = array<i32>} : memref<160x512xbf16, #tpu.memory_space<vmem>>, vector<160x2xbf16>,
    %c0_34 = arith.constant 0 : index
    %c510_35 = arith.constant 510 : index
    %40 = vector.load %arg20[%c0_34, %c510_35] : memref<160x512xbf16, #tpu.memory_space<vmem>>, vector<160x2xbf16>
    tpu.vector_store %arg20[%c0_34, %c510_35], %38 {strides = array<i32>} : memref<160x512xbf16, #tpu.memory_space<vmem>>, vector<160x2xbf16>,
    %41 = vector.extract_strided_slice %37 {offsets = [0, 0], sizes = [32, 510], strides = [1, 1]} : vector<32x512xbf16> to vector<32x510xbf16>
    %c0_36 = arith.constant 0 : index
    %c2_37 = arith.constant 2 : index
    %42 = vector.load %arg20[%c0_36, %c2_37] : memref<160x512xbf16, #tpu.memory_space<vmem>>, vector<32x510xbf16>
    tpu.vector_store %arg20[%c0_36, %c2_37], %41 {strides = array<i32>} : memref<160x512xbf16, #tpu.memory_space<vmem>>, vector<32x510xbf16>,
    %43 = vector.extract_strided_slice %37 {offsets = [0, 0], sizes = [32, 511], strides = [1, 1]} : vector<32x512xbf16> to vector<32x511xbf16>
    %c32_38 = arith.constant 32 : index
    %c1_39 = arith.constant 1 : index
    %44 = vector.load %arg20[%c32_38, %c1_39] : memref<160x512xbf16, #tpu.memory_space<vmem>>, vector<32x511xbf16>
    tpu.vector_store %arg20[%c32_38, %c1_39], %43 {strides = array<i32>} : memref<160x512xbf16, #tpu.memory_space<vmem>>, vector<32x511xbf16>,
    %c64_40 = arith.constant 64 : index
    %c0_41 = arith.constant 0 : index
    %45 = vector.load %arg20[%c64_40, %c0_41] : memref<160x512xbf16, #tpu.memory_space<vmem>>, vector<32x512xbf16>
    tpu.vector_store %arg20[%c64_40, %c0_41], %37 {strides = array<i32>} : memref<160x512xbf16, #tpu.memory_space<vmem>>, vector<32x512xbf16>,
    %46 = vector.extract_strided_slice %37 {offsets = [0, 1], sizes = [32, 511], strides = [1, 1]} : vector<32x512xbf16> to vector<32x511xbf16>
    %c96_42 = arith.constant 96 : index
    %c0_43 = arith.constant 0 : index
    %47 = vector.load %arg20[%c96_42, %c0_43] : memref<160x512xbf16, #tpu.memory_space<vmem>>, vector<32x511xbf16>
    tpu.vector_store %arg20[%c96_42, %c0_43], %46 {strides = array<i32>} : memref<160x512xbf16, #tpu.memory_space<vmem>>, vector<32x511xbf16>,
    %48 = vector.extract_strided_slice %37 {offsets = [0, 2], sizes = [32, 510], strides = [1, 1]} : vector<32x512xbf16> to vector<32x510xbf16>
    %c128_44 = arith.constant 128 : index
    %c0_45 = arith.constant 0 : index
    %49 = vector.load %arg20[%c128_44, %c0_45] : memref<160x512xbf16, #tpu.memory_space<vmem>>, vector<32x510xbf16>
    tpu.vector_store %arg20[%c128_44, %c0_45], %48 {strides = array<i32>} : memref<160x512xbf16, #tpu.memory_space<vmem>>, vector<32x510xbf16>,
    %c0_46 = arith.constant 0 : index
    %c0_47 = arith.constant 0 : index
    %50 = vector.load %arg20[%c0_46, %c0_47] : memref<160x512xbf16, #tpu.memory_space<vmem>>, vector<160x512xbf16>
    %cst_48 = arith.constant dense<0.000000e+00> : vector<32x512xf32>
    %51 = tpu.matmul %30, %50, %cst_48 {dimension_numbers = #tpu.dot_dimension_numbers<[1], [0], [0], [1], [0, 0, 1, 1], [], []>} : vector<32x160xbf16>, vector<160x512xbf16>, vector<32x512xf32> -> vector<32x512xf32>
    %52 = vector.broadcast %32 : vector<32x1xf32> to vector<32x512xf32>
    %53 = arith.addf %51, %52 : vector<32x512xf32>
    %cst_49 = arith.constant 0.000000e+00 : f32
    %54 = vector.broadcast %cst_49 : f32 to vector<32x512xf32>
    %55 = arith.maximumf %53, %54 : vector<32x512xf32>
    %cst_50 = arith.constant 0.000000e+00 : f32
    %56 = vector.shape_cast %36 : vector<1x512xi1> to vector<1x512xi1>
    %57 = vector.broadcast %56 : vector<1x512xi1> to vector<32x512xi1>
    %58 = vector.broadcast %cst_50 : f32 to vector<32x512xf32>
    %59 = arith.select %57, %55, %58 : vector<32x512xi1>, vector<32x512xf32>
    %60 = arith.truncf %59 : vector<32x512xf32> to vector<32x512xbf16>
    %cst_51 = arith.constant 0.000000e+00 : bf16
    %61 = vector.broadcast %cst_51 : bf16 to vector<160x2xbf16>
    %c0_52 = arith.constant 0 : index
    %c0_53 = arith.constant 0 : index
    %62 = vector.load %arg20[%c0_52, %c0_53] : memref<160x512xbf16, #tpu.memory_space<vmem>>, vector<160x2xbf16>
    tpu.vector_store %arg20[%c0_52, %c0_53], %61 {strides = array<i32>} : memref<160x512xbf16, #tpu.memory_space<vmem>>, vector<160x2xbf16>,
    %c0_54 = arith.constant 0 : index
    %c510_55 = arith.constant 510 : index
    %63 = vector.load %arg20[%c0_54, %c510_55] : memref<160x512xbf16, #tpu.memory_space<vmem>>, vector<160x2xbf16>
    tpu.vector_store %arg20[%c0_54, %c510_55], %61 {strides = array<i32>} : memref<160x512xbf16, #tpu.memory_space<vmem>>, vector<160x2xbf16>,
    %64 = vector.extract_strided_slice %60 {offsets = [0, 0], sizes = [32, 510], strides = [1, 1]} : vector<32x512xbf16> to vector<32x510xbf16>
    %c0_56 = arith.constant 0 : index
    %c2_57 = arith.constant 2 : index
    %65 = vector.load %arg20[%c0_56, %c2_57] : memref<160x512xbf16, #tpu.memory_space<vmem>>, vector<32x510xbf16>
    tpu.vector_store %arg20[%c0_56, %c2_57], %64 {strides = array<i32>} : memref<160x512xbf16, #tpu.memory_space<vmem>>, vector<32x510xbf16>,
    %66 = vector.extract_strided_slice %60 {offsets = [0, 0], sizes = [32, 511], strides = [1, 1]} : vector<32x512xbf16> to vector<32x511xbf16>
    %c32_58 = arith.constant 32 : index
    %c1_59 = arith.constant 1 : index
    %67 = vector.load %arg20[%c32_58, %c1_59] : memref<160x512xbf16, #tpu.memory_space<vmem>>, vector<32x511xbf16>
    tpu.vector_store %arg20[%c32_58, %c1_59], %66 {strides = array<i32>} : memref<160x512xbf16, #tpu.memory_space<vmem>>, vector<32x511xbf16>,
    %c64_60 = arith.constant 64 : index
    %c0_61 = arith.constant 0 : index
    %68 = vector.load %arg20[%c64_60, %c0_61] : memref<160x512xbf16, #tpu.memory_space<vmem>>, vector<32x512xbf16>
    tpu.vector_store %arg20[%c64_60, %c0_61], %60 {strides = array<i32>} : memref<160x512xbf16, #tpu.memory_space<vmem>>, vector<32x512xbf16>,
    %69 = vector.extract_strided_slice %60 {offsets = [0, 1], sizes = [32, 511], strides = [1, 1]} : vector<32x512xbf16> to vector<32x511xbf16>
    %c96_62 = arith.constant 96 : index
    %c0_63 = arith.constant 0 : index
    %70 = vector.load %arg20[%c96_62, %c0_63] : memref<160x512xbf16, #tpu.memory_space<vmem>>, vector<32x511xbf16>
    tpu.vector_store %arg20[%c96_62, %c0_63], %69 {strides = array<i32>} : memref<160x512xbf16, #tpu.memory_space<vmem>>, vector<32x511xbf16>,
    %71 = vector.extract_strided_slice %60 {offsets = [0, 2], sizes = [32, 510], strides = [1, 1]} : vector<32x512xbf16> to vector<32x510xbf16>
    %c128_64 = arith.constant 128 : index
    %c0_65 = arith.constant 0 : index
    %72 = vector.load %arg20[%c128_64, %c0_65] : memref<160x512xbf16, #tpu.memory_space<vmem>>, vector<32x510xbf16>
    tpu.vector_store %arg20[%c128_64, %c0_65], %71 {strides = array<i32>} : memref<160x512xbf16, #tpu.memory_space<vmem>>, vector<32x510xbf16>,
    %c0_66 = arith.constant 0 : index
    %c0_67 = arith.constant 0 : index
    %73 = vector.load %arg20[%c0_66, %c0_67] : memref<160x512xbf16, #tpu.memory_space<vmem>>, vector<160x512xbf16>
    %cst_68 = arith.constant dense<0.000000e+00> : vector<32x512xf32>
    %74 = tpu.matmul %30, %73, %cst_68 {dimension_numbers = #tpu.dot_dimension_numbers<[1], [0], [0], [1], [0, 0, 1, 1], [], []>} : vector<32x160xbf16>, vector<160x512xbf16>, vector<32x512xf32> -> vector<32x512xf32>
    %75 = vector.broadcast %32 : vector<32x1xf32> to vector<32x512xf32>
    %76 = arith.addf %74, %75 : vector<32x512xf32>
    %77 = arith.addf %76, %28 : vector<32x512xf32>
    %cst_69 = arith.constant 0.000000e+00 : f32
    %78 = vector.broadcast %cst_69 : f32 to vector<32x512xf32>
    %79 = arith.maximumf %77, %78 : vector<32x512xf32>
    %80 = vector.extract_strided_slice %79 {offsets = [0, 0], sizes = [32, 508], strides = [1, 1]} : vector<32x512xf32> to vector<32x508xf32>
    %81 = vector.extract_strided_slice %79 {offsets = [0, 1], sizes = [32, 508], strides = [1, 1]} : vector<32x512xf32> to vector<32x508xf32>
    %82 = arith.maximumf %80, %81 : vector<32x508xf32>
    %83 = vector.extract_strided_slice %79 {offsets = [0, 2], sizes = [32, 508], strides = [1, 1]} : vector<32x512xf32> to vector<32x508xf32>
    %84 = arith.maximumf %82, %83 : vector<32x508xf32>
    %85 = vector.extract_strided_slice %79 {offsets = [0, 3], sizes = [32, 508], strides = [1, 1]} : vector<32x512xf32> to vector<32x508xf32>
    %86 = arith.maximumf %84, %85 : vector<32x508xf32>
    %87 = vector.extract_strided_slice %79 {offsets = [0, 4], sizes = [32, 508], strides = [1, 1]} : vector<32x512xf32> to vector<32x508xf32>
    %88 = arith.maximumf %86, %87 : vector<32x508xf32>
    %c0_70 = arith.constant 0 : index
    %c0_71 = arith.constant 0 : index
    %89 = vector.load %arg7[%c0_70, %c0_71] : memref<508x256xf32, #tpu.memory_space<vmem>>, vector<508x256xf32>
    %cst_72 = arith.constant dense<0.000000e+00> : vector<32x256xf32>
    %90 = tpu.matmul %88, %89, %cst_72 {dimension_numbers = #tpu.dot_dimension_numbers<[1], [0], [0], [1], [0, 0, 1, 1], [], []>} : vector<32x508xf32>, vector<508x256xf32>, vector<32x256xf32> -> vector<32x256xf32>
    %c1_73 = arith.constant 1 : index
    %c0_74 = arith.constant 0 : index
    %c0_75 = arith.constant 0 : index
    %91 = vector.load %arg4[%c1_73, %c0_74, %c0_75] : memref<5x32x160xbf16, #tpu.memory_space<vmem>>, vector<1x32x160xbf16>
    %92 = vector.shape_cast %91 : vector<1x32x160xbf16> to vector<32x160xbf16>
    %c1_76 = arith.constant 1 : index
    %c0_77 = arith.constant 0 : index
    %c0_78 = arith.constant 0 : index
    %93 = vector.load %arg5[%c1_76, %c0_77, %c0_78] : memref<5x32x1xf32, #tpu.memory_space<vmem>>, vector<1x32x1xf32>
    %94 = vector.shape_cast %93 : vector<1x32x1xf32> to vector<32x1xf32>
    %c1_79 = arith.constant 1 : index
    %c0_80 = arith.constant 0 : index
    %c0_81 = arith.constant 0 : index
    %95 = vector.load %arg6[%c1_79, %c0_80, %c0_81] : memref<5x1x512xf32, #tpu.memory_space<vmem>>, vector<1x1x256xf32>
    %96 = vector.shape_cast %95 : vector<1x1x256xf32> to vector<1x256xf32>
    %cst_82 = arith.constant 5.000000e-01 : f32
    %97 = vector.broadcast %cst_82 : f32 to vector<1x256xf32>
    %98 = arith.cmpf ogt, %96, %97 : vector<1x256xf32>
    %99 = arith.truncf %90 : vector<32x256xf32> to vector<32x256xbf16>
    %cst_83 = arith.constant 0.000000e+00 : bf16
    %100 = vector.broadcast %cst_83 : bf16 to vector<160x2xbf16>
    %c0_84 = arith.constant 0 : index
    %c0_85 = arith.constant 0 : index
    %101 = vector.load %arg20[%c0_84, %c0_85] : memref<160x512xbf16, #tpu.memory_space<vmem>>, vector<160x2xbf16>
    tpu.vector_store %arg20[%c0_84, %c0_85], %100 {strides = array<i32>} : memref<160x512xbf16, #tpu.memory_space<vmem>>, vector<160x2xbf16>,
    %c0_86 = arith.constant 0 : index
    %c254 = arith.constant 254 : index
    %102 = vector.load %arg20[%c0_86, %c254] : memref<160x512xbf16, #tpu.memory_space<vmem>>, vector<160x2xbf16>
    tpu.vector_store %arg20[%c0_86, %c254], %100 {strides = array<i32>} : memref<160x512xbf16, #tpu.memory_space<vmem>>, vector<160x2xbf16>,
    %103 = vector.extract_strided_slice %99 {offsets = [0, 0], sizes = [32, 254], strides = [1, 1]} : vector<32x256xbf16> to vector<32x254xbf16>
    %c0_87 = arith.constant 0 : index
    %c2_88 = arith.constant 2 : index
    %104 = vector.load %arg20[%c0_87, %c2_88] : memref<160x512xbf16, #tpu.memory_space<vmem>>, vector<32x254xbf16>
    tpu.vector_store %arg20[%c0_87, %c2_88], %103 {strides = array<i32>} : memref<160x512xbf16, #tpu.memory_space<vmem>>, vector<32x254xbf16>,
    %105 = vector.extract_strided_slice %99 {offsets = [0, 0], sizes = [32, 255], strides = [1, 1]} : vector<32x256xbf16> to vector<32x255xbf16>
    %c32_89 = arith.constant 32 : index
    %c1_90 = arith.constant 1 : index
    %106 = vector.load %arg20[%c32_89, %c1_90] : memref<160x512xbf16, #tpu.memory_space<vmem>>, vector<32x255xbf16>
    tpu.vector_store %arg20[%c32_89, %c1_90], %105 {strides = array<i32>} : memref<160x512xbf16, #tpu.memory_space<vmem>>, vector<32x255xbf16>,
    %c64_91 = arith.constant 64 : index
    %c0_92 = arith.constant 0 : index
    %107 = vector.load %arg20[%c64_91, %c0_92] : memref<160x512xbf16, #tpu.memory_space<vmem>>, vector<32x256xbf16>
    tpu.vector_store %arg20[%c64_91, %c0_92], %99 {strides = array<i32>} : memref<160x512xbf16, #tpu.memory_space<vmem>>, vector<32x256xbf16>,
    %108 = vector.extract_strided_slice %99 {offsets = [0, 1], sizes = [32, 255], strides = [1, 1]} : vector<32x256xbf16> to vector<32x255xbf16>
    %c96_93 = arith.constant 96 : index
    %c0_94 = arith.constant 0 : index
    %109 = vector.load %arg20[%c96_93, %c0_94] : memref<160x512xbf16, #tpu.memory_space<vmem>>, vector<32x255xbf16>
    tpu.vector_store %arg20[%c96_93, %c0_94], %108 {strides = array<i32>} : memref<160x512xbf16, #tpu.memory_space<vmem>>, vector<32x255xbf16>,
    %110 = vector.extract_strided_slice %99 {offsets = [0, 2], sizes = [32, 254], strides = [1, 1]} : vector<32x256xbf16> to vector<32x254xbf16>
    %c128_95 = arith.constant 128 : index
    %c0_96 = arith.constant 0 : index
    %111 = vector.load %arg20[%c128_95, %c0_96] : memref<160x512xbf16, #tpu.memory_space<vmem>>, vector<32x254xbf16>
    tpu.vector_store %arg20[%c128_95, %c0_96], %110 {strides = array<i32>} : memref<160x512xbf16, #tpu.memory_space<vmem>>, vector<32x254xbf16>,
    %c0_97 = arith.constant 0 : index
    %c0_98 = arith.constant 0 : index
    %112 = vector.load %arg20[%c0_97, %c0_98] : memref<160x512xbf16, #tpu.memory_space<vmem>>, vector<160x256xbf16>
    %cst_99 = arith.constant dense<0.000000e+00> : vector<32x256xf32>
    %113 = tpu.matmul %92, %112, %cst_99 {dimension_numbers = #tpu.dot_dimension_numbers<[1], [0], [0], [1], [0, 0, 1, 1], [], []>} : vector<32x160xbf16>, vector<160x256xbf16>, vector<32x256xf32> -> vector<32x256xf32>
    %114 = vector.broadcast %94 : vector<32x1xf32> to vector<32x256xf32>
    %115 = arith.addf %113, %114 : vector<32x256xf32>
    %cst_100 = arith.constant 0.000000e+00 : f32
    %116 = vector.broadcast %cst_100 : f32 to vector<32x256xf32>
    %117 = arith.maximumf %115, %116 : vector<32x256xf32>
    %cst_101 = arith.constant 0.000000e+00 : f32
    %118 = vector.shape_cast %98 : vector<1x256xi1> to vector<1x256xi1>
    %119 = vector.broadcast %118 : vector<1x256xi1> to vector<32x256xi1>
    %120 = vector.broadcast %cst_101 : f32 to vector<32x256xf32>
    %121 = arith.select %119, %117, %120 : vector<32x256xi1>, vector<32x256xf32>
    %122 = arith.truncf %121 : vector<32x256xf32> to vector<32x256xbf16>
    %cst_102 = arith.constant 0.000000e+00 : bf16
    %123 = vector.broadcast %cst_102 : bf16 to vector<160x2xbf16>
    %c0_103 = arith.constant 0 : index
    %c0_104 = arith.constant 0 : index
    %124 = vector.load %arg20[%c0_103, %c0_104] : memref<160x512xbf16, #tpu.memory_space<vmem>>, vector<160x2xbf16>
    tpu.vector_store %arg20[%c0_103, %c0_104], %123 {strides = array<i32>} : memref<160x512xbf16, #tpu.memory_space<vmem>>, vector<160x2xbf16>,
    %c0_105 = arith.constant 0 : index
    %c254_106 = arith.constant 254 : index
    %125 = vector.load %arg20[%c0_105, %c254_106] : memref<160x512xbf16, #tpu.memory_space<vmem>>, vector<160x2xbf16>
    tpu.vector_store %arg20[%c0_105, %c254_106], %123 {strides = array<i32>} : memref<160x512xbf16, #tpu.memory_space<vmem>>, vector<160x2xbf16>,
    %126 = vector.extract_strided_slice %122 {offsets = [0, 0], sizes = [32, 254], strides = [1, 1]} : vector<32x256xbf16> to vector<32x254xbf16>
    %c0_107 = arith.constant 0 : index
    %c2_108 = arith.constant 2 : index
    %127 = vector.load %arg20[%c0_107, %c2_108] : memref<160x512xbf16, #tpu.memory_space<vmem>>, vector<32x254xbf16>
    tpu.vector_store %arg20[%c0_107, %c2_108], %126 {strides = array<i32>} : memref<160x512xbf16, #tpu.memory_space<vmem>>, vector<32x254xbf16>,
    %128 = vector.extract_strided_slice %122 {offsets = [0, 0], sizes = [32, 255], strides = [1, 1]} : vector<32x256xbf16> to vector<32x255xbf16>
    %c32_109 = arith.constant 32 : index
    %c1_110 = arith.constant 1 : index
    %129 = vector.load %arg20[%c32_109, %c1_110] : memref<160x512xbf16, #tpu.memory_space<vmem>>, vector<32x255xbf16>
    tpu.vector_store %arg20[%c32_109, %c1_110], %128 {strides = array<i32>} : memref<160x512xbf16, #tpu.memory_space<vmem>>, vector<32x255xbf16>,
    %c64_111 = arith.constant 64 : index
    %c0_112 = arith.constant 0 : index
    %130 = vector.load %arg20[%c64_111, %c0_112] : memref<160x512xbf16, #tpu.memory_space<vmem>>, vector<32x256xbf16>
    tpu.vector_store %arg20[%c64_111, %c0_112], %122 {strides = array<i32>} : memref<160x512xbf16, #tpu.memory_space<vmem>>, vector<32x256xbf16>,
    %131 = vector.extract_strided_slice %122 {offsets = [0, 1], sizes = [32, 255], strides = [1, 1]} : vector<32x256xbf16> to vector<32x255xbf16>
    %c96_113 = arith.constant 96 : index
    %c0_114 = arith.constant 0 : index
    %132 = vector.load %arg20[%c96_113, %c0_114] : memref<160x512xbf16, #tpu.memory_space<vmem>>, vector<32x255xbf16>
    tpu.vector_store %arg20[%c96_113, %c0_114], %131 {strides = array<i32>} : memref<160x512xbf16, #tpu.memory_space<vmem>>, vector<32x255xbf16>,
    %133 = vector.extract_strided_slice %122 {offsets = [0, 2], sizes = [32, 254], strides = [1, 1]} : vector<32x256xbf16> to vector<32x254xbf16>
    %c128_115 = arith.constant 128 : index
    %c0_116 = arith.constant 0 : index
    %134 = vector.load %arg20[%c128_115, %c0_116] : memref<160x512xbf16, #tpu.memory_space<vmem>>, vector<32x254xbf16>
    tpu.vector_store %arg20[%c128_115, %c0_116], %133 {strides = array<i32>} : memref<160x512xbf16, #tpu.memory_space<vmem>>, vector<32x254xbf16>,
    %c0_117 = arith.constant 0 : index
    %c0_118 = arith.constant 0 : index
    %135 = vector.load %arg20[%c0_117, %c0_118] : memref<160x512xbf16, #tpu.memory_space<vmem>>, vector<160x256xbf16>
    %cst_119 = arith.constant dense<0.000000e+00> : vector<32x256xf32>
    %136 = tpu.matmul %92, %135, %cst_119 {dimension_numbers = #tpu.dot_dimension_numbers<[1], [0], [0], [1], [0, 0, 1, 1], [], []>} : vector<32x160xbf16>, vector<160x256xbf16>, vector<32x256xf32> -> vector<32x256xf32>
    %137 = vector.broadcast %94 : vector<32x1xf32> to vector<32x256xf32>
    %138 = arith.addf %136, %137 : vector<32x256xf32>
    %139 = arith.addf %138, %90 : vector<32x256xf32>
    %cst_120 = arith.constant 0.000000e+00 : f32
    %140 = vector.broadcast %cst_120 : f32 to vector<32x256xf32>
    %141 = arith.maximumf %139, %140 : vector<32x256xf32>
    %142 = vector.extract_strided_slice %141 {offsets = [0, 0], sizes = [32, 252], strides = [1, 1]} : vector<32x256xf32> to vector<32x252xf32>
    %143 = vector.extract_strided_slice %141 {offsets = [0, 1], sizes = [32, 252], strides = [1, 1]} : vector<32x256xf32> to vector<32x252xf32>
    %144 = arith.maximumf %142, %143 : vector<32x252xf32>
    %145 = vector.extract_strided_slice %141 {offsets = [0, 2], sizes = [32, 252], strides = [1, 1]} : vector<32x256xf32> to vector<32x252xf32>
    %146 = arith.maximumf %144, %145 : vector<32x252xf32>
    %147 = vector.extract_strided_slice %141 {offsets = [0, 3], sizes = [32, 252], strides = [1, 1]} : vector<32x256xf32> to vector<32x252xf32>
    %148 = arith.maximumf %146, %147 : vector<32x252xf32>
    %149 = vector.extract_strided_slice %141 {offsets = [0, 4], sizes = [32, 252], strides = [1, 1]} : vector<32x256xf32> to vector<32x252xf32>
    %150 = arith.maximumf %148, %149 : vector<32x252xf32>
    %c0_121 = arith.constant 0 : index
    %c0_122 = arith.constant 0 : index
    %151 = vector.load %arg8[%c0_121, %c0_122] : memref<252x128xf32, #tpu.memory_space<vmem>>, vector<252x128xf32>
    %cst_123 = arith.constant dense<0.000000e+00> : vector<32x128xf32>
    %152 = tpu.matmul %150, %151, %cst_123 {dimension_numbers = #tpu.dot_dimension_numbers<[1], [0], [0], [1], [0, 0, 1, 1], [], []>} : vector<32x252xf32>, vector<252x128xf32>, vector<32x128xf32> -> vector<32x128xf32>
    %c2_124 = arith.constant 2 : index
    %c0_125 = arith.constant 0 : index
    %c0_126 = arith.constant 0 : index
    %153 = vector.load %arg4[%c2_124, %c0_125, %c0_126] : memref<5x32x160xbf16, #tpu.memory_space<vmem>>, vector<1x32x160xbf16>
    %154 = vector.shape_cast %153 : vector<1x32x160xbf16> to vector<32x160xbf16>
    %c2_127 = arith.constant 2 : index
    %c0_128 = arith.constant 0 : index
    %c0_129 = arith.constant 0 : index
    %155 = vector.load %arg5[%c2_127, %c0_128, %c0_129] : memref<5x32x1xf32, #tpu.memory_space<vmem>>, vector<1x32x1xf32>
    %156 = vector.shape_cast %155 : vector<1x32x1xf32> to vector<32x1xf32>
    %c2_130 = arith.constant 2 : index
    %c0_131 = arith.constant 0 : index
    %c0_132 = arith.constant 0 : index
    %157 = vector.load %arg6[%c2_130, %c0_131, %c0_132] : memref<5x1x512xf32, #tpu.memory_space<vmem>>, vector<1x1x128xf32>
    %158 = vector.shape_cast %157 : vector<1x1x128xf32> to vector<1x128xf32>
    %cst_133 = arith.constant 5.000000e-01 : f32
    %159 = vector.broadcast %cst_133 : f32 to vector<1x128xf32>
    %160 = arith.cmpf ogt, %158, %159 : vector<1x128xf32>
    %161 = arith.truncf %152 : vector<32x128xf32> to vector<32x128xbf16>
    %cst_134 = arith.constant 0.000000e+00 : bf16
    %162 = vector.broadcast %cst_134 : bf16 to vector<160x2xbf16>
    %c0_135 = arith.constant 0 : index
    %c0_136 = arith.constant 0 : index
    %163 = vector.load %arg20[%c0_135, %c0_136] : memref<160x512xbf16, #tpu.memory_space<vmem>>, vector<160x2xbf16>
    tpu.vector_store %arg20[%c0_135, %c0_136], %162 {strides = array<i32>} : memref<160x512xbf16, #tpu.memory_space<vmem>>, vector<160x2xbf16>,
    %c0_137 = arith.constant 0 : index
    %c126 = arith.constant 126 : index
    %164 = vector.load %arg20[%c0_137, %c126] : memref<160x512xbf16, #tpu.memory_space<vmem>>, vector<160x2xbf16>
    tpu.vector_store %arg20[%c0_137, %c126], %162 {strides = array<i32>} : memref<160x512xbf16, #tpu.memory_space<vmem>>, vector<160x2xbf16>,
    %165 = vector.extract_strided_slice %161 {offsets = [0, 0], sizes = [32, 126], strides = [1, 1]} : vector<32x128xbf16> to vector<32x126xbf16>
    %c0_138 = arith.constant 0 : index
    %c2_139 = arith.constant 2 : index
    %166 = vector.load %arg20[%c0_138, %c2_139] : memref<160x512xbf16, #tpu.memory_space<vmem>>, vector<32x126xbf16>
    tpu.vector_store %arg20[%c0_138, %c2_139], %165 {strides = array<i32>} : memref<160x512xbf16, #tpu.memory_space<vmem>>, vector<32x126xbf16>,
    %167 = vector.extract_strided_slice %161 {offsets = [0, 0], sizes = [32, 127], strides = [1, 1]} : vector<32x128xbf16> to vector<32x127xbf16>
    %c32_140 = arith.constant 32 : index
    %c1_141 = arith.constant 1 : index
    %168 = vector.load %arg20[%c32_140, %c1_141] : memref<160x512xbf16, #tpu.memory_space<vmem>>, vector<32x127xbf16>
    tpu.vector_store %arg20[%c32_140, %c1_141], %167 {strides = array<i32>} : memref<160x512xbf16, #tpu.memory_space<vmem>>, vector<32x127xbf16>,
    %c64_142 = arith.constant 64 : index
    %c0_143 = arith.constant 0 : index
    %169 = vector.load %arg20[%c64_142, %c0_143] : memref<160x512xbf16, #tpu.memory_space<vmem>>, vector<32x128xbf16>
    tpu.vector_store %arg20[%c64_142, %c0_143], %161 {strides = array<i32>} : memref<160x512xbf16, #tpu.memory_space<vmem>>, vector<32x128xbf16>,
    %170 = vector.extract_strided_slice %161 {offsets = [0, 1], sizes = [32, 127], strides = [1, 1]} : vector<32x128xbf16> to vector<32x127xbf16>
    %c96_144 = arith.constant 96 : index
    %c0_145 = arith.constant 0 : index
    %171 = vector.load %arg20[%c96_144, %c0_145] : memref<160x512xbf16, #tpu.memory_space<vmem>>, vector<32x127xbf16>
    tpu.vector_store %arg20[%c96_144, %c0_145], %170 {strides = array<i32>} : memref<160x512xbf16, #tpu.memory_space<vmem>>, vector<32x127xbf16>,
    %172 = vector.extract_strided_slice %161 {offsets = [0, 2], sizes = [32, 126], strides = [1, 1]} : vector<32x128xbf16> to vector<32x126xbf16>
    %c128_146 = arith.constant 128 : index
    %c0_147 = arith.constant 0 : index
    %173 = vector.load %arg20[%c128_146, %c0_147] : memref<160x512xbf16, #tpu.memory_space<vmem>>, vector<32x126xbf16>
    tpu.vector_store %arg20[%c128_146, %c0_147], %172 {strides = array<i32>} : memref<160x512xbf16, #tpu.memory_space<vmem>>, vector<32x126xbf16>,
    %c0_148 = arith.constant 0 : index
    %c0_149 = arith.constant 0 : index
    %174 = vector.load %arg20[%c0_148, %c0_149] : memref<160x512xbf16, #tpu.memory_space<vmem>>, vector<160x128xbf16>
    %cst_150 = arith.constant dense<0.000000e+00> : vector<32x128xf32>
    %175 = tpu.matmul %154, %174, %cst_150 {dimension_numbers = #tpu.dot_dimension_numbers<[1], [0], [0], [1], [0, 0, 1, 1], [], []>} : vector<32x160xbf16>, vector<160x128xbf16>, vector<32x128xf32> -> vector<32x128xf32>
    %176 = vector.broadcast %156 : vector<32x1xf32> to vector<32x128xf32>
    %177 = arith.addf %175, %176 : vector<32x128xf32>
    %cst_151 = arith.constant 0.000000e+00 : f32
    %178 = vector.broadcast %cst_151 : f32 to vector<32x128xf32>
    %179 = arith.maximumf %177, %178 : vector<32x128xf32>
    %cst_152 = arith.constant 0.000000e+00 : f32
    %180 = vector.shape_cast %160 : vector<1x128xi1> to vector<1x128xi1>
    %181 = vector.broadcast %180 : vector<1x128xi1> to vector<32x128xi1>
    %182 = vector.broadcast %cst_152 : f32 to vector<32x128xf32>
    %183 = arith.select %181, %179, %182 : vector<32x128xi1>, vector<32x128xf32>
    %184 = arith.truncf %183 : vector<32x128xf32> to vector<32x128xbf16>
    %cst_153 = arith.constant 0.000000e+00 : bf16
    %185 = vector.broadcast %cst_153 : bf16 to vector<160x2xbf16>
    %c0_154 = arith.constant 0 : index
    %c0_155 = arith.constant 0 : index
    %186 = vector.load %arg20[%c0_154, %c0_155] : memref<160x512xbf16, #tpu.memory_space<vmem>>, vector<160x2xbf16>
    tpu.vector_store %arg20[%c0_154, %c0_155], %185 {strides = array<i32>} : memref<160x512xbf16, #tpu.memory_space<vmem>>, vector<160x2xbf16>,
    %c0_156 = arith.constant 0 : index
    %c126_157 = arith.constant 126 : index
    %187 = vector.load %arg20[%c0_156, %c126_157] : memref<160x512xbf16, #tpu.memory_space<vmem>>, vector<160x2xbf16>
    tpu.vector_store %arg20[%c0_156, %c126_157], %185 {strides = array<i32>} : memref<160x512xbf16, #tpu.memory_space<vmem>>, vector<160x2xbf16>,
    %188 = vector.extract_strided_slice %184 {offsets = [0, 0], sizes = [32, 126], strides = [1, 1]} : vector<32x128xbf16> to vector<32x126xbf16>
    %c0_158 = arith.constant 0 : index
    %c2_159 = arith.constant 2 : index
    %189 = vector.load %arg20[%c0_158, %c2_159] : memref<160x512xbf16, #tpu.memory_space<vmem>>, vector<32x126xbf16>
    tpu.vector_store %arg20[%c0_158, %c2_159], %188 {strides = array<i32>} : memref<160x512xbf16, #tpu.memory_space<vmem>>, vector<32x126xbf16>,
    %190 = vector.extract_strided_slice %184 {offsets = [0, 0], sizes = [32, 127], strides = [1, 1]} : vector<32x128xbf16> to vector<32x127xbf16>
    %c32_160 = arith.constant 32 : index
    %c1_161 = arith.constant 1 : index
    %191 = vector.load %arg20[%c32_160, %c1_161] : memref<160x512xbf16, #tpu.memory_space<vmem>>, vector<32x127xbf16>
    tpu.vector_store %arg20[%c32_160, %c1_161], %190 {strides = array<i32>} : memref<160x512xbf16, #tpu.memory_space<vmem>>, vector<32x127xbf16>,
    %c64_162 = arith.constant 64 : index
    %c0_163 = arith.constant 0 : index
    %192 = vector.load %arg20[%c64_162, %c0_163] : memref<160x512xbf16, #tpu.memory_space<vmem>>, vector<32x128xbf16>
    tpu.vector_store %arg20[%c64_162, %c0_163], %184 {strides = array<i32>} : memref<160x512xbf16, #tpu.memory_space<vmem>>, vector<32x128xbf16>,
    %193 = vector.extract_strided_slice %184 {offsets = [0, 1], sizes = [32, 127], strides = [1, 1]} : vector<32x128xbf16> to vector<32x127xbf16>
    %c96_164 = arith.constant 96 : index
    %c0_165 = arith.constant 0 : index
    %194 = vector.load %arg20[%c96_164, %c0_165] : memref<160x512xbf16, #tpu.memory_space<vmem>>, vector<32x127xbf16>
    tpu.vector_store %arg20[%c96_164, %c0_165], %193 {strides = array<i32>} : memref<160x512xbf16, #tpu.memory_space<vmem>>, vector<32x127xbf16>,
    %195 = vector.extract_strided_slice %184 {offsets = [0, 2], sizes = [32, 126], strides = [1, 1]} : vector<32x128xbf16> to vector<32x126xbf16>
    %c128_166 = arith.constant 128 : index
    %c0_167 = arith.constant 0 : index
    %196 = vector.load %arg20[%c128_166, %c0_167] : memref<160x512xbf16, #tpu.memory_space<vmem>>, vector<32x126xbf16>
    tpu.vector_store %arg20[%c128_166, %c0_167], %195 {strides = array<i32>} : memref<160x512xbf16, #tpu.memory_space<vmem>>, vector<32x126xbf16>,
    %c0_168 = arith.constant 0 : index
    %c0_169 = arith.constant 0 : index
    %197 = vector.load %arg20[%c0_168, %c0_169] : memref<160x512xbf16, #tpu.memory_space<vmem>>, vector<160x128xbf16>
    %cst_170 = arith.constant dense<0.000000e+00> : vector<32x128xf32>
    %198 = tpu.matmul %154, %197, %cst_170 {dimension_numbers = #tpu.dot_dimension_numbers<[1], [0], [0], [1], [0, 0, 1, 1], [], []>} : vector<32x160xbf16>, vector<160x128xbf16>, vector<32x128xf32> -> vector<32x128xf32>
    %199 = vector.broadcast %156 : vector<32x1xf32> to vector<32x128xf32>
    %200 = arith.addf %198, %199 : vector<32x128xf32>
    %201 = arith.addf %200, %152 : vector<32x128xf32>
    %cst_171 = arith.constant 0.000000e+00 : f32
    %202 = vector.broadcast %cst_171 : f32 to vector<32x128xf32>
    %203 = arith.maximumf %201, %202 : vector<32x128xf32>
    %204 = vector.extract_strided_slice %203 {offsets = [0, 0], sizes = [32, 124], strides = [1, 1]} : vector<32x128xf32> to vector<32x124xf32>
    %205 = vector.extract_strided_slice %203 {offsets = [0, 1], sizes = [32, 124], strides = [1, 1]} : vector<32x128xf32> to vector<32x124xf32>
    %206 = arith.maximumf %204, %205 : vector<32x124xf32>
    %207 = vector.extract_strided_slice %203 {offsets = [0, 2], sizes = [32, 124], strides = [1, 1]} : vector<32x128xf32> to vector<32x124xf32>
    %208 = arith.maximumf %206, %207 : vector<32x124xf32>
    %209 = vector.extract_strided_slice %203 {offsets = [0, 3], sizes = [32, 124], strides = [1, 1]} : vector<32x128xf32> to vector<32x124xf32>
    %210 = arith.maximumf %208, %209 : vector<32x124xf32>
    %211 = vector.extract_strided_slice %203 {offsets = [0, 4], sizes = [32, 124], strides = [1, 1]} : vector<32x128xf32> to vector<32x124xf32>
    %212 = arith.maximumf %210, %211 : vector<32x124xf32>
    %c0_172 = arith.constant 0 : index
    %c0_173 = arith.constant 0 : index
    %213 = vector.load %arg9[%c0_172, %c0_173] : memref<124x64xf32, #tpu.memory_space<vmem>>, vector<124x64xf32>
    %cst_174 = arith.constant dense<0.000000e+00> : vector<32x64xf32>
    %214 = tpu.matmul %212, %213, %cst_174 {dimension_numbers = #tpu.dot_dimension_numbers<[1], [0], [0], [1], [0, 0, 1, 1], [], []>} : vector<32x124xf32>, vector<124x64xf32>, vector<32x64xf32> -> vector<32x64xf32>
    %c3 = arith.constant 3 : index
    %c0_175 = arith.constant 0 : index
    %c0_176 = arith.constant 0 : index
    %215 = vector.load %arg4[%c3, %c0_175, %c0_176] : memref<5x32x160xbf16, #tpu.memory_space<vmem>>, vector<1x32x160xbf16>
    %216 = vector.shape_cast %215 : vector<1x32x160xbf16> to vector<32x160xbf16>
    %c3_177 = arith.constant 3 : index
    %c0_178 = arith.constant 0 : index
    %c0_179 = arith.constant 0 : index
    %217 = vector.load %arg5[%c3_177, %c0_178, %c0_179] : memref<5x32x1xf32, #tpu.memory_space<vmem>>, vector<1x32x1xf32>
    %218 = vector.shape_cast %217 : vector<1x32x1xf32> to vector<32x1xf32>
    %c3_180 = arith.constant 3 : index
    %c0_181 = arith.constant 0 : index
    %c0_182 = arith.constant 0 : index
    %219 = vector.load %arg6[%c3_180, %c0_181, %c0_182] : memref<5x1x512xf32, #tpu.memory_space<vmem>>, vector<1x1x64xf32>
    %220 = vector.shape_cast %219 : vector<1x1x64xf32> to vector<1x64xf32>
    %cst_183 = arith.constant 5.000000e-01 : f32
    %221 = vector.broadcast %cst_183 : f32 to vector<1x64xf32>
    %222 = arith.cmpf ogt, %220, %221 : vector<1x64xf32>
    %223 = arith.truncf %214 : vector<32x64xf32> to vector<32x64xbf16>
    %cst_184 = arith.constant 0.000000e+00 : bf16
    %224 = vector.broadcast %cst_184 : bf16 to vector<160x2xbf16>
    %c0_185 = arith.constant 0 : index
    %c0_186 = arith.constant 0 : index
    %225 = vector.load %arg20[%c0_185, %c0_186] : memref<160x512xbf16, #tpu.memory_space<vmem>>, vector<160x2xbf16>
    tpu.vector_store %arg20[%c0_185, %c0_186], %224 {strides = array<i32>} : memref<160x512xbf16, #tpu.memory_space<vmem>>, vector<160x2xbf16>,
    %c0_187 = arith.constant 0 : index
    %c62 = arith.constant 62 : index
    %226 = vector.load %arg20[%c0_187, %c62] : memref<160x512xbf16, #tpu.memory_space<vmem>>, vector<160x2xbf16>
    tpu.vector_store %arg20[%c0_187, %c62], %224 {strides = array<i32>} : memref<160x512xbf16, #tpu.memory_space<vmem>>, vector<160x2xbf16>,
    %227 = vector.extract_strided_slice %223 {offsets = [0, 0], sizes = [32, 62], strides = [1, 1]} : vector<32x64xbf16> to vector<32x62xbf16>
    %c0_188 = arith.constant 0 : index
    %c2_189 = arith.constant 2 : index
    %228 = vector.load %arg20[%c0_188, %c2_189] : memref<160x512xbf16, #tpu.memory_space<vmem>>, vector<32x62xbf16>
    tpu.vector_store %arg20[%c0_188, %c2_189], %227 {strides = array<i32>} : memref<160x512xbf16, #tpu.memory_space<vmem>>, vector<32x62xbf16>,
    %229 = vector.extract_strided_slice %223 {offsets = [0, 0], sizes = [32, 63], strides = [1, 1]} : vector<32x64xbf16> to vector<32x63xbf16>
    %c32_190 = arith.constant 32 : index
    %c1_191 = arith.constant 1 : index
    %230 = vector.load %arg20[%c32_190, %c1_191] : memref<160x512xbf16, #tpu.memory_space<vmem>>, vector<32x63xbf16>
    tpu.vector_store %arg20[%c32_190, %c1_191], %229 {strides = array<i32>} : memref<160x512xbf16, #tpu.memory_space<vmem>>, vector<32x63xbf16>,
    %c64_192 = arith.constant 64 : index
    %c0_193 = arith.constant 0 : index
    %231 = vector.load %arg20[%c64_192, %c0_193] : memref<160x512xbf16, #tpu.memory_space<vmem>>, vector<32x64xbf16>
    tpu.vector_store %arg20[%c64_192, %c0_193], %223 {strides = array<i32>} : memref<160x512xbf16, #tpu.memory_space<vmem>>, vector<32x64xbf16>,
    %232 = vector.extract_strided_slice %223 {offsets = [0, 1], sizes = [32, 63], strides = [1, 1]} : vector<32x64xbf16> to vector<32x63xbf16>
    %c96_194 = arith.constant 96 : index
    %c0_195 = arith.constant 0 : index
    %233 = vector.load %arg20[%c96_194, %c0_195] : memref<160x512xbf16, #tpu.memory_space<vmem>>, vector<32x63xbf16>
    tpu.vector_store %arg20[%c96_194, %c0_195], %232 {strides = array<i32>} : memref<160x512xbf16, #tpu.memory_space<vmem>>, vector<32x63xbf16>,
    %234 = vector.extract_strided_slice %223 {offsets = [0, 2], sizes = [32, 62], strides = [1, 1]} : vector<32x64xbf16> to vector<32x62xbf16>
    %c128_196 = arith.constant 128 : index
    %c0_197 = arith.constant 0 : index
    %235 = vector.load %arg20[%c128_196, %c0_197] : memref<160x512xbf16, #tpu.memory_space<vmem>>, vector<32x62xbf16>
    tpu.vector_store %arg20[%c128_196, %c0_197], %234 {strides = array<i32>} : memref<160x512xbf16, #tpu.memory_space<vmem>>, vector<32x62xbf16>,
    %c0_198 = arith.constant 0 : index
    %c0_199 = arith.constant 0 : index
    %236 = vector.load %arg20[%c0_198, %c0_199] : memref<160x512xbf16, #tpu.memory_space<vmem>>, vector<160x64xbf16>
    %cst_200 = arith.constant dense<0.000000e+00> : vector<32x64xf32>
    %237 = tpu.matmul %216, %236, %cst_200 {dimension_numbers = #tpu.dot_dimension_numbers<[1], [0], [0], [1], [0, 0, 1, 1], [], []>} : vector<32x160xbf16>, vector<160x64xbf16>, vector<32x64xf32> -> vector<32x64xf32>
    %238 = vector.broadcast %218 : vector<32x1xf32> to vector<32x64xf32>
    %239 = arith.addf %237, %238 : vector<32x64xf32>
    %cst_201 = arith.constant 0.000000e+00 : f32
    %240 = vector.broadcast %cst_201 : f32 to vector<32x64xf32>
    %241 = arith.maximumf %239, %240 : vector<32x64xf32>
    %cst_202 = arith.constant 0.000000e+00 : f32
    %242 = vector.shape_cast %222 : vector<1x64xi1> to vector<1x64xi1>
    %243 = vector.broadcast %242 : vector<1x64xi1> to vector<32x64xi1>
    %244 = vector.broadcast %cst_202 : f32 to vector<32x64xf32>
    %245 = arith.select %243, %241, %244 : vector<32x64xi1>, vector<32x64xf32>
    %246 = arith.truncf %245 : vector<32x64xf32> to vector<32x64xbf16>
    %cst_203 = arith.constant 0.000000e+00 : bf16
    %247 = vector.broadcast %cst_203 : bf16 to vector<160x2xbf16>
    %c0_204 = arith.constant 0 : index
    %c0_205 = arith.constant 0 : index
    %248 = vector.load %arg20[%c0_204, %c0_205] : memref<160x512xbf16, #tpu.memory_space<vmem>>, vector<160x2xbf16>
    tpu.vector_store %arg20[%c0_204, %c0_205], %247 {strides = array<i32>} : memref<160x512xbf16, #tpu.memory_space<vmem>>, vector<160x2xbf16>,
    %c0_206 = arith.constant 0 : index
    %c62_207 = arith.constant 62 : index
    %249 = vector.load %arg20[%c0_206, %c62_207] : memref<160x512xbf16, #tpu.memory_space<vmem>>, vector<160x2xbf16>
    tpu.vector_store %arg20[%c0_206, %c62_207], %247 {strides = array<i32>} : memref<160x512xbf16, #tpu.memory_space<vmem>>, vector<160x2xbf16>,
    %250 = vector.extract_strided_slice %246 {offsets = [0, 0], sizes = [32, 62], strides = [1, 1]} : vector<32x64xbf16> to vector<32x62xbf16>
    %c0_208 = arith.constant 0 : index
    %c2_209 = arith.constant 2 : index
    %251 = vector.load %arg20[%c0_208, %c2_209] : memref<160x512xbf16, #tpu.memory_space<vmem>>, vector<32x62xbf16>
    tpu.vector_store %arg20[%c0_208, %c2_209], %250 {strides = array<i32>} : memref<160x512xbf16, #tpu.memory_space<vmem>>, vector<32x62xbf16>,
    %252 = vector.extract_strided_slice %246 {offsets = [0, 0], sizes = [32, 63], strides = [1, 1]} : vector<32x64xbf16> to vector<32x63xbf16>
    %c32_210 = arith.constant 32 : index
    %c1_211 = arith.constant 1 : index
    %253 = vector.load %arg20[%c32_210, %c1_211] : memref<160x512xbf16, #tpu.memory_space<vmem>>, vector<32x63xbf16>
    tpu.vector_store %arg20[%c32_210, %c1_211], %252 {strides = array<i32>} : memref<160x512xbf16, #tpu.memory_space<vmem>>, vector<32x63xbf16>,
    %c64_212 = arith.constant 64 : index
    %c0_213 = arith.constant 0 : index
    %254 = vector.load %arg20[%c64_212, %c0_213] : memref<160x512xbf16, #tpu.memory_space<vmem>>, vector<32x64xbf16>
    tpu.vector_store %arg20[%c64_212, %c0_213], %246 {strides = array<i32>} : memref<160x512xbf16, #tpu.memory_space<vmem>>, vector<32x64xbf16>,
    %255 = vector.extract_strided_slice %246 {offsets = [0, 1], sizes = [32, 63], strides = [1, 1]} : vector<32x64xbf16> to vector<32x63xbf16>
    %c96_214 = arith.constant 96 : index
    %c0_215 = arith.constant 0 : index
    %256 = vector.load %arg20[%c96_214, %c0_215] : memref<160x512xbf16, #tpu.memory_space<vmem>>, vector<32x63xbf16>
    tpu.vector_store %arg20[%c96_214, %c0_215], %255 {strides = array<i32>} : memref<160x512xbf16, #tpu.memory_space<vmem>>, vector<32x63xbf16>,
    %257 = vector.extract_strided_slice %246 {offsets = [0, 2], sizes = [32, 62], strides = [1, 1]} : vector<32x64xbf16> to vector<32x62xbf16>
    %c128_216 = arith.constant 128 : index
    %c0_217 = arith.constant 0 : index
    %258 = vector.load %arg20[%c128_216, %c0_217] : memref<160x512xbf16, #tpu.memory_space<vmem>>, vector<32x62xbf16>
    tpu.vector_store %arg20[%c128_216, %c0_217], %257 {strides = array<i32>} : memref<160x512xbf16, #tpu.memory_space<vmem>>, vector<32x62xbf16>,
    %c0_218 = arith.constant 0 : index
    %c0_219 = arith.constant 0 : index
    %259 = vector.load %arg20[%c0_218, %c0_219] : memref<160x512xbf16, #tpu.memory_space<vmem>>, vector<160x64xbf16>
    %cst_220 = arith.constant dense<0.000000e+00> : vector<32x64xf32>
    %260 = tpu.matmul %216, %259, %cst_220 {dimension_numbers = #tpu.dot_dimension_numbers<[1], [0], [0], [1], [0, 0, 1, 1], [], []>} : vector<32x160xbf16>, vector<160x64xbf16>, vector<32x64xf32> -> vector<32x64xf32>
    %261 = vector.broadcast %218 : vector<32x1xf32> to vector<32x64xf32>
    %262 = arith.addf %260, %261 : vector<32x64xf32>
    %263 = arith.addf %262, %214 : vector<32x64xf32>
    %cst_221 = arith.constant 0.000000e+00 : f32
    %264 = vector.broadcast %cst_221 : f32 to vector<32x64xf32>
    %265 = arith.maximumf %263, %264 : vector<32x64xf32>
    %266 = vector.extract_strided_slice %265 {offsets = [0, 0], sizes = [32, 60], strides = [1, 1]} : vector<32x64xf32> to vector<32x60xf32>
    %267 = vector.extract_strided_slice %265 {offsets = [0, 1], sizes = [32, 60], strides = [1, 1]} : vector<32x64xf32> to vector<32x60xf32>
    %268 = arith.maximumf %266, %267 : vector<32x60xf32>
    %269 = vector.extract_strided_slice %265 {offsets = [0, 2], sizes = [32, 60], strides = [1, 1]} : vector<32x64xf32> to vector<32x60xf32>
    %270 = arith.maximumf %268, %269 : vector<32x60xf32>
    %271 = vector.extract_strided_slice %265 {offsets = [0, 3], sizes = [32, 60], strides = [1, 1]} : vector<32x64xf32> to vector<32x60xf32>
    %272 = arith.maximumf %270, %271 : vector<32x60xf32>
    %273 = vector.extract_strided_slice %265 {offsets = [0, 4], sizes = [32, 60], strides = [1, 1]} : vector<32x64xf32> to vector<32x60xf32>
    %274 = arith.maximumf %272, %273 : vector<32x60xf32>
    %c0_222 = arith.constant 0 : index
    %c0_223 = arith.constant 0 : index
    %275 = vector.load %arg10[%c0_222, %c0_223] : memref<60x32xf32, #tpu.memory_space<vmem>>, vector<60x32xf32>
    %cst_224 = arith.constant dense<0.000000e+00> : vector<32x32xf32>
    %276 = tpu.matmul %274, %275, %cst_224 {dimension_numbers = #tpu.dot_dimension_numbers<[1], [0], [0], [1], [0, 0, 1, 1], [], []>} : vector<32x60xf32>, vector<60x32xf32>, vector<32x32xf32> -> vector<32x32xf32>
    %c4 = arith.constant 4 : index
    %c0_225 = arith.constant 0 : index
    %c0_226 = arith.constant 0 : index
    %277 = vector.load %arg4[%c4, %c0_225, %c0_226] : memref<5x32x160xbf16, #tpu.memory_space<vmem>>, vector<1x32x160xbf16>
    %278 = vector.shape_cast %277 : vector<1x32x160xbf16> to vector<32x160xbf16>
    %c4_227 = arith.constant 4 : index
    %c0_228 = arith.constant 0 : index
    %c0_229 = arith.constant 0 : index
    %279 = vector.load %arg5[%c4_227, %c0_228, %c0_229] : memref<5x32x1xf32, #tpu.memory_space<vmem>>, vector<1x32x1xf32>
    %280 = vector.shape_cast %279 : vector<1x32x1xf32> to vector<32x1xf32>
    %c4_230 = arith.constant 4 : index
    %c0_231 = arith.constant 0 : index
    %c0_232 = arith.constant 0 : index
    %281 = vector.load %arg6[%c4_230, %c0_231, %c0_232] : memref<5x1x512xf32, #tpu.memory_space<vmem>>, vector<1x1x32xf32>
    %282 = vector.shape_cast %281 : vector<1x1x32xf32> to vector<1x32xf32>
    %cst_233 = arith.constant 5.000000e-01 : f32
    %283 = vector.broadcast %cst_233 : f32 to vector<1x32xf32>
    %284 = arith.cmpf ogt, %282, %283 : vector<1x32xf32>
    %285 = arith.truncf %276 : vector<32x32xf32> to vector<32x32xbf16>
    %cst_234 = arith.constant 0.000000e+00 : bf16
    %286 = vector.broadcast %cst_234 : bf16 to vector<160x2xbf16>
    %c0_235 = arith.constant 0 : index
    %c0_236 = arith.constant 0 : index
    %287 = vector.load %arg20[%c0_235, %c0_236] : memref<160x512xbf16, #tpu.memory_space<vmem>>, vector<160x2xbf16>
    tpu.vector_store %arg20[%c0_235, %c0_236], %286 {strides = array<i32>} : memref<160x512xbf16, #tpu.memory_space<vmem>>, vector<160x2xbf16>,
    %c0_237 = arith.constant 0 : index
    %c30 = arith.constant 30 : index
    %288 = vector.load %arg20[%c0_237, %c30] : memref<160x512xbf16, #tpu.memory_space<vmem>>, vector<160x2xbf16>
    tpu.vector_store %arg20[%c0_237, %c30], %286 {strides = array<i32>} : memref<160x512xbf16, #tpu.memory_space<vmem>>, vector<160x2xbf16>,
    %289 = vector.extract_strided_slice %285 {offsets = [0, 0], sizes = [32, 30], strides = [1, 1]} : vector<32x32xbf16> to vector<32x30xbf16>
    %c0_238 = arith.constant 0 : index
    %c2_239 = arith.constant 2 : index
    %290 = vector.load %arg20[%c0_238, %c2_239] : memref<160x512xbf16, #tpu.memory_space<vmem>>, vector<32x30xbf16>
    tpu.vector_store %arg20[%c0_238, %c2_239], %289 {strides = array<i32>} : memref<160x512xbf16, #tpu.memory_space<vmem>>, vector<32x30xbf16>,
    %291 = vector.extract_strided_slice %285 {offsets = [0, 0], sizes = [32, 31], strides = [1, 1]} : vector<32x32xbf16> to vector<32x31xbf16>
    %c32_240 = arith.constant 32 : index
    %c1_241 = arith.constant 1 : index
    %292 = vector.load %arg20[%c32_240, %c1_241] : memref<160x512xbf16, #tpu.memory_space<vmem>>, vector<32x31xbf16>
    tpu.vector_store %arg20[%c32_240, %c1_241], %291 {strides = array<i32>} : memref<160x512xbf16, #tpu.memory_space<vmem>>, vector<32x31xbf16>,
    %c64_242 = arith.constant 64 : index
    %c0_243 = arith.constant 0 : index
    %293 = vector.load %arg20[%c64_242, %c0_243] : memref<160x512xbf16, #tpu.memory_space<vmem>>, vector<32x32xbf16>
    tpu.vector_store %arg20[%c64_242, %c0_243], %285 {strides = array<i32>} : memref<160x512xbf16, #tpu.memory_space<vmem>>, vector<32x32xbf16>,
    %294 = vector.extract_strided_slice %285 {offsets = [0, 1], sizes = [32, 31], strides = [1, 1]} : vector<32x32xbf16> to vector<32x31xbf16>
    %c96_244 = arith.constant 96 : index
    %c0_245 = arith.constant 0 : index
    %295 = vector.load %arg20[%c96_244, %c0_245] : memref<160x512xbf16, #tpu.memory_space<vmem>>, vector<32x31xbf16>
    tpu.vector_store %arg20[%c96_244, %c0_245], %294 {strides = array<i32>} : memref<160x512xbf16, #tpu.memory_space<vmem>>, vector<32x31xbf16>,
    %296 = vector.extract_strided_slice %285 {offsets = [0, 2], sizes = [32, 30], strides = [1, 1]} : vector<32x32xbf16> to vector<32x30xbf16>
    %c128_246 = arith.constant 128 : index
    %c0_247 = arith.constant 0 : index
    %297 = vector.load %arg20[%c128_246, %c0_247] : memref<160x512xbf16, #tpu.memory_space<vmem>>, vector<32x30xbf16>
    tpu.vector_store %arg20[%c128_246, %c0_247], %296 {strides = array<i32>} : memref<160x512xbf16, #tpu.memory_space<vmem>>, vector<32x30xbf16>,
    %c0_248 = arith.constant 0 : index
    %c0_249 = arith.constant 0 : index
    %298 = vector.load %arg20[%c0_248, %c0_249] : memref<160x512xbf16, #tpu.memory_space<vmem>>, vector<160x32xbf16>
    %cst_250 = arith.constant dense<0.000000e+00> : vector<32x32xf32>
    %299 = tpu.matmul %278, %298, %cst_250 {dimension_numbers = #tpu.dot_dimension_numbers<[1], [0], [0], [1], [0, 0, 1, 1], [], []>} : vector<32x160xbf16>, vector<160x32xbf16>, vector<32x32xf32> -> vector<32x32xf32>
    %300 = vector.broadcast %280 : vector<32x1xf32> to vector<32x32xf32>
    %301 = arith.addf %299, %300 : vector<32x32xf32>
    %cst_251 = arith.constant 0.000000e+00 : f32
    %302 = vector.broadcast %cst_251 : f32 to vector<32x32xf32>
    %303 = arith.maximumf %301, %302 : vector<32x32xf32>
    %cst_252 = arith.constant 0.000000e+00 : f32
    %304 = vector.shape_cast %284 : vector<1x32xi1> to vector<1x32xi1>
    %305 = vector.broadcast %304 : vector<1x32xi1> to vector<32x32xi1>
    %306 = vector.broadcast %cst_252 : f32 to vector<32x32xf32>
    %307 = arith.select %305, %303, %306 : vector<32x32xi1>, vector<32x32xf32>
    %308 = arith.truncf %307 : vector<32x32xf32> to vector<32x32xbf16>
    %cst_253 = arith.constant 0.000000e+00 : bf16
    %309 = vector.broadcast %cst_253 : bf16 to vector<160x2xbf16>
    %c0_254 = arith.constant 0 : index
    %c0_255 = arith.constant 0 : index
    %310 = vector.load %arg20[%c0_254, %c0_255] : memref<160x512xbf16, #tpu.memory_space<vmem>>, vector<160x2xbf16>
    tpu.vector_store %arg20[%c0_254, %c0_255], %309 {strides = array<i32>} : memref<160x512xbf16, #tpu.memory_space<vmem>>, vector<160x2xbf16>,
    %c0_256 = arith.constant 0 : index
    %c30_257 = arith.constant 30 : index
    %311 = vector.load %arg20[%c0_256, %c30_257] : memref<160x512xbf16, #tpu.memory_space<vmem>>, vector<160x2xbf16>
    tpu.vector_store %arg20[%c0_256, %c30_257], %309 {strides = array<i32>} : memref<160x512xbf16, #tpu.memory_space<vmem>>, vector<160x2xbf16>,
    %312 = vector.extract_strided_slice %308 {offsets = [0, 0], sizes = [32, 30], strides = [1, 1]} : vector<32x32xbf16> to vector<32x30xbf16>
    %c0_258 = arith.constant 0 : index
    %c2_259 = arith.constant 2 : index
    %313 = vector.load %arg20[%c0_258, %c2_259] : memref<160x512xbf16, #tpu.memory_space<vmem>>, vector<32x30xbf16>
    tpu.vector_store %arg20[%c0_258, %c2_259], %312 {strides = array<i32>} : memref<160x512xbf16, #tpu.memory_space<vmem>>, vector<32x30xbf16>,
    %314 = vector.extract_strided_slice %308 {offsets = [0, 0], sizes = [32, 31], strides = [1, 1]} : vector<32x32xbf16> to vector<32x31xbf16>
    %c32_260 = arith.constant 32 : index
    %c1_261 = arith.constant 1 : index
    %315 = vector.load %arg20[%c32_260, %c1_261] : memref<160x512xbf16, #tpu.memory_space<vmem>>, vector<32x31xbf16>
    tpu.vector_store %arg20[%c32_260, %c1_261], %314 {strides = array<i32>} : memref<160x512xbf16, #tpu.memory_space<vmem>>, vector<32x31xbf16>,
    %c64_262 = arith.constant 64 : index
    %c0_263 = arith.constant 0 : index
    %316 = vector.load %arg20[%c64_262, %c0_263] : memref<160x512xbf16, #tpu.memory_space<vmem>>, vector<32x32xbf16>
    tpu.vector_store %arg20[%c64_262, %c0_263], %308 {strides = array<i32>} : memref<160x512xbf16, #tpu.memory_space<vmem>>, vector<32x32xbf16>,
    %317 = vector.extract_strided_slice %308 {offsets = [0, 1], sizes = [32, 31], strides = [1, 1]} : vector<32x32xbf16> to vector<32x31xbf16>
    %c96_264 = arith.constant 96 : index
    %c0_265 = arith.constant 0 : index
    %318 = vector.load %arg20[%c96_264, %c0_265] : memref<160x512xbf16, #tpu.memory_space<vmem>>, vector<32x31xbf16>
    tpu.vector_store %arg20[%c96_264, %c0_265], %317 {strides = array<i32>} : memref<160x512xbf16, #tpu.memory_space<vmem>>, vector<32x31xbf16>,
    %319 = vector.extract_strided_slice %308 {offsets = [0, 2], sizes = [32, 30], strides = [1, 1]} : vector<32x32xbf16> to vector<32x30xbf16>
    %c128_266 = arith.constant 128 : index
    %c0_267 = arith.constant 0 : index
    %320 = vector.load %arg20[%c128_266, %c0_267] : memref<160x512xbf16, #tpu.memory_space<vmem>>, vector<32x30xbf16>
    tpu.vector_store %arg20[%c128_266, %c0_267], %319 {strides = array<i32>} : memref<160x512xbf16, #tpu.memory_space<vmem>>, vector<32x30xbf16>,
    %c0_268 = arith.constant 0 : index
    %c0_269 = arith.constant 0 : index
    %321 = vector.load %arg20[%c0_268, %c0_269] : memref<160x512xbf16, #tpu.memory_space<vmem>>, vector<160x32xbf16>
    %cst_270 = arith.constant dense<0.000000e+00> : vector<32x32xf32>
    %322 = tpu.matmul %278, %321, %cst_270 {dimension_numbers = #tpu.dot_dimension_numbers<[1], [0], [0], [1], [0, 0, 1, 1], [], []>} : vector<32x160xbf16>, vector<160x32xbf16>, vector<32x32xf32> -> vector<32x32xf32>
    %323 = vector.broadcast %280 : vector<32x1xf32> to vector<32x32xf32>
    %324 = arith.addf %322, %323 : vector<32x32xf32>
    %325 = arith.addf %324, %276 : vector<32x32xf32>
    %cst_271 = arith.constant 0.000000e+00 : f32
    %326 = vector.broadcast %cst_271 : f32 to vector<32x32xf32>
    %327 = arith.maximumf %325, %326 : vector<32x32xf32>
    %328 = vector.extract_strided_slice %327 {offsets = [0, 0], sizes = [32, 28], strides = [1, 1]} : vector<32x32xf32> to vector<32x28xf32>
    %329 = vector.extract_strided_slice %327 {offsets = [0, 1], sizes = [32, 28], strides = [1, 1]} : vector<32x32xf32> to vector<32x28xf32>
    %330 = arith.maximumf %328, %329 : vector<32x28xf32>
    %331 = vector.extract_strided_slice %327 {offsets = [0, 2], sizes = [32, 28], strides = [1, 1]} : vector<32x32xf32> to vector<32x28xf32>
    %332 = arith.maximumf %330, %331 : vector<32x28xf32>
    %333 = vector.extract_strided_slice %327 {offsets = [0, 3], sizes = [32, 28], strides = [1, 1]} : vector<32x32xf32> to vector<32x28xf32>
    %334 = arith.maximumf %332, %333 : vector<32x28xf32>
    %335 = vector.extract_strided_slice %327 {offsets = [0, 4], sizes = [32, 28], strides = [1, 1]} : vector<32x32xf32> to vector<32x28xf32>
    %336 = arith.maximumf %334, %335 : vector<32x28xf32>
    %c0_272 = arith.constant 0 : index
    %c0_273 = arith.constant 0 : index
    %337 = vector.load %arg11[%c0_272, %c0_273] : memref<28x16xf32, #tpu.memory_space<vmem>>, vector<28x16xf32>
    %cst_274 = arith.constant dense<0.000000e+00> : vector<32x16xf32>
    %338 = tpu.matmul %336, %337, %cst_274 {dimension_numbers = #tpu.dot_dimension_numbers<[1], [0], [0], [1], [0, 0, 1, 1], [], []>} : vector<32x28xf32>, vector<28x16xf32>, vector<32x16xf32> -> vector<32x16xf32>
    %cst_275 = arith.constant 0.000000e+00 : f32
    %339 = vector.broadcast %cst_275 : f32 to vector<32x128xf32>
    %c0_276 = arith.constant 0 : index
    %c0_277 = arith.constant 0 : index
    %c0_278 = arith.constant 0 : index
    %340 = vector.load %arg12[%c0_276, %c0_277, %c0_278] : memref<3x16x128xf32, #tpu.memory_space<vmem>>, vector<1x16x128xf32>
    %341 = vector.shape_cast %340 : vector<1x16x128xf32> to vector<16x128xf32>
    %cst_279 = arith.constant dense<0.000000e+00> : vector<32x128xf32>
    %342 = tpu.matmul %338, %341, %cst_279 {dimension_numbers = #tpu.dot_dimension_numbers<[1], [0], [0], [1], [0, 0, 1, 1], [], []>} : vector<32x16xf32>, vector<16x128xf32>, vector<32x128xf32> -> vector<32x128xf32>
    %c0_280 = arith.constant 0 : index
    %c0_281 = arith.constant 0 : index
    %c0_282 = arith.constant 0 : index
    %343 = vector.load %arg13[%c0_280, %c0_281, %c0_282] : memref<3x32x32xf32, #tpu.memory_space<vmem>>, vector<1x32x32xf32>
    %344 = vector.shape_cast %343 : vector<1x32x32xf32> to vector<32x32xf32>
    %cst_283 = arith.constant dense<0.000000e+00> : vector<32x128xf32>
    %345 = tpu.matmul %344, %342, %cst_283 {dimension_numbers = #tpu.dot_dimension_numbers<[1], [0], [0], [1], [0, 0, 1, 1], [], []>} : vector<32x32xf32>, vector<32x128xf32>, vector<32x128xf32> -> vector<32x128xf32>
    %346 = arith.addf %339, %345 : vector<32x128xf32>
    %c1_284 = arith.constant 1 : index
    %c0_285 = arith.constant 0 : index
    %c0_286 = arith.constant 0 : index
    %347 = vector.load %arg12[%c1_284, %c0_285, %c0_286] : memref<3x16x128xf32, #tpu.memory_space<vmem>>, vector<1x16x128xf32>
    %348 = vector.shape_cast %347 : vector<1x16x128xf32> to vector<16x128xf32>
    %cst_287 = arith.constant dense<0.000000e+00> : vector<32x128xf32>
    %349 = tpu.matmul %338, %348, %cst_287 {dimension_numbers = #tpu.dot_dimension_numbers<[1], [0], [0], [1], [0, 0, 1, 1], [], []>} : vector<32x16xf32>, vector<16x128xf32>, vector<32x128xf32> -> vector<32x128xf32>
    %c1_288 = arith.constant 1 : index
    %c0_289 = arith.constant 0 : index
    %c0_290 = arith.constant 0 : index
    %350 = vector.load %arg13[%c1_288, %c0_289, %c0_290] : memref<3x32x32xf32, #tpu.memory_space<vmem>>, vector<1x32x32xf32>
    %351 = vector.shape_cast %350 : vector<1x32x32xf32> to vector<32x32xf32>
    %cst_291 = arith.constant dense<0.000000e+00> : vector<32x128xf32>
    %352 = tpu.matmul %351, %349, %cst_291 {dimension_numbers = #tpu.dot_dimension_numbers<[1], [0], [0], [1], [0, 0, 1, 1], [], []>} : vector<32x32xf32>, vector<32x128xf32>, vector<32x128xf32> -> vector<32x128xf32>
    %353 = arith.addf %346, %352 : vector<32x128xf32>
    %c2_292 = arith.constant 2 : index
    %c0_293 = arith.constant 0 : index
    %c0_294 = arith.constant 0 : index
    %354 = vector.load %arg12[%c2_292, %c0_293, %c0_294] : memref<3x16x128xf32, #tpu.memory_space<vmem>>, vector<1x16x128xf32>
    %355 = vector.shape_cast %354 : vector<1x16x128xf32> to vector<16x128xf32>
    %cst_295 = arith.constant dense<0.000000e+00> : vector<32x128xf32>
    %356 = tpu.matmul %338, %355, %cst_295 {dimension_numbers = #tpu.dot_dimension_numbers<[1], [0], [0], [1], [0, 0, 1, 1], [], []>} : vector<32x16xf32>, vector<16x128xf32>, vector<32x128xf32> -> vector<32x128xf32>
    %c2_296 = arith.constant 2 : index
    %c0_297 = arith.constant 0 : index
    %c0_298 = arith.constant 0 : index
    %357 = vector.load %arg13[%c2_296, %c0_297, %c0_298] : memref<3x32x32xf32, #tpu.memory_space<vmem>>, vector<1x32x32xf32>
    %358 = vector.shape_cast %357 : vector<1x32x32xf32> to vector<32x32xf32>
    %cst_299 = arith.constant dense<0.000000e+00> : vector<32x128xf32>
    %359 = tpu.matmul %358, %356, %cst_299 {dimension_numbers = #tpu.dot_dimension_numbers<[1], [0], [0], [1], [0, 0, 1, 1], [], []>} : vector<32x32xf32>, vector<32x128xf32>, vector<32x128xf32> -> vector<32x128xf32>
    %360 = arith.addf %353, %359 : vector<32x128xf32>
    %c0_300 = arith.constant 0 : index
    %c0_301 = arith.constant 0 : index
    %361 = vector.load %arg14[%c0_300, %c0_301] : memref<32x1xf32, #tpu.memory_space<vmem>>, vector<32x1xf32>
    %362 = vector.broadcast %361 : vector<32x1xf32> to vector<32x128xf32>
    %363 = arith.addf %360, %362 : vector<32x128xf32>
    %cst_302 = arith.constant 0.000000e+00 : f32
    %364 = vector.broadcast %cst_302 : f32 to vector<32x128xf32>
    %365 = arith.maximumf %363, %364 : vector<32x128xf32>
    %c0_303 = arith.constant 0 : index
    %c0_304 = arith.constant 0 : index
    %366 = vector.load %arg15[%c0_303, %c0_304] : memref<16x32xf32, #tpu.memory_space<vmem>>, vector<16x32xf32>
    %cst_305 = arith.constant dense<0.000000e+00> : vector<16x128xf32>
    %367 = tpu.matmul %366, %365, %cst_305 {dimension_numbers = #tpu.dot_dimension_numbers<[1], [0], [0], [1], [0, 0, 1, 1], [], []>} : vector<16x32xf32>, vector<32x128xf32>, vector<16x128xf32> -> vector<16x128xf32>
    %c0_306 = arith.constant 0 : index
    %c0_307 = arith.constant 0 : index
    %368 = vector.load %arg16[%c0_306, %c0_307] : memref<16x1xf32, #tpu.memory_space<vmem>>, vector<16x1xf32>
    %369 = vector.broadcast %368 : vector<16x1xf32> to vector<16x128xf32>
    %370 = arith.addf %367, %369 : vector<16x128xf32>
    %cst_308 = arith.constant 0.000000e+00 : f32
    %371 = vector.broadcast %cst_308 : f32 to vector<16x128xf32>
    %372 = arith.maximumf %370, %371 : vector<16x128xf32>
    %c0_309 = arith.constant 0 : index
    %c0_310 = arith.constant 0 : index
    %373 = vector.load %arg17[%c0_309, %c0_310] : memref<5x16xf32, #tpu.memory_space<vmem>>, vector<5x16xf32>
    %cst_311 = arith.constant dense<0.000000e+00> : vector<5x128xf32>
    %374 = tpu.matmul %373, %372, %cst_311 {dimension_numbers = #tpu.dot_dimension_numbers<[1], [0], [0], [1], [0, 0, 1, 1], [], []>} : vector<5x16xf32>, vector<16x128xf32>, vector<5x128xf32> -> vector<5x128xf32>
    %c0_312 = arith.constant 0 : index
    %c0_313 = arith.constant 0 : index
    %375 = vector.load %arg18[%c0_312, %c0_313] : memref<5x1xf32, #tpu.memory_space<vmem>>, vector<5x1xf32>
    %376 = vector.broadcast %375 : vector<5x1xf32> to vector<5x128xf32>
    %377 = arith.addf %374, %376 : vector<5x128xf32>
    %cst_314 = arith.constant dense<0xFF800000> : vector<128xf32>
    %378 = vector.multi_reduction <maximumf>, %377, %cst_314 [0] : vector<5x128xf32> to vector<128xf32>
    %379 = vector.shape_cast %378 : vector<128xf32> to vector<1x128xf32>
    %380 = vector.broadcast %379 : vector<1x128xf32> to vector<5x128xf32>
    %381 = arith.subf %377, %380 : vector<5x128xf32>
    %382 = math.exp %381 : vector<5x128xf32>
    %cst_315 = arith.constant dense<0.000000e+00> : vector<128xf32>
    %383 = vector.multi_reduction <add>, %382, %cst_315 [0] : vector<5x128xf32> to vector<128xf32>
    %384 = vector.shape_cast %383 : vector<128xf32> to vector<1x128xf32>
    %385 = math.log %384 : vector<1x128xf32>
    %386 = vector.broadcast %385 : vector<1x128xf32> to vector<5x128xf32>
    %387 = arith.subf %381, %386 : vector<5x128xf32>
    %c0_316 = arith.constant 0 : index
    %c0_317 = arith.constant 0 : index
    %c0_318 = arith.constant 0 : index
    %388 = vector.load %arg19[%c0_316, %c0_317, %c0_318] : memref<1x5x128xf32, #tpu.memory_space<vmem>>, vector<1x5x128xf32>
    %389 = vector.shape_cast %388 : vector<1x5x128xf32> to vector<5x128xf32>
    %390 = vector.shape_cast %387 : vector<5x128xf32> to vector<1x5x128xf32>
    tpu.vector_store %arg19[%c0_316, %c0_317, %c0_318], %390 {strides = array<i32>} : memref<1x5x128xf32, #tpu.memory_space<vmem>>, vector<1x5x128xf32>,
    return
  }
  func.func @transform_0(%arg0: i32) -> (i32, i32, i32) {
    %c0_i32 = arith.constant 0 : i32
    %c0_i32_0 = arith.constant 0 : i32
    %c0_i32_1 = arith.constant 0 : i32
    return %arg0, %c0_i32, %c0_i32_0 : i32, i32, i32
  }
  func.func @transform_1(%arg0: i32) -> (i32, i32) {
    %c0_i32 = arith.constant 0 : i32
    %c0_i32_0 = arith.constant 0 : i32
    %c0_i32_1 = arith.constant 0 : i32
    return %c0_i32, %c0_i32_0 : i32, i32
  }
  func.func @transform_2(%arg0: i32) -> (i32, i32) {
    %c0_i32 = arith.constant 0 : i32
    %c0_i32_0 = arith.constant 0 : i32
    %c0_i32_1 = arith.constant 0 : i32
    return %c0_i32, %c0_i32_0 : i32, i32
  }
  func.func @transform_3(%arg0: i32) -> (i32, i32, i32) {
    %c0_i32 = arith.constant 0 : i32
    %c0_i32_0 = arith.constant 0 : i32
    %c0_i32_1 = arith.constant 0 : i32
    %c0_i32_2 = arith.constant 0 : i32
    return %c0_i32, %c0_i32_0, %c0_i32_1 : i32, i32, i32
  }
  func.func @transform_4(%arg0: i32) -> (i32, i32, i32) {
    %c0_i32 = arith.constant 0 : i32
    %c0_i32_0 = arith.constant 0 : i32
    %c0_i32_1 = arith.constant 0 : i32
    %c0_i32_2 = arith.constant 0 : i32
    return %c0_i32, %c0_i32_0, %c0_i32_1 : i32, i32, i32
  }
  func.func @transform_5(%arg0: i32) -> (i32, i32, i32) {
    %c0_i32 = arith.constant 0 : i32
    %c0_i32_0 = arith.constant 0 : i32
    %c0_i32_1 = arith.constant 0 : i32
    %c0_i32_2 = arith.constant 0 : i32
    return %c0_i32, %c0_i32_0, %c0_i32_1 : i32, i32, i32
  }
  func.func @transform_6(%arg0: i32) -> (i32, i32) {
    %c0_i32 = arith.constant 0 : i32
    %c0_i32_0 = arith.constant 0 : i32
    %c0_i32_1 = arith.constant 0 : i32
    return %c0_i32, %c0_i32_0 : i32, i32
  }
  func.func @transform_7(%arg0: i32) -> (i32, i32) {
    %c0_i32 = arith.constant 0 : i32
    %c0_i32_0 = arith.constant 0 : i32
    %c0_i32_1 = arith.constant 0 : i32
    return %c0_i32, %c0_i32_0 : i32, i32
  }
  func.func @transform_8(%arg0: i32) -> (i32, i32) {
    %c0_i32 = arith.constant 0 : i32
    %c0_i32_0 = arith.constant 0 : i32
    %c0_i32_1 = arith.constant 0 : i32
    return %c0_i32, %c0_i32_0 : i32, i32
  }
  func.func @transform_9(%arg0: i32) -> (i32, i32) {
    %c0_i32 = arith.constant 0 : i32
    %c0_i32_0 = arith.constant 0 : i32
    %c0_i32_1 = arith.constant 0 : i32
    return %c0_i32, %c0_i32_0 : i32, i32
  }
  func.func @transform_10(%arg0: i32) -> (i32, i32) {
    %c0_i32 = arith.constant 0 : i32
    %c0_i32_0 = arith.constant 0 : i32
    %c0_i32_1 = arith.constant 0 : i32
    return %c0_i32, %c0_i32_0 : i32, i32
  }
  func.func @transform_11(%arg0: i32) -> (i32, i32, i32) {
    %c0_i32 = arith.constant 0 : i32
    %c0_i32_0 = arith.constant 0 : i32
    %c0_i32_1 = arith.constant 0 : i32
    %c0_i32_2 = arith.constant 0 : i32
    return %c0_i32, %c0_i32_0, %c0_i32_1 : i32, i32, i32
  }
  func.func @transform_12(%arg0: i32) -> (i32, i32, i32) {
    %c0_i32 = arith.constant 0 : i32
    %c0_i32_0 = arith.constant 0 : i32
    %c0_i32_1 = arith.constant 0 : i32
    %c0_i32_2 = arith.constant 0 : i32
    return %c0_i32, %c0_i32_0, %c0_i32_1 : i32, i32, i32
  }
  func.func @transform_13(%arg0: i32) -> (i32, i32) {
    %c0_i32 = arith.constant 0 : i32
    %c0_i32_0 = arith.constant 0 : i32
    %c0_i32_1 = arith.constant 0 : i32
    return %c0_i32, %c0_i32_0 : i32, i32
  }
  func.func @transform_14(%arg0: i32) -> (i32, i32) {
    %c0_i32 = arith.constant 0 : i32
    %c0_i32_0 = arith.constant 0 : i32
    %c0_i32_1 = arith.constant 0 : i32
    return %c0_i32, %c0_i32_0 : i32, i32
  }
  func.func @transform_15(%arg0: i32) -> (i32, i32) {
    %c0_i32 = arith.constant 0 : i32
    %c0_i32_0 = arith.constant 0 : i32
    %c0_i32_1 = arith.constant 0 : i32
    return %c0_i32, %c0_i32_0 : i32, i32
  }
  func.func @transform_16(%arg0: i32) -> (i32, i32) {
    %c0_i32 = arith.constant 0 : i32
    %c0_i32_0 = arith.constant 0 : i32
    %c0_i32_1 = arith.constant 0 : i32
    return %c0_i32, %c0_i32_0 : i32, i32
  }
  func.func @transform_17(%arg0: i32) -> (i32, i32) {
    %c0_i32 = arith.constant 0 : i32
    %c0_i32_0 = arith.constant 0 : i32
    %c0_i32_1 = arith.constant 0 : i32
    return %c0_i32, %c0_i32_0 : i32, i32
  }
  func.func @transform_18(%arg0: i32) -> (i32, i32, i32) {
    %c0_i32 = arith.constant 0 : i32
    %c0_i32_0 = arith.constant 0 : i32
    %c0_i32_1 = arith.constant 0 : i32
    return %arg0, %c0_i32, %c0_i32_0 : i32, i32, i32
  }
}

</mosaic_0001>

<llo_original>
// kernel: tpu_custom_call.1
$region0: #{tpu_custom_call.1}
  #allocation0 [shape = 'u32[]', space=smem, size = 0x4, offset = 0x4, fixed_abs, tag = 'smem constant byte address 0x4 - core index']
  #allocation1 [shape = 'u32[72,128]{1,0:T(1,128)}', space=vmem, size = 0x9000, scoped, tag = 'internal scratch']
  #allocation2 [shape = 'bf16[160,512]{1,0:T(8,128)(2,1)}', space=vmem, size = 0x28000, scoped, tag = 'scratch operand']
  %s0 = inlined_call_operand.vmem [shape: f32[2,32,512], index: 0, kind: input, shape index: {}]
  %s1 = inlined_call_operand.vmem [shape: bf16[32,160], index: 1, kind: input, shape index: {}]
  %s2 = inlined_call_operand.vmem [shape: f32[32,1], index: 2, kind: input, shape index: {}]
  %s3 = inlined_call_operand.vmem [shape: bf16[5,32,160], index: 3, kind: input, shape index: {}]
  %s4 = inlined_call_operand.vmem [shape: f32[5,32,1], index: 4, kind: input, shape index: {}]
  %s5 = inlined_call_operand.vmem [shape: f32[5,1,512], index: 5, kind: input, shape index: {}]
  %s6 = inlined_call_operand.hbm [shape: f32[508,256], index: 6, kind: input, shape index: {}]
  %s7 = inlined_call_operand.hbm [shape: f32[252,128], index: 7, kind: input, shape index: {}]
  %s8 = inlined_call_operand.vmem [shape: f32[124,64], index: 8, kind: input, shape index: {}]
  %s9 = inlined_call_operand.vmem [shape: f32[60,32], index: 9, kind: input, shape index: {}]
  %s10 = inlined_call_operand.vmem [shape: f32[28,16], index: 10, kind: input, shape index: {}]
  %s11 = inlined_call_operand.hbm [shape: f32[3,16,128], index: 11, kind: input, shape index: {}]
  %s12 = inlined_call_operand.hbm [shape: f32[3,32,32], index: 12, kind: input, shape index: {}]
  %s13 = inlined_call_operand.vmem [shape: f32[32,1], index: 13, kind: input, shape index: {}]
  %s14 = inlined_call_operand.hbm [shape: f32[16,32], index: 14, kind: input, shape index: {}]
  %s15 = inlined_call_operand.vmem [shape: f32[16,1], index: 15, kind: input, shape index: {}]
  %s16 = inlined_call_operand.vmem [shape: f32[5,16], index: 16, kind: input, shape index: {}]
  %s17 = inlined_call_operand.vmem [shape: f32[5,1], index: 17, kind: input, shape index: {}]
  %s18 = inlined_call_operand.vmem [shape: f32[2,5,128], index: 18, kind: output, shape index: {}]
  %s19 = sld [smem:[#allocation0]]
  $region125: #{tpu_custom_call.1} parent=0
    _
  %s21 = ssub.s32 1, %s19
  %s22 = scalar_select 0, %s21, %s19
  $region1: #{tpu_custom_call.1} parent=0
    #allocation3 [shape = 'u8[524288]{0}', space=vmem, size = 0x80000, scoped, tag = 'input window, operand 6, single buffered']
    #allocation4 [shape = 's32[2]{0}', space=sflag, size = 0x8, scoped, tag = 'scoped memory for tpu_custom_call.1']
    #allocation5 [shape = 'u8[131072]{0}', space=vmem, size = 0x20000, scoped, tag = 'input window, operand 7, single buffered']
    #allocation6 [shape = 's32[1]{0}', space=sflag, size = 0x4, scoped, tag = 'scoped memory for tpu_custom_call.1']
    #allocation7 [shape = 'u8[24576]{0}', space=vmem, size = 0x6000, scoped, tag = 'input window, operand 11, single buffered']
    #allocation8 [shape = 'u8[49152]{0}', space=vmem, size = 0xc000, scoped, tag = 'input window, operand 12, single buffered']
    #allocation9 [shape = 's32[1]{0}', space=sflag, size = 0x4, scoped, tag = 'scoped memory for tpu_custom_call.1']
    #allocation10 [shape = 'u8[8192]{0}', space=vmem, size = 0x2000, scoped, tag = 'input window, operand 14, single buffered']
    %23 = vsyncpa [#allocation4], 0
    %24 = vsyncpa [#allocation6], 0
    %25 = vsyncpa [#allocation9], 0
    loop: start=0, step=1, limit=4
    $region2: #{tpu_custom_call.1} parent=1 // loop_pre_header
      _
    $region3: #{tpu_custom_call.1} parent=1 // loop_header
      %s27 = sphi 0, %s31
      %p28 = scmp.ge.s32.totalorder %s27, 4
      %s37 = sphi 0, %s39
      %s40 = sphi 0, %s37
      %s41 = sphi 0, %s40
      %s57 = sphi 0, %s41
      %s61 = sphi 0, %s61
      %s63 = sphi 0, %s61
      %s64 = sphi 0, %s63
      %s78 = sphi 0, %s64
      %s82 = sphi 0, %s82
      %s84 = sphi 0, %s82
      %s85 = sphi 0, %s84
      %s99 = sphi 0, %s85
      %s103 = sphi 0, %s103
      %s105 = sphi 0, %s103
      %s106 = sphi 0, %s105
      %s120 = sphi 0, %s106
      %s124 = sphi 0, %s124
      %s126 = sphi 0, %s124
      %s127 = sphi 0, %s126
      %s141 = sphi 0, %s127
      %s145 = sphi 0, %s145
      %s147 = sphi 0, %s145
      %s148 = sphi 0, %s147
      %s162 = sphi 0, %s148
      %s166 = sphi 0, %s166
      %s168 = sphi 0, %s166
      %s169 = sphi 0, %s168
      %s183 = sphi 0, %s169
      %s187 = sphi 0, %s187
      %s189 = sphi 0, %s187
      %s190 = sphi 0, %s189
      %s204 = sphi 0, %s190
      %s208 = sphi 0, %s208
      %s210 = sphi 0, %s208
      %s211 = sphi 0, %s210
      %s225 = sphi 0, %s211
      %s229 = sphi 0, %s229
      %s231 = sphi 0, %s229
      %s232 = sphi 0, %s231
      %s246 = sphi 0, %s232
      %s250 = sphi 0, %s250
      %s252 = sphi 0, %s250
      %s253 = sphi 0, %s252
      %s267 = sphi 0, %s253
      %s271 = sphi 0, %s271
      %s273 = sphi 0, %s271
      %s274 = sphi 0, %s273
      %s288 = sphi 0, %s274
      %s292 = sphi 0, %s292
      %s294 = sphi 0, %s292
      %s295 = sphi 0, %s294
      %s309 = sphi 0, %s295
      %s313 = sphi 0, %s313
      %s315 = sphi 0, %s313
      %s316 = sphi 0, %s315
      %s330 = sphi 0, %s316
      %s334 = sphi 0, %s334
      %s336 = sphi 0, %s334
      %s337 = sphi 0, %s336
      %s351 = sphi 0, %s337
      %s355 = sphi 0, %s355
      %s357 = sphi 0, %s355
      %s358 = sphi 0, %s357
      %s372 = sphi 0, %s358
      %s376 = sphi 0, %s376
      %s378 = sphi 0, %s376
      %s379 = sphi 0, %s378
      %s393 = sphi 0, %s379
      %s397 = sphi 0, %s397
      %s399 = sphi 0, %s397
      %s400 = sphi 0, %s399
      %s414 = sphi 0, %s400
      %s420 = sphi 0, %s422
      %s423 = sphi 0, %s420
      %s424 = sphi 0, %s423
      %s440 = sphi 0, %s424
    $region4: #{tpu_custom_call.1} parent=1 // loop_header_branch
      %30 = sbr.rel (%p28) target = $region8
    $region5: #{tpu_custom_call.1} parent=1 // loop_body
      %s32 = ssub.s32 %s27, 1
      %s33 = ssub.s32 %s27, 2
      %s34 = sadd.s32 %s27, 1
      %s35 = ssub.s32 %s27, %s34
      %p36 = scmp.eq.s32.totalorder %s35, 0
      %s38 = sadd.s32 %s37, 1
      %s39 = scalar_select %p36, %s37, %s38
      %p42 = pneg %p36
      %p43 = scmp.eq.s32.totalorder %s27, 1
      %p44 = por %p42, %p43
      %p45 = scmp.ne.s32.totalorder %s37, %s40
      %p46 = scmp.eq.s32.totalorder %s27, 0
      %p47 = por %p45, %p46
      %p48 = scmp.ne.s32.totalorder %s37, %s40
      %p49 = scmp.eq.s32.totalorder %s32, 1
      %p50 = por %p48, %p49
      %p51 = scmp.ne.s32.totalorder %s40, %s41
      %p52 = scmp.eq.s32.totalorder %s32, 0
      %p53 = por %p51, %p52
      %p54 = scmp.ne.s32.totalorder %s40, %s41
      %p55 = scmp.eq.s32.totalorder %s33, 1
      %p56 = por %p54, %p55
      %p58 = scmp.ne.s32.totalorder %s41, %s57
      %p59 = scmp.eq.s32.totalorder %s33, 0
      %p60 = por %p58, %p59
      %s62 = sadd.s32 %s61, 1
      %p65 = scmp.eq.s32.totalorder %s27, 1
      %p66 = scmp.ne.s32.totalorder %s61, %s63
      %p67 = scmp.eq.s32.totalorder %s27, 0
      %p68 = por %p66, %p67
      %p69 = scmp.ne.s32.totalorder %s61, %s63
      %p70 = scmp.eq.s32.totalorder %s32, 1
      %p71 = por %p69, %p70
      %p72 = scmp.ne.s32.totalorder %s63, %s64
      %p73 = scmp.eq.s32.totalorder %s32, 0
      %p74 = por %p72, %p73
      %p75 = scmp.ne.s32.totalorder %s63, %s64
      %p76 = scmp.eq.s32.totalorder %s33, 1
      %p77 = por %p75, %p76
      %p79 = scmp.ne.s32.totalorder %s64, %s78
      %p80 = scmp.eq.s32.totalorder %s33, 0
      %p81 = por %p79, %p80
      %s83 = sadd.s32 %s82, 1
      %p86 = scmp.eq.s32.totalorder %s27, 1
      %p87 = scmp.ne.s32.totalorder %s82, %s84
      %p88 = scmp.eq.s32.totalorder %s27, 0
      %p89 = por %p87, %p88
      %p90 = scmp.ne.s32.totalorder %s82, %s84
      %p91 = scmp.eq.s32.totalorder %s32, 1
      %p92 = por %p90, %p91
      %p93 = scmp.ne.s32.totalorder %s84, %s85
      %p94 = scmp.eq.s32.totalorder %s32, 0
      %p95 = por %p93, %p94
      %p96 = scmp.ne.s32.totalorder %s84, %s85
      %p97 = scmp.eq.s32.totalorder %s33, 1
      %p98 = por %p96, %p97
      %p100 = scmp.ne.s32.totalorder %s85, %s99
      %p101 = scmp.eq.s32.totalorder %s33, 0
      %p102 = por %p100, %p101
      %s104 = sadd.s32 %s103, 1
      %p107 = scmp.eq.s32.totalorder %s27, 1
      %p108 = scmp.ne.s32.totalorder %s103, %s105
      %p109 = scmp.eq.s32.totalorder %s27, 0
      %p110 = por %p108, %p109
      %p111 = scmp.ne.s32.totalorder %s103, %s105
      %p112 = scmp.eq.s32.totalorder %s32, 1
      %p113 = por %p111, %p112
      %p114 = scmp.ne.s32.totalorder %s105, %s106
      %p115 = scmp.eq.s32.totalorder %s32, 0
      %p116 = por %p114, %p115
      %p117 = scmp.ne.s32.totalorder %s105, %s106
      %p118 = scmp.eq.s32.totalorder %s33, 1
      %p119 = por %p117, %p118
      %p121 = scmp.ne.s32.totalorder %s106, %s120
      %p122 = scmp.eq.s32.totalorder %s33, 0
      %p123 = por %p121, %p122
      %s125 = sadd.s32 %s124, 1
      %p128 = scmp.eq.s32.totalorder %s27, 1
      %p129 = scmp.ne.s32.totalorder %s124, %s126
      %p130 = scmp.eq.s32.totalorder %s27, 0
      %p131 = por %p129, %p130
      %p132 = scmp.ne.s32.totalorder %s124, %s126
      %p133 = scmp.eq.s32.totalorder %s32, 1
      %p134 = por %p132, %p133
      %p135 = scmp.ne.s32.totalorder %s126, %s127
      %p136 = scmp.eq.s32.totalorder %s32, 0
      %p137 = por %p135, %p136
      %p138 = scmp.ne.s32.totalorder %s126, %s127
      %p139 = scmp.eq.s32.totalorder %s33, 1
      %p140 = por %p138, %p139
      %p142 = scmp.ne.s32.totalorder %s127, %s141
      %p143 = scmp.eq.s32.totalorder %s33, 0
      %p144 = por %p142, %p143
      %s146 = sadd.s32 %s145, 1
      %p149 = scmp.eq.s32.totalorder %s27, 1
      %p150 = scmp.ne.s32.totalorder %s145, %s147
      %p151 = scmp.eq.s32.totalorder %s27, 0
      %p152 = por %p150, %p151
      %p153 = scmp.ne.s32.totalorder %s145, %s147
      %p154 = scmp.eq.s32.totalorder %s32, 1
      %p155 = por %p153, %p154
      %p156 = scmp.ne.s32.totalorder %s147, %s148
      %p157 = scmp.eq.s32.totalorder %s32, 0
      %p158 = por %p156, %p157
      %p159 = scmp.ne.s32.totalorder %s147, %s148
      %p160 = scmp.eq.s32.totalorder %s33, 1
      %p161 = por %p159, %p160
      %p163 = scmp.ne.s32.totalorder %s148, %s162
      %p164 = scmp.eq.s32.totalorder %s33, 0
      %p165 = por %p163, %p164
      %s167 = sadd.s32 %s166, 1
      %p170 = scmp.eq.s32.totalorder %s27, 1
      %p171 = scmp.ne.s32.totalorder %s166, %s168
      %p172 = scmp.eq.s32.totalorder %s27, 0
      %p173 = por %p171, %p172
      %p174 = scmp.ne.s32.totalorder %s166, %s168
      %p175 = scmp.eq.s32.totalorder %s32, 1
      %p176 = por %p174, %p175
      %p177 = scmp.ne.s32.totalorder %s168, %s169
      %p178 = scmp.eq.s32.totalorder %s32, 0
      %p179 = por %p177, %p178
      %p180 = scmp.ne.s32.totalorder %s168, %s169
      %p181 = scmp.eq.s32.totalorder %s33, 1
      %p182 = por %p180, %p181
      %p184 = scmp.ne.s32.totalorder %s169, %s183
      %p185 = scmp.eq.s32.totalorder %s33, 0
      %p186 = por %p184, %p185
      %s188 = sadd.s32 %s187, 1
      %p191 = scmp.eq.s32.totalorder %s27, 1
      %p192 = scmp.ne.s32.totalorder %s187, %s189
      %p193 = scmp.eq.s32.totalorder %s27, 0
      %p194 = por %p192, %p193
      %p195 = scmp.ne.s32.totalorder %s187, %s189
      %p196 = scmp.eq.s32.totalorder %s32, 1
      %p197 = por %p195, %p196
      %p198 = scmp.ne.s32.totalorder %s189, %s190
      %p199 = scmp.eq.s32.totalorder %s32, 0
      %p200 = por %p198, %p199
      %p201 = scmp.ne.s32.totalorder %s189, %s190
      %p202 = scmp.eq.s32.totalorder %s33, 1
      %p203 = por %p201, %p202
      %p205 = scmp.ne.s32.totalorder %s190, %s204
      %p206 = scmp.eq.s32.totalorder %s33, 0
      %p207 = por %p205, %p206
      %s209 = sadd.s32 %s208, 1
      %p212 = scmp.eq.s32.totalorder %s27, 1
      %p213 = scmp.ne.s32.totalorder %s208, %s210
      %p214 = scmp.eq.s32.totalorder %s27, 0
      %p215 = por %p213, %p214
      %p216 = scmp.ne.s32.totalorder %s208, %s210
      %p217 = scmp.eq.s32.totalorder %s32, 1
      %p218 = por %p216, %p217
      %p219 = scmp.ne.s32.totalorder %s210, %s211
      %p220 = scmp.eq.s32.totalorder %s32, 0
      %p221 = por %p219, %p220
      %p222 = scmp.ne.s32.totalorder %s210, %s211
      %p223 = scmp.eq.s32.totalorder %s33, 1
      %p224 = por %p222, %p223
      %p226 = scmp.ne.s32.totalorder %s211, %s225
      %p227 = scmp.eq.s32.totalorder %s33, 0
      %p228 = por %p226, %p227
      %s230 = sadd.s32 %s229, 1
      %p233 = scmp.eq.s32.totalorder %s27, 1
      %p234 = scmp.ne.s32.totalorder %s229, %s231
      %p235 = scmp.eq.s32.totalorder %s27, 0
      %p236 = por %p234, %p235
      %p237 = scmp.ne.s32.totalorder %s229, %s231
      %p238 = scmp.eq.s32.totalorder %s32, 1
      %p239 = por %p237, %p238
      %p240 = scmp.ne.s32.totalorder %s231, %s232
      %p241 = scmp.eq.s32.totalorder %s32, 0
      %p242 = por %p240, %p241
      %p243 = scmp.ne.s32.totalorder %s231, %s232
      %p244 = scmp.eq.s32.totalorder %s33, 1
      %p245 = por %p243, %p244
      %p247 = scmp.ne.s32.totalorder %s232, %s246
      %p248 = scmp.eq.s32.totalorder %s33, 0
      %p249 = por %p247, %p248
      %s251 = sadd.s32 %s250, 1
      %p254 = scmp.eq.s32.totalorder %s27, 1
      %p255 = scmp.ne.s32.totalorder %s250, %s252
      %p256 = scmp.eq.s32.totalorder %s27, 0
      %p257 = por %p255, %p256
      %p258 = scmp.ne.s32.totalorder %s250, %s252
      %p259 = scmp.eq.s32.totalorder %s32, 1
      %p260 = por %p258, %p259
      %p261 = scmp.ne.s32.totalorder %s252, %s253
      %p262 = scmp.eq.s32.totalorder %s32, 0
      %p263 = por %p261, %p262
      %p264 = scmp.ne.s32.totalorder %s252, %s253
      %p265 = scmp.eq.s32.totalorder %s33, 1
      %p266 = por %p264, %p265
      %p268 = scmp.ne.s32.totalorder %s253, %s267
      %p269 = scmp.eq.s32.totalorder %s33, 0
      %p270 = por %p268, %p269
      %s272 = sadd.s32 %s271, 1
      %p275 = scmp.eq.s32.totalorder %s27, 1
      %p276 = scmp.ne.s32.totalorder %s271, %s273
      %p277 = scmp.eq.s32.totalorder %s27, 0
      %p278 = por %p276, %p277
      %p279 = scmp.ne.s32.totalorder %s271, %s273
      %p280 = scmp.eq.s32.totalorder %s32, 1
      %p281 = por %p279, %p280
      %p282 = scmp.ne.s32.totalorder %s273, %s274
      %p283 = scmp.eq.s32.totalorder %s32, 0
      %p284 = por %p282, %p283
      %p285 = scmp.ne.s32.totalorder %s273, %s274
      %p286 = scmp.eq.s32.totalorder %s33, 1
      %p287 = por %p285, %p286
      %p289 = scmp.ne.s32.totalorder %s274, %s288
      %p290 = scmp.eq.s32.totalorder %s33, 0
      %p291 = por %p289, %p290
      %s293 = sadd.s32 %s292, 1
      %p296 = scmp.eq.s32.totalorder %s27, 1
      %p297 = scmp.ne.s32.totalorder %s292, %s294
      %p298 = scmp.eq.s32.totalorder %s27, 0
      %p299 = por %p297, %p298
      %p300 = scmp.ne.s32.totalorder %s292, %s294
      %p301 = scmp.eq.s32.totalorder %s32, 1
      %p302 = por %p300, %p301
      %p303 = scmp.ne.s32.totalorder %s294, %s295
      %p304 = scmp.eq.s32.totalorder %s32, 0
      %p305 = por %p303, %p304
      %p306 = scmp.ne.s32.totalorder %s294, %s295
      %p307 = scmp.eq.s32.totalorder %s33, 1
      %p308 = por %p306, %p307
      %p310 = scmp.ne.s32.totalorder %s295, %s309
      %p311 = scmp.eq.s32.totalorder %s33, 0
      %p312 = por %p310, %p311
      %s314 = sadd.s32 %s313, 1
      %p317 = scmp.eq.s32.totalorder %s27, 1
      %p318 = scmp.ne.s32.totalorder %s313, %s315
      %p319 = scmp.eq.s32.totalorder %s27, 0
      %p320 = por %p318, %p319
      %p321 = scmp.ne.s32.totalorder %s313, %s315
      %p322 = scmp.eq.s32.totalorder %s32, 1
      %p323 = por %p321, %p322
      %p324 = scmp.ne.s32.totalorder %s315, %s316
      %p325 = scmp.eq.s32.totalorder %s32, 0
      %p326 = por %p324, %p325
      %p327 = scmp.ne.s32.totalorder %s315, %s316
      %p328 = scmp.eq.s32.totalorder %s33, 1
      %p329 = por %p327, %p328
      %p331 = scmp.ne.s32.totalorder %s316, %s330
      %p332 = scmp.eq.s32.totalorder %s33, 0
      %p333 = por %p331, %p332
      %s335 = sadd.s32 %s334, 1
      %p338 = scmp.eq.s32.totalorder %s27, 1
      %p339 = scmp.ne.s32.totalorder %s334, %s336
      %p340 = scmp.eq.s32.totalorder %s27, 0
      %p341 = por %p339, %p340
      %p342 = scmp.ne.s32.totalorder %s334, %s336
      %p343 = scmp.eq.s32.totalorder %s32, 1
      %p344 = por %p342, %p343
      %p345 = scmp.ne.s32.totalorder %s336, %s337
      %p346 = scmp.eq.s32.totalorder %s32, 0
      %p347 = por %p345, %p346
      %p348 = scmp.ne.s32.totalorder %s336, %s337
      %p349 = scmp.eq.s32.totalorder %s33, 1
      %p350 = por %p348, %p349
      %p352 = scmp.ne.s32.totalorder %s337, %s351
      %p353 = scmp.eq.s32.totalorder %s33, 0
      %p354 = por %p352, %p353
      %s356 = sadd.s32 %s355, 1
      %p359 = scmp.eq.s32.totalorder %s27, 1
      %p360 = scmp.ne.s32.totalorder %s355, %s357
      %p361 = scmp.eq.s32.totalorder %s27, 0
      %p362 = por %p360, %p361
      %p363 = scmp.ne.s32.totalorder %s355, %s357
      %p364 = scmp.eq.s32.totalorder %s32, 1
      %p365 = por %p363, %p364
      %p366 = scmp.ne.s32.totalorder %s357, %s358
      %p367 = scmp.eq.s32.totalorder %s32, 0
      %p368 = por %p366, %p367
      %p369 = scmp.ne.s32.totalorder %s357, %s358
      %p370 = scmp.eq.s32.totalorder %s33, 1
      %p371 = por %p369, %p370
      %p373 = scmp.ne.s32.totalorder %s358, %s372
      %p374 = scmp.eq.s32.totalorder %s33, 0
      %p375 = por %p373, %p374
      %s377 = sadd.s32 %s376, 1
      %p380 = scmp.eq.s32.totalorder %s27, 1
      %p381 = scmp.ne.s32.totalorder %s376, %s378
      %p382 = scmp.eq.s32.totalorder %s27, 0
      %p383 = por %p381, %p382
      %p384 = scmp.ne.s32.totalorder %s376, %s378
      %p385 = scmp.eq.s32.totalorder %s32, 1
      %p386 = por %p384, %p385
      %p387 = scmp.ne.s32.totalorder %s378, %s379
      %p388 = scmp.eq.s32.totalorder %s32, 0
      %p389 = por %p387, %p388
      %p390 = scmp.ne.s32.totalorder %s378, %s379
      %p391 = scmp.eq.s32.totalorder %s33, 1
      %p392 = por %p390, %p391
      %p394 = scmp.ne.s32.totalorder %s379, %s393
      %p395 = scmp.eq.s32.totalorder %s33, 0
      %p396 = por %p394, %p395
      %s398 = sadd.s32 %s397, 1
      %p401 = scmp.eq.s32.totalorder %s27, 1
      %p402 = scmp.ne.s32.totalorder %s397, %s399
      %p403 = scmp.eq.s32.totalorder %s27, 0
      %p404 = por %p402, %p403
      %p405 = scmp.ne.s32.totalorder %s397, %s399
      %p406 = scmp.eq.s32.totalorder %s32, 1
      %p407 = por %p405, %p406
      %p408 = scmp.ne.s32.totalorder %s399, %s400
      %p409 = scmp.eq.s32.totalorder %s32, 0
      %p410 = por %p408, %p409
      %p411 = scmp.ne.s32.totalorder %s399, %s400
      %p412 = scmp.eq.s32.totalorder %s33, 1
      %p413 = por %p411, %p412
      %p415 = scmp.ne.s32.totalorder %s400, %s414
      %p416 = scmp.eq.s32.totalorder %s33, 0
      %p417 = por %p415, %p416
      %s418 = ssub.s32 %s27, %s34
      %p419 = scmp.eq.s32.totalorder %s418, 0
      %s421 = sadd.s32 %s420, 1
      %s422 = scalar_select %p419, %s420, %s421
      %p425 = pneg %p419
      %p426 = scmp.eq.s32.totalorder %s27, 1
      %p427 = por %p425, %p426
      %p428 = scmp.ne.s32.totalorder %s420, %s423
      %p429 = scmp.eq.s32.totalorder %s27, 0
      %p430 = por %p428, %p429
      %p431 = scmp.ne.s32.totalorder %s420, %s423
      %p432 = scmp.eq.s32.totalorder %s32, 1
      %p433 = por %p431, %p432
      %p434 = scmp.ne.s32.totalorder %s423, %s424
      %p435 = scmp.eq.s32.totalorder %s32, 0
      %p436 = por %p434, %p435
      %p437 = scmp.ne.s32.totalorder %s423, %s424
      %p438 = scmp.eq.s32.totalorder %s33, 1
      %p439 = por %p437, %p438
      %p441 = scmp.ne.s32.totalorder %s424, %s440
      %p442 = scmp.eq.s32.totalorder %s33, 0
      %p443 = por %p441, %p442
      %p444 = scmp.le.s32.totalorder 1, %s27
      %p445 = scmp.lt.s32.totalorder %s27, 3
      %p446 = pnand %p444, %p445
      %p447 = pneg %p446
      // Predicated region
      $region9: #{tpu_custom_call.1} parent=5 // pred_check
        _
      $region10: #{tpu_custom_call.1} parent=5 // pred_check_branch
        %449 = sbr.rel (%p446) target = $region12
      $region11: #{tpu_custom_call.1} parent=5 // pred_region
        %s450 = ssub.s32 %s27, 1
        // Predicated region
        $region13: #{tpu_custom_call.1} parent=11 // pred_check
          %p451 = pneg %p74
        $region14: #{tpu_custom_call.1} parent=11 // pred_check_branch
          %453 = sbr.rel (%p451) target = $region16
        $region15: #{tpu_custom_call.1} parent=11 // pred_region
          _
        $region16: #{tpu_custom_call.1} parent=11 // pred_fallthru
          _
        // Predicated region
        $region17: #{tpu_custom_call.1} parent=11 // pred_check
          %p454 = pneg %p95
        $region18: #{tpu_custom_call.1} parent=11 // pred_check_branch
          %456 = sbr.rel (%p454) target = $region20
        $region19: #{tpu_custom_call.1} parent=11 // pred_region
          _
        $region20: #{tpu_custom_call.1} parent=11 // pred_fallthru
          _
        // Predicated region
        $region21: #{tpu_custom_call.1} parent=11 // pred_check
          %p457 = pneg %p116
        $region22: #{tpu_custom_call.1} parent=11 // pred_check_branch
          %459 = sbr.rel (%p457) target = $region24
        $region23: #{tpu_custom_call.1} parent=11 // pred_region
          _
        $region24: #{tpu_custom_call.1} parent=11 // pred_fallthru
          _
        // Predicated region
        $region25: #{tpu_custom_call.1} parent=11 // pred_check
          %p460 = pneg %p137
        $region26: #{tpu_custom_call.1} parent=11 // pred_check_branch
          %462 = sbr.rel (%p460) target = $region28
        $region27: #{tpu_custom_call.1} parent=11 // pred_region
          _
        $region28: #{tpu_custom_call.1} parent=11 // pred_fallthru
          _
        // Predicated region
        $region29: #{tpu_custom_call.1} parent=11 // pred_check
          %p463 = pneg %p158
        $region30: #{tpu_custom_call.1} parent=11 // pred_check_branch
          %465 = sbr.rel (%p463) target = $region32
        $region31: #{tpu_custom_call.1} parent=11 // pred_region
          _
        $region32: #{tpu_custom_call.1} parent=11 // pred_fallthru
          _
        // Predicated region
        $region33: #{tpu_custom_call.1} parent=11 // pred_check
          %p466 = pneg %p179
        $region34: #{tpu_custom_call.1} parent=11 // pred_check_branch
          %468 = sbr.rel (%p466) target = $region36
        $region35: #{tpu_custom_call.1} parent=11 // pred_region
          %470 = vsyncadd [#allocation4], 0
          %s471 = sshll.u32 %s6, 4
          %s472 = int_to_ptr.hbm [resolvable:$true] %s471
          %s473 = sshll.u32 [#allocation3], 4
          %s474 = int_to_ptr.vmem [resolvable:$true] %s473
          %479 = dma.hbm_to_vmem [thread:$0]  %s472, 16384, %s474, [#allocation4], 256, 256, 16
        $region36: #{tpu_custom_call.1} parent=11 // pred_fallthru
          _
        // Predicated region
        $region37: #{tpu_custom_call.1} parent=11 // pred_check
          %p480 = pneg %p200
        $region38: #{tpu_custom_call.1} parent=11 // pred_check_branch
          %482 = sbr.rel (%p480) target = $region40
        $region39: #{tpu_custom_call.1} parent=11 // pred_region
          %484 = vsyncadd [#allocation6], 0
          %s485 = sshll.u32 %s7, 4
          %s486 = int_to_ptr.hbm [resolvable:$true] %s485
          %s487 = sshll.u32 [#allocation5], 4
          %s488 = int_to_ptr.vmem [resolvable:$true] %s487
          %493 = dma.hbm_to_vmem [thread:$0]  %s486, 4096, %s488, [#allocation6], 128, 128, 8
        $region40: #{tpu_custom_call.1} parent=11 // pred_fallthru
          _
        // Predicated region
        $region41: #{tpu_custom_call.1} parent=11 // pred_check
          %p494 = pneg %p221
        $region42: #{tpu_custom_call.1} parent=11 // pred_check_branch
          %496 = sbr.rel (%p494) target = $region44
        $region43: #{tpu_custom_call.1} parent=11 // pred_region
          _
        $region44: #{tpu_custom_call.1} parent=11 // pred_fallthru
          _
        // Predicated region
        $region45: #{tpu_custom_call.1} parent=11 // pred_check
          %p497 = pneg %p242
        $region46: #{tpu_custom_call.1} parent=11 // pred_check_branch
          %499 = sbr.rel (%p497) target = $region48
        $region47: #{tpu_custom_call.1} parent=11 // pred_region
          _
        $region48: #{tpu_custom_call.1} parent=11 // pred_fallthru
          _
        // Predicated region
        $region49: #{tpu_custom_call.1} parent=11 // pred_check
          %p500 = pneg %p263
        $region50: #{tpu_custom_call.1} parent=11 // pred_check_branch
          %502 = sbr.rel (%p500) target = $region52
        $region51: #{tpu_custom_call.1} parent=11 // pred_region
          _
        $region52: #{tpu_custom_call.1} parent=11 // pred_fallthru
          _
        // Predicated region
        $region53: #{tpu_custom_call.1} parent=11 // pred_check
          %p503 = pneg %p284
        $region54: #{tpu_custom_call.1} parent=11 // pred_check_branch
          %505 = sbr.rel (%p503) target = $region56
        $region55: #{tpu_custom_call.1} parent=11 // pred_region
          %507 = vsyncadd [#allocation6], 0
          %s508 = sshll.u32 %s11, 4
          %s509 = int_to_ptr.hbm [resolvable:$true] %s508
          %s510 = sshll.u32 [#allocation7], 4
          %s511 = int_to_ptr.vmem [resolvable:$true] %s510
          %516 = dma.hbm_to_vmem [thread:$0]  %s509, 768, %s511, [#allocation6], 128, 128, 8
        $region56: #{tpu_custom_call.1} parent=11 // pred_fallthru
          _
        // Predicated region
        $region57: #{tpu_custom_call.1} parent=11 // pred_check
          %p517 = pneg %p305
        $region58: #{tpu_custom_call.1} parent=11 // pred_check_branch
          %519 = sbr.rel (%p517) target = $region60
        $region59: #{tpu_custom_call.1} parent=11 // pred_region
          %521 = vsyncadd [#allocation9], 0
          %s522 = sshll.u32 %s12, 4
          %s523 = int_to_ptr.hbm [resolvable:$true] %s522
          %s524 = sshll.u32 [#allocation8], 4
          %s525 = int_to_ptr.vmem [resolvable:$true] %s524
          %530 = dma.hbm_to_vmem [thread:$0]  %s523, 1536, %s525, [#allocation9], 128, 128, 8
        $region60: #{tpu_custom_call.1} parent=11 // pred_fallthru
          _
        // Predicated region
        $region61: #{tpu_custom_call.1} parent=11 // pred_check
          %p531 = pneg %p326
        $region62: #{tpu_custom_call.1} parent=11 // pred_check_branch
          %533 = sbr.rel (%p531) target = $region64
        $region63: #{tpu_custom_call.1} parent=11 // pred_region
          _
        $region64: #{tpu_custom_call.1} parent=11 // pred_fallthru
          _
        // Predicated region
        $region65: #{tpu_custom_call.1} parent=11 // pred_check
          %p534 = pneg %p347
        $region66: #{tpu_custom_call.1} parent=11 // pred_check_branch
          %536 = sbr.rel (%p534) target = $region68
        $region67: #{tpu_custom_call.1} parent=11 // pred_region
          %538 = vsyncadd [#allocation9], 0
          %s539 = sshll.u32 %s14, 4
          %s540 = int_to_ptr.hbm [resolvable:$true] %s539
          %s541 = sshll.u32 [#allocation10], 4
          %s542 = int_to_ptr.vmem [resolvable:$true] %s541
          %547 = dma.hbm_to_vmem [thread:$0]  %s540, 256, %s542, [#allocation9], 128, 128, 8
        $region68: #{tpu_custom_call.1} parent=11 // pred_fallthru
          _
        // Predicated region
        $region69: #{tpu_custom_call.1} parent=11 // pred_check
          %p548 = pneg %p368
        $region70: #{tpu_custom_call.1} parent=11 // pred_check_branch
          %550 = sbr.rel (%p548) target = $region72
        $region71: #{tpu_custom_call.1} parent=11 // pred_region
          _
        $region72: #{tpu_custom_call.1} parent=11 // pred_fallthru
          _
        // Predicated region
        $region73: #{tpu_custom_call.1} parent=11 // pred_check
          %p551 = pneg %p389
        $region74: #{tpu_custom_call.1} parent=11 // pred_check_branch
          %553 = sbr.rel (%p551) target = $region76
        $region75: #{tpu_custom_call.1} parent=11 // pred_region
          _
        $region76: #{tpu_custom_call.1} parent=11 // pred_fallthru
          _
        // Predicated region
        $region77: #{tpu_custom_call.1} parent=11 // pred_check
          %p554 = pneg %p410
        $region78: #{tpu_custom_call.1} parent=11 // pred_check_branch
          %556 = sbr.rel (%p554) target = $region80
        $region79: #{tpu_custom_call.1} parent=11 // pred_region
          _
        $region80: #{tpu_custom_call.1} parent=11 // pred_fallthru
          _
      $region12: #{tpu_custom_call.1} parent=5 // pred_fallthru
        _
      %p557 = scmp.lt.s32.totalorder %s27, 2
      // Predicated region
      $region81: #{tpu_custom_call.1} parent=5 // pred_check
        %p558 = pneg %p557
      $region82: #{tpu_custom_call.1} parent=5 // pred_check_branch
        %560 = sbr.rel (%p558) target = $region84
      $region83: #{tpu_custom_call.1} parent=5 // pred_region
        // Predicated region
        $region85: #{tpu_custom_call.1} parent=83 // pred_check
          %p561 = pneg %p47
        $region86: #{tpu_custom_call.1} parent=83 // pred_check_branch
          %563 = sbr.rel (%p561) target = $region88
        $region87: #{tpu_custom_call.1} parent=83 // pred_region
          %p564 = scmp.lt.s32.totalorder %s27, 1
          %s565 = scalar_select %p564, %s27, 1
          %s566 = smul.addr %s565, 16
          %s567 = smul.addr %s566, 8
          %s568 = scalar_lea.vmem %s0, %s567
        $region88: #{tpu_custom_call.1} parent=83 // pred_fallthru
          _
      $region84: #{tpu_custom_call.1} parent=5 // pred_fallthru
        _
      %p569 = scmp.le.s32.totalorder 1, %s27
      %p570 = scmp.lt.s32.totalorder %s27, 3
      %p571 = pnand %p569, %p570
      %p572 = pneg %p571
      // Predicated region
      $region89: #{tpu_custom_call.1} parent=5 // pred_check
        _
      $region90: #{tpu_custom_call.1} parent=5 // pred_check_branch
        %574 = sbr.rel (%p571) target = $region92
      $region91: #{tpu_custom_call.1} parent=5 // pred_region
        %s575 = ssub.s32 %s27, 1
        // Predicated region
        $region93: #{tpu_custom_call.1} parent=91 // pred_check
          %p576 = pneg %p179
        $region94: #{tpu_custom_call.1} parent=91 // pred_check_branch
          %578 = sbr.rel (%p576) target = $region96
        $region95: #{tpu_custom_call.1} parent=91 // pred_region
          %580 = dma.done [#allocation4], 16384
        $region96: #{tpu_custom_call.1} parent=91 // pred_fallthru
          _
        // Predicated region
        $region97: #{tpu_custom_call.1} parent=91 // pred_check
          %p581 = pneg %p200
        $region98: #{tpu_custom_call.1} parent=91 // pred_check_branch
          %583 = sbr.rel (%p581) target = $region100
        $region99: #{tpu_custom_call.1} parent=91 // pred_region
          %585 = dma.done [#allocation6], 4096
        $region100: #{tpu_custom_call.1} parent=91 // pred_fallthru
          _
        // Predicated region
        $region101: #{tpu_custom_call.1} parent=91 // pred_check
          %p586 = pneg %p284
        $region102: #{tpu_custom_call.1} parent=91 // pred_check_branch
          %588 = sbr.rel (%p586) target = $region104
        $region103: #{tpu_custom_call.1} parent=91 // pred_region
          %590 = dma.done [#allocation6], 768
        $region104: #{tpu_custom_call.1} parent=91 // pred_fallthru
          _
        // Predicated region
        $region105: #{tpu_custom_call.1} parent=91 // pred_check
          %p591 = pneg %p305
        $region106: #{tpu_custom_call.1} parent=91 // pred_check_branch
          %593 = sbr.rel (%p591) target = $region108
        $region107: #{tpu_custom_call.1} parent=91 // pred_region
          %595 = dma.done [#allocation9], 1536
        $region108: #{tpu_custom_call.1} parent=91 // pred_fallthru
          _
        // Predicated region
        $region109: #{tpu_custom_call.1} parent=91 // pred_check
          %p596 = pneg %p347
        $region110: #{tpu_custom_call.1} parent=91 // pred_check_branch
          %598 = sbr.rel (%p596) target = $region112
        $region111: #{tpu_custom_call.1} parent=91 // pred_region
          %600 = dma.done [#allocation9], 256
        $region112: #{tpu_custom_call.1} parent=91 // pred_fallthru
          _
        %p601 = scmp.lt.s32.totalorder %s32, 1
        %s602 = scalar_select %p601, %s32, 1
        %s603 = smul.addr %s602, 16
        %s604 = smul.addr %s603, 8
        %s605 = scalar_lea.vmem %s0, %s604
        %p606 = pneg %p53
        %p607 = pneg %p50
        %p608 = pneg %p74
        %p609 = pneg %p71
        %p610 = pneg %p95
        %p611 = pneg %p92
        %p612 = pneg %p116
        %p613 = pneg %p113
        %p614 = pneg %p137
        %p615 = pneg %p134
        %p616 = pneg %p158
        %p617 = pneg %p155
        %p618 = pneg %p179
        %p619 = pneg %p176
        %p620 = pneg %p200
        %p621 = pneg %p197
        %p622 = pneg %p221
        %p623 = pneg %p218
        %p624 = pneg %p242
        %p625 = pneg %p239
        %p626 = pneg %p263
        %p627 = pneg %p260
        %p628 = pneg %p284
        %p629 = pneg %p281
        %p630 = pneg %p305
        %p631 = pneg %p302
        %p632 = pneg %p326
        %p633 = pneg %p323
        %p634 = pneg %p347
        %p635 = pneg %p344
        %p636 = pneg %p368
        %p637 = pneg %p365
        %p638 = pneg %p389
        %p639 = pneg %p386
        %p640 = pneg %p410
        %p641 = pneg %p407
        %p642 = pneg %p436
        %p643 = pneg %p433
        %p644 = scmp.lt.s32.totalorder %s32, 1
        %s645 = scalar_select %p644, %s32, 1
        %s646 = smul.addr %s645, 8
        %s647 = scalar_lea.vmem %s18, %s646
        %p648 = scmp.lt.s32.totalorder %s32, 1
        %s649 = scalar_select %p648, %s32, 1
        %s650 = smul.addr %s649, 16
        %s651 = smul.addr %s650, 8
        %s652 = scalar_lea.vmem %s0, %s651
        %p653 = scmp.lt.s32.totalorder %s32, 1
        %s654 = scalar_select %p653, %s32, 1
        %s655 = smul.addr %s654, 8
        %s656 = scalar_lea.vmem %s18, %s655
        %v658 = vld [vmem:[%s652] sm:$0xff]
        %v659 = vld [vmem:[%s652 + $0x8] sm:$0xff]
        %v660 = vld [vmem:[%s652 + $0x10] sm:$0xff]
        %v661 = vld [vmem:[%s652 + $0x18] sm:$0xff]
        %v662 = vld [vmem:[%s652 + $0x20] sm:$0xff]
        %v663 = vld [vmem:[%s652 + $0x28] sm:$0xff]
        %v664 = vld [vmem:[%s652 + $0x30] sm:$0xff]
        %v665 = vld [vmem:[%s652 + $0x38] sm:$0xff]
        %v666 = vld [vmem:[%s652 + $0x40] sm:$0xff]
        %v667 = vld [vmem:[%s652 + $0x48] sm:$0xff]
        %v668 = vld [vmem:[%s652 + $0x50] sm:$0xff]
        %v669 = vld [vmem:[%s652 + $0x58] sm:$0xff]
        %v670 = vld [vmem:[%s652 + $0x60] sm:$0xff]
        %v671 = vld [vmem:[%s652 + $0x68] sm:$0xff]
        %v672 = vld [vmem:[%s652 + $0x70] sm:$0xff]
        %v673 = vld [vmem:[%s652 + $0x78] sm:$0xff]
        %v674 = vld [vmem:[%s1] sm:$0xff]
        %v675 = vld [vmem:[%s1 + $0x8] sm:$0xff]
        %v676 = vld [vmem:[%s1 + $0x10] sm:$0xff]
        %v677 = vld [vmem:[%s1 + $0x18] sm:$0xff]
        %v678 = vld [vmem:[%s2] sm:$0xff]
        %v679 = vld [vmem:[%s2 + $0x8] sm:$0xff]
        %v680 = vld [vmem:[%s2 + $0x10] sm:$0xff]
        %v681 = vld [vmem:[%s2 + $0x18] sm:$0xff]
        %v682 = vpack.c.bf16 %v659, %v658
        %v683 = vpack.c.bf16 %v661, %v660
        %v684 = vpack.c.bf16 %v663, %v662
        %v685 = vpack.c.bf16 %v665, %v664
        %v686 = vpack.c.bf16 %v667, %v666
        %v687 = vpack.c.bf16 %v669, %v668
        %v688 = vpack.c.bf16 %v671, %v670
        %v689 = vpack.c.bf16 %v673, %v672
        %vm690 = vcmask 11264
        %691 = vst.msk [vmem:[#allocation2] sm:$0xf] %vm690, 0
        %692 = vst.msk [vmem:[#allocation2 + $0x10] sm:$0xf] %vm690, 0
        %693 = vst.msk [vmem:[#allocation2 + $0x20] sm:$0xf] %vm690, 0
        %694 = vst.msk [vmem:[#allocation2 + $0x30] sm:$0xf] %vm690, 0
        %695 = vst.msk [vmem:[#allocation2 + $0x40] sm:$0xf] %vm690, 0
        %696 = vst.msk [vmem:[#allocation2 + $0x50] sm:$0xf] %vm690, 0
        %697 = vst.msk [vmem:[#allocation2 + $0x60] sm:$0xf] %vm690, 0
        %698 = vst.msk [vmem:[#allocation2 + $0x70] sm:$0xf] %vm690, 0
        %699 = vst.msk [vmem:[#allocation2 + $0x80] sm:$0xf] %vm690, 0
        %700 = vst.msk [vmem:[#allocation2 + $0x90] sm:$0xf] %vm690, 0
        %701 = vst.msk [vmem:[#allocation2 + $0xa0] sm:$0xf] %vm690, 0
        %702 = vst.msk [vmem:[#allocation2 + $0xb0] sm:$0xf] %vm690, 0
        %703 = vst.msk [vmem:[#allocation2 + $0xc0] sm:$0xf] %vm690, 0
        %704 = vst.msk [vmem:[#allocation2 + $0xd0] sm:$0xf] %vm690, 0
        %705 = vst.msk [vmem:[#allocation2 + $0xe0] sm:$0xf] %vm690, 0
        %706 = vst.msk [vmem:[#allocation2 + $0xf0] sm:$0xf] %vm690, 0
        %707 = vst.msk [vmem:[#allocation2 + $0x100] sm:$0xf] %vm690, 0
        %708 = vst.msk [vmem:[#allocation2 + $0x110] sm:$0xf] %vm690, 0
        %709 = vst.msk [vmem:[#allocation2 + $0x120] sm:$0xf] %vm690, 0
        %710 = vst.msk [vmem:[#allocation2 + $0x130] sm:$0xf] %vm690, 0
        %vm711 = vcmask 1044464
        %712 = vst.msk [vmem:[#allocation2 + $0xc] sm:$0xf] %vm711, 0
        %713 = vst.msk [vmem:[#allocation2 + $0x1c] sm:$0xf] %vm711, 0
        %714 = vst.msk [vmem:[#allocation2 + $0x2c] sm:$0xf] %vm711, 0
        %715 = vst.msk [vmem:[#allocation2 + $0x3c] sm:$0xf] %vm711, 0
        %716 = vst.msk [vmem:[#allocation2 + $0x4c] sm:$0xf] %vm711, 0
        %717 = vst.msk [vmem:[#allocation2 + $0x5c] sm:$0xf] %vm711, 0
        %718 = vst.msk [vmem:[#allocation2 + $0x6c] sm:$0xf] %vm711, 0
        %719 = vst.msk [vmem:[#allocation2 + $0x7c] sm:$0xf] %vm711, 0
        %720 = vst.msk [vmem:[#allocation2 + $0x8c] sm:$0xf] %vm711, 0
        %721 = vst.msk [vmem:[#allocation2 + $0x9c] sm:$0xf] %vm711, 0
        %722 = vst.msk [vmem:[#allocation2 + $0xac] sm:$0xf] %vm711, 0
        %723 = vst.msk [vmem:[#allocation2 + $0xbc] sm:$0xf] %vm711, 0
        %724 = vst.msk [vmem:[#allocation2 + $0xcc] sm:$0xf] %vm711, 0
        %725 = vst.msk [vmem:[#allocation2 + $0xdc] sm:$0xf] %vm711, 0
        %726 = vst.msk [vmem:[#allocation2 + $0xec] sm:$0xf] %vm711, 0
        %727 = vst.msk [vmem:[#allocation2 + $0xfc] sm:$0xf] %vm711, 0
        %728 = vst.msk [vmem:[#allocation2 + $0x10c] sm:$0xf] %vm711, 0
        %729 = vst.msk [vmem:[#allocation2 + $0x11c] sm:$0xf] %vm711, 0
        %730 = vst.msk [vmem:[#allocation2 + $0x12c] sm:$0xf] %vm711, 0
        %731 = vst.msk [vmem:[#allocation2 + $0x13c] sm:$0xf] %vm711, 0
        %740 = vrot.lane.b32.xlu0 %v682, 2
        %v741 = vpop.permute.xlu0 %740
        %742 = vrot.lane.b32.xlu0 %v683, 2
        %v743 = vpop.permute.xlu0 %742
        %744 = vrot.lane.b32.xlu0 %v684, 2
        %v745 = vpop.permute.xlu0 %744
        %746 = vrot.lane.b32.xlu0 %v685, 2
        %v747 = vpop.permute.xlu0 %746
        %748 = vrot.lane.b32.xlu0 %v686, 2
        %v749 = vpop.permute.xlu0 %748
        %750 = vrot.lane.b32.xlu0 %v687, 2
        %v751 = vpop.permute.xlu0 %750
        %752 = vrot.lane.b32.xlu0 %v688, 2
        %v753 = vpop.permute.xlu0 %752
        %754 = vrot.lane.b32.xlu0 %v689, 2
        %v755 = vpop.permute.xlu0 %754
        %v756 = vrot.slane %v741, 4
        %v757 = vrot.slane %v743, 4
        %v758 = vrot.slane %v745, 4
        %v759 = vrot.slane %v747, 4
        %v760 = vrot.slane %v749, 4
        %v761 = vrot.slane %v751, 4
        %v762 = vrot.slane %v753, 4
        %v763 = vrot.slane %v755, 4
        %vm764 = vcmask 15360
        %v765 = vsel %vm764, %v756, %v741
        %vm766 = vcmask 1043456
        %v767 = vsel %vm766, %v756, %v757
        %v768 = vsel %vm764, %v767, %v743
        %v769 = vsel %vm764, %v758, %v745
        %v770 = vsel %vm766, %v758, %v759
        %v771 = vsel %vm764, %v770, %v747
        %v772 = vsel %vm764, %v760, %v749
        %v773 = vsel %vm766, %v760, %v761
        %v774 = vsel %vm764, %v773, %v751
        %v775 = vsel %vm764, %v762, %v753
        %v776 = vsel %vm766, %v762, %v763
        %v777 = vsel %vm764, %v776, %v755
        %vm786 = vcmask 1043472
        %vm787 = vcmask 1047556
        %vm788 = vmor %vm787, %vm786
        %789 = vst.msk [vmem:[#allocation2] sm:$0xff] %vm788, %v765
        %790 = vst [vmem:[#allocation2 + $0x8] sm:$0xff] %v768
        %791 = vst.msk [vmem:[#allocation2 + $0x10] sm:$0xff] %vm788, %v769
        %792 = vst [vmem:[#allocation2 + $0x18] sm:$0xff] %v771
        %793 = vst.msk [vmem:[#allocation2 + $0x20] sm:$0xff] %vm788, %v772
        %794 = vst [vmem:[#allocation2 + $0x28] sm:$0xff] %v774
        %795 = vst.msk [vmem:[#allocation2 + $0x30] sm:$0xff] %vm788, %v775
        %796 = vst [vmem:[#allocation2 + $0x38] sm:$0xff] %v777
        %797 = vrot.lane.b32.xlu0 %v682, 1
        %v798 = vpop.permute.xlu0 %797
        %799 = vrot.lane.b32.xlu0 %v683, 1
        %v800 = vpop.permute.xlu0 %799
        %801 = vrot.lane.b32.xlu0 %v684, 1
        %v802 = vpop.permute.xlu0 %801
        %803 = vrot.lane.b32.xlu0 %v685, 1
        %v804 = vpop.permute.xlu0 %803
        %805 = vrot.lane.b32.xlu0 %v686, 1
        %v806 = vpop.permute.xlu0 %805
        %807 = vrot.lane.b32.xlu0 %v687, 1
        %v808 = vpop.permute.xlu0 %807
        %809 = vrot.lane.b32.xlu0 %v688, 1
        %v810 = vpop.permute.xlu0 %809
        %811 = vrot.lane.b32.xlu0 %v689, 1
        %v812 = vpop.permute.xlu0 %811
        %v813 = vrot.slane %v798, 4
        %v814 = vrot.slane %v800, 4
        %v815 = vrot.slane %v802, 4
        %v816 = vrot.slane %v804, 4
        %v817 = vrot.slane %v806, 4
        %v818 = vrot.slane %v808, 4
        %v819 = vrot.slane %v810, 4
        %v820 = vrot.slane %v812, 4
        %vm821 = vcmask 7168
        %v822 = vsel %vm821, %v813, %v798
        %v823 = vsel %vm766, %v813, %v814
        %v824 = vsel %vm821, %v823, %v800
        %v825 = vsel %vm821, %v815, %v802
        %v826 = vsel %vm766, %v815, %v816
        %v827 = vsel %vm821, %v826, %v804
        %v828 = vsel %vm821, %v817, %v806
        %v829 = vsel %vm766, %v817, %v818
        %v830 = vsel %vm821, %v829, %v808
        %v831 = vsel %vm821, %v819, %v810
        %v832 = vsel %vm766, %v819, %v820
        %v833 = vsel %vm821, %v832, %v812
        %vm842 = vcmask 1043464
        %vm843 = vmor %vm787, %vm842
        %844 = vst.msk [vmem:[#allocation2 + $0x40] sm:$0xff] %vm843, %v822
        %845 = vst [vmem:[#allocation2 + $0x48] sm:$0xff] %v824
        %846 = vst.msk [vmem:[#allocation2 + $0x50] sm:$0xff] %vm843, %v825
        %847 = vst [vmem:[#allocation2 + $0x58] sm:$0xff] %v827
        %848 = vst.msk [vmem:[#allocation2 + $0x60] sm:$0xff] %vm843, %v828
        %849 = vst [vmem:[#allocation2 + $0x68] sm:$0xff] %v830
        %850 = vst.msk [vmem:[#allocation2 + $0x70] sm:$0xff] %vm843, %v831
        %851 = vst [vmem:[#allocation2 + $0x78] sm:$0xff] %v833
        %852 = vst [vmem:[#allocation2 + $0x80] sm:$0xff] %v682
        %853 = vst [vmem:[#allocation2 + $0x88] sm:$0xff] %v683
        %854 = vst [vmem:[#allocation2 + $0x90] sm:$0xff] %v684
        %855 = vst [vmem:[#allocation2 + $0x98] sm:$0xff] %v685
        %856 = vst [vmem:[#allocation2 + $0xa0] sm:$0xff] %v686
        %857 = vst [vmem:[#allocation2 + $0xa8] sm:$0xff] %v687
        %858 = vst [vmem:[#allocation2 + $0xb0] sm:$0xff] %v688
        %859 = vst [vmem:[#allocation2 + $0xb8] sm:$0xff] %v689
        %860 = vrot.lane.b32.xlu0 %v682, 127
        %v861 = vpop.permute.xlu0 %860
        %862 = vrot.lane.b32.xlu0 %v683, 127
        %v863 = vpop.permute.xlu0 %862
        %864 = vrot.lane.b32.xlu0 %v684, 127
        %v865 = vpop.permute.xlu0 %864
        %866 = vrot.lane.b32.xlu0 %v685, 127
        %v867 = vpop.permute.xlu0 %866
        %868 = vrot.lane.b32.xlu0 %v686, 127
        %v869 = vpop.permute.xlu0 %868
        %870 = vrot.lane.b32.xlu0 %v687, 127
        %v871 = vpop.permute.xlu0 %870
        %872 = vrot.lane.b32.xlu0 %v688, 127
        %v873 = vpop.permute.xlu0 %872
        %874 = vrot.lane.b32.xlu0 %v689, 127
        %v875 = vpop.permute.xlu0 %874
        %v876 = vrot.slane %v861, 4
        %v877 = vrot.slane %v863, 4
        %v878 = vrot.slane %v865, 4
        %v879 = vrot.slane %v867, 4
        %v880 = vrot.slane %v869, 4
        %v881 = vrot.slane %v871, 4
        %v882 = vrot.slane %v873, 4
        %v883 = vrot.slane %v875, 4
        %v884 = vsel %vm766, %v876, %v877
        %vm885 = vcmask 1039360
        %v886 = vsel %vm885, %v861, %v884
        %v887 = vsel %vm885, %v863, %v877
        %v888 = vsel %vm766, %v878, %v879
        %v889 = vsel %vm885, %v865, %v888
        %v890 = vsel %vm885, %v867, %v879
        %v891 = vsel %vm766, %v880, %v881
        %v892 = vsel %vm885, %v869, %v891
        %v893 = vsel %vm885, %v871, %v881
        %v894 = vsel %vm766, %v882, %v883
        %v895 = vsel %vm885, %v873, %v894
        %v896 = vsel %vm885, %v875, %v883
        %905 = vst [vmem:[#allocation2 + $0xc0] sm:$0xff] %v886
        %vm906 = vcmask 1043456
        %vm907 = vcmask 1039364
        %vm908 = vmor %vm907, %vm906
        %909 = vst.msk [vmem:[#allocation2 + $0xc8] sm:$0xff] %vm908, %v887
        %910 = vst [vmem:[#allocation2 + $0xd0] sm:$0xff] %v889
        %911 = vst.msk [vmem:[#allocation2 + $0xd8] sm:$0xff] %vm908, %v890
        %912 = vst [vmem:[#allocation2 + $0xe0] sm:$0xff] %v892
        %913 = vst.msk [vmem:[#allocation2 + $0xe8] sm:$0xff] %vm908, %v893
        %914 = vst [vmem:[#allocation2 + $0xf0] sm:$0xff] %v895
        %915 = vst.msk [vmem:[#allocation2 + $0xf8] sm:$0xff] %vm908, %v896
        %916 = vrot.lane.b32.xlu0 %v682, 126
        %v917 = vpop.permute.xlu0 %916
        %918 = vrot.lane.b32.xlu0 %v683, 126
        %v919 = vpop.permute.xlu0 %918
        %920 = vrot.lane.b32.xlu0 %v684, 126
        %v921 = vpop.permute.xlu0 %920
        %922 = vrot.lane.b32.xlu0 %v685, 126
        %v923 = vpop.permute.xlu0 %922
        %924 = vrot.lane.b32.xlu0 %v686, 126
        %v925 = vpop.permute.xlu0 %924
        %926 = vrot.lane.b32.xlu0 %v687, 126
        %v927 = vpop.permute.xlu0 %926
        %928 = vrot.lane.b32.xlu0 %v688, 126
        %v929 = vpop.permute.xlu0 %928
        %930 = vrot.lane.b32.xlu0 %v689, 126
        %v931 = vpop.permute.xlu0 %930
        %v932 = vrot.slane %v917, 4
        %v933 = vrot.slane %v919, 4
        %v934 = vrot.slane %v921, 4
        %v935 = vrot.slane %v923, 4
        %v936 = vrot.slane %v925, 4
        %v937 = vrot.slane %v927, 4
        %v938 = vrot.slane %v929, 4
        %v939 = vrot.slane %v931, 4
        %v940 = vsel %vm766, %v932, %v933
        %vm941 = vcmask 1031168
        %v942 = vsel %vm941, %v917, %v940
        %v943 = vsel %vm941, %v919, %v933
        %v944 = vsel %vm766, %v934, %v935
        %v945 = vsel %vm941, %v921, %v944
        %v946 = vsel %vm941, %v923, %v935
        %v947 = vsel %vm766, %v936, %v937
        %v948 = vsel %vm941, %v925, %v947
        %v949 = vsel %vm941, %v927, %v937
        %v950 = vsel %vm766, %v938, %v939
        %v951 = vsel %vm941, %v929, %v950
        %v952 = vsel %vm941, %v931, %v939
        %961 = vst [vmem:[#allocation2 + $0x100] sm:$0xff] %v942
        %vm962 = vcmask 1031172
        %vm963 = vmor %vm962, %vm906
        %964 = vst.msk [vmem:[#allocation2 + $0x108] sm:$0xff] %vm963, %v943
        %965 = vst [vmem:[#allocation2 + $0x110] sm:$0xff] %v945
        %966 = vst.msk [vmem:[#allocation2 + $0x118] sm:$0xff] %vm963, %v946
        %967 = vst [vmem:[#allocation2 + $0x120] sm:$0xff] %v948
        %968 = vst.msk [vmem:[#allocation2 + $0x128] sm:$0xff] %vm963, %v949
        %969 = vst [vmem:[#allocation2 + $0x130] sm:$0xff] %v951
        %970 = vst.msk [vmem:[#allocation2 + $0x138] sm:$0xff] %vm963, %v952
        %v971 = vld [vmem:[#allocation2] sm:$0xff]
        %v972 = vld [vmem:[#allocation2 + $0x8] sm:$0xff]
        %v973 = vld [vmem:[#allocation2 + $0x10] sm:$0xff]
        %v974 = vld [vmem:[#allocation2 + $0x18] sm:$0xff]
        %v975 = vld [vmem:[#allocation2 + $0x20] sm:$0xff]
        %v976 = vld [vmem:[#allocation2 + $0x28] sm:$0xff]
        %v977 = vld [vmem:[#allocation2 + $0x30] sm:$0xff]
        %v978 = vld [vmem:[#allocation2 + $0x38] sm:$0xff]
        %v979 = vld [vmem:[#allocation2 + $0x40] sm:$0xff]
        %v980 = vld [vmem:[#allocation2 + $0x48] sm:$0xff]
        %v981 = vld [vmem:[#allocation2 + $0x50] sm:$0xff]
        %v982 = vld [vmem:[#allocation2 + $0x58] sm:$0xff]
        %v983 = vld [vmem:[#allocation2 + $0x60] sm:$0xff]
        %v984 = vld [vmem:[#allocation2 + $0x68] sm:$0xff]
        %v985 = vld [vmem:[#allocation2 + $0x70] sm:$0xff]
        %v986 = vld [vmem:[#allocation2 + $0x78] sm:$0xff]
        %v987 = vld [vmem:[#allocation2 + $0x80] sm:$0xff]
        %v988 = vld [vmem:[#allocation2 + $0x88] sm:$0xff]
        %v989 = vld [vmem:[#allocation2 + $0x90] sm:$0xff]
        %v990 = vld [vmem:[#allocation2 + $0x98] sm:$0xff]
        %v991 = vld [vmem:[#allocation2 + $0xa0] sm:$0xff]
        %v992 = vld [vmem:[#allocation2 + $0xa8] sm:$0xff]
        %v993 = vld [vmem:[#allocation2 + $0xb0] sm:$0xff]
        %v994 = vld [vmem:[#allocation2 + $0xb8] sm:$0xff]
        %v995 = vld [vmem:[#allocation2 + $0xc0] sm:$0xff]
        %v996 = vld [vmem:[#allocation2 + $0xc8] sm:$0xff]
        %v997 = vld [vmem:[#allocation2 + $0xd0] sm:$0xff]
        %v998 = vld [vmem:[#allocation2 + $0xd8] sm:$0xff]
        %v999 = vld [vmem:[#allocation2 + $0xe0] sm:$0xff]
        %v1000 = vld [vmem:[#allocation2 + $0xe8] sm:$0xff]
        %v1001 = vld [vmem:[#allocation2 + $0xf0] sm:$0xff]
        %v1002 = vld [vmem:[#allocation2 + $0xf8] sm:$0xff]
        %v1003 = vld [vmem:[#allocation2 + $0x100] sm:$0xff]
        %v1004 = vld [vmem:[#allocation2 + $0x108] sm:$0xff]
        %v1005 = vld [vmem:[#allocation2 + $0x110] sm:$0xff]
        %v1006 = vld [vmem:[#allocation2 + $0x118] sm:$0xff]
        %v1007 = vld [vmem:[#allocation2 + $0x120] sm:$0xff]
        %v1008 = vld [vmem:[#allocation2 + $0x128] sm:$0xff]
        %v1009 = vld [vmem:[#allocation2 + $0x130] sm:$0xff]
        %v1010 = vld [vmem:[#allocation2 + $0x138] sm:$0xff]
        %1012 = vset.pattern.permute.xlu0 0
        %1013 = vperm.xlu0 %1012, %v678
        %v1014 = vpop.permute.xlu0 %1013
        %1017 = vset.pattern.permute.xlu0 0
        %1018 = vperm.xlu0 %1017, %v679
        %v1019 = vpop.permute.xlu0 %1018
        %1022 = vset.pattern.permute.xlu0 0
        %1023 = vperm.xlu0 %1022, %v680
        %v1024 = vpop.permute.xlu0 %1023
        %1027 = vset.pattern.permute.xlu0 0
        %1028 = vperm.xlu0 %1027, %v681
        %v1029 = vpop.permute.xlu0 %1028
        %v1035 = vunpack.c.l.b16 %v674
        %v1036 = vunpack.c.h.b16 %v674
        %v1037 = vunpack.c.l.b16 %v675
        %v1038 = vunpack.c.h.b16 %v675
        %v1039 = vunpack.c.l.b16 %v676
        %v1040 = vunpack.c.h.b16 %v676
        %v1041 = vunpack.c.l.b16 %v677
        %v1042 = vunpack.c.h.b16 %v677
        %v1043 = vpack.c.b16 %v1037, %v1035
        %v1044 = vpack.c.b16 %v1038, %v1036
        %v1045 = vpack.c.b16 %v1041, %v1039
        %v1046 = vpack.c.b16 %v1042, %v1040
        %v1089 = vunpack.c.l.b16 %v971
        %v1090 = vunpack.c.h.b16 %v971
        %v1091 = vunpack.c.l.b16 %v972
        %v1092 = vunpack.c.h.b16 %v972
        %v1093 = vunpack.c.l.b16 %v973
        %v1094 = vunpack.c.h.b16 %v973
        %v1095 = vunpack.c.l.b16 %v974
        %v1096 = vunpack.c.h.b16 %v974
        %v1097 = vunpack.c.l.b16 %v975
        %v1098 = vunpack.c.h.b16 %v975
        %v1099 = vunpack.c.l.b16 %v976
        %v1100 = vunpack.c.h.b16 %v976
        %v1101 = vunpack.c.l.b16 %v977
        %v1102 = vunpack.c.h.b16 %v977
        %v1103 = vunpack.c.l.b16 %v978
        %v1104 = vunpack.c.h.b16 %v978
        %v1105 = vunpack.c.l.b16 %v979
        %v1106 = vunpack.c.h.b16 %v979
        %v1107 = vunpack.c.l.b16 %v980
        %v1108 = vunpack.c.h.b16 %v980
        %v1109 = vunpack.c.l.b16 %v981
        %v1110 = vunpack.c.h.b16 %v981
        %v1111 = vunpack.c.l.b16 %v982
        %v1112 = vunpack.c.h.b16 %v982
        %v1113 = vunpack.c.l.b16 %v983
        %v1114 = vunpack.c.h.b16 %v983
        %v1115 = vunpack.c.l.b16 %v984
        %v1116 = vunpack.c.h.b16 %v984
        %v1117 = vunpack.c.l.b16 %v985
        %v1118 = vunpack.c.h.b16 %v985
        %v1119 = vunpack.c.l.b16 %v986
        %v1120 = vunpack.c.h.b16 %v986
        %v1121 = vunpack.c.l.b16 %v987
        %v1122 = vunpack.c.h.b16 %v987
        %v1123 = vunpack.c.l.b16 %v988
        %v1124 = vunpack.c.h.b16 %v988
        %v1125 = vunpack.c.l.b16 %v989
        %v1126 = vunpack.c.h.b16 %v989
        %v1127 = vunpack.c.l.b16 %v990
        %v1128 = vunpack.c.h.b16 %v990
        %v1129 = vunpack.c.l.b16 %v991
        %v1130 = vunpack.c.h.b16 %v991
        %v1131 = vunpack.c.l.b16 %v992
        %v1132 = vunpack.c.h.b16 %v992
        %v1133 = vunpack.c.l.b16 %v993
        %v1134 = vunpack.c.h.b16 %v993
        %v1135 = vunpack.c.l.b16 %v994
        %v1136 = vunpack.c.h.b16 %v994
        %v1137 = vunpack.c.l.b16 %v995
        %v1138 = vunpack.c.h.b16 %v995
        %v1139 = vunpack.c.l.b16 %v996
        %v1140 = vunpack.c.h.b16 %v996
        %v1141 = vunpack.c.l.b16 %v997
        %v1142 = vunpack.c.h.b16 %v997
        %v1143 = vunpack.c.l.b16 %v998
        %v1144 = vunpack.c.h.b16 %v998
        %v1145 = vunpack.c.l.b16 %v999
        %v1146 = vunpack.c.h.b16 %v999
        %v1147 = vunpack.c.l.b16 %v1000
        %v1148 = vunpack.c.h.b16 %v1000
        %v1149 = vunpack.c.l.b16 %v1001
        %v1150 = vunpack.c.h.b16 %v1001
        %v1151 = vunpack.c.l.b16 %v1002
        %v1152 = vunpack.c.h.b16 %v1002
        %v1153 = vunpack.c.l.b16 %v1003
        %v1154 = vunpack.c.h.b16 %v1003
        %v1155 = vunpack.c.l.b16 %v1004
        %v1156 = vunpack.c.h.b16 %v1004
        %v1157 = vunpack.c.l.b16 %v1005
        %v1158 = vunpack.c.h.b16 %v1005
        %v1159 = vunpack.c.l.b16 %v1006
        %v1160 = vunpack.c.h.b16 %v1006
        %v1161 = vunpack.c.l.b16 %v1007
        %v1162 = vunpack.c.h.b16 %v1007
        %v1163 = vunpack.c.l.b16 %v1008
        %v1164 = vunpack.c.h.b16 %v1008
        %v1165 = vunpack.c.l.b16 %v1009
        %v1166 = vunpack.c.h.b16 %v1009
        %v1167 = vunpack.c.l.b16 %v1010
        %v1168 = vunpack.c.h.b16 %v1010
        %v1169 = vpack.c.b16 %v1093, %v1089
        %v1170 = vpack.c.b16 %v1094, %v1090
        %v1171 = vpack.c.b16 %v1095, %v1091
        %v1172 = vpack.c.b16 %v1096, %v1092
        %v1173 = vpack.c.b16 %v1101, %v1097
        %v1174 = vpack.c.b16 %v1102, %v1098
        %v1175 = vpack.c.b16 %v1103, %v1099
        %v1176 = vpack.c.b16 %v1104, %v1100
        %v1177 = vpack.c.b16 %v1109, %v1105
        %v1178 = vpack.c.b16 %v1110, %v1106
        %v1179 = vpack.c.b16 %v1111, %v1107
        %v1180 = vpack.c.b16 %v1112, %v1108
        %v1181 = vpack.c.b16 %v1117, %v1113
        %v1182 = vpack.c.b16 %v1118, %v1114
        %v1183 = vpack.c.b16 %v1119, %v1115
        %v1184 = vpack.c.b16 %v1120, %v1116
        %v1185 = vpack.c.b16 %v1125, %v1121
        %v1186 = vpack.c.b16 %v1126, %v1122
        %v1187 = vpack.c.b16 %v1127, %v1123
        %v1188 = vpack.c.b16 %v1128, %v1124
        %v1189 = vpack.c.b16 %v1133, %v1129
        %v1190 = vpack.c.b16 %v1134, %v1130
        %v1191 = vpack.c.b16 %v1135, %v1131
        %v1192 = vpack.c.b16 %v1136, %v1132
        %v1193 = vpack.c.b16 %v1141, %v1137
        %v1194 = vpack.c.b16 %v1142, %v1138
        %v1195 = vpack.c.b16 %v1143, %v1139
        %v1196 = vpack.c.b16 %v1144, %v1140
        %v1197 = vpack.c.b16 %v1149, %v1145
        %v1198 = vpack.c.b16 %v1150, %v1146
        %v1199 = vpack.c.b16 %v1151, %v1147
        %v1200 = vpack.c.b16 %v1152, %v1148
        %v1201 = vpack.c.b16 %v1157, %v1153
        %v1202 = vpack.c.b16 %v1158, %v1154
        %v1203 = vpack.c.b16 %v1159, %v1155
        %v1204 = vpack.c.b16 %v1160, %v1156
        %v1205 = vpack.c.b16 %v1165, %v1161
        %v1206 = vpack.c.b16 %v1166, %v1162
        %v1207 = vpack.c.b16 %v1167, %v1163
        %v1208 = vpack.c.b16 %v1168, %v1164
        %vm1249 = vcmask 261120
        %v1251 = vsel %vm1249, %v1044, 0
        %v1254 = vsel %vm1249, %v1046, 0
        %1256 = vmatpush.bf16.msra.mxu0 %v1197
        %1257 = vmatpush.bf16.msra.mxu0 %v1193
        %1258 = vmatpush.bf16.msra.mxu0 %v1189
        %1259 = vmatpush.bf16.msra.mxu0 %v1185
        %1260 = vmatpush.bf16.msra.mxu0 %v1181
        %1261 = vmatpush.bf16.msra.mxu0 %v1177
        %1262 = vmatpush.bf16.msra.mxu0 %v1173
        %1263 = vmatpush.bf16.msra.mxu0 %v1169
        %1264 = vmatmul.bf16.gmra.mxu0 %v1043
        %v1265 = vpop.f32.mrf.mxu0
        %v1266 = vadd.f32 %v1014, %v1265
        %v1267 = vpop.f32.mrf.mxu0
        %v1268 = vadd.f32 %v1019, %v1267
        %1269 = vmatmul.bf16.gmra.mxu0 %v1045
        %v1270 = vpop.f32.mrf.mxu0
        %v1271 = vadd.f32 %v1024, %v1270
        %v1272 = vpop.f32.mrf.mxu0
        %v1273 = vadd.f32 %v1029, %v1272
        %1274 = vdwg.mxu0
        %1275 = vmatpush.bf16.msra.mxu0 0
        %1276 = vmatpush.bf16.msra.mxu0 0
        %1277 = vmatpush.bf16.msra.mxu0 0
        %1278 = vmatpush.bf16.msra.mxu0 0
        %1279 = vmatpush.bf16.msra.mxu0 0
        %1280 = vmatpush.bf16.msra.mxu0 0
        %1281 = vmatpush.bf16.msra.mxu0 %v1205
        %1282 = vmatpush.bf16.msra.mxu0 %v1201
        %1283 = vmatmul.bf16.gmra.mxu0 %v1251
        %v1284 = vpop.f32.mrf.mxu0
        %v1285 = vadd.f32 %v1266, %v1284
        %v1286 = vpop.f32.mrf.mxu0
        %v1287 = vadd.f32 %v1268, %v1286
        %1288 = vmatmul.bf16.gmra.mxu0 %v1254
        %v1289 = vpop.f32.mrf.mxu0
        %v1290 = vadd.f32 %v1271, %v1289
        %v1291 = vpop.f32.mrf.mxu0
        %v1292 = vadd.f32 %v1273, %v1291
        %1293 = vdwg.mxu0
        %1294 = vmatpush.bf16.msra.mxu0 %v1198
        %1295 = vmatpush.bf16.msra.mxu0 %v1194
        %1296 = vmatpush.bf16.msra.mxu0 %v1190
        %1297 = vmatpush.bf16.msra.mxu0 %v1186
        %1298 = vmatpush.bf16.msra.mxu0 %v1182
        %1299 = vmatpush.bf16.msra.mxu0 %v1178
        %1300 = vmatpush.bf16.msra.mxu0 %v1174
        %1301 = vmatpush.bf16.msra.mxu0 %v1170
        %1302 = vmatmul.bf16.gmra.mxu0 %v1043
        %v1303 = vpop.f32.mrf.mxu0
        %v1304 = vadd.f32 %v1014, %v1303
        %v1305 = vpop.f32.mrf.mxu0
        %v1306 = vadd.f32 %v1019, %v1305
        %1307 = vmatmul.bf16.gmra.mxu0 %v1045
        %v1308 = vpop.f32.mrf.mxu0
        %v1309 = vadd.f32 %v1024, %v1308
        %v1310 = vpop.f32.mrf.mxu0
        %v1311 = vadd.f32 %v1029, %v1310
        %1312 = vdwg.mxu0
        %1313 = vmatpush.bf16.msra.mxu0 0
        %1314 = vmatpush.bf16.msra.mxu0 0
        %1315 = vmatpush.bf16.msra.mxu0 0
        %1316 = vmatpush.bf16.msra.mxu0 0
        %1317 = vmatpush.bf16.msra.mxu0 0
        %1318 = vmatpush.bf16.msra.mxu0 0
        %1319 = vmatpush.bf16.msra.mxu0 %v1206
        %1320 = vmatpush.bf16.msra.mxu0 %v1202
        %1321 = vmatmul.bf16.gmra.mxu0 %v1251
        %v1322 = vpop.f32.mrf.mxu0
        %v1323 = vadd.f32 %v1304, %v1322
        %v1324 = vpop.f32.mrf.mxu0
        %v1325 = vadd.f32 %v1306, %v1324
        %1326 = vmatmul.bf16.gmra.mxu0 %v1254
        %v1327 = vpop.f32.mrf.mxu0
        %v1328 = vadd.f32 %v1309, %v1327
        %v1329 = vpop.f32.mrf.mxu0
        %v1330 = vadd.f32 %v1311, %v1329
        %1331 = vdwg.mxu0
        %1332 = vmatpush.bf16.msra.mxu0 %v1199
        %1333 = vmatpush.bf16.msra.mxu0 %v1195
        %1334 = vmatpush.bf16.msra.mxu0 %v1191
        %1335 = vmatpush.bf16.msra.mxu0 %v1187
        %1336 = vmatpush.bf16.msra.mxu0 %v1183
        %1337 = vmatpush.bf16.msra.mxu0 %v1179
        %1338 = vmatpush.bf16.msra.mxu0 %v1175
        %1339 = vmatpush.bf16.msra.mxu0 %v1171
        %1340 = vmatmul.bf16.gmra.mxu0 %v1043
        %v1341 = vpop.f32.mrf.mxu0
        %v1342 = vadd.f32 %v1014, %v1341
        %v1343 = vpop.f32.mrf.mxu0
        %v1344 = vadd.f32 %v1019, %v1343
        %1345 = vmatmul.bf16.gmra.mxu0 %v1045
        %v1346 = vpop.f32.mrf.mxu0
        %v1347 = vadd.f32 %v1024, %v1346
        %v1348 = vpop.f32.mrf.mxu0
        %v1349 = vadd.f32 %v1029, %v1348
        %1350 = vdwg.mxu0
        %1351 = vmatpush.bf16.msra.mxu0 0
        %1352 = vmatpush.bf16.msra.mxu0 0
        %1353 = vmatpush.bf16.msra.mxu0 0
        %1354 = vmatpush.bf16.msra.mxu0 0
        %1355 = vmatpush.bf16.msra.mxu0 0
        %1356 = vmatpush.bf16.msra.mxu0 0
        %1357 = vmatpush.bf16.msra.mxu0 %v1207
        %1358 = vmatpush.bf16.msra.mxu0 %v1203
        %1359 = vmatmul.bf16.gmra.mxu0 %v1251
        %v1360 = vpop.f32.mrf.mxu0
        %v1361 = vadd.f32 %v1342, %v1360
        %v1362 = vpop.f32.mrf.mxu0
        %v1363 = vadd.f32 %v1344, %v1362
        %1364 = vmatmul.bf16.gmra.mxu0 %v1254
        %v1365 = vpop.f32.mrf.mxu0
        %v1366 = vadd.f32 %v1347, %v1365
        %v1367 = vpop.f32.mrf.mxu0
        %v1368 = vadd.f32 %v1349, %v1367
        %1369 = vdwg.mxu0
        %1370 = vmatpush.bf16.msra.mxu0 %v1200
        %1371 = vmatpush.bf16.msra.mxu0 %v1196
        %1372 = vmatpush.bf16.msra.mxu0 %v1192
        %1373 = vmatpush.bf16.msra.mxu0 %v1188
        %1374 = vmatpush.bf16.msra.mxu0 %v1184
        %1375 = vmatpush.bf16.msra.mxu0 %v1180
        %1376 = vmatpush.bf16.msra.mxu0 %v1176
        %1377 = vmatpush.bf16.msra.mxu0 %v1172
        %1378 = vmatmul.bf16.gmra.mxu0 %v1043
        %v1379 = vpop.f32.mrf.mxu0
        %v1380 = vadd.f32 %v1014, %v1379
        %v1381 = vpop.f32.mrf.mxu0
        %v1382 = vadd.f32 %v1019, %v1381
        %1383 = vmatmul.bf16.gmra.mxu0 %v1045
        %v1384 = vpop.f32.mrf.mxu0
        %v1385 = vadd.f32 %v1024, %v1384
        %v1386 = vpop.f32.mrf.mxu0
        %v1387 = vadd.f32 %v1029, %v1386
        %1388 = vdwg.mxu0
        %1389 = vmatpush.bf16.msra.mxu0 0
        %1390 = vmatpush.bf16.msra.mxu0 0
        %1391 = vmatpush.bf16.msra.mxu0 0
        %1392 = vmatpush.bf16.msra.mxu0 0
        %1393 = vmatpush.bf16.msra.mxu0 0
        %1394 = vmatpush.bf16.msra.mxu0 0
        %1395 = vmatpush.bf16.msra.mxu0 %v1208
        %1396 = vmatpush.bf16.msra.mxu0 %v1204
        %1397 = vmatmul.bf16.gmra.mxu0 %v1251
        %v1398 = vpop.f32.mrf.mxu0
        %v1399 = vadd.f32 %v1380, %v1398
        %v1400 = vpop.f32.mrf.mxu0
        %v1401 = vadd.f32 %v1382, %v1400
        %1402 = vmatmul.bf16.gmra.mxu0 %v1254
        %v1403 = vpop.f32.mrf.mxu0
        %v1404 = vadd.f32 %v1385, %v1403
        %v1405 = vpop.f32.mrf.mxu0
        %v1406 = vadd.f32 %v1387, %v1405
        %1407 = vdwg.mxu0
        %v1408 = vld [vmem:[%s5] sm:$0xf]
        %vm1409 = vcmp.gt.f32.partialorder %v1408, 0.5
        %v1410 = vsel %vm1409, 1, 0
        %v1411 = vperm.slane %v1410, 0
        %v1412 = vperm.slane %v1410, 1
        %v1413 = vperm.slane %v1410, 2
        %v1414 = vperm.slane %v1410, 3
        %vm1415 = vcmp.eq.s32.totalorder %v1411, 1
        %vm1416 = vcmp.eq.s32.totalorder %v1412, 1
        %vm1417 = vcmp.eq.s32.totalorder %v1413, 1
        %vm1418 = vcmp.eq.s32.totalorder %v1414, 1
        %v1419 = vsel %vm1415, %v1285, 0.0
        %v1420 = vsel %vm1416, %v1323, 0.0
        %v1421 = vsel %vm1417, %v1361, 0.0
        %v1422 = vsel %vm1418, %v1399, 0.0
        %v1423 = vsel %vm1415, %v1287, 0.0
        %v1424 = vsel %vm1416, %v1325, 0.0
        %v1425 = vsel %vm1417, %v1363, 0.0
        %v1426 = vsel %vm1418, %v1401, 0.0
        %v1427 = vsel %vm1415, %v1290, 0.0
        %v1428 = vsel %vm1416, %v1328, 0.0
        %v1429 = vsel %vm1417, %v1366, 0.0
        %v1430 = vsel %vm1418, %v1404, 0.0
        %v1431 = vsel %vm1415, %v1292, 0.0
        %v1432 = vsel %vm1416, %v1330, 0.0
        %v1433 = vsel %vm1417, %v1368, 0.0
        %v1434 = vsel %vm1418, %v1406, 0.0
        %v1435 = vld [vmem:[%s3] sm:$0xff]
        %v1436 = vld [vmem:[%s3 + $0x8] sm:$0xff]
        %v1437 = vld [vmem:[%s3 + $0x10] sm:$0xff]
        %v1438 = vld [vmem:[%s3 + $0x18] sm:$0xff]
        %v1439 = vld [vmem:[%s4] sm:$0xff]
        %v1440 = vld [vmem:[%s4 + $0x8] sm:$0xff]
        %v1441 = vld [vmem:[%s4 + $0x10] sm:$0xff]
        %v1442 = vld [vmem:[%s4 + $0x18] sm:$0xff]
        %v1443 = vpack.c.bf16 %v1420, %v1419
        %v1444 = vpack.c.bf16 %v1422, %v1421
        %v1445 = vpack.c.bf16 %v1424, %v1423
        %v1446 = vpack.c.bf16 %v1426, %v1425
        %v1447 = vpack.c.bf16 %v1428, %v1427
        %v1448 = vpack.c.bf16 %v1430, %v1429
        %v1449 = vpack.c.bf16 %v1432, %v1431
        %v1450 = vpack.c.bf16 %v1434, %v1433
        %1451 = vst.msk [vmem:[#allocation2] sm:$0xf] %vm690, 0
        %1452 = vst.msk [vmem:[#allocation2 + $0x10] sm:$0xf] %vm690, 0
        %1453 = vst.msk [vmem:[#allocation2 + $0x20] sm:$0xf] %vm690, 0
        %1454 = vst.msk [vmem:[#allocation2 + $0x30] sm:$0xf] %vm690, 0
        %1455 = vst.msk [vmem:[#allocation2 + $0x40] sm:$0xf] %vm690, 0
        %1456 = vst.msk [vmem:[#allocation2 + $0x50] sm:$0xf] %vm690, 0
        %1457 = vst.msk [vmem:[#allocation2 + $0x60] sm:$0xf] %vm690, 0
        %1458 = vst.msk [vmem:[#allocation2 + $0x70] sm:$0xf] %vm690, 0
        %1459 = vst.msk [vmem:[#allocation2 + $0x80] sm:$0xf] %vm690, 0
        %1460 = vst.msk [vmem:[#allocation2 + $0x90] sm:$0xf] %vm690, 0
        %1461 = vst.msk [vmem:[#allocation2 + $0xa0] sm:$0xf] %vm690, 0
        %1462 = vst.msk [vmem:[#allocation2 + $0xb0] sm:$0xf] %vm690, 0
        %1463 = vst.msk [vmem:[#allocation2 + $0xc0] sm:$0xf] %vm690, 0
        %1464 = vst.msk [vmem:[#allocation2 + $0xd0] sm:$0xf] %vm690, 0
        %1465 = vst.msk [vmem:[#allocation2 + $0xe0] sm:$0xf] %vm690, 0
        %1466 = vst.msk [vmem:[#allocation2 + $0xf0] sm:$0xf] %vm690, 0
        %1467 = vst.msk [vmem:[#allocation2 + $0x100] sm:$0xf] %vm690, 0
        %1468 = vst.msk [vmem:[#allocation2 + $0x110] sm:$0xf] %vm690, 0
        %1469 = vst.msk [vmem:[#allocation2 + $0x120] sm:$0xf] %vm690, 0
        %1470 = vst.msk [vmem:[#allocation2 + $0x130] sm:$0xf] %vm690, 0
        %1471 = vst.msk [vmem:[#allocation2 + $0xc] sm:$0xf] %vm711, 0
        %1472 = vst.msk [vmem:[#allocation2 + $0x1c] sm:$0xf] %vm711, 0
        %1473 = vst.msk [vmem:[#allocation2 + $0x2c] sm:$0xf] %vm711, 0
        %1474 = vst.msk [vmem:[#allocation2 + $0x3c] sm:$0xf] %vm711, 0
        %1475 = vst.msk [vmem:[#allocation2 + $0x4c] sm:$0xf] %vm711, 0
        %1476 = vst.msk [vmem:[#allocation2 + $0x5c] sm:$0xf] %vm711, 0
        %1477 = vst.msk [vmem:[#allocation2 + $0x6c] sm:$0xf] %vm711, 0
        %1478 = vst.msk [vmem:[#allocation2 + $0x7c] sm:$0xf] %vm711, 0
        %1479 = vst.msk [vmem:[#allocation2 + $0x8c] sm:$0xf] %vm711, 0
        %1480 = vst.msk [vmem:[#allocation2 + $0x9c] sm:$0xf] %vm711, 0
        %1481 = vst.msk [vmem:[#allocation2 + $0xac] sm:$0xf] %vm711, 0
        %1482 = vst.msk [vmem:[#allocation2 + $0xbc] sm:$0xf] %vm711, 0
        %1483 = vst.msk [vmem:[#allocation2 + $0xcc] sm:$0xf] %vm711, 0
        %1484 = vst.msk [vmem:[#allocation2 + $0xdc] sm:$0xf] %vm711, 0
        %1485 = vst.msk [vmem:[#allocation2 + $0xec] sm:$0xf] %vm711, 0
        %1486 = vst.msk [vmem:[#allocation2 + $0xfc] sm:$0xf] %vm711, 0
        %1487 = vst.msk [vmem:[#allocation2 + $0x10c] sm:$0xf] %vm711, 0
        %1488 = vst.msk [vmem:[#allocation2 + $0x11c] sm:$0xf] %vm711, 0
        %1489 = vst.msk [vmem:[#allocation2 + $0x12c] sm:$0xf] %vm711, 0
        %1490 = vst.msk [vmem:[#allocation2 + $0x13c] sm:$0xf] %vm711, 0
        %1499 = vrot.lane.b32.xlu0 %v1443, 2
        %v1500 = vpop.permute.xlu0 %1499
        %1501 = vrot.lane.b32.xlu0 %v1444, 2
        %v1502 = vpop.permute.xlu0 %1501
        %1503 = vrot.lane.b32.xlu0 %v1445, 2
        %v1504 = vpop.permute.xlu0 %1503
        %1505 = vrot.lane.b32.xlu0 %v1446, 2
        %v1506 = vpop.permute.xlu0 %1505
        %1507 = vrot.lane.b32.xlu0 %v1447, 2
        %v1508 = vpop.permute.xlu0 %1507
        %1509 = vrot.lane.b32.xlu0 %v1448, 2
        %v1510 = vpop.permute.xlu0 %1509
        %1511 = vrot.lane.b32.xlu0 %v1449, 2
        %v1512 = vpop.permute.xlu0 %1511
        %1513 = vrot.lane.b32.xlu0 %v1450, 2
        %v1514 = vpop.permute.xlu0 %1513
        %v1515 = vrot.slane %v1500, 4
        %v1516 = vrot.slane %v1502, 4
        %v1517 = vrot.slane %v1504, 4
        %v1518 = vrot.slane %v1506, 4
        %v1519 = vrot.slane %v1508, 4
        %v1520 = vrot.slane %v1510, 4
        %v1521 = vrot.slane %v1512, 4
        %v1522 = vrot.slane %v1514, 4
        %v1523 = vsel %vm764, %v1515, %v1500
        %v1524 = vsel %vm766, %v1515, %v1516
        %v1525 = vsel %vm764, %v1524, %v1502
        %v1526 = vsel %vm764, %v1517, %v1504
        %v1527 = vsel %vm766, %v1517, %v1518
        %v1528 = vsel %vm764, %v1527, %v1506
        %v1529 = vsel %vm764, %v1519, %v1508
        %v1530 = vsel %vm766, %v1519, %v1520
        %v1531 = vsel %vm764, %v1530, %v1510
        %v1532 = vsel %vm764, %v1521, %v1512
        %v1533 = vsel %vm766, %v1521, %v1522
        %v1534 = vsel %vm764, %v1533, %v1514
        %1543 = vst.msk [vmem:[#allocation2] sm:$0xff] %vm788, %v1523
        %1544 = vst [vmem:[#allocation2 + $0x8] sm:$0xff] %v1525
        %1545 = vst.msk [vmem:[#allocation2 + $0x10] sm:$0xff] %vm788, %v1526
        %1546 = vst [vmem:[#allocation2 + $0x18] sm:$0xff] %v1528
        %1547 = vst.msk [vmem:[#allocation2 + $0x20] sm:$0xff] %vm788, %v1529
        %1548 = vst [vmem:[#allocation2 + $0x28] sm:$0xff] %v1531
        %1549 = vst.msk [vmem:[#allocation2 + $0x30] sm:$0xff] %vm788, %v1532
        %1550 = vst [vmem:[#allocation2 + $0x38] sm:$0xff] %v1534
        %1551 = vrot.lane.b32.xlu0 %v1443, 1
        %v1552 = vpop.permute.xlu0 %1551
        %1553 = vrot.lane.b32.xlu0 %v1444, 1
        %v1554 = vpop.permute.xlu0 %1553
        %1555 = vrot.lane.b32.xlu0 %v1445, 1
        %v1556 = vpop.permute.xlu0 %1555
        %1557 = vrot.lane.b32.xlu0 %v1446, 1
        %v1558 = vpop.permute.xlu0 %1557
        %1559 = vrot.lane.b32.xlu0 %v1447, 1
        %v1560 = vpop.permute.xlu0 %1559
        %1561 = vrot.lane.b32.xlu0 %v1448, 1
        %v1562 = vpop.permute.xlu0 %1561
        %1563 = vrot.lane.b32.xlu0 %v1449, 1
        %v1564 = vpop.permute.xlu0 %1563
        %1565 = vrot.lane.b32.xlu0 %v1450, 1
        %v1566 = vpop.permute.xlu0 %1565
        %v1567 = vrot.slane %v1552, 4
        %v1568 = vrot.slane %v1554, 4
        %v1569 = vrot.slane %v1556, 4
        %v1570 = vrot.slane %v1558, 4
        %v1571 = vrot.slane %v1560, 4
        %v1572 = vrot.slane %v1562, 4
        %v1573 = vrot.slane %v1564, 4
        %v1574 = vrot.slane %v1566, 4
        %v1575 = vsel %vm821, %v1567, %v1552
        %v1576 = vsel %vm766, %v1567, %v1568
        %v1577 = vsel %vm821, %v1576, %v1554
        %v1578 = vsel %vm821, %v1569, %v1556
        %v1579 = vsel %vm766, %v1569, %v1570
        %v1580 = vsel %vm821, %v1579, %v1558
        %v1581 = vsel %vm821, %v1571, %v1560
        %v1582 = vsel %vm766, %v1571, %v1572
        %v1583 = vsel %vm821, %v1582, %v1562
        %v1584 = vsel %vm821, %v1573, %v1564
        %v1585 = vsel %vm766, %v1573, %v1574
        %v1586 = vsel %vm821, %v1585, %v1566
        %1595 = vst.msk [vmem:[#allocation2 + $0x40] sm:$0xff] %vm843, %v1575
        %1596 = vst [vmem:[#allocation2 + $0x48] sm:$0xff] %v1577
        %1597 = vst.msk [vmem:[#allocation2 + $0x50] sm:$0xff] %vm843, %v1578
        %1598 = vst [vmem:[#allocation2 + $0x58] sm:$0xff] %v1580
        %1599 = vst.msk [vmem:[#allocation2 + $0x60] sm:$0xff] %vm843, %v1581
        %1600 = vst [vmem:[#allocation2 + $0x68] sm:$0xff] %v1583
        %1601 = vst.msk [vmem:[#allocation2 + $0x70] sm:$0xff] %vm843, %v1584
        %1602 = vst [vmem:[#allocation2 + $0x78] sm:$0xff] %v1586
        %1603 = vst [vmem:[#allocation2 + $0x80] sm:$0xff] %v1443
        %1604 = vst [vmem:[#allocation2 + $0x88] sm:$0xff] %v1444
        %1605 = vst [vmem:[#allocation2 + $0x90] sm:$0xff] %v1445
        %1606 = vst [vmem:[#allocation2 + $0x98] sm:$0xff] %v1446
        %1607 = vst [vmem:[#allocation2 + $0xa0] sm:$0xff] %v1447
        %1608 = vst [vmem:[#allocation2 + $0xa8] sm:$0xff] %v1448
        %1609 = vst [vmem:[#allocation2 + $0xb0] sm:$0xff] %v1449
        %1610 = vst [vmem:[#allocation2 + $0xb8] sm:$0xff] %v1450
        %1611 = vrot.lane.b32.xlu0 %v1443, 127
        %v1612 = vpop.permute.xlu0 %1611
        %1613 = vrot.lane.b32.xlu0 %v1444, 127
        %v1614 = vpop.permute.xlu0 %1613
        %1615 = vrot.lane.b32.xlu0 %v1445, 127
        %v1616 = vpop.permute.xlu0 %1615
        %1617 = vrot.lane.b32.xlu0 %v1446, 127
        %v1618 = vpop.permute.xlu0 %1617
        %1619 = vrot.lane.b32.xlu0 %v1447, 127
        %v1620 = vpop.permute.xlu0 %1619
        %1621 = vrot.lane.b32.xlu0 %v1448, 127
        %v1622 = vpop.permute.xlu0 %1621
        %1623 = vrot.lane.b32.xlu0 %v1449, 127
        %v1624 = vpop.permute.xlu0 %1623
        %1625 = vrot.lane.b32.xlu0 %v1450, 127
        %v1626 = vpop.permute.xlu0 %1625
        %v1627 = vrot.slane %v1612, 4
        %v1628 = vrot.slane %v1614, 4
        %v1629 = vrot.slane %v1616, 4
        %v1630 = vrot.slane %v1618, 4
        %v1631 = vrot.slane %v1620, 4
        %v1632 = vrot.slane %v1622, 4
        %v1633 = vrot.slane %v1624, 4
        %v1634 = vrot.slane %v1626, 4
        %v1635 = vsel %vm766, %v1627, %v1628
        %v1636 = vsel %vm885, %v1612, %v1635
        %v1637 = vsel %vm885, %v1614, %v1628
        %v1638 = vsel %vm766, %v1629, %v1630
        %v1639 = vsel %vm885, %v1616, %v1638
        %v1640 = vsel %vm885, %v1618, %v1630
        %v1641 = vsel %vm766, %v1631, %v1632
        %v1642 = vsel %vm885, %v1620, %v1641
        %v1643 = vsel %vm885, %v1622, %v1632
        %v1644 = vsel %vm766, %v1633, %v1634
        %v1645 = vsel %vm885, %v1624, %v1644
        %v1646 = vsel %vm885, %v1626, %v1634
        %1655 = vst [vmem:[#allocation2 + $0xc0] sm:$0xff] %v1636
        %1656 = vst.msk [vmem:[#allocation2 + $0xc8] sm:$0xff] %vm908, %v1637
        %1657 = vst [vmem:[#allocation2 + $0xd0] sm:$0xff] %v1639
        %1658 = vst.msk [vmem:[#allocation2 + $0xd8] sm:$0xff] %vm908, %v1640
        %1659 = vst [vmem:[#allocation2 + $0xe0] sm:$0xff] %v1642
        %1660 = vst.msk [vmem:[#allocation2 + $0xe8] sm:$0xff] %vm908, %v1643
        %1661 = vst [vmem:[#allocation2 + $0xf0] sm:$0xff] %v1645
        %1662 = vst.msk [vmem:[#allocation2 + $0xf8] sm:$0xff] %vm908, %v1646
        %1663 = vrot.lane.b32.xlu0 %v1443, 126
        %v1664 = vpop.permute.xlu0 %1663
        %1665 = vrot.lane.b32.xlu0 %v1444, 126
        %v1666 = vpop.permute.xlu0 %1665
        %1667 = vrot.lane.b32.xlu0 %v1445, 126
        %v1668 = vpop.permute.xlu0 %1667
        %1669 = vrot.lane.b32.xlu0 %v1446, 126
        %v1670 = vpop.permute.xlu0 %1669
        %1671 = vrot.lane.b32.xlu0 %v1447, 126
        %v1672 = vpop.permute.xlu0 %1671
        %1673 = vrot.lane.b32.xlu0 %v1448, 126
        %v1674 = vpop.permute.xlu0 %1673
        %1675 = vrot.lane.b32.xlu0 %v1449, 126
        %v1676 = vpop.permute.xlu0 %1675
        %1677 = vrot.lane.b32.xlu0 %v1450, 126
        %v1678 = vpop.permute.xlu0 %1677
        %v1679 = vrot.slane %v1664, 4
        %v1680 = vrot.slane %v1666, 4
        %v1681 = vrot.slane %v1668, 4
        %v1682 = vrot.slane %v1670, 4
        %v1683 = vrot.slane %v1672, 4
        %v1684 = vrot.slane %v1674, 4
        %v1685 = vrot.slane %v1676, 4
        %v1686 = vrot.slane %v1678, 4
        %v1687 = vsel %vm766, %v1679, %v1680
        %v1688 = vsel %vm941, %v1664, %v1687
        %v1689 = vsel %vm941, %v1666, %v1680
        %v1690 = vsel %vm766, %v1681, %v1682
        %v1691 = vsel %vm941, %v1668, %v1690
        %v1692 = vsel %vm941, %v1670, %v1682
        %v1693 = vsel %vm766, %v1683, %v1684
        %v1694 = vsel %vm941, %v1672, %v1693
        %v1695 = vsel %vm941, %v1674, %v1684
        %v1696 = vsel %vm766, %v1685, %v1686
        %v1697 = vsel %vm941, %v1676, %v1696
        %v1698 = vsel %vm941, %v1678, %v1686
        %1707 = vst [vmem:[#allocation2 + $0x100] sm:$0xff] %v1688
        %1708 = vst.msk [vmem:[#allocation2 + $0x108] sm:$0xff] %vm963, %v1689
        %1709 = vst [vmem:[#allocation2 + $0x110] sm:$0xff] %v1691
        %1710 = vst.msk [vmem:[#allocation2 + $0x118] sm:$0xff] %vm963, %v1692
        %1711 = vst [vmem:[#allocation2 + $0x120] sm:$0xff] %v1694
        %1712 = vst.msk [vmem:[#allocation2 + $0x128] sm:$0xff] %vm963, %v1695
        %1713 = vst [vmem:[#allocation2 + $0x130] sm:$0xff] %v1697
        %1714 = vst.msk [vmem:[#allocation2 + $0x138] sm:$0xff] %vm963, %v1698
        %v1715 = vld [vmem:[#allocation2] sm:$0xff]
        %v1716 = vld [vmem:[#allocation2 + $0x8] sm:$0xff]
        %v1717 = vld [vmem:[#allocation2 + $0x10] sm:$0xff]
        %v1718 = vld [vmem:[#allocation2 + $0x18] sm:$0xff]
        %v1719 = vld [vmem:[#allocation2 + $0x20] sm:$0xff]
        %v1720 = vld [vmem:[#allocation2 + $0x28] sm:$0xff]
        %v1721 = vld [vmem:[#allocation2 + $0x30] sm:$0xff]
        %v1722 = vld [vmem:[#allocation2 + $0x38] sm:$0xff]
        %v1723 = vld [vmem:[#allocation2 + $0x40] sm:$0xff]
        %v1724 = vld [vmem:[#allocation2 + $0x48] sm:$0xff]
        %v1725 = vld [vmem:[#allocation2 + $0x50] sm:$0xff]
        %v1726 = vld [vmem:[#allocation2 + $0x58] sm:$0xff]
        %v1727 = vld [vmem:[#allocation2 + $0x60] sm:$0xff]
        %v1728 = vld [vmem:[#allocation2 + $0x68] sm:$0xff]
        %v1729 = vld [vmem:[#allocation2 + $0x70] sm:$0xff]
        %v1730 = vld [vmem:[#allocation2 + $0x78] sm:$0xff]
        %v1731 = vld [vmem:[#allocation2 + $0x80] sm:$0xff]
        %v1732 = vld [vmem:[#allocation2 + $0x88] sm:$0xff]
        %v1733 = vld [vmem:[#allocation2 + $0x90] sm:$0xff]
        %v1734 = vld [vmem:[#allocation2 + $0x98] sm:$0xff]
        %v1735 = vld [vmem:[#allocation2 + $0xa0] sm:$0xff]
        %v1736 = vld [vmem:[#allocation2 + $0xa8] sm:$0xff]
        %v1737 = vld [vmem:[#allocation2 + $0xb0] sm:$0xff]
        %v1738 = vld [vmem:[#allocation2 + $0xb8] sm:$0xff]
        %v1739 = vld [vmem:[#allocation2 + $0xc0] sm:$0xff]
        %v1740 = vld [vmem:[#allocation2 + $0xc8] sm:$0xff]
        %v1741 = vld [vmem:[#allocation2 + $0xd0] sm:$0xff]
        %v1742 = vld [vmem:[#allocation2 + $0xd8] sm:$0xff]
        %v1743 = vld [vmem:[#allocation2 + $0xe0] sm:$0xff]
        %v1744 = vld [vmem:[#allocation2 + $0xe8] sm:$0xff]
        %v1745 = vld [vmem:[#allocation2 + $0xf0] sm:$0xff]
        %v1746 = vld [vmem:[#allocation2 + $0xf8] sm:$0xff]
        %v1747 = vld [vmem:[#allocation2 + $0x100] sm:$0xff]
        %v1748 = vld [vmem:[#allocation2 + $0x108] sm:$0xff]
        %v1749 = vld [vmem:[#allocation2 + $0x110] sm:$0xff]
        %v1750 = vld [vmem:[#allocation2 + $0x118] sm:$0xff]
        %v1751 = vld [vmem:[#allocation2 + $0x120] sm:$0xff]
        %v1752 = vld [vmem:[#allocation2 + $0x128] sm:$0xff]
        %v1753 = vld [vmem:[#allocation2 + $0x130] sm:$0xff]
        %v1754 = vld [vmem:[#allocation2 + $0x138] sm:$0xff]
        %1756 = vset.pattern.permute.xlu0 0
        %1757 = vperm.xlu0 %1756, %v1439
        %v1758 = vpop.permute.xlu0 %1757
        %1761 = vset.pattern.permute.xlu0 0
        %1762 = vperm.xlu0 %1761, %v1440
        %v1763 = vpop.permute.xlu0 %1762
        %1766 = vset.pattern.permute.xlu0 0
        %1767 = vperm.xlu0 %1766, %v1441
        %v1768 = vpop.permute.xlu0 %1767
        %1771 = vset.pattern.permute.xlu0 0
        %1772 = vperm.xlu0 %1771, %v1442
        %v1773 = vpop.permute.xlu0 %1772
        %v1779 = vunpack.c.l.b16 %v1435
        %v1780 = vunpack.c.h.b16 %v1435
        %v1781 = vunpack.c.l.b16 %v1436
        %v1782 = vunpack.c.h.b16 %v1436
        %v1783 = vunpack.c.l.b16 %v1437
        %v1784 = vunpack.c.h.b16 %v1437
        %v1785 = vunpack.c.l.b16 %v1438
        %v1786 = vunpack.c.h.b16 %v1438
        %v1787 = vpack.c.b16 %v1781, %v1779
        %v1788 = vpack.c.b16 %v1782, %v1780
        %v1789 = vpack.c.b16 %v1785, %v1783
        %v1790 = vpack.c.b16 %v1786, %v1784
        %v1833 = vunpack.c.l.b16 %v1715
        %v1834 = vunpack.c.h.b16 %v1715
        %v1835 = vunpack.c.l.b16 %v1716
        %v1836 = vunpack.c.h.b16 %v1716
        %v1837 = vunpack.c.l.b16 %v1717
        %v1838 = vunpack.c.h.b16 %v1717
        %v1839 = vunpack.c.l.b16 %v1718
        %v1840 = vunpack.c.h.b16 %v1718
        %v1841 = vunpack.c.l.b16 %v1719
        %v1842 = vunpack.c.h.b16 %v1719
        %v1843 = vunpack.c.l.b16 %v1720
        %v1844 = vunpack.c.h.b16 %v1720
        %v1845 = vunpack.c.l.b16 %v1721
        %v1846 = vunpack.c.h.b16 %v1721
        %v1847 = vunpack.c.l.b16 %v1722
        %v1848 = vunpack.c.h.b16 %v1722
        %v1849 = vunpack.c.l.b16 %v1723
        %v1850 = vunpack.c.h.b16 %v1723
        %v1851 = vunpack.c.l.b16 %v1724
        %v1852 = vunpack.c.h.b16 %v1724
        %v1853 = vunpack.c.l.b16 %v1725
        %v1854 = vunpack.c.h.b16 %v1725
        %v1855 = vunpack.c.l.b16 %v1726
        %v1856 = vunpack.c.h.b16 %v1726
        %v1857 = vunpack.c.l.b16 %v1727
        %v1858 = vunpack.c.h.b16 %v1727
        %v1859 = vunpack.c.l.b16 %v1728
        %v1860 = vunpack.c.h.b16 %v1728
        %v1861 = vunpack.c.l.b16 %v1729
        %v1862 = vunpack.c.h.b16 %v1729
        %v1863 = vunpack.c.l.b16 %v1730
        %v1864 = vunpack.c.h.b16 %v1730
        %v1865 = vunpack.c.l.b16 %v1731
        %v1866 = vunpack.c.h.b16 %v1731
        %v1867 = vunpack.c.l.b16 %v1732
        %v1868 = vunpack.c.h.b16 %v1732
        %v1869 = vunpack.c.l.b16 %v1733
        %v1870 = vunpack.c.h.b16 %v1733
        %v1871 = vunpack.c.l.b16 %v1734
        %v1872 = vunpack.c.h.b16 %v1734
        %v1873 = vunpack.c.l.b16 %v1735
        %v1874 = vunpack.c.h.b16 %v1735
        %v1875 = vunpack.c.l.b16 %v1736
        %v1876 = vunpack.c.h.b16 %v1736
        %v1877 = vunpack.c.l.b16 %v1737
        %v1878 = vunpack.c.h.b16 %v1737
        %v1879 = vunpack.c.l.b16 %v1738
        %v1880 = vunpack.c.h.b16 %v1738
        %v1881 = vunpack.c.l.b16 %v1739
        %v1882 = vunpack.c.h.b16 %v1739
        %v1883 = vunpack.c.l.b16 %v1740
        %v1884 = vunpack.c.h.b16 %v1740
        %v1885 = vunpack.c.l.b16 %v1741
        %v1886 = vunpack.c.h.b16 %v1741
        %v1887 = vunpack.c.l.b16 %v1742
        %v1888 = vunpack.c.h.b16 %v1742
        %v1889 = vunpack.c.l.b16 %v1743
        %v1890 = vunpack.c.h.b16 %v1743
        %v1891 = vunpack.c.l.b16 %v1744
        %v1892 = vunpack.c.h.b16 %v1744
        %v1893 = vunpack.c.l.b16 %v1745
        %v1894 = vunpack.c.h.b16 %v1745
        %v1895 = vunpack.c.l.b16 %v1746
        %v1896 = vunpack.c.h.b16 %v1746
        %v1897 = vunpack.c.l.b16 %v1747
        %v1898 = vunpack.c.h.b16 %v1747
        %v1899 = vunpack.c.l.b16 %v1748
        %v1900 = vunpack.c.h.b16 %v1748
        %v1901 = vunpack.c.l.b16 %v1749
        %v1902 = vunpack.c.h.b16 %v1749
        %v1903 = vunpack.c.l.b16 %v1750
        %v1904 = vunpack.c.h.b16 %v1750
        %v1905 = vunpack.c.l.b16 %v1751
        %v1906 = vunpack.c.h.b16 %v1751
        %v1907 = vunpack.c.l.b16 %v1752
        %v1908 = vunpack.c.h.b16 %v1752
        %v1909 = vunpack.c.l.b16 %v1753
        %v1910 = vunpack.c.h.b16 %v1753
        %v1911 = vunpack.c.l.b16 %v1754
        %v1912 = vunpack.c.h.b16 %v1754
        %v1913 = vpack.c.b16 %v1837, %v1833
        %v1914 = vpack.c.b16 %v1838, %v1834
        %v1915 = vpack.c.b16 %v1839, %v1835
        %v1916 = vpack.c.b16 %v1840, %v1836
        %v1917 = vpack.c.b16 %v1845, %v1841
        %v1918 = vpack.c.b16 %v1846, %v1842
        %v1919 = vpack.c.b16 %v1847, %v1843
        %v1920 = vpack.c.b16 %v1848, %v1844
        %v1921 = vpack.c.b16 %v1853, %v1849
        %v1922 = vpack.c.b16 %v1854, %v1850
        %v1923 = vpack.c.b16 %v1855, %v1851
        %v1924 = vpack.c.b16 %v1856, %v1852
        %v1925 = vpack.c.b16 %v1861, %v1857
        %v1926 = vpack.c.b16 %v1862, %v1858
        %v1927 = vpack.c.b16 %v1863, %v1859
        %v1928 = vpack.c.b16 %v1864, %v1860
        %v1929 = vpack.c.b16 %v1869, %v1865
        %v1930 = vpack.c.b16 %v1870, %v1866
        %v1931 = vpack.c.b16 %v1871, %v1867
        %v1932 = vpack.c.b16 %v1872, %v1868
        %v1933 = vpack.c.b16 %v1877, %v1873
        %v1934 = vpack.c.b16 %v1878, %v1874
        %v1935 = vpack.c.b16 %v1879, %v1875
        %v1936 = vpack.c.b16 %v1880, %v1876
        %v1937 = vpack.c.b16 %v1885, %v1881
        %v1938 = vpack.c.b16 %v1886, %v1882
        %v1939 = vpack.c.b16 %v1887, %v1883
        %v1940 = vpack.c.b16 %v1888, %v1884
        %v1941 = vpack.c.b16 %v1893, %v1889
        %v1942 = vpack.c.b16 %v1894, %v1890
        %v1943 = vpack.c.b16 %v1895, %v1891
        %v1944 = vpack.c.b16 %v1896, %v1892
        %v1945 = vpack.c.b16 %v1901, %v1897
        %v1946 = vpack.c.b16 %v1902, %v1898
        %v1947 = vpack.c.b16 %v1903, %v1899
        %v1948 = vpack.c.b16 %v1904, %v1900
        %v1949 = vpack.c.b16 %v1909, %v1905
        %v1950 = vpack.c.b16 %v1910, %v1906
        %v1951 = vpack.c.b16 %v1911, %v1907
        %v1952 = vpack.c.b16 %v1912, %v1908
        %v1994 = vsel %vm1249, %v1788, 0
        %v1997 = vsel %vm1249, %v1790, 0
        %1999 = vmatpush.bf16.msra.mxu0 %v1941
        %2000 = vmatpush.bf16.msra.mxu0 %v1937
        %2001 = vmatpush.bf16.msra.mxu0 %v1933
        %2002 = vmatpush.bf16.msra.mxu0 %v1929
        %2003 = vmatpush.bf16.msra.mxu0 %v1925
        %2004 = vmatpush.bf16.msra.mxu0 %v1921
        %2005 = vmatpush.bf16.msra.mxu0 %v1917
        %2006 = vmatpush.bf16.msra.mxu0 %v1913
        %2007 = vmatmul.bf16.gmra.mxu0 %v1787
        %v2008 = vpop.f32.mrf.mxu0
        %v2009 = vadd.f32 %v1758, %v2008
        %v2010 = vpop.f32.mrf.mxu0
        %v2011 = vadd.f32 %v1763, %v2010
        %2012 = vmatmul.bf16.gmra.mxu0 %v1789
        %v2013 = vpop.f32.mrf.mxu0
        %v2014 = vadd.f32 %v1768, %v2013
        %v2015 = vpop.f32.mrf.mxu0
        %v2016 = vadd.f32 %v1773, %v2015
        %2017 = vdwg.mxu0
        %2018 = vmatpush.bf16.msra.mxu0 0
        %2019 = vmatpush.bf16.msra.mxu0 0
        %2020 = vmatpush.bf16.msra.mxu0 0
        %2021 = vmatpush.bf16.msra.mxu0 0
        %2022 = vmatpush.bf16.msra.mxu0 0
        %2023 = vmatpush.bf16.msra.mxu0 0
        %2024 = vmatpush.bf16.msra.mxu0 %v1949
        %2025 = vmatpush.bf16.msra.mxu0 %v1945
        %2026 = vmatmul.bf16.gmra.mxu0 %v1994
        %v2027 = vpop.f32.mrf.mxu0
        %v2028 = vadd.f32 %v2009, %v2027
        %v2029 = vpop.f32.mrf.mxu0
        %v2030 = vadd.f32 %v2011, %v2029
        %2031 = vmatmul.bf16.gmra.mxu0 %v1997
        %v2032 = vpop.f32.mrf.mxu0
        %v2033 = vadd.f32 %v2014, %v2032
        %v2034 = vpop.f32.mrf.mxu0
        %v2035 = vadd.f32 %v2016, %v2034
        %2036 = vdwg.mxu0
        %2037 = vmatpush.bf16.msra.mxu0 %v1942
        %2038 = vmatpush.bf16.msra.mxu0 %v1938
        %2039 = vmatpush.bf16.msra.mxu0 %v1934
        %2040 = vmatpush.bf16.msra.mxu0 %v1930
        %2041 = vmatpush.bf16.msra.mxu0 %v1926
        %2042 = vmatpush.bf16.msra.mxu0 %v1922
        %2043 = vmatpush.bf16.msra.mxu0 %v1918
        %2044 = vmatpush.bf16.msra.mxu0 %v1914
        %2045 = vmatmul.bf16.gmra.mxu0 %v1787
        %v2046 = vpop.f32.mrf.mxu0
        %v2047 = vadd.f32 %v1758, %v2046
        %v2048 = vpop.f32.mrf.mxu0
        %v2049 = vadd.f32 %v1763, %v2048
        %2050 = vmatmul.bf16.gmra.mxu0 %v1789
        %v2051 = vpop.f32.mrf.mxu0
        %v2052 = vadd.f32 %v1768, %v2051
        %v2053 = vpop.f32.mrf.mxu0
        %v2054 = vadd.f32 %v1773, %v2053
        %2055 = vdwg.mxu0
        %2056 = vmatpush.bf16.msra.mxu0 0
        %2057 = vmatpush.bf16.msra.mxu0 0
        %2058 = vmatpush.bf16.msra.mxu0 0
        %2059 = vmatpush.bf16.msra.mxu0 0
        %2060 = vmatpush.bf16.msra.mxu0 0
        %2061 = vmatpush.bf16.msra.mxu0 0
        %2062 = vmatpush.bf16.msra.mxu0 %v1950
        %2063 = vmatpush.bf16.msra.mxu0 %v1946
        %2064 = vmatmul.bf16.gmra.mxu0 %v1994
        %v2065 = vpop.f32.mrf.mxu0
        %v2066 = vadd.f32 %v2047, %v2065
        %v2067 = vpop.f32.mrf.mxu0
        %v2068 = vadd.f32 %v2049, %v2067
        %2069 = vmatmul.bf16.gmra.mxu0 %v1997
        %v2070 = vpop.f32.mrf.mxu0
        %v2071 = vadd.f32 %v2052, %v2070
        %v2072 = vpop.f32.mrf.mxu0
        %v2073 = vadd.f32 %v2054, %v2072
        %2074 = vdwg.mxu0
        %2075 = vmatpush.bf16.msra.mxu0 %v1943
        %2076 = vmatpush.bf16.msra.mxu0 %v1939
        %2077 = vmatpush.bf16.msra.mxu0 %v1935
        %2078 = vmatpush.bf16.msra.mxu0 %v1931
        %2079 = vmatpush.bf16.msra.mxu0 %v1927
        %2080 = vmatpush.bf16.msra.mxu0 %v1923
        %2081 = vmatpush.bf16.msra.mxu0 %v1919
        %2082 = vmatpush.bf16.msra.mxu0 %v1915
        %2083 = vmatmul.bf16.gmra.mxu0 %v1787
        %v2084 = vpop.f32.mrf.mxu0
        %v2085 = vadd.f32 %v1758, %v2084
        %v2086 = vpop.f32.mrf.mxu0
        %v2087 = vadd.f32 %v1763, %v2086
        %2088 = vmatmul.bf16.gmra.mxu0 %v1789
        %v2089 = vpop.f32.mrf.mxu0
        %v2090 = vadd.f32 %v1768, %v2089
        %v2091 = vpop.f32.mrf.mxu0
        %v2092 = vadd.f32 %v1773, %v2091
        %2093 = vdwg.mxu0
        %2094 = vmatpush.bf16.msra.mxu0 0
        %2095 = vmatpush.bf16.msra.mxu0 0
        %2096 = vmatpush.bf16.msra.mxu0 0
        %2097 = vmatpush.bf16.msra.mxu0 0
        %2098 = vmatpush.bf16.msra.mxu0 0
        %2099 = vmatpush.bf16.msra.mxu0 0
        %2100 = vmatpush.bf16.msra.mxu0 %v1951
        %2101 = vmatpush.bf16.msra.mxu0 %v1947
        %2102 = vmatmul.bf16.gmra.mxu0 %v1994
        %v2103 = vpop.f32.mrf.mxu0
        %v2104 = vadd.f32 %v2085, %v2103
        %v2105 = vpop.f32.mrf.mxu0
        %v2106 = vadd.f32 %v2087, %v2105
        %2107 = vmatmul.bf16.gmra.mxu0 %v1997
        %v2108 = vpop.f32.mrf.mxu0
        %v2109 = vadd.f32 %v2090, %v2108
        %v2110 = vpop.f32.mrf.mxu0
        %v2111 = vadd.f32 %v2092, %v2110
        %2112 = vdwg.mxu0
        %2113 = vmatpush.bf16.msra.mxu0 %v1944
        %2114 = vmatpush.bf16.msra.mxu0 %v1940
        %2115 = vmatpush.bf16.msra.mxu0 %v1936
        %2116 = vmatpush.bf16.msra.mxu0 %v1932
        %2117 = vmatpush.bf16.msra.mxu0 %v1928
        %2118 = vmatpush.bf16.msra.mxu0 %v1924
        %2119 = vmatpush.bf16.msra.mxu0 %v1920
        %2120 = vmatpush.bf16.msra.mxu0 %v1916
        %2121 = vmatmul.bf16.gmra.mxu0 %v1787
        %v2122 = vpop.f32.mrf.mxu0
        %v2123 = vadd.f32 %v1758, %v2122
        %v2124 = vpop.f32.mrf.mxu0
        %v2125 = vadd.f32 %v1763, %v2124
        %2126 = vmatmul.bf16.gmra.mxu0 %v1789
        %v2127 = vpop.f32.mrf.mxu0
        %v2128 = vadd.f32 %v1768, %v2127
        %v2129 = vpop.f32.mrf.mxu0
        %v2130 = vadd.f32 %v1773, %v2129
        %2131 = vdwg.mxu0
        %2132 = vmatpush.bf16.msra.mxu0 0
        %2133 = vmatpush.bf16.msra.mxu0 0
        %2134 = vmatpush.bf16.msra.mxu0 0
        %2135 = vmatpush.bf16.msra.mxu0 0
        %2136 = vmatpush.bf16.msra.mxu0 0
        %2137 = vmatpush.bf16.msra.mxu0 0
        %2138 = vmatpush.bf16.msra.mxu0 %v1952
        %2139 = vmatpush.bf16.msra.mxu0 %v1948
        %2140 = vmatmul.bf16.gmra.mxu0 %v1994
        %v2141 = vpop.f32.mrf.mxu0
        %v2142 = vadd.f32 %v2123, %v2141
        %v2143 = vpop.f32.mrf.mxu0
        %v2144 = vadd.f32 %v2125, %v2143
        %2145 = vmatmul.bf16.gmra.mxu0 %v1997
        %v2146 = vpop.f32.mrf.mxu0
        %v2147 = vadd.f32 %v2128, %v2146
        %v2148 = vpop.f32.mrf.mxu0
        %v2149 = vadd.f32 %v2130, %v2148
        %2150 = vdwg.mxu0
        %v2151 = vmax.f32 %v2028, 0.0
        %v2152 = vmax.f32 %v2066, 0.0
        %v2153 = vmax.f32 %v2104, 0.0
        %v2154 = vmax.f32 %v2142, 0.0
        %v2155 = vmax.f32 %v2030, 0.0
        %v2156 = vmax.f32 %v2068, 0.0
        %v2157 = vmax.f32 %v2106, 0.0
        %v2158 = vmax.f32 %v2144, 0.0
        %v2159 = vmax.f32 %v2033, 0.0
        %v2160 = vmax.f32 %v2071, 0.0
        %v2161 = vmax.f32 %v2109, 0.0
        %v2162 = vmax.f32 %v2147, 0.0
        %v2163 = vmax.f32 %v2035, 0.0
        %v2164 = vmax.f32 %v2073, 0.0
        %v2165 = vmax.f32 %v2111, 0.0
        %v2166 = vmax.f32 %v2149, 0.0
        %v2167 = vsel %vm1415, %v2151, 0.0
        %v2168 = vsel %vm1416, %v2152, 0.0
        %v2169 = vsel %vm1417, %v2153, 0.0
        %v2170 = vsel %vm1418, %v2154, 0.0
        %v2171 = vsel %vm1415, %v2155, 0.0
        %v2172 = vsel %vm1416, %v2156, 0.0
        %v2173 = vsel %vm1417, %v2157, 0.0
        %v2174 = vsel %vm1418, %v2158, 0.0
        %v2175 = vsel %vm1415, %v2159, 0.0
        %v2176 = vsel %vm1416, %v2160, 0.0
        %v2177 = vsel %vm1417, %v2161, 0.0
        %v2178 = vsel %vm1418, %v2162, 0.0
        %v2179 = vsel %vm1415, %v2163, 0.0
        %v2180 = vsel %vm1416, %v2164, 0.0
        %v2181 = vsel %vm1417, %v2165, 0.0
        %v2182 = vsel %vm1418, %v2166, 0.0
        %v2183 = vpack.c.bf16 %v2168, %v2167
        %v2184 = vpack.c.bf16 %v2170, %v2169
        %v2185 = vpack.c.bf16 %v2172, %v2171
        %v2186 = vpack.c.bf16 %v2174, %v2173
        %v2187 = vpack.c.bf16 %v2176, %v2175
        %v2188 = vpack.c.bf16 %v2178, %v2177
        %v2189 = vpack.c.bf16 %v2180, %v2179
        %v2190 = vpack.c.bf16 %v2182, %v2181
        %2191 = vst.msk [vmem:[#allocation2] sm:$0xf] %vm690, 0
        %2192 = vst.msk [vmem:[#allocation2 + $0x10] sm:$0xf] %vm690, 0
        %2193 = vst.msk [vmem:[#allocation2 + $0x20] sm:$0xf] %vm690, 0
        %2194 = vst.msk [vmem:[#allocation2 + $0x30] sm:$0xf] %vm690, 0
        %2195 = vst.msk [vmem:[#allocation2 + $0x40] sm:$0xf] %vm690, 0
        %2196 = vst.msk [vmem:[#allocation2 + $0x50] sm:$0xf] %vm690, 0
        %2197 = vst.msk [vmem:[#allocation2 + $0x60] sm:$0xf] %vm690, 0
        %2198 = vst.msk [vmem:[#allocation2 + $0x70] sm:$0xf] %vm690, 0
        %2199 = vst.msk [vmem:[#allocation2 + $0x80] sm:$0xf] %vm690, 0
        %2200 = vst.msk [vmem:[#allocation2 + $0x90] sm:$0xf] %vm690, 0
        %2201 = vst.msk [vmem:[#allocation2 + $0xa0] sm:$0xf] %vm690, 0
        %2202 = vst.msk [vmem:[#allocation2 + $0xb0] sm:$0xf] %vm690, 0
        %2203 = vst.msk [vmem:[#allocation2 + $0xc0] sm:$0xf] %vm690, 0
        %2204 = vst.msk [vmem:[#allocation2 + $0xd0] sm:$0xf] %vm690, 0
        %2205 = vst.msk [vmem:[#allocation2 + $0xe0] sm:$0xf] %vm690, 0
        %2206 = vst.msk [vmem:[#allocation2 + $0xf0] sm:$0xf] %vm690, 0
        %2207 = vst.msk [vmem:[#allocation2 + $0x100] sm:$0xf] %vm690, 0
        %2208 = vst.msk [vmem:[#allocation2 + $0x110] sm:$0xf] %vm690, 0
        %2209 = vst.msk [vmem:[#allocation2 + $0x120] sm:$0xf] %vm690, 0
        %2210 = vst.msk [vmem:[#allocation2 + $0x130] sm:$0xf] %vm690, 0
        %2211 = vst.msk [vmem:[#allocation2 + $0xc] sm:$0xf] %vm711, 0
        %2212 = vst.msk [vmem:[#allocation2 + $0x1c] sm:$0xf] %vm711, 0
        %2213 = vst.msk [vmem:[#allocation2 + $0x2c] sm:$0xf] %vm711, 0
        %2214 = vst.msk [vmem:[#allocation2 + $0x3c] sm:$0xf] %vm711, 0
        %2215 = vst.msk [vmem:[#allocation2 + $0x4c] sm:$0xf] %vm711, 0
        %2216 = vst.msk [vmem:[#allocation2 + $0x5c] sm:$0xf] %vm711, 0
        %2217 = vst.msk [vmem:[#allocation2 + $0x6c] sm:$0xf] %vm711, 0
        %2218 = vst.msk [vmem:[#allocation2 + $0x7c] sm:$0xf] %vm711, 0
        %2219 = vst.msk [vmem:[#allocation2 + $0x8c] sm:$0xf] %vm711, 0
        %2220 = vst.msk [vmem:[#allocation2 + $0x9c] sm:$0xf] %vm711, 0
        %2221 = vst.msk [vmem:[#allocation2 + $0xac] sm:$0xf] %vm711, 0
        %2222 = vst.msk [vmem:[#allocation2 + $0xbc] sm:$0xf] %vm711, 0
        %2223 = vst.msk [vmem:[#allocation2 + $0xcc] sm:$0xf] %vm711, 0
        %2224 = vst.msk [vmem:[#allocation2 + $0xdc] sm:$0xf] %vm711, 0
        %2225 = vst.msk [vmem:[#allocation2 + $0xec] sm:$0xf] %vm711, 0
        %2226 = vst.msk [vmem:[#allocation2 + $0xfc] sm:$0xf] %vm711, 0
        %2227 = vst.msk [vmem:[#allocation2 + $0x10c] sm:$0xf] %vm711, 0
        %2228 = vst.msk [vmem:[#allocation2 + $0x11c] sm:$0xf] %vm711, 0
        %2229 = vst.msk [vmem:[#allocation2 + $0x12c] sm:$0xf] %vm711, 0
        %2230 = vst.msk [vmem:[#allocation2 + $0x13c] sm:$0xf] %vm711, 0
        %2239 = vrot.lane.b32.xlu0 %v2183, 2
        %v2240 = vpop.permute.xlu0 %2239
        %2241 = vrot.lane.b32.xlu0 %v2184, 2
        %v2242 = vpop.permute.xlu0 %2241
        %2243 = vrot.lane.b32.xlu0 %v2185, 2
        %v2244 = vpop.permute.xlu0 %2243
        %2245 = vrot.lane.b32.xlu0 %v2186, 2
        %v2246 = vpop.permute.xlu0 %2245
        %2247 = vrot.lane.b32.xlu0 %v2187, 2
        %v2248 = vpop.permute.xlu0 %2247
        %2249 = vrot.lane.b32.xlu0 %v2188, 2
        %v2250 = vpop.permute.xlu0 %2249
        %2251 = vrot.lane.b32.xlu0 %v2189, 2
        %v2252 = vpop.permute.xlu0 %2251
        %2253 = vrot.lane.b32.xlu0 %v2190, 2
        %v2254 = vpop.permute.xlu0 %2253
        %v2255 = vrot.slane %v2240, 4
        %v2256 = vrot.slane %v2242, 4
        %v2257 = vrot.slane %v2244, 4
        %v2258 = vrot.slane %v2246, 4
        %v2259 = vrot.slane %v2248, 4
        %v2260 = vrot.slane %v2250, 4
        %v2261 = vrot.slane %v2252, 4
        %v2262 = vrot.slane %v2254, 4
        %v2263 = vsel %vm764, %v2255, %v2240
        %v2264 = vsel %vm766, %v2255, %v2256
        %v2265 = vsel %vm764, %v2264, %v2242
        %v2266 = vsel %vm764, %v2257, %v2244
        %v2267 = vsel %vm766, %v2257, %v2258
        %v2268 = vsel %vm764, %v2267, %v2246
        %v2269 = vsel %vm764, %v2259, %v2248
        %v2270 = vsel %vm766, %v2259, %v2260
        %v2271 = vsel %vm764, %v2270, %v2250
        %v2272 = vsel %vm764, %v2261, %v2252
        %v2273 = vsel %vm766, %v2261, %v2262
        %v2274 = vsel %vm764, %v2273, %v2254
        %2283 = vst.msk [vmem:[#allocation2] sm:$0xff] %vm788, %v2263
        %2284 = vst [vmem:[#allocation2 + $0x8] sm:$0xff] %v2265
        %2285 = vst.msk [vmem:[#allocation2 + $0x10] sm:$0xff] %vm788, %v2266
        %2286 = vst [vmem:[#allocation2 + $0x18] sm:$0xff] %v2268
        %2287 = vst.msk [vmem:[#allocation2 + $0x20] sm:$0xff] %vm788, %v2269
        %2288 = vst [vmem:[#allocation2 + $0x28] sm:$0xff] %v2271
        %2289 = vst.msk [vmem:[#allocation2 + $0x30] sm:$0xff] %vm788, %v2272
        %2290 = vst [vmem:[#allocation2 + $0x38] sm:$0xff] %v2274
        %2291 = vrot.lane.b32.xlu0 %v2183, 1
        %v2292 = vpop.permute.xlu0 %2291
        %2293 = vrot.lane.b32.xlu0 %v2184, 1
        %v2294 = vpop.permute.xlu0 %2293
        %2295 = vrot.lane.b32.xlu0 %v2185, 1
        %v2296 = vpop.permute.xlu0 %2295
        %2297 = vrot.lane.b32.xlu0 %v2186, 1
        %v2298 = vpop.permute.xlu0 %2297
        %2299 = vrot.lane.b32.xlu0 %v2187, 1
        %v2300 = vpop.permute.xlu0 %2299
        %2301 = vrot.lane.b32.xlu0 %v2188, 1
        %v2302 = vpop.permute.xlu0 %2301
        %2303 = vrot.lane.b32.xlu0 %v2189, 1
        %v2304 = vpop.permute.xlu0 %2303
        %2305 = vrot.lane.b32.xlu0 %v2190, 1
        %v2306 = vpop.permute.xlu0 %2305
        %v2307 = vrot.slane %v2292, 4
        %v2308 = vrot.slane %v2294, 4
        %v2309 = vrot.slane %v2296, 4
        %v2310 = vrot.slane %v2298, 4
        %v2311 = vrot.slane %v2300, 4
        %v2312 = vrot.slane %v2302, 4
        %v2313 = vrot.slane %v2304, 4
        %v2314 = vrot.slane %v2306, 4
        %v2315 = vsel %vm821, %v2307, %v2292
        %v2316 = vsel %vm766, %v2307, %v2308
        %v2317 = vsel %vm821, %v2316, %v2294
        %v2318 = vsel %vm821, %v2309, %v2296
        %v2319 = vsel %vm766, %v2309, %v2310
        %v2320 = vsel %vm821, %v2319, %v2298
        %v2321 = vsel %vm821, %v2311, %v2300
        %v2322 = vsel %vm766, %v2311, %v2312
        %v2323 = vsel %vm821, %v2322, %v2302
        %v2324 = vsel %vm821, %v2313, %v2304
        %v2325 = vsel %vm766, %v2313, %v2314
        %v2326 = vsel %vm821, %v2325, %v2306
        %2335 = vst.msk [vmem:[#allocation2 + $0x40] sm:$0xff] %vm843, %v2315
        %2336 = vst [vmem:[#allocation2 + $0x48] sm:$0xff] %v2317
        %2337 = vst.msk [vmem:[#allocation2 + $0x50] sm:$0xff] %vm843, %v2318
        %2338 = vst [vmem:[#allocation2 + $0x58] sm:$0xff] %v2320
        %2339 = vst.msk [vmem:[#allocation2 + $0x60] sm:$0xff] %vm843, %v2321
        %2340 = vst [vmem:[#allocation2 + $0x68] sm:$0xff] %v2323
        %2341 = vst.msk [vmem:[#allocation2 + $0x70] sm:$0xff] %vm843, %v2324
        %2342 = vst [vmem:[#allocation2 + $0x78] sm:$0xff] %v2326
        %2343 = vst [vmem:[#allocation2 + $0x80] sm:$0xff] %v2183
        %2344 = vst [vmem:[#allocation2 + $0x88] sm:$0xff] %v2184
        %2345 = vst [vmem:[#allocation2 + $0x90] sm:$0xff] %v2185
        %2346 = vst [vmem:[#allocation2 + $0x98] sm:$0xff] %v2186
        %2347 = vst [vmem:[#allocation2 + $0xa0] sm:$0xff] %v2187
        %2348 = vst [vmem:[#allocation2 + $0xa8] sm:$0xff] %v2188
        %2349 = vst [vmem:[#allocation2 + $0xb0] sm:$0xff] %v2189
        %2350 = vst [vmem:[#allocation2 + $0xb8] sm:$0xff] %v2190
        %2351 = vrot.lane.b32.xlu0 %v2183, 127
        %v2352 = vpop.permute.xlu0 %2351
        %2353 = vrot.lane.b32.xlu0 %v2184, 127
        %v2354 = vpop.permute.xlu0 %2353
        %2355 = vrot.lane.b32.xlu0 %v2185, 127
        %v2356 = vpop.permute.xlu0 %2355
        %2357 = vrot.lane.b32.xlu0 %v2186, 127
        %v2358 = vpop.permute.xlu0 %2357
        %2359 = vrot.lane.b32.xlu0 %v2187, 127
        %v2360 = vpop.permute.xlu0 %2359
        %2361 = vrot.lane.b32.xlu0 %v2188, 127
        %v2362 = vpop.permute.xlu0 %2361
        %2363 = vrot.lane.b32.xlu0 %v2189, 127
        %v2364 = vpop.permute.xlu0 %2363
        %2365 = vrot.lane.b32.xlu0 %v2190, 127
        %v2366 = vpop.permute.xlu0 %2365
        %v2367 = vrot.slane %v2352, 4
        %v2368 = vrot.slane %v2354, 4
        %v2369 = vrot.slane %v2356, 4
        %v2370 = vrot.slane %v2358, 4
        %v2371 = vrot.slane %v2360, 4
        %v2372 = vrot.slane %v2362, 4
        %v2373 = vrot.slane %v2364, 4
        %v2374 = vrot.slane %v2366, 4
        %v2375 = vsel %vm766, %v2367, %v2368
        %v2376 = vsel %vm885, %v2352, %v2375
        %v2377 = vsel %vm885, %v2354, %v2368
        %v2378 = vsel %vm766, %v2369, %v2370
        %v2379 = vsel %vm885, %v2356, %v2378
        %v2380 = vsel %vm885, %v2358, %v2370
        %v2381 = vsel %vm766, %v2371, %v2372
        %v2382 = vsel %vm885, %v2360, %v2381
        %v2383 = vsel %vm885, %v2362, %v2372
        %v2384 = vsel %vm766, %v2373, %v2374
        %v2385 = vsel %vm885, %v2364, %v2384
        %v2386 = vsel %vm885, %v2366, %v2374
        %2395 = vst [vmem:[#allocation2 + $0xc0] sm:$0xff] %v2376
        %2396 = vst.msk [vmem:[#allocation2 + $0xc8] sm:$0xff] %vm908, %v2377
        %2397 = vst [vmem:[#allocation2 + $0xd0] sm:$0xff] %v2379
        %2398 = vst.msk [vmem:[#allocation2 + $0xd8] sm:$0xff] %vm908, %v2380
        %2399 = vst [vmem:[#allocation2 + $0xe0] sm:$0xff] %v2382
        %2400 = vst.msk [vmem:[#allocation2 + $0xe8] sm:$0xff] %vm908, %v2383
        %2401 = vst [vmem:[#allocation2 + $0xf0] sm:$0xff] %v2385
        %2402 = vst.msk [vmem:[#allocation2 + $0xf8] sm:$0xff] %vm908, %v2386
        %2403 = vrot.lane.b32.xlu0 %v2183, 126
        %v2404 = vpop.permute.xlu0 %2403
        %2405 = vrot.lane.b32.xlu0 %v2184, 126
        %v2406 = vpop.permute.xlu0 %2405
        %2407 = vrot.lane.b32.xlu0 %v2185, 126
        %v2408 = vpop.permute.xlu0 %2407
        %2409 = vrot.lane.b32.xlu0 %v2186, 126
        %v2410 = vpop.permute.xlu0 %2409
        %2411 = vrot.lane.b32.xlu0 %v2187, 126
        %v2412 = vpop.permute.xlu0 %2411
        %2413 = vrot.lane.b32.xlu0 %v2188, 126
        %v2414 = vpop.permute.xlu0 %2413
        %2415 = vrot.lane.b32.xlu0 %v2189, 126
        %v2416 = vpop.permute.xlu0 %2415
        %2417 = vrot.lane.b32.xlu0 %v2190, 126
        %v2418 = vpop.permute.xlu0 %2417
        %v2419 = vrot.slane %v2404, 4
        %v2420 = vrot.slane %v2406, 4
        %v2421 = vrot.slane %v2408, 4
        %v2422 = vrot.slane %v2410, 4
        %v2423 = vrot.slane %v2412, 4
        %v2424 = vrot.slane %v2414, 4
        %v2425 = vrot.slane %v2416, 4
        %v2426 = vrot.slane %v2418, 4
        %v2427 = vsel %vm766, %v2419, %v2420
        %v2428 = vsel %vm941, %v2404, %v2427
        %v2429 = vsel %vm941, %v2406, %v2420
        %v2430 = vsel %vm766, %v2421, %v2422
        %v2431 = vsel %vm941, %v2408, %v2430
        %v2432 = vsel %vm941, %v2410, %v2422
        %v2433 = vsel %vm766, %v2423, %v2424
        %v2434 = vsel %vm941, %v2412, %v2433
        %v2435 = vsel %vm941, %v2414, %v2424
        %v2436 = vsel %vm766, %v2425, %v2426
        %v2437 = vsel %vm941, %v2416, %v2436
        %v2438 = vsel %vm941, %v2418, %v2426
        %2447 = vst [vmem:[#allocation2 + $0x100] sm:$0xff] %v2428
        %2448 = vst.msk [vmem:[#allocation2 + $0x108] sm:$0xff] %vm963, %v2429
        %2449 = vst [vmem:[#allocation2 + $0x110] sm:$0xff] %v2431
        %2450 = vst.msk [vmem:[#allocation2 + $0x118] sm:$0xff] %vm963, %v2432
        %2451 = vst [vmem:[#allocation2 + $0x120] sm:$0xff] %v2434
        %2452 = vst.msk [vmem:[#allocation2 + $0x128] sm:$0xff] %vm963, %v2435
        %2453 = vst [vmem:[#allocation2 + $0x130] sm:$0xff] %v2437
        %2454 = vst.msk [vmem:[#allocation2 + $0x138] sm:$0xff] %vm963, %v2438
        %v2455 = vld [vmem:[#allocation2] sm:$0xff]
        %v2456 = vld [vmem:[#allocation2 + $0x8] sm:$0xff]
        %v2457 = vld [vmem:[#allocation2 + $0x10] sm:$0xff]
        %v2458 = vld [vmem:[#allocation2 + $0x18] sm:$0xff]
        %v2459 = vld [vmem:[#allocation2 + $0x20] sm:$0xff]
        %v2460 = vld [vmem:[#allocation2 + $0x28] sm:$0xff]
        %v2461 = vld [vmem:[#allocation2 + $0x30] sm:$0xff]
        %v2462 = vld [vmem:[#allocation2 + $0x38] sm:$0xff]
        %v2463 = vld [vmem:[#allocation2 + $0x40] sm:$0xff]
        %v2464 = vld [vmem:[#allocation2 + $0x48] sm:$0xff]
        %v2465 = vld [vmem:[#allocation2 + $0x50] sm:$0xff]
        %v2466 = vld [vmem:[#allocation2 + $0x58] sm:$0xff]
        %v2467 = vld [vmem:[#allocation2 + $0x60] sm:$0xff]
        %v2468 = vld [vmem:[#allocation2 + $0x68] sm:$0xff]
        %v2469 = vld [vmem:[#allocation2 + $0x70] sm:$0xff]
        %v2470 = vld [vmem:[#allocation2 + $0x78] sm:$0xff]
        %v2471 = vld [vmem:[#allocation2 + $0x80] sm:$0xff]
        %v2472 = vld [vmem:[#allocation2 + $0x88] sm:$0xff]
        %v2473 = vld [vmem:[#allocation2 + $0x90] sm:$0xff]
        %v2474 = vld [vmem:[#allocation2 + $0x98] sm:$0xff]
        %v2475 = vld [vmem:[#allocation2 + $0xa0] sm:$0xff]
        %v2476 = vld [vmem:[#allocation2 + $0xa8] sm:$0xff]
        %v2477 = vld [vmem:[#allocation2 + $0xb0] sm:$0xff]
        %v2478 = vld [vmem:[#allocation2 + $0xb8] sm:$0xff]
        %v2479 = vld [vmem:[#allocation2 + $0xc0] sm:$0xff]
        %v2480 = vld [vmem:[#allocation2 + $0xc8] sm:$0xff]
        %v2481 = vld [vmem:[#allocation2 + $0xd0] sm:$0xff]
        %v2482 = vld [vmem:[#allocation2 + $0xd8] sm:$0xff]
        %v2483 = vld [vmem:[#allocation2 + $0xe0] sm:$0xff]
        %v2484 = vld [vmem:[#allocation2 + $0xe8] sm:$0xff]
        %v2485 = vld [vmem:[#allocation2 + $0xf0] sm:$0xff]
        %v2486 = vld [vmem:[#allocation2 + $0xf8] sm:$0xff]
        %v2487 = vld [vmem:[#allocation2 + $0x100] sm:$0xff]
        %v2488 = vld [vmem:[#allocation2 + $0x108] sm:$0xff]
        %v2489 = vld [vmem:[#allocation2 + $0x110] sm:$0xff]
        %v2490 = vld [vmem:[#allocation2 + $0x118] sm:$0xff]
        %v2491 = vld [vmem:[#allocation2 + $0x120] sm:$0xff]
        %v2492 = vld [vmem:[#allocation2 + $0x128] sm:$0xff]
        %v2493 = vld [vmem:[#allocation2 + $0x130] sm:$0xff]
        %v2494 = vld [vmem:[#allocation2 + $0x138] sm:$0xff]
        %v2535 = vunpack.c.l.b16 %v2455
        %v2536 = vunpack.c.h.b16 %v2455
        %v2537 = vunpack.c.l.b16 %v2456
        %v2538 = vunpack.c.h.b16 %v2456
        %v2539 = vunpack.c.l.b16 %v2457
        %v2540 = vunpack.c.h.b16 %v2457
        %v2541 = vunpack.c.l.b16 %v2458
        %v2542 = vunpack.c.h.b16 %v2458
        %v2543 = vunpack.c.l.b16 %v2459
        %v2544 = vunpack.c.h.b16 %v2459
        %v2545 = vunpack.c.l.b16 %v2460
        %v2546 = vunpack.c.h.b16 %v2460
        %v2547 = vunpack.c.l.b16 %v2461
        %v2548 = vunpack.c.h.b16 %v2461
        %v2549 = vunpack.c.l.b16 %v2462
        %v2550 = vunpack.c.h.b16 %v2462
        %v2551 = vunpack.c.l.b16 %v2463
        %v2552 = vunpack.c.h.b16 %v2463
        %v2553 = vunpack.c.l.b16 %v2464
        %v2554 = vunpack.c.h.b16 %v2464
        %v2555 = vunpack.c.l.b16 %v2465
        %v2556 = vunpack.c.h.b16 %v2465
        %v2557 = vunpack.c.l.b16 %v2466
        %v2558 = vunpack.c.h.b16 %v2466
        %v2559 = vunpack.c.l.b16 %v2467
        %v2560 = vunpack.c.h.b16 %v2467
        %v2561 = vunpack.c.l.b16 %v2468
        %v2562 = vunpack.c.h.b16 %v2468
        %v2563 = vunpack.c.l.b16 %v2469
        %v2564 = vunpack.c.h.b16 %v2469
        %v2565 = vunpack.c.l.b16 %v2470
        %v2566 = vunpack.c.h.b16 %v2470
        %v2567 = vunpack.c.l.b16 %v2471
        %v2568 = vunpack.c.h.b16 %v2471
        %v2569 = vunpack.c.l.b16 %v2472
        %v2570 = vunpack.c.h.b16 %v2472
        %v2571 = vunpack.c.l.b16 %v2473
        %v2572 = vunpack.c.h.b16 %v2473
        %v2573 = vunpack.c.l.b16 %v2474
        %v2574 = vunpack.c.h.b16 %v2474
        %v2575 = vunpack.c.l.b16 %v2475
        %v2576 = vunpack.c.h.b16 %v2475
        %v2577 = vunpack.c.l.b16 %v2476
        %v2578 = vunpack.c.h.b16 %v2476
        %v2579 = vunpack.c.l.b16 %v2477
        %v2580 = vunpack.c.h.b16 %v2477
        %v2581 = vunpack.c.l.b16 %v2478
        %v2582 = vunpack.c.h.b16 %v2478
        %v2583 = vunpack.c.l.b16 %v2479
        %v2584 = vunpack.c.h.b16 %v2479
        %v2585 = vunpack.c.l.b16 %v2480
        %v2586 = vunpack.c.h.b16 %v2480
        %v2587 = vunpack.c.l.b16 %v2481
        %v2588 = vunpack.c.h.b16 %v2481
        %v2589 = vunpack.c.l.b16 %v2482
        %v2590 = vunpack.c.h.b16 %v2482
        %v2591 = vunpack.c.l.b16 %v2483
        %v2592 = vunpack.c.h.b16 %v2483
        %v2593 = vunpack.c.l.b16 %v2484
        %v2594 = vunpack.c.h.b16 %v2484
        %v2595 = vunpack.c.l.b16 %v2485
        %v2596 = vunpack.c.h.b16 %v2485
        %v2597 = vunpack.c.l.b16 %v2486
        %v2598 = vunpack.c.h.b16 %v2486
        %v2599 = vunpack.c.l.b16 %v2487
        %v2600 = vunpack.c.h.b16 %v2487
        %v2601 = vunpack.c.l.b16 %v2488
        %v2602 = vunpack.c.h.b16 %v2488
        %v2603 = vunpack.c.l.b16 %v2489
        %v2604 = vunpack.c.h.b16 %v2489
        %v2605 = vunpack.c.l.b16 %v2490
        %v2606 = vunpack.c.h.b16 %v2490
        %v2607 = vunpack.c.l.b16 %v2491
        %v2608 = vunpack.c.h.b16 %v2491
        %v2609 = vunpack.c.l.b16 %v2492
        %v2610 = vunpack.c.h.b16 %v2492
        %v2611 = vunpack.c.l.b16 %v2493
        %v2612 = vunpack.c.h.b16 %v2493
        %v2613 = vunpack.c.l.b16 %v2494
        %v2614 = vunpack.c.h.b16 %v2494
        %v2615 = vpack.c.b16 %v2539, %v2535
        %v2616 = vpack.c.b16 %v2540, %v2536
        %v2617 = vpack.c.b16 %v2541, %v2537
        %v2618 = vpack.c.b16 %v2542, %v2538
        %v2619 = vpack.c.b16 %v2547, %v2543
        %v2620 = vpack.c.b16 %v2548, %v2544
        %v2621 = vpack.c.b16 %v2549, %v2545
        %v2622 = vpack.c.b16 %v2550, %v2546
        %v2623 = vpack.c.b16 %v2555, %v2551
        %v2624 = vpack.c.b16 %v2556, %v2552
        %v2625 = vpack.c.b16 %v2557, %v2553
        %v2626 = vpack.c.b16 %v2558, %v2554
        %v2627 = vpack.c.b16 %v2563, %v2559
        %v2628 = vpack.c.b16 %v2564, %v2560
        %v2629 = vpack.c.b16 %v2565, %v2561
        %v2630 = vpack.c.b16 %v2566, %v2562
        %v2631 = vpack.c.b16 %v2571, %v2567
        %v2632 = vpack.c.b16 %v2572, %v2568
        %v2633 = vpack.c.b16 %v2573, %v2569
        %v2634 = vpack.c.b16 %v2574, %v2570
        %v2635 = vpack.c.b16 %v2579, %v2575
        %v2636 = vpack.c.b16 %v2580, %v2576
        %v2637 = vpack.c.b16 %v2581, %v2577
        %v2638 = vpack.c.b16 %v2582, %v2578
        %v2639 = vpack.c.b16 %v2587, %v2583
        %v2640 = vpack.c.b16 %v2588, %v2584
        %v2641 = vpack.c.b16 %v2589, %v2585
        %v2642 = vpack.c.b16 %v2590, %v2586
        %v2643 = vpack.c.b16 %v2595, %v2591
        %v2644 = vpack.c.b16 %v2596, %v2592
        %v2645 = vpack.c.b16 %v2597, %v2593
        %v2646 = vpack.c.b16 %v2598, %v2594
        %v2647 = vpack.c.b16 %v2603, %v2599
        %v2648 = vpack.c.b16 %v2604, %v2600
        %v2649 = vpack.c.b16 %v2605, %v2601
        %v2650 = vpack.c.b16 %v2606, %v2602
        %v2651 = vpack.c.b16 %v2611, %v2607
        %v2652 = vpack.c.b16 %v2612, %v2608
        %v2653 = vpack.c.b16 %v2613, %v2609
        %v2654 = vpack.c.b16 %v2614, %v2610
        %2695 = vmatpush.bf16.msra.mxu0 %v2643
        %2696 = vmatpush.bf16.msra.mxu0 %v2639
        %2697 = vmatpush.bf16.msra.mxu0 %v2635
        %2698 = vmatpush.bf16.msra.mxu0 %v2631
        %2699 = vmatpush.bf16.msra.mxu0 %v2627
        %2700 = vmatpush.bf16.msra.mxu0 %v2623
        %2701 = vmatpush.bf16.msra.mxu0 %v2619
        %2702 = vmatpush.bf16.msra.mxu0 %v2615
        %2703 = vmatmul.bf16.gmra.mxu0 %v1787
        %v2704 = vpop.f32.mrf.mxu0
        %v2705 = vadd.f32 %v1758, %v2704
        %v2706 = vpop.f32.mrf.mxu0
        %v2707 = vadd.f32 %v1763, %v2706
        %2708 = vmatmul.bf16.gmra.mxu0 %v1789
        %v2709 = vpop.f32.mrf.mxu0
        %v2710 = vadd.f32 %v1768, %v2709
        %v2711 = vpop.f32.mrf.mxu0
        %v2712 = vadd.f32 %v1773, %v2711
        %2713 = vdwg.mxu0
        %2714 = vmatpush.bf16.msra.mxu0 0
        %2715 = vmatpush.bf16.msra.mxu0 0
        %2716 = vmatpush.bf16.msra.mxu0 0
        %2717 = vmatpush.bf16.msra.mxu0 0
        %2718 = vmatpush.bf16.msra.mxu0 0
        %2719 = vmatpush.bf16.msra.mxu0 0
        %2720 = vmatpush.bf16.msra.mxu0 %v2651
        %2721 = vmatpush.bf16.msra.mxu0 %v2647
        %2722 = vmatmul.bf16.gmra.mxu0 %v1994
        %v2723 = vpop.f32.mrf.mxu0
        %v2724 = vadd.f32 %v2705, %v2723
        %v2725 = vpop.f32.mrf.mxu0
        %v2726 = vadd.f32 %v2707, %v2725
        %2727 = vmatmul.bf16.gmra.mxu0 %v1997
        %v2728 = vpop.f32.mrf.mxu0
        %v2729 = vadd.f32 %v2710, %v2728
        %v2730 = vpop.f32.mrf.mxu0
        %v2731 = vadd.f32 %v2712, %v2730
        %2732 = vdwg.mxu0
        %2733 = vmatpush.bf16.msra.mxu0 %v2644
        %2734 = vmatpush.bf16.msra.mxu0 %v2640
        %2735 = vmatpush.bf16.msra.mxu0 %v2636
        %2736 = vmatpush.bf16.msra.mxu0 %v2632
        %2737 = vmatpush.bf16.msra.mxu0 %v2628
        %2738 = vmatpush.bf16.msra.mxu0 %v2624
        %2739 = vmatpush.bf16.msra.mxu0 %v2620
        %2740 = vmatpush.bf16.msra.mxu0 %v2616
        %2741 = vmatmul.bf16.gmra.mxu0 %v1787
        %v2742 = vpop.f32.mrf.mxu0
        %v2743 = vadd.f32 %v1758, %v2742
        %v2744 = vpop.f32.mrf.mxu0
        %v2745 = vadd.f32 %v1763, %v2744
        %2746 = vmatmul.bf16.gmra.mxu0 %v1789
        %v2747 = vpop.f32.mrf.mxu0
        %v2748 = vadd.f32 %v1768, %v2747
        %v2749 = vpop.f32.mrf.mxu0
        %v2750 = vadd.f32 %v1773, %v2749
        %2751 = vdwg.mxu0
        %2752 = vmatpush.bf16.msra.mxu0 0
        %2753 = vmatpush.bf16.msra.mxu0 0
        %2754 = vmatpush.bf16.msra.mxu0 0
        %2755 = vmatpush.bf16.msra.mxu0 0
        %2756 = vmatpush.bf16.msra.mxu0 0
        %2757 = vmatpush.bf16.msra.mxu0 0
        %2758 = vmatpush.bf16.msra.mxu0 %v2652
        %2759 = vmatpush.bf16.msra.mxu0 %v2648
        %2760 = vmatmul.bf16.gmra.mxu0 %v1994
        %v2761 = vpop.f32.mrf.mxu0
        %v2762 = vadd.f32 %v2743, %v2761
        %v2763 = vpop.f32.mrf.mxu0
        %v2764 = vadd.f32 %v2745, %v2763
        %2765 = vmatmul.bf16.gmra.mxu0 %v1997
        %v2766 = vpop.f32.mrf.mxu0
        %v2767 = vadd.f32 %v2748, %v2766
        %v2768 = vpop.f32.mrf.mxu0
        %v2769 = vadd.f32 %v2750, %v2768
        %2770 = vdwg.mxu0
        %2771 = vmatpush.bf16.msra.mxu0 %v2645
        %2772 = vmatpush.bf16.msra.mxu0 %v2641
        %2773 = vmatpush.bf16.msra.mxu0 %v2637
        %2774 = vmatpush.bf16.msra.mxu0 %v2633
        %2775 = vmatpush.bf16.msra.mxu0 %v2629
        %2776 = vmatpush.bf16.msra.mxu0 %v2625
        %2777 = vmatpush.bf16.msra.mxu0 %v2621
        %2778 = vmatpush.bf16.msra.mxu0 %v2617
        %2779 = vmatmul.bf16.gmra.mxu0 %v1787
        %v2780 = vpop.f32.mrf.mxu0
        %v2781 = vadd.f32 %v1758, %v2780
        %v2782 = vpop.f32.mrf.mxu0
        %v2783 = vadd.f32 %v1763, %v2782
        %2784 = vmatmul.bf16.gmra.mxu0 %v1789
        %v2785 = vpop.f32.mrf.mxu0
        %v2786 = vadd.f32 %v1768, %v2785
        %v2787 = vpop.f32.mrf.mxu0
        %v2788 = vadd.f32 %v1773, %v2787
        %2789 = vdwg.mxu0
        %2790 = vmatpush.bf16.msra.mxu0 0
        %2791 = vmatpush.bf16.msra.mxu0 0
        %2792 = vmatpush.bf16.msra.mxu0 0
        %2793 = vmatpush.bf16.msra.mxu0 0
        %2794 = vmatpush.bf16.msra.mxu0 0
        %2795 = vmatpush.bf16.msra.mxu0 0
        %2796 = vmatpush.bf16.msra.mxu0 %v2653
        %2797 = vmatpush.bf16.msra.mxu0 %v2649
        %2798 = vmatmul.bf16.gmra.mxu0 %v1994
        %v2799 = vpop.f32.mrf.mxu0
        %v2800 = vadd.f32 %v2781, %v2799
        %v2801 = vpop.f32.mrf.mxu0
        %v2802 = vadd.f32 %v2783, %v2801
        %2803 = vmatmul.bf16.gmra.mxu0 %v1997
        %v2804 = vpop.f32.mrf.mxu0
        %v2805 = vadd.f32 %v2786, %v2804
        %v2806 = vpop.f32.mrf.mxu0
        %v2807 = vadd.f32 %v2788, %v2806
        %2808 = vdwg.mxu0
        %2809 = vmatpush.bf16.msra.mxu0 %v2646
        %2810 = vmatpush.bf16.msra.mxu0 %v2642
        %2811 = vmatpush.bf16.msra.mxu0 %v2638
        %2812 = vmatpush.bf16.msra.mxu0 %v2634
        %2813 = vmatpush.bf16.msra.mxu0 %v2630
        %2814 = vmatpush.bf16.msra.mxu0 %v2626
        %2815 = vmatpush.bf16.msra.mxu0 %v2622
        %2816 = vmatpush.bf16.msra.mxu0 %v2618
        %2817 = vmatmul.bf16.gmra.mxu0 %v1787
        %v2818 = vpop.f32.mrf.mxu0
        %v2819 = vadd.f32 %v1758, %v2818
        %v2820 = vpop.f32.mrf.mxu0
        %v2821 = vadd.f32 %v1763, %v2820
        %2822 = vmatmul.bf16.gmra.mxu0 %v1789
        %v2823 = vpop.f32.mrf.mxu0
        %v2824 = vadd.f32 %v1768, %v2823
        %v2825 = vpop.f32.mrf.mxu0
        %v2826 = vadd.f32 %v1773, %v2825
        %2827 = vdwg.mxu0
        %2828 = vmatpush.bf16.msra.mxu0 0
        %2829 = vmatpush.bf16.msra.mxu0 0
        %2830 = vmatpush.bf16.msra.mxu0 0
        %2831 = vmatpush.bf16.msra.mxu0 0
        %2832 = vmatpush.bf16.msra.mxu0 0
        %2833 = vmatpush.bf16.msra.mxu0 0
        %2834 = vmatpush.bf16.msra.mxu0 %v2654
        %2835 = vmatpush.bf16.msra.mxu0 %v2650
        %2836 = vmatmul.bf16.gmra.mxu0 %v1994
        %v2837 = vpop.f32.mrf.mxu0
        %v2838 = vadd.f32 %v2819, %v2837
        %v2839 = vpop.f32.mrf.mxu0
        %v2840 = vadd.f32 %v2821, %v2839
        %2841 = vmatmul.bf16.gmra.mxu0 %v1997
        %v2842 = vpop.f32.mrf.mxu0
        %v2843 = vadd.f32 %v2824, %v2842
        %v2844 = vpop.f32.mrf.mxu0
        %v2845 = vadd.f32 %v2826, %v2844
        %2846 = vdwg.mxu0
        %v2847 = vadd.f32 %v2724, %v1419
        %v2848 = vadd.f32 %v2762, %v1420
        %v2849 = vadd.f32 %v2800, %v1421
        %v2850 = vadd.f32 %v2838, %v1422
        %v2851 = vadd.f32 %v2726, %v1423
        %v2852 = vadd.f32 %v2764, %v1424
        %v2853 = vadd.f32 %v2802, %v1425
        %v2854 = vadd.f32 %v2840, %v1426
        %v2855 = vadd.f32 %v2729, %v1427
        %v2856 = vadd.f32 %v2767, %v1428
        %v2857 = vadd.f32 %v2805, %v1429
        %v2858 = vadd.f32 %v2843, %v1430
        %v2859 = vadd.f32 %v2731, %v1431
        %v2860 = vadd.f32 %v2769, %v1432
        %v2861 = vadd.f32 %v2807, %v1433
        %v2862 = vadd.f32 %v2845, %v1434
        %v2863 = vmax.f32 %v2847, 0.0
        %v2864 = vmax.f32 %v2848, 0.0
        %v2865 = vmax.f32 %v2849, 0.0
        %v2866 = vmax.f32 %v2850, 0.0
        %v2867 = vmax.f32 %v2851, 0.0
        %v2868 = vmax.f32 %v2852, 0.0
        %v2869 = vmax.f32 %v2853, 0.0
        %v2870 = vmax.f32 %v2854, 0.0
        %v2871 = vmax.f32 %v2855, 0.0
        %v2872 = vmax.f32 %v2856, 0.0
        %v2873 = vmax.f32 %v2857, 0.0
        %v2874 = vmax.f32 %v2858, 0.0
        %v2875 = vmax.f32 %v2859, 0.0
        %v2876 = vmax.f32 %v2860, 0.0
        %v2877 = vmax.f32 %v2861, 0.0
        %v2878 = vmax.f32 %v2862, 0.0
        %2895 = vrot.lane.b32.xlu0 %v2863, 127
        %v2896 = vpop.permute.xlu0 %2895
        %2897 = vrot.lane.b32.xlu0 %v2864, 127
        %v2898 = vpop.permute.xlu0 %2897
        %2899 = vrot.lane.b32.xlu0 %v2865, 127
        %v2900 = vpop.permute.xlu0 %2899
        %2901 = vrot.lane.b32.xlu0 %v2866, 127
        %v2902 = vpop.permute.xlu0 %2901
        %2903 = vrot.lane.b32.xlu0 %v2867, 127
        %v2904 = vpop.permute.xlu0 %2903
        %2905 = vrot.lane.b32.xlu0 %v2868, 127
        %v2906 = vpop.permute.xlu0 %2905
        %2907 = vrot.lane.b32.xlu0 %v2869, 127
        %v2908 = vpop.permute.xlu0 %2907
        %2909 = vrot.lane.b32.xlu0 %v2870, 127
        %v2910 = vpop.permute.xlu0 %2909
        %2911 = vrot.lane.b32.xlu0 %v2871, 127
        %v2912 = vpop.permute.xlu0 %2911
        %2913 = vrot.lane.b32.xlu0 %v2872, 127
        %v2914 = vpop.permute.xlu0 %2913
        %2915 = vrot.lane.b32.xlu0 %v2873, 127
        %v2916 = vpop.permute.xlu0 %2915
        %2917 = vrot.lane.b32.xlu0 %v2874, 127
        %v2918 = vpop.permute.xlu0 %2917
        %2919 = vrot.lane.b32.xlu0 %v2875, 127
        %v2920 = vpop.permute.xlu0 %2919
        %2921 = vrot.lane.b32.xlu0 %v2876, 127
        %v2922 = vpop.permute.xlu0 %2921
        %2923 = vrot.lane.b32.xlu0 %v2877, 127
        %v2924 = vpop.permute.xlu0 %2923
        %2925 = vrot.lane.b32.xlu0 %v2878, 127
        %v2926 = vpop.permute.xlu0 %2925
        %vm2927 = vcmask 1039360
        %v2928 = vsel %vm2927, %v2896, %v2898
        %v2929 = vsel %vm2927, %v2898, %v2900
        %v2930 = vsel %vm2927, %v2900, %v2902
        %v2931 = vsel %vm2927, %v2904, %v2906
        %v2932 = vsel %vm2927, %v2906, %v2908
        %v2933 = vsel %vm2927, %v2908, %v2910
        %v2934 = vsel %vm2927, %v2912, %v2914
        %v2935 = vsel %vm2927, %v2914, %v2916
        %v2936 = vsel %vm2927, %v2916, %v2918
        %v2937 = vsel %vm2927, %v2920, %v2922
        %v2938 = vsel %vm2927, %v2922, %v2924
        %v2939 = vsel %vm2927, %v2924, %v2926
        %v2956 = vmax.f32 %v2863, %v2928
        %v2957 = vmax.f32 %v2864, %v2929
        %v2958 = vmax.f32 %v2865, %v2930
        %v2959 = vmax.f32 %v2866, %v2902
        %v2960 = vmax.f32 %v2867, %v2931
        %v2961 = vmax.f32 %v2868, %v2932
        %v2962 = vmax.f32 %v2869, %v2933
        %v2963 = vmax.f32 %v2870, %v2910
        %v2964 = vmax.f32 %v2871, %v2934
        %v2965 = vmax.f32 %v2872, %v2935
        %v2966 = vmax.f32 %v2873, %v2936
        %v2967 = vmax.f32 %v2874, %v2918
        %v2968 = vmax.f32 %v2875, %v2937
        %v2969 = vmax.f32 %v2876, %v2938
        %v2970 = vmax.f32 %v2877, %v2939
        %v2971 = vmax.f32 %v2878, %v2926
        %2972 = vrot.lane.b32.xlu0 %v2863, 126
        %v2973 = vpop.permute.xlu0 %2972
        %2974 = vrot.lane.b32.xlu0 %v2864, 126
        %v2975 = vpop.permute.xlu0 %2974
        %2976 = vrot.lane.b32.xlu0 %v2865, 126
        %v2977 = vpop.permute.xlu0 %2976
        %2978 = vrot.lane.b32.xlu0 %v2866, 126
        %v2979 = vpop.permute.xlu0 %2978
        %2980 = vrot.lane.b32.xlu0 %v2867, 126
        %v2981 = vpop.permute.xlu0 %2980
        %2982 = vrot.lane.b32.xlu0 %v2868, 126
        %v2983 = vpop.permute.xlu0 %2982
        %2984 = vrot.lane.b32.xlu0 %v2869, 126
        %v2985 = vpop.permute.xlu0 %2984
        %2986 = vrot.lane.b32.xlu0 %v2870, 126
        %v2987 = vpop.permute.xlu0 %2986
        %2988 = vrot.lane.b32.xlu0 %v2871, 126
        %v2989 = vpop.permute.xlu0 %2988
        %2990 = vrot.lane.b32.xlu0 %v2872, 126
        %v2991 = vpop.permute.xlu0 %2990
        %2992 = vrot.lane.b32.xlu0 %v2873, 126
        %v2993 = vpop.permute.xlu0 %2992
        %2994 = vrot.lane.b32.xlu0 %v2874, 126
        %v2995 = vpop.permute.xlu0 %2994
        %2996 = vrot.lane.b32.xlu0 %v2875, 126
        %v2997 = vpop.permute.xlu0 %2996
        %2998 = vrot.lane.b32.xlu0 %v2876, 126
        %v2999 = vpop.permute.xlu0 %2998
        %3000 = vrot.lane.b32.xlu0 %v2877, 126
        %v3001 = vpop.permute.xlu0 %3000
        %3002 = vrot.lane.b32.xlu0 %v2878, 126
        %v3003 = vpop.permute.xlu0 %3002
        %vm3004 = vcmask 1031168
        %v3005 = vsel %vm3004, %v2973, %v2975
        %v3006 = vsel %vm3004, %v2975, %v2977
        %v3007 = vsel %vm3004, %v2977, %v2979
        %v3008 = vsel %vm3004, %v2981, %v2983
        %v3009 = vsel %vm3004, %v2983, %v2985
        %v3010 = vsel %vm3004, %v2985, %v2987
        %v3011 = vsel %vm3004, %v2989, %v2991
        %v3012 = vsel %vm3004, %v2991, %v2993
        %v3013 = vsel %vm3004, %v2993, %v2995
        %v3014 = vsel %vm3004, %v2997, %v2999
        %v3015 = vsel %vm3004, %v2999, %v3001
        %v3016 = vsel %vm3004, %v3001, %v3003
        %v3033 = vmax.f32 %v2956, %v3005
        %v3034 = vmax.f32 %v2957, %v3006
        %v3035 = vmax.f32 %v2958, %v3007
        %v3036 = vmax.f32 %v2959, %v2979
        %v3037 = vmax.f32 %v2960, %v3008
        %v3038 = vmax.f32 %v2961, %v3009
        %v3039 = vmax.f32 %v2962, %v3010
        %v3040 = vmax.f32 %v2963, %v2987
        %v3041 = vmax.f32 %v2964, %v3011
        %v3042 = vmax.f32 %v2965, %v3012
        %v3043 = vmax.f32 %v2966, %v3013
        %v3044 = vmax.f32 %v2967, %v2995
        %v3045 = vmax.f32 %v2968, %v3014
        %v3046 = vmax.f32 %v2969, %v3015
        %v3047 = vmax.f32 %v2970, %v3016
        %v3048 = vmax.f32 %v2971, %v3003
        %3049 = vrot.lane.b32.xlu0 %v2863, 125
        %v3050 = vpop.permute.xlu0 %3049
        %3051 = vrot.lane.b32.xlu0 %v2864, 125
        %v3052 = vpop.permute.xlu0 %3051
        %3053 = vrot.lane.b32.xlu0 %v2865, 125
        %v3054 = vpop.permute.xlu0 %3053
        %3055 = vrot.lane.b32.xlu0 %v2866, 125
        %v3056 = vpop.permute.xlu0 %3055
        %3057 = vrot.lane.b32.xlu0 %v2867, 125
        %v3058 = vpop.permute.xlu0 %3057
        %3059 = vrot.lane.b32.xlu0 %v2868, 125
        %v3060 = vpop.permute.xlu0 %3059
        %3061 = vrot.lane.b32.xlu0 %v2869, 125
        %v3062 = vpop.permute.xlu0 %3061
        %3063 = vrot.lane.b32.xlu0 %v2870, 125
        %v3064 = vpop.permute.xlu0 %3063
        %3065 = vrot.lane.b32.xlu0 %v2871, 125
        %v3066 = vpop.permute.xlu0 %3065
        %3067 = vrot.lane.b32.xlu0 %v2872, 125
        %v3068 = vpop.permute.xlu0 %3067
        %3069 = vrot.lane.b32.xlu0 %v2873, 125
        %v3070 = vpop.permute.xlu0 %3069
        %3071 = vrot.lane.b32.xlu0 %v2874, 125
        %v3072 = vpop.permute.xlu0 %3071
        %3073 = vrot.lane.b32.xlu0 %v2875, 125
        %v3074 = vpop.permute.xlu0 %3073
        %3075 = vrot.lane.b32.xlu0 %v2876, 125
        %v3076 = vpop.permute.xlu0 %3075
        %3077 = vrot.lane.b32.xlu0 %v2877, 125
        %v3078 = vpop.permute.xlu0 %3077
        %3079 = vrot.lane.b32.xlu0 %v2878, 125
        %v3080 = vpop.permute.xlu0 %3079
        %vm3081 = vcmask 1022976
        %v3082 = vsel %vm3081, %v3050, %v3052
        %v3083 = vsel %vm3081, %v3052, %v3054
        %v3084 = vsel %vm3081, %v3054, %v3056
        %v3085 = vsel %vm3081, %v3058, %v3060
        %v3086 = vsel %vm3081, %v3060, %v3062
        %v3087 = vsel %vm3081, %v3062, %v3064
        %v3088 = vsel %vm3081, %v3066, %v3068
        %v3089 = vsel %vm3081, %v3068, %v3070
        %v3090 = vsel %vm3081, %v3070, %v3072
        %v3091 = vsel %vm3081, %v3074, %v3076
        %v3092 = vsel %vm3081, %v3076, %v3078
        %v3093 = vsel %vm3081, %v3078, %v3080
        %v3110 = vmax.f32 %v3033, %v3082
        %v3111 = vmax.f32 %v3034, %v3083
        %v3112 = vmax.f32 %v3035, %v3084
        %v3113 = vmax.f32 %v3036, %v3056
        %v3114 = vmax.f32 %v3037, %v3085
        %v3115 = vmax.f32 %v3038, %v3086
        %v3116 = vmax.f32 %v3039, %v3087
        %v3117 = vmax.f32 %v3040, %v3064
        %v3118 = vmax.f32 %v3041, %v3088
        %v3119 = vmax.f32 %v3042, %v3089
        %v3120 = vmax.f32 %v3043, %v3090
        %v3121 = vmax.f32 %v3044, %v3072
        %v3122 = vmax.f32 %v3045, %v3091
        %v3123 = vmax.f32 %v3046, %v3092
        %v3124 = vmax.f32 %v3047, %v3093
        %v3125 = vmax.f32 %v3048, %v3080
        %3126 = vrot.lane.b32.xlu0 %v2863, 124
        %v3127 = vpop.permute.xlu0 %3126
        %3128 = vrot.lane.b32.xlu0 %v2864, 124
        %v3129 = vpop.permute.xlu0 %3128
        %3130 = vrot.lane.b32.xlu0 %v2865, 124
        %v3131 = vpop.permute.xlu0 %3130
        %3132 = vrot.lane.b32.xlu0 %v2866, 124
        %v3133 = vpop.permute.xlu0 %3132
        %3134 = vrot.lane.b32.xlu0 %v2867, 124
        %v3135 = vpop.permute.xlu0 %3134
        %3136 = vrot.lane.b32.xlu0 %v2868, 124
        %v3137 = vpop.permute.xlu0 %3136
        %3138 = vrot.lane.b32.xlu0 %v2869, 124
        %v3139 = vpop.permute.xlu0 %3138
        %3140 = vrot.lane.b32.xlu0 %v2870, 124
        %v3141 = vpop.permute.xlu0 %3140
        %3142 = vrot.lane.b32.xlu0 %v2871, 124
        %v3143 = vpop.permute.xlu0 %3142
        %3144 = vrot.lane.b32.xlu0 %v2872, 124
        %v3145 = vpop.permute.xlu0 %3144
        %3146 = vrot.lane.b32.xlu0 %v2873, 124
        %v3147 = vpop.permute.xlu0 %3146
        %3148 = vrot.lane.b32.xlu0 %v2874, 124
        %v3149 = vpop.permute.xlu0 %3148
        %3150 = vrot.lane.b32.xlu0 %v2875, 124
        %v3151 = vpop.permute.xlu0 %3150
        %3152 = vrot.lane.b32.xlu0 %v2876, 124
        %v3153 = vpop.permute.xlu0 %3152
        %3154 = vrot.lane.b32.xlu0 %v2877, 124
        %v3155 = vpop.permute.xlu0 %3154
        %3156 = vrot.lane.b32.xlu0 %v2878, 124
        %v3157 = vpop.permute.xlu0 %3156
        %vm3158 = vcmask 1014784
        %v3159 = vsel %vm3158, %v3127, %v3129
        %v3160 = vsel %vm3158, %v3129, %v3131
        %v3161 = vsel %vm3158, %v3131, %v3133
        %v3162 = vsel %vm3158, %v3135, %v3137
        %v3163 = vsel %vm3158, %v3137, %v3139
        %v3164 = vsel %vm3158, %v3139, %v3141
        %v3165 = vsel %vm3158, %v3143, %v3145
        %v3166 = vsel %vm3158, %v3145, %v3147
        %v3167 = vsel %vm3158, %v3147, %v3149
        %v3168 = vsel %vm3158, %v3151, %v3153
        %v3169 = vsel %vm3158, %v3153, %v3155
        %v3170 = vsel %vm3158, %v3155, %v3157
        %v3187 = vmax.f32 %v3110, %v3159
        %v3188 = vmax.f32 %v3111, %v3160
        %v3189 = vmax.f32 %v3112, %v3161
        %v3190 = vmax.f32 %v3113, %v3133
        %v3191 = vmax.f32 %v3114, %v3162
        %v3192 = vmax.f32 %v3115, %v3163
        %v3193 = vmax.f32 %v3116, %v3164
        %v3194 = vmax.f32 %v3117, %v3141
        %v3195 = vmax.f32 %v3118, %v3165
        %v3196 = vmax.f32 %v3119, %v3166
        %v3197 = vmax.f32 %v3120, %v3167
        %v3198 = vmax.f32 %v3121, %v3149
        %v3199 = vmax.f32 %v3122, %v3168
        %v3200 = vmax.f32 %v3123, %v3169
        %v3201 = vmax.f32 %v3124, %v3170
        %v3202 = vmax.f32 %v3125, %v3157
        %v3203 = vld [vmem:[#allocation3] sm:$0xff]
        %v3204 = vld [vmem:[#allocation3 + $0x8] sm:$0xff]
        %v3205 = vld [vmem:[#allocation3 + $0x10] sm:$0xff]
        %v3206 = vld [vmem:[#allocation3 + $0x18] sm:$0xff]
        %v3207 = vld [vmem:[#allocation3 + $0x20] sm:$0xff]
        %v3208 = vld [vmem:[#allocation3 + $0x28] sm:$0xff]
        %v3209 = vld [vmem:[#allocation3 + $0x30] sm:$0xff]
        %v3210 = vld [vmem:[#allocation3 + $0x38] sm:$0xff]
        %v3211 = vld [vmem:[#allocation3 + $0x40] sm:$0xff]
        %v3212 = vld [vmem:[#allocation3 + $0x48] sm:$0xff]
        %v3213 = vld [vmem:[#allocation3 + $0x50] sm:$0xff]
        %v3214 = vld [vmem:[#allocation3 + $0x58] sm:$0xff]
        %v3215 = vld [vmem:[#allocation3 + $0x60] sm:$0xff]
        %v3216 = vld [vmem:[#allocation3 + $0x68] sm:$0xff]
        %v3217 = vld [vmem:[#allocation3 + $0x70] sm:$0xff]
        %v3218 = vld [vmem:[#allocation3 + $0x78] sm:$0xff]
        %v3219 = vld [vmem:[#allocation3 + $0x80] sm:$0xff]
        %v3220 = vld [vmem:[#allocation3 + $0x88] sm:$0xff]
        %v3221 = vld [vmem:[#allocation3 + $0x90] sm:$0xff]
        %v3222 = vld [vmem:[#allocation3 + $0x98] sm:$0xff]
        %v3223 = vld [vmem:[#allocation3 + $0xa0] sm:$0xff]
        %v3224 = vld [vmem:[#allocation3 + $0xa8] sm:$0xff]
        %v3225 = vld [vmem:[#allocation3 + $0xb0] sm:$0xff]
        %v3226 = vld [vmem:[#allocation3 + $0xb8] sm:$0xff]
        %v3227 = vld [vmem:[#allocation3 + $0xc0] sm:$0xff]
        %v3228 = vld [vmem:[#allocation3 + $0xc8] sm:$0xff]
        %v3229 = vld [vmem:[#allocation3 + $0xd0] sm:$0xff]
        %v3230 = vld [vmem:[#allocation3 + $0xd8] sm:$0xff]
        %v3231 = vld [vmem:[#allocation3 + $0xe0] sm:$0xff]
        %v3232 = vld [vmem:[#allocation3 + $0xe8] sm:$0xff]
        %v3233 = vld [vmem:[#allocation3 + $0xf0] sm:$0xff]
        %v3234 = vld [vmem:[#allocation3 + $0xf8] sm:$0xff]
        %v3235 = vld [vmem:[#allocation3 + $0x100] sm:$0xff]
        %v3236 = vld [vmem:[#allocation3 + $0x108] sm:$0xff]
        %v3237 = vld [vmem:[#allocation3 + $0x110] sm:$0xff]
        %v3238 = vld [vmem:[#allocation3 + $0x118] sm:$0xff]
        %v3239 = vld [vmem:[#allocation3 + $0x120] sm:$0xff]
        %v3240 = vld [vmem:[#allocation3 + $0x128] sm:$0xff]
        %v3241 = vld [vmem:[#allocation3 + $0x130] sm:$0xff]
        %v3242 = vld [vmem:[#allocation3 + $0x138] sm:$0xff]
        %v3243 = vld [vmem:[#allocation3 + $0x140] sm:$0xff]
        %v3244 = vld [vmem:[#allocation3 + $0x148] sm:$0xff]
        %v3245 = vld [vmem:[#allocation3 + $0x150] sm:$0xff]
        %v3246 = vld [vmem:[#allocation3 + $0x158] sm:$0xff]
        %v3247 = vld [vmem:[#allocation3 + $0x160] sm:$0xff]
        %v3248 = vld [vmem:[#allocation3 + $0x168] sm:$0xff]
        %v3249 = vld [vmem:[#allocation3 + $0x170] sm:$0xff]
        %v3250 = vld [vmem:[#allocation3 + $0x178] sm:$0xff]
        %v3251 = vld [vmem:[#allocation3 + $0x180] sm:$0xff]
        %v3252 = vld [vmem:[#allocation3 + $0x188] sm:$0xff]
        %v3253 = vld [vmem:[#allocation3 + $0x190] sm:$0xff]
        %v3254 = vld [vmem:[#allocation3 + $0x198] sm:$0xff]
        %v3255 = vld [vmem:[#allocation3 + $0x1a0] sm:$0xff]
        %v3256 = vld [vmem:[#allocation3 + $0x1a8] sm:$0xff]
        %v3257 = vld [vmem:[#allocation3 + $0x1b0] sm:$0xff]
        %v3258 = vld [vmem:[#allocation3 + $0x1b8] sm:$0xff]
        %v3259 = vld [vmem:[#allocation3 + $0x1c0] sm:$0xff]
        %v3260 = vld [vmem:[#allocation3 + $0x1c8] sm:$0xff]
        %v3261 = vld [vmem:[#allocation3 + $0x1d0] sm:$0xff]
        %v3262 = vld [vmem:[#allocation3 + $0x1d8] sm:$0xff]
        %v3263 = vld [vmem:[#allocation3 + $0x1e0] sm:$0xff]
        %v3264 = vld [vmem:[#allocation3 + $0x1e8] sm:$0xff]
        %v3265 = vld [vmem:[#allocation3 + $0x1f0] sm:$0xff]
        %v3266 = vld [vmem:[#allocation3 + $0x1f8] sm:$0xff]
        %v3267 = vld [vmem:[#allocation3 + $0x200] sm:$0xff]
        %v3268 = vld [vmem:[#allocation3 + $0x208] sm:$0xff]
        %v3269 = vld [vmem:[#allocation3 + $0x210] sm:$0xff]
        %v3270 = vld [vmem:[#allocation3 + $0x218] sm:$0xff]
        %v3271 = vld [vmem:[#allocation3 + $0x220] sm:$0xff]
        %v3272 = vld [vmem:[#allocation3 + $0x228] sm:$0xff]
        %v3273 = vld [vmem:[#allocation3 + $0x230] sm:$0xff]
        %v3274 = vld [vmem:[#allocation3 + $0x238] sm:$0xff]
        %v3275 = vld [vmem:[#allocation3 + $0x240] sm:$0xff]
        %v3276 = vld [vmem:[#allocation3 + $0x248] sm:$0xff]
        %v3277 = vld [vmem:[#allocation3 + $0x250] sm:$0xff]
        %v3278 = vld [vmem:[#allocation3 + $0x258] sm:$0xff]
        %v3279 = vld [vmem:[#allocation3 + $0x260] sm:$0xff]
        %v3280 = vld [vmem:[#allocation3 + $0x268] sm:$0xff]
        %v3281 = vld [vmem:[#allocation3 + $0x270] sm:$0xff]
        %v3282 = vld [vmem:[#allocation3 + $0x278] sm:$0xff]
        %v3283 = vld [vmem:[#allocation3 + $0x280] sm:$0xff]
        %v3284 = vld [vmem:[#allocation3 + $0x288] sm:$0xff]
        %v3285 = vld [vmem:[#allocation3 + $0x290] sm:$0xff]
        %v3286 = vld [vmem:[#allocation3 + $0x298] sm:$0xff]
        %v3287 = vld [vmem:[#allocation3 + $0x2a0] sm:$0xff]
        %v3288 = vld [vmem:[#allocation3 + $0x2a8] sm:$0xff]
        %v3289 = vld [vmem:[#allocation3 + $0x2b0] sm:$0xff]
        %v3290 = vld [vmem:[#allocation3 + $0x2b8] sm:$0xff]
        %v3291 = vld [vmem:[#allocation3 + $0x2c0] sm:$0xff]
        %v3292 = vld [vmem:[#allocation3 + $0x2c8] sm:$0xff]
        %v3293 = vld [vmem:[#allocation3 + $0x2d0] sm:$0xff]
        %v3294 = vld [vmem:[#allocation3 + $0x2d8] sm:$0xff]
        %v3295 = vld [vmem:[#allocation3 + $0x2e0] sm:$0xff]
        %v3296 = vld [vmem:[#allocation3 + $0x2e8] sm:$0xff]
        %v3297 = vld [vmem:[#allocation3 + $0x2f0] sm:$0xff]
        %v3298 = vld [vmem:[#allocation3 + $0x2f8] sm:$0xff]
        %v3299 = vld [vmem:[#allocation3 + $0x300] sm:$0xff]
        %v3300 = vld [vmem:[#allocation3 + $0x308] sm:$0xff]
        %v3301 = vld [vmem:[#allocation3 + $0x310] sm:$0xff]
        %v3302 = vld [vmem:[#allocation3 + $0x318] sm:$0xff]
        %v3303 = vld [vmem:[#allocation3 + $0x320] sm:$0xff]
        %v3304 = vld [vmem:[#allocation3 + $0x328] sm:$0xff]
        %v3305 = vld [vmem:[#allocation3 + $0x330] sm:$0xff]
        %v3306 = vld [vmem:[#allocation3 + $0x338] sm:$0xff]
        %v3307 = vld [vmem:[#allocation3 + $0x340] sm:$0xff]
        %v3308 = vld [vmem:[#allocation3 + $0x348] sm:$0xff]
        %v3309 = vld [vmem:[#allocation3 + $0x350] sm:$0xff]
        %v3310 = vld [vmem:[#allocation3 + $0x358] sm:$0xff]
        %v3311 = vld [vmem:[#allocation3 + $0x360] sm:$0xff]
        %v3312 = vld [vmem:[#allocation3 + $0x368] sm:$0xff]
        %v3313 = vld [vmem:[#allocation3 + $0x370] sm:$0xff]
        %v3314 = vld [vmem:[#allocation3 + $0x378] sm:$0xff]
        %v3315 = vld [vmem:[#allocation3 + $0x380] sm:$0xff]
        %v3316 = vld [vmem:[#allocation3 + $0x388] sm:$0xff]
        %v3317 = vld [vmem:[#allocation3 + $0x390] sm:$0xff]
        %v3318 = vld [vmem:[#allocation3 + $0x398] sm:$0xff]
        %v3319 = vld [vmem:[#allocation3 + $0x3a0] sm:$0xff]
        %v3320 = vld [vmem:[#allocation3 + $0x3a8] sm:$0xff]
        %v3321 = vld [vmem:[#allocation3 + $0x3b0] sm:$0xff]
        %v3322 = vld [vmem:[#allocation3 + $0x3b8] sm:$0xff]
        %v3323 = vld [vmem:[#allocation3 + $0x3c0] sm:$0xff]
        %v3324 = vld [vmem:[#allocation3 + $0x3c8] sm:$0xff]
        %v3325 = vld [vmem:[#allocation3 + $0x3d0] sm:$0xff]
        %v3326 = vld [vmem:[#allocation3 + $0x3d8] sm:$0xff]
        %v3327 = vld [vmem:[#allocation3 + $0x3e0] sm:$0xff]
        %v3328 = vld [vmem:[#allocation3 + $0x3e8] sm:$0xff]
        %v3329 = vld [vmem:[#allocation3 + $0x3f0] sm:$0xf]
        %v3330 = vld [vmem:[#allocation3 + $0x3f8] sm:$0xf]
        %v3332 = vsel %vm3158, %v3190, 0
        %v3335 = vsel %vm3158, %v3194, 0
        %v3338 = vsel %vm3158, %v3198, 0
        %v3341 = vsel %vm3158, %v3202, 0
        %v3344 = vsel %vm906, %v3329, 0
        %v3347 = vsel %vm906, %v3330, 0
        %3349 = vmatpush.msra.mxu0 %v3233
        %3350 = vmatpush.msra.mxu0 %v3231
        %3351 = vmatpush.msra.mxu0 %v3229
        %3352 = vmatpush.msra.mxu0 %v3227
        %3353 = vmatpush.msra.mxu0 %v3225
        %3354 = vmatpush.msra.mxu0 %v3223
        %3355 = vmatpush.msra.mxu0 %v3221
        %3356 = vmatpush.msra.mxu0 %v3219
        %3357 = vmatpush.msra.mxu0 %v3217
        %3358 = vmatpush.msra.mxu0 %v3215
        %3359 = vmatpush.msra.mxu0 %v3213
        %3360 = vmatpush.msra.mxu0 %v3211
        %3361 = vmatpush.msra.mxu0 %v3209
        %3362 = vmatpush.msra.mxu0 %v3207
        %3363 = vmatpush.msra.mxu0 %v3205
        %3364 = vmatpush.msra.mxu0 %v3203
        %3365 = vmatmul.f32.gmra.mxu0 %v3187
        %v3366 = vpop.f32.mrf.mxu0
        %v3367 = vadd.f32 0.0, %v3366
        %3368 = vmatmul.f32.gmra.mxu0 %v3191
        %v3369 = vpop.f32.mrf.mxu0
        %v3370 = vadd.f32 0.0, %v3369
        %3371 = vmatmul.f32.gmra.mxu0 %v3195
        %v3372 = vpop.f32.mrf.mxu0
        %v3373 = vadd.f32 0.0, %v3372
        %3374 = vmatmul.f32.gmra.mxu0 %v3199
        %v3375 = vpop.f32.mrf.mxu0
        %v3376 = vadd.f32 0.0, %v3375
        %3377 = vdwg.mxu0
        %3378 = vmatpush.msra.mxu0 %v3265
        %3379 = vmatpush.msra.mxu0 %v3263
        %3380 = vmatpush.msra.mxu0 %v3261
        %3381 = vmatpush.msra.mxu0 %v3259
        %3382 = vmatpush.msra.mxu0 %v3257
        %3383 = vmatpush.msra.mxu0 %v3255
        %3384 = vmatpush.msra.mxu0 %v3253
        %3385 = vmatpush.msra.mxu0 %v3251
        %3386 = vmatpush.msra.mxu0 %v3249
        %3387 = vmatpush.msra.mxu0 %v3247
        %3388 = vmatpush.msra.mxu0 %v3245
        %3389 = vmatpush.msra.mxu0 %v3243
        %3390 = vmatpush.msra.mxu0 %v3241
        %3391 = vmatpush.msra.mxu0 %v3239
        %3392 = vmatpush.msra.mxu0 %v3237
        %3393 = vmatpush.msra.mxu0 %v3235
        %3394 = vmatmul.f32.gmra.mxu0 %v3188
        %v3395 = vpop.f32.mrf.mxu0
        %v3396 = vadd.f32 %v3367, %v3395
        %3397 = vmatmul.f32.gmra.mxu0 %v3192
        %v3398 = vpop.f32.mrf.mxu0
        %v3399 = vadd.f32 %v3370, %v3398
        %3400 = vmatmul.f32.gmra.mxu0 %v3196
        %v3401 = vpop.f32.mrf.mxu0
        %v3402 = vadd.f32 %v3373, %v3401
        %3403 = vmatmul.f32.gmra.mxu0 %v3200
        %v3404 = vpop.f32.mrf.mxu0
        %v3405 = vadd.f32 %v3376, %v3404
        %3406 = vdwg.mxu0
        %3407 = vmatpush.msra.mxu0 %v3297
        %3408 = vmatpush.msra.mxu0 %v3295
        %3409 = vmatpush.msra.mxu0 %v3293
        %3410 = vmatpush.msra.mxu0 %v3291
        %3411 = vmatpush.msra.mxu0 %v3289
        %3412 = vmatpush.msra.mxu0 %v3287
        %3413 = vmatpush.msra.mxu0 %v3285
        %3414 = vmatpush.msra.mxu0 %v3283
        %3415 = vmatpush.msra.mxu0 %v3281
        %3416 = vmatpush.msra.mxu0 %v3279
        %3417 = vmatpush.msra.mxu0 %v3277
        %3418 = vmatpush.msra.mxu0 %v3275
        %3419 = vmatpush.msra.mxu0 %v3273
        %3420 = vmatpush.msra.mxu0 %v3271
        %3421 = vmatpush.msra.mxu0 %v3269
        %3422 = vmatpush.msra.mxu0 %v3267
        %3423 = vmatmul.f32.gmra.mxu0 %v3189
        %v3424 = vpop.f32.mrf.mxu0
        %v3425 = vadd.f32 %v3396, %v3424
        %3426 = vmatmul.f32.gmra.mxu0 %v3193
        %v3427 = vpop.f32.mrf.mxu0
        %v3428 = vadd.f32 %v3399, %v3427
        %3429 = vmatmul.f32.gmra.mxu0 %v3197
        %v3430 = vpop.f32.mrf.mxu0
        %v3431 = vadd.f32 %v3402, %v3430
        %3432 = vmatmul.f32.gmra.mxu0 %v3201
        %v3433 = vpop.f32.mrf.mxu0
        %v3434 = vadd.f32 %v3405, %v3433
        %3435 = vdwg.mxu0
        %3436 = vmatpush.msra.mxu0 %v3344
        %3437 = vmatpush.msra.mxu0 %v3327
        %3438 = vmatpush.msra.mxu0 %v3325
        %3439 = vmatpush.msra.mxu0 %v3323
        %3440 = vmatpush.msra.mxu0 %v3321
        %3441 = vmatpush.msra.mxu0 %v3319
        %3442 = vmatpush.msra.mxu0 %v3317
        %3443 = vmatpush.msra.mxu0 %v3315
        %3444 = vmatpush.msra.mxu0 %v3313
        %3445 = vmatpush.msra.mxu0 %v3311
        %3446 = vmatpush.msra.mxu0 %v3309
        %3447 = vmatpush.msra.mxu0 %v3307
        %3448 = vmatpush.msra.mxu0 %v3305
        %3449 = vmatpush.msra.mxu0 %v3303
        %3450 = vmatpush.msra.mxu0 %v3301
        %3451 = vmatpush.msra.mxu0 %v3299
        %3452 = vmatmul.f32.gmra.mxu0 %v3332
        %v3453 = vpop.f32.mrf.mxu0
        %v3454 = vadd.f32 %v3425, %v3453
        %3455 = vmatmul.f32.gmra.mxu0 %v3335
        %v3456 = vpop.f32.mrf.mxu0
        %v3457 = vadd.f32 %v3428, %v3456
        %3458 = vmatmul.f32.gmra.mxu0 %v3338
        %v3459 = vpop.f32.mrf.mxu0
        %v3460 = vadd.f32 %v3431, %v3459
        %3461 = vmatmul.f32.gmra.mxu0 %v3341
        %v3462 = vpop.f32.mrf.mxu0
        %v3463 = vadd.f32 %v3434, %v3462
        %3464 = vdwg.mxu0
        %3465 = vmatpush.msra.mxu0 %v3234
        %3466 = vmatpush.msra.mxu0 %v3232
        %3467 = vmatpush.msra.mxu0 %v3230
        %3468 = vmatpush.msra.mxu0 %v3228
        %3469 = vmatpush.msra.mxu0 %v3226
        %3470 = vmatpush.msra.mxu0 %v3224
        %3471 = vmatpush.msra.mxu0 %v3222
        %3472 = vmatpush.msra.mxu0 %v3220
        %3473 = vmatpush.msra.mxu0 %v3218
        %3474 = vmatpush.msra.mxu0 %v3216
        %3475 = vmatpush.msra.mxu0 %v3214
        %3476 = vmatpush.msra.mxu0 %v3212
        %3477 = vmatpush.msra.mxu0 %v3210
        %3478 = vmatpush.msra.mxu0 %v3208
        %3479 = vmatpush.msra.mxu0 %v3206
        %3480 = vmatpush.msra.mxu0 %v3204
        %3481 = vmatmul.f32.gmra.mxu0 %v3187
        %v3482 = vpop.f32.mrf.mxu0
        %v3483 = vadd.f32 0.0, %v3482
        %3484 = vmatmul.f32.gmra.mxu0 %v3191
        %v3485 = vpop.f32.mrf.mxu0
        %v3486 = vadd.f32 0.0, %v3485
        %3487 = vmatmul.f32.gmra.mxu0 %v3195
        %v3488 = vpop.f32.mrf.mxu0
        %v3489 = vadd.f32 0.0, %v3488
        %3490 = vmatmul.f32.gmra.mxu0 %v3199
        %v3491 = vpop.f32.mrf.mxu0
        %v3492 = vadd.f32 0.0, %v3491
        %3493 = vdwg.mxu0
        %3494 = vmatpush.msra.mxu0 %v3266
        %3495 = vmatpush.msra.mxu0 %v3264
        %3496 = vmatpush.msra.mxu0 %v3262
        %3497 = vmatpush.msra.mxu0 %v3260
        %3498 = vmatpush.msra.mxu0 %v3258
        %3499 = vmatpush.msra.mxu0 %v3256
        %3500 = vmatpush.msra.mxu0 %v3254
        %3501 = vmatpush.msra.mxu0 %v3252
        %3502 = vmatpush.msra.mxu0 %v3250
        %3503 = vmatpush.msra.mxu0 %v3248
        %3504 = vmatpush.msra.mxu0 %v3246
        %3505 = vmatpush.msra.mxu0 %v3244
        %3506 = vmatpush.msra.mxu0 %v3242
        %3507 = vmatpush.msra.mxu0 %v3240
        %3508 = vmatpush.msra.mxu0 %v3238
        %3509 = vmatpush.msra.mxu0 %v3236
        %3510 = vmatmul.f32.gmra.mxu0 %v3188
        %v3511 = vpop.f32.mrf.mxu0
        %v3512 = vadd.f32 %v3483, %v3511
        %3513 = vmatmul.f32.gmra.mxu0 %v3192
        %v3514 = vpop.f32.mrf.mxu0
        %v3515 = vadd.f32 %v3486, %v3514
        %3516 = vmatmul.f32.gmra.mxu0 %v3196
        %v3517 = vpop.f32.mrf.mxu0
        %v3518 = vadd.f32 %v3489, %v3517
        %3519 = vmatmul.f32.gmra.mxu0 %v3200
        %v3520 = vpop.f32.mrf.mxu0
        %v3521 = vadd.f32 %v3492, %v3520
        %3522 = vdwg.mxu0
        %3523 = vmatpush.msra.mxu0 %v3298
        %3524 = vmatpush.msra.mxu0 %v3296
        %3525 = vmatpush.msra.mxu0 %v3294
        %3526 = vmatpush.msra.mxu0 %v3292
        %3527 = vmatpush.msra.mxu0 %v3290
        %3528 = vmatpush.msra.mxu0 %v3288
        %3529 = vmatpush.msra.mxu0 %v3286
        %3530 = vmatpush.msra.mxu0 %v3284
        %3531 = vmatpush.msra.mxu0 %v3282
        %3532 = vmatpush.msra.mxu0 %v3280
        %3533 = vmatpush.msra.mxu0 %v3278
        %3534 = vmatpush.msra.mxu0 %v3276
        %3535 = vmatpush.msra.mxu0 %v3274
        %3536 = vmatpush.msra.mxu0 %v3272
        %3537 = vmatpush.msra.mxu0 %v3270
        %3538 = vmatpush.msra.mxu0 %v3268
        %3539 = vmatmul.f32.gmra.mxu0 %v3189
        %v3540 = vpop.f32.mrf.mxu0
        %v3541 = vadd.f32 %v3512, %v3540
        %3542 = vmatmul.f32.gmra.mxu0 %v3193
        %v3543 = vpop.f32.mrf.mxu0
        %v3544 = vadd.f32 %v3515, %v3543
        %3545 = vmatmul.f32.gmra.mxu0 %v3197
        %v3546 = vpop.f32.mrf.mxu0
        %v3547 = vadd.f32 %v3518, %v3546
        %3548 = vmatmul.f32.gmra.mxu0 %v3201
        %v3549 = vpop.f32.mrf.mxu0
        %v3550 = vadd.f32 %v3521, %v3549
        %3551 = vdwg.mxu0
        %3552 = vmatpush.msra.mxu0 %v3347
        %3553 = vmatpush.msra.mxu0 %v3328
        %3554 = vmatpush.msra.mxu0 %v3326
        %3555 = vmatpush.msra.mxu0 %v3324
        %3556 = vmatpush.msra.mxu0 %v3322
        %3557 = vmatpush.msra.mxu0 %v3320
        %3558 = vmatpush.msra.mxu0 %v3318
        %3559 = vmatpush.msra.mxu0 %v3316
        %3560 = vmatpush.msra.mxu0 %v3314
        %3561 = vmatpush.msra.mxu0 %v3312
        %3562 = vmatpush.msra.mxu0 %v3310
        %3563 = vmatpush.msra.mxu0 %v3308
        %3564 = vmatpush.msra.mxu0 %v3306
        %3565 = vmatpush.msra.mxu0 %v3304
        %3566 = vmatpush.msra.mxu0 %v3302
        %3567 = vmatpush.msra.mxu0 %v3300
        %3568 = vmatmul.f32.gmra.mxu0 %v3332
        %v3569 = vpop.f32.mrf.mxu0
        %v3570 = vadd.f32 %v3541, %v3569
        %3571 = vmatmul.f32.gmra.mxu0 %v3335
        %v3572 = vpop.f32.mrf.mxu0
        %v3573 = vadd.f32 %v3544, %v3572
        %3574 = vmatmul.f32.gmra.mxu0 %v3338
        %v3575 = vpop.f32.mrf.mxu0
        %v3576 = vadd.f32 %v3547, %v3575
        %3577 = vmatmul.f32.gmra.mxu0 %v3341
        %v3578 = vpop.f32.mrf.mxu0
        %v3579 = vadd.f32 %v3550, %v3578
        %3580 = vdwg.mxu0
        %s3581 = scalar_lea.vmem %s3, 32
        %v3582 = vld [vmem:[%s3581] sm:$0xff]
        %v3583 = vld [vmem:[%s3581 + $0x8] sm:$0xff]
        %v3584 = vld [vmem:[%s3581 + $0x10] sm:$0xff]
        %v3585 = vld [vmem:[%s3581 + $0x18] sm:$0xff]
        %s3586 = scalar_lea.vmem %s4, 32
        %v3587 = vld [vmem:[%s3586] sm:$0xff]
        %v3588 = vld [vmem:[%s3586 + $0x8] sm:$0xff]
        %v3589 = vld [vmem:[%s3586 + $0x10] sm:$0xff]
        %v3590 = vld [vmem:[%s3586 + $0x18] sm:$0xff]
        %s3591 = scalar_lea.vmem %s5, 4
        %v3592 = vld [vmem:[%s3591] sm:$0x3]
        %vm3593 = vcmp.gt.f32.partialorder %v3592, 0.5
        %v3594 = vpack.c.bf16 %v3570, %v3454
        %v3595 = vpack.c.bf16 %v3573, %v3457
        %v3596 = vpack.c.bf16 %v3576, %v3460
        %v3597 = vpack.c.bf16 %v3579, %v3463
        %3598 = vst.msk [vmem:[#allocation2] sm:$0xf] %vm690, 0
        %3599 = vst.msk [vmem:[#allocation2 + $0x10] sm:$0xf] %vm690, 0
        %3600 = vst.msk [vmem:[#allocation2 + $0x20] sm:$0xf] %vm690, 0
        %3601 = vst.msk [vmem:[#allocation2 + $0x30] sm:$0xf] %vm690, 0
        %3602 = vst.msk [vmem:[#allocation2 + $0x40] sm:$0xf] %vm690, 0
        %3603 = vst.msk [vmem:[#allocation2 + $0x50] sm:$0xf] %vm690, 0
        %3604 = vst.msk [vmem:[#allocation2 + $0x60] sm:$0xf] %vm690, 0
        %3605 = vst.msk [vmem:[#allocation2 + $0x70] sm:$0xf] %vm690, 0
        %3606 = vst.msk [vmem:[#allocation2 + $0x80] sm:$0xf] %vm690, 0
        %3607 = vst.msk [vmem:[#allocation2 + $0x90] sm:$0xf] %vm690, 0
        %3608 = vst.msk [vmem:[#allocation2 + $0xa0] sm:$0xf] %vm690, 0
        %3609 = vst.msk [vmem:[#allocation2 + $0xb0] sm:$0xf] %vm690, 0
        %3610 = vst.msk [vmem:[#allocation2 + $0xc0] sm:$0xf] %vm690, 0
        %3611 = vst.msk [vmem:[#allocation2 + $0xd0] sm:$0xf] %vm690, 0
        %3612 = vst.msk [vmem:[#allocation2 + $0xe0] sm:$0xf] %vm690, 0
        %3613 = vst.msk [vmem:[#allocation2 + $0xf0] sm:$0xf] %vm690, 0
        %3614 = vst.msk [vmem:[#allocation2 + $0x100] sm:$0xf] %vm690, 0
        %3615 = vst.msk [vmem:[#allocation2 + $0x110] sm:$0xf] %vm690, 0
        %3616 = vst.msk [vmem:[#allocation2 + $0x120] sm:$0xf] %vm690, 0
        %3617 = vst.msk [vmem:[#allocation2 + $0x130] sm:$0xf] %vm690, 0
        %3618 = vst.msk [vmem:[#allocation2 + $0x4] sm:$0xf] %vm711, 0
        %3619 = vst.msk [vmem:[#allocation2 + $0x14] sm:$0xf] %vm711, 0
        %3620 = vst.msk [vmem:[#allocation2 + $0x24] sm:$0xf] %vm711, 0
        %3621 = vst.msk [vmem:[#allocation2 + $0x34] sm:$0xf] %vm711, 0
        %3622 = vst.msk [vmem:[#allocation2 + $0x44] sm:$0xf] %vm711, 0
        %3623 = vst.msk [vmem:[#allocation2 + $0x54] sm:$0xf] %vm711, 0
        %3624 = vst.msk [vmem:[#allocation2 + $0x64] sm:$0xf] %vm711, 0
        %3625 = vst.msk [vmem:[#allocation2 + $0x74] sm:$0xf] %vm711, 0
        %3626 = vst.msk [vmem:[#allocation2 + $0x84] sm:$0xf] %vm711, 0
        %3627 = vst.msk [vmem:[#allocation2 + $0x94] sm:$0xf] %vm711, 0
        %3628 = vst.msk [vmem:[#allocation2 + $0xa4] sm:$0xf] %vm711, 0
        %3629 = vst.msk [vmem:[#allocation2 + $0xb4] sm:$0xf] %vm711, 0
        %3630 = vst.msk [vmem:[#allocation2 + $0xc4] sm:$0xf] %vm711, 0
        %3631 = vst.msk [vmem:[#allocation2 + $0xd4] sm:$0xf] %vm711, 0
        %3632 = vst.msk [vmem:[#allocation2 + $0xe4] sm:$0xf] %vm711, 0
        %3633 = vst.msk [vmem:[#allocation2 + $0xf4] sm:$0xf] %vm711, 0
        %3634 = vst.msk [vmem:[#allocation2 + $0x104] sm:$0xf] %vm711, 0
        %3635 = vst.msk [vmem:[#allocation2 + $0x114] sm:$0xf] %vm711, 0
        %3636 = vst.msk [vmem:[#allocation2 + $0x124] sm:$0xf] %vm711, 0
        %3637 = vst.msk [vmem:[#allocation2 + $0x134] sm:$0xf] %vm711, 0
        %3642 = vrot.lane.b32.xlu0 %v3594, 2
        %v3643 = vpop.permute.xlu0 %3642
        %3644 = vrot.lane.b32.xlu0 %v3595, 2
        %v3645 = vpop.permute.xlu0 %3644
        %3646 = vrot.lane.b32.xlu0 %v3596, 2
        %v3647 = vpop.permute.xlu0 %3646
        %3648 = vrot.lane.b32.xlu0 %v3597, 2
        %v3649 = vpop.permute.xlu0 %3648
        %v3650 = vrot.slane %v3643, 4
        %v3651 = vrot.slane %v3645, 4
        %v3652 = vrot.slane %v3647, 4
        %v3653 = vrot.slane %v3649, 4
        %v3654 = vsel %vm764, %v3650, %v3643
        %v3655 = vsel %vm764, %v3651, %v3645
        %v3656 = vsel %vm764, %v3652, %v3647
        %v3657 = vsel %vm764, %v3653, %v3649
        %3662 = vst.msk [vmem:[#allocation2] sm:$0xff] %vm788, %v3654
        %3663 = vst.msk [vmem:[#allocation2 + $0x10] sm:$0xff] %vm788, %v3655
        %3664 = vst.msk [vmem:[#allocation2 + $0x20] sm:$0xff] %vm788, %v3656
        %3665 = vst.msk [vmem:[#allocation2 + $0x30] sm:$0xff] %vm788, %v3657
        %3666 = vrot.lane.b32.xlu0 %v3594, 1
        %v3667 = vpop.permute.xlu0 %3666
        %3668 = vrot.lane.b32.xlu0 %v3595, 1
        %v3669 = vpop.permute.xlu0 %3668
        %3670 = vrot.lane.b32.xlu0 %v3596, 1
        %v3671 = vpop.permute.xlu0 %3670
        %3672 = vrot.lane.b32.xlu0 %v3597, 1
        %v3673 = vpop.permute.xlu0 %3672
        %v3674 = vrot.slane %v3667, 4
        %v3675 = vrot.slane %v3669, 4
        %v3676 = vrot.slane %v3671, 4
        %v3677 = vrot.slane %v3673, 4
        %v3678 = vsel %vm821, %v3674, %v3667
        %v3679 = vsel %vm821, %v3675, %v3669
        %v3680 = vsel %vm821, %v3676, %v3671
        %v3681 = vsel %vm821, %v3677, %v3673
        %3686 = vst.msk [vmem:[#allocation2 + $0x40] sm:$0xff] %vm843, %v3678
        %3687 = vst.msk [vmem:[#allocation2 + $0x50] sm:$0xff] %vm843, %v3679
        %3688 = vst.msk [vmem:[#allocation2 + $0x60] sm:$0xff] %vm843, %v3680
        %3689 = vst.msk [vmem:[#allocation2 + $0x70] sm:$0xff] %vm843, %v3681
        %3690 = vst [vmem:[#allocation2 + $0x80] sm:$0xff] %v3594
        %3691 = vst [vmem:[#allocation2 + $0x90] sm:$0xff] %v3595
        %3692 = vst [vmem:[#allocation2 + $0xa0] sm:$0xff] %v3596
        %3693 = vst [vmem:[#allocation2 + $0xb0] sm:$0xff] %v3597
        %3694 = vrot.lane.b32.xlu0 %v3594, 127
        %v3695 = vpop.permute.xlu0 %3694
        %3696 = vrot.lane.b32.xlu0 %v3595, 127
        %v3697 = vpop.permute.xlu0 %3696
        %3698 = vrot.lane.b32.xlu0 %v3596, 127
        %v3699 = vpop.permute.xlu0 %3698
        %3700 = vrot.lane.b32.xlu0 %v3597, 127
        %v3701 = vpop.permute.xlu0 %3700
        %v3702 = vrot.slane %v3695, 4
        %v3703 = vrot.slane %v3697, 4
        %v3704 = vrot.slane %v3699, 4
        %v3705 = vrot.slane %v3701, 4
        %v3706 = vsel %vm885, %v3695, %v3702
        %v3707 = vsel %vm885, %v3697, %v3703
        %v3708 = vsel %vm885, %v3699, %v3704
        %v3709 = vsel %vm885, %v3701, %v3705
        %3714 = vst.msk [vmem:[#allocation2 + $0xc0] sm:$0xff] %vm908, %v3706
        %3715 = vst.msk [vmem:[#allocation2 + $0xd0] sm:$0xff] %vm908, %v3707
        %3716 = vst.msk [vmem:[#allocation2 + $0xe0] sm:$0xff] %vm908, %v3708
        %3717 = vst.msk [vmem:[#allocation2 + $0xf0] sm:$0xff] %vm908, %v3709
        %3718 = vrot.lane.b32.xlu0 %v3594, 126
        %v3719 = vpop.permute.xlu0 %3718
        %3720 = vrot.lane.b32.xlu0 %v3595, 126
        %v3721 = vpop.permute.xlu0 %3720
        %3722 = vrot.lane.b32.xlu0 %v3596, 126
        %v3723 = vpop.permute.xlu0 %3722
        %3724 = vrot.lane.b32.xlu0 %v3597, 126
        %v3725 = vpop.permute.xlu0 %3724
        %v3726 = vrot.slane %v3719, 4
        %v3727 = vrot.slane %v3721, 4
        %v3728 = vrot.slane %v3723, 4
        %v3729 = vrot.slane %v3725, 4
        %v3730 = vsel %vm941, %v3719, %v3726
        %v3731 = vsel %vm941, %v3721, %v3727
        %v3732 = vsel %vm941, %v3723, %v3728
        %v3733 = vsel %vm941, %v3725, %v3729
        %3738 = vst.msk [vmem:[#allocation2 + $0x100] sm:$0xff] %vm963, %v3730
        %3739 = vst.msk [vmem:[#allocation2 + $0x110] sm:$0xff] %vm963, %v3731
        %3740 = vst.msk [vmem:[#allocation2 + $0x120] sm:$0xff] %vm963, %v3732
        %3741 = vst.msk [vmem:[#allocation2 + $0x130] sm:$0xff] %vm963, %v3733
        %v3742 = vld [vmem:[#allocation2] sm:$0xff]
        %v3743 = vld [vmem:[#allocation2 + $0x10] sm:$0xff]
        %v3744 = vld [vmem:[#allocation2 + $0x20] sm:$0xff]
        %v3745 = vld [vmem:[#allocation2 + $0x30] sm:$0xff]
        %v3746 = vld [vmem:[#allocation2 + $0x40] sm:$0xff]
        %v3747 = vld [vmem:[#allocation2 + $0x50] sm:$0xff]
        %v3748 = vld [vmem:[#allocation2 + $0x60] sm:$0xff]
        %v3749 = vld [vmem:[#allocation2 + $0x70] sm:$0xff]
        %v3750 = vld [vmem:[#allocation2 + $0x80] sm:$0xff]
        %v3751 = vld [vmem:[#allocation2 + $0x90] sm:$0xff]
        %v3752 = vld [vmem:[#allocation2 + $0xa0] sm:$0xff]
        %v3753 = vld [vmem:[#allocation2 + $0xb0] sm:$0xff]
        %v3754 = vld [vmem:[#allocation2 + $0xc0] sm:$0xff]
        %v3755 = vld [vmem:[#allocation2 + $0xd0] sm:$0xff]
        %v3756 = vld [vmem:[#allocation2 + $0xe0] sm:$0xff]
        %v3757 = vld [vmem:[#allocation2 + $0xf0] sm:$0xff]
        %v3758 = vld [vmem:[#allocation2 + $0x100] sm:$0xff]
        %v3759 = vld [vmem:[#allocation2 + $0x110] sm:$0xff]
        %v3760 = vld [vmem:[#allocation2 + $0x120] sm:$0xff]
        %v3761 = vld [vmem:[#allocation2 + $0x130] sm:$0xff]
        %3763 = vset.pattern.permute.xlu0 0
        %3764 = vperm.xlu0 %3763, %v3587
        %v3765 = vpop.permute.xlu0 %3764
        %3768 = vset.pattern.permute.xlu0 0
        %3769 = vperm.xlu0 %3768, %v3588
        %v3770 = vpop.permute.xlu0 %3769
        %3773 = vset.pattern.permute.xlu0 0
        %3774 = vperm.xlu0 %3773, %v3589
        %v3775 = vpop.permute.xlu0 %3774
        %3778 = vset.pattern.permute.xlu0 0
        %3779 = vperm.xlu0 %3778, %v3590
        %v3780 = vpop.permute.xlu0 %3779
        %v3786 = vunpack.c.l.b16 %v3582
        %v3787 = vunpack.c.h.b16 %v3582
        %v3788 = vunpack.c.l.b16 %v3583
        %v3789 = vunpack.c.h.b16 %v3583
        %v3790 = vunpack.c.l.b16 %v3584
        %v3791 = vunpack.c.h.b16 %v3584
        %v3792 = vunpack.c.l.b16 %v3585
        %v3793 = vunpack.c.h.b16 %v3585
        %v3794 = vpack.c.b16 %v3788, %v3786
        %v3795 = vpack.c.b16 %v3789, %v3787
        %v3796 = vpack.c.b16 %v3792, %v3790
        %v3797 = vpack.c.b16 %v3793, %v3791
        %v3820 = vunpack.c.l.b16 %v3742
        %v3821 = vunpack.c.h.b16 %v3742
        %v3822 = vunpack.c.l.b16 %v3743
        %v3823 = vunpack.c.h.b16 %v3743
        %v3824 = vunpack.c.l.b16 %v3744
        %v3825 = vunpack.c.h.b16 %v3744
        %v3826 = vunpack.c.l.b16 %v3745
        %v3827 = vunpack.c.h.b16 %v3745
        %v3828 = vunpack.c.l.b16 %v3746
        %v3829 = vunpack.c.h.b16 %v3746
        %v3830 = vunpack.c.l.b16 %v3747
        %v3831 = vunpack.c.h.b16 %v3747
        %v3832 = vunpack.c.l.b16 %v3748
        %v3833 = vunpack.c.h.b16 %v3748
        %v3834 = vunpack.c.l.b16 %v3749
        %v3835 = vunpack.c.h.b16 %v3749
        %v3836 = vunpack.c.l.b16 %v3750
        %v3837 = vunpack.c.h.b16 %v3750
        %v3838 = vunpack.c.l.b16 %v3751
        %v3839 = vunpack.c.h.b16 %v3751
        %v3840 = vunpack.c.l.b16 %v3752
        %v3841 = vunpack.c.h.b16 %v3752
        %v3842 = vunpack.c.l.b16 %v3753
        %v3843 = vunpack.c.h.b16 %v3753
        %v3844 = vunpack.c.l.b16 %v3754
        %v3845 = vunpack.c.h.b16 %v3754
        %v3846 = vunpack.c.l.b16 %v3755
        %v3847 = vunpack.c.h.b16 %v3755
        %v3848 = vunpack.c.l.b16 %v3756
        %v3849 = vunpack.c.h.b16 %v3756
        %v3850 = vunpack.c.l.b16 %v3757
        %v3851 = vunpack.c.h.b16 %v3757
        %v3852 = vunpack.c.l.b16 %v3758
        %v3853 = vunpack.c.h.b16 %v3758
        %v3854 = vunpack.c.l.b16 %v3759
        %v3855 = vunpack.c.h.b16 %v3759
        %v3856 = vunpack.c.l.b16 %v3760
        %v3857 = vunpack.c.h.b16 %v3760
        %v3858 = vunpack.c.l.b16 %v3761
        %v3859 = vunpack.c.h.b16 %v3761
        %v3860 = vpack.c.b16 %v3822, %v3820
        %v3861 = vpack.c.b16 %v3823, %v3821
        %v3862 = vpack.c.b16 %v3826, %v3824
        %v3863 = vpack.c.b16 %v3827, %v3825
        %v3864 = vpack.c.b16 %v3830, %v3828
        %v3865 = vpack.c.b16 %v3831, %v3829
        %v3866 = vpack.c.b16 %v3834, %v3832
        %v3867 = vpack.c.b16 %v3835, %v3833
        %v3868 = vpack.c.b16 %v3838, %v3836
        %v3869 = vpack.c.b16 %v3839, %v3837
        %v3870 = vpack.c.b16 %v3842, %v3840
        %v3871 = vpack.c.b16 %v3843, %v3841
        %v3872 = vpack.c.b16 %v3846, %v3844
        %v3873 = vpack.c.b16 %v3847, %v3845
        %v3874 = vpack.c.b16 %v3850, %v3848
        %v3875 = vpack.c.b16 %v3851, %v3849
        %v3876 = vpack.c.b16 %v3854, %v3852
        %v3877 = vpack.c.b16 %v3855, %v3853
        %v3878 = vpack.c.b16 %v3858, %v3856
        %v3879 = vpack.c.b16 %v3859, %v3857
        %v3901 = vsel %vm1249, %v3795, 0
        %v3904 = vsel %vm1249, %v3797, 0
        %3906 = vmatpush.bf16.msra.mxu0 %v3874
        %3907 = vmatpush.bf16.msra.mxu0 %v3872
        %3908 = vmatpush.bf16.msra.mxu0 %v3870
        %3909 = vmatpush.bf16.msra.mxu0 %v3868
        %3910 = vmatpush.bf16.msra.mxu0 %v3866
        %3911 = vmatpush.bf16.msra.mxu0 %v3864
        %3912 = vmatpush.bf16.msra.mxu0 %v3862
        %3913 = vmatpush.bf16.msra.mxu0 %v3860
        %3914 = vmatmul.bf16.gmra.mxu0 %v3794
        %v3915 = vpop.f32.mrf.mxu0
        %v3916 = vadd.f32 %v3765, %v3915
        %v3917 = vpop.f32.mrf.mxu0
        %v3918 = vadd.f32 %v3770, %v3917
        %3919 = vmatmul.bf16.gmra.mxu0 %v3796
        %v3920 = vpop.f32.mrf.mxu0
        %v3921 = vadd.f32 %v3775, %v3920
        %v3922 = vpop.f32.mrf.mxu0
        %v3923 = vadd.f32 %v3780, %v3922
        %3924 = vdwg.mxu0
        %3925 = vmatpush.bf16.msra.mxu0 0
        %3926 = vmatpush.bf16.msra.mxu0 0
        %3927 = vmatpush.bf16.msra.mxu0 0
        %3928 = vmatpush.bf16.msra.mxu0 0
        %3929 = vmatpush.bf16.msra.mxu0 0
        %3930 = vmatpush.bf16.msra.mxu0 0
        %3931 = vmatpush.bf16.msra.mxu0 %v3878
        %3932 = vmatpush.bf16.msra.mxu0 %v3876
        %3933 = vmatmul.bf16.gmra.mxu0 %v3901
        %v3934 = vpop.f32.mrf.mxu0
        %v3935 = vadd.f32 %v3916, %v3934
        %v3936 = vpop.f32.mrf.mxu0
        %v3937 = vadd.f32 %v3918, %v3936
        %3938 = vmatmul.bf16.gmra.mxu0 %v3904
        %v3939 = vpop.f32.mrf.mxu0
        %v3940 = vadd.f32 %v3921, %v3939
        %v3941 = vpop.f32.mrf.mxu0
        %v3942 = vadd.f32 %v3923, %v3941
        %3943 = vdwg.mxu0
        %3944 = vmatpush.bf16.msra.mxu0 %v3875
        %3945 = vmatpush.bf16.msra.mxu0 %v3873
        %3946 = vmatpush.bf16.msra.mxu0 %v3871
        %3947 = vmatpush.bf16.msra.mxu0 %v3869
        %3948 = vmatpush.bf16.msra.mxu0 %v3867
        %3949 = vmatpush.bf16.msra.mxu0 %v3865
        %3950 = vmatpush.bf16.msra.mxu0 %v3863
        %3951 = vmatpush.bf16.msra.mxu0 %v3861
        %3952 = vmatmul.bf16.gmra.mxu0 %v3794
        %v3953 = vpop.f32.mrf.mxu0
        %v3954 = vadd.f32 %v3765, %v3953
        %v3955 = vpop.f32.mrf.mxu0
        %v3956 = vadd.f32 %v3770, %v3955
        %3957 = vmatmul.bf16.gmra.mxu0 %v3796
        %v3958 = vpop.f32.mrf.mxu0
        %v3959 = vadd.f32 %v3775, %v3958
        %v3960 = vpop.f32.mrf.mxu0
        %v3961 = vadd.f32 %v3780, %v3960
        %3962 = vdwg.mxu0
        %3963 = vmatpush.bf16.msra.mxu0 0
        %3964 = vmatpush.bf16.msra.mxu0 0
        %3965 = vmatpush.bf16.msra.mxu0 0
        %3966 = vmatpush.bf16.msra.mxu0 0
        %3967 = vmatpush.bf16.msra.mxu0 0
        %3968 = vmatpush.bf16.msra.mxu0 0
        %3969 = vmatpush.bf16.msra.mxu0 %v3879
        %3970 = vmatpush.bf16.msra.mxu0 %v3877
        %3971 = vmatmul.bf16.gmra.mxu0 %v3901
        %v3972 = vpop.f32.mrf.mxu0
        %v3973 = vadd.f32 %v3954, %v3972
        %v3974 = vpop.f32.mrf.mxu0
        %v3975 = vadd.f32 %v3956, %v3974
        %3976 = vmatmul.bf16.gmra.mxu0 %v3904
        %v3977 = vpop.f32.mrf.mxu0
        %v3978 = vadd.f32 %v3959, %v3977
        %v3979 = vpop.f32.mrf.mxu0
        %v3980 = vadd.f32 %v3961, %v3979
        %3981 = vdwg.mxu0
        %v3982 = vmax.f32 %v3935, 0.0
        %v3983 = vmax.f32 %v3973, 0.0
        %v3984 = vmax.f32 %v3937, 0.0
        %v3985 = vmax.f32 %v3975, 0.0
        %v3986 = vmax.f32 %v3940, 0.0
        %v3987 = vmax.f32 %v3978, 0.0
        %v3988 = vmax.f32 %v3942, 0.0
        %v3989 = vmax.f32 %v3980, 0.0
        %v3990 = vsel %vm3593, 1, 0
        %v3991 = vperm.slane %v3990, 0
        %v3992 = vperm.slane %v3990, 1
        %vm3993 = vcmp.eq.s32.totalorder %v3991, 1
        %vm3994 = vcmp.eq.s32.totalorder %v3992, 1
        %v3995 = vsel %vm3993, %v3982, 0.0
        %v3996 = vsel %vm3994, %v3983, 0.0
        %v3997 = vsel %vm3993, %v3984, 0.0
        %v3998 = vsel %vm3994, %v3985, 0.0
        %v3999 = vsel %vm3993, %v3986, 0.0
        %v4000 = vsel %vm3994, %v3987, 0.0
        %v4001 = vsel %vm3993, %v3988, 0.0
        %v4002 = vsel %vm3994, %v3989, 0.0
        %v4003 = vpack.c.bf16 %v3996, %v3995
        %v4004 = vpack.c.bf16 %v3998, %v3997
        %v4005 = vpack.c.bf16 %v4000, %v3999
        %v4006 = vpack.c.bf16 %v4002, %v4001
        %4007 = vst.msk [vmem:[#allocation2] sm:$0xf] %vm690, 0
        %4008 = vst.msk [vmem:[#allocation2 + $0x10] sm:$0xf] %vm690, 0
        %4009 = vst.msk [vmem:[#allocation2 + $0x20] sm:$0xf] %vm690, 0
        %4010 = vst.msk [vmem:[#allocation2 + $0x30] sm:$0xf] %vm690, 0
        %4011 = vst.msk [vmem:[#allocation2 + $0x40] sm:$0xf] %vm690, 0
        %4012 = vst.msk [vmem:[#allocation2 + $0x50] sm:$0xf] %vm690, 0
        %4013 = vst.msk [vmem:[#allocation2 + $0x60] sm:$0xf] %vm690, 0
        %4014 = vst.msk [vmem:[#allocation2 + $0x70] sm:$0xf] %vm690, 0
        %4015 = vst.msk [vmem:[#allocation2 + $0x80] sm:$0xf] %vm690, 0
        %4016 = vst.msk [vmem:[#allocation2 + $0x90] sm:$0xf] %vm690, 0
        %4017 = vst.msk [vmem:[#allocation2 + $0xa0] sm:$0xf] %vm690, 0
        %4018 = vst.msk [vmem:[#allocation2 + $0xb0] sm:$0xf] %vm690, 0
        %4019 = vst.msk [vmem:[#allocation2 + $0xc0] sm:$0xf] %vm690, 0
        %4020 = vst.msk [vmem:[#allocation2 + $0xd0] sm:$0xf] %vm690, 0
        %4021 = vst.msk [vmem:[#allocation2 + $0xe0] sm:$0xf] %vm690, 0
        %4022 = vst.msk [vmem:[#allocation2 + $0xf0] sm:$0xf] %vm690, 0
        %4023 = vst.msk [vmem:[#allocation2 + $0x100] sm:$0xf] %vm690, 0
        %4024 = vst.msk [vmem:[#allocation2 + $0x110] sm:$0xf] %vm690, 0
        %4025 = vst.msk [vmem:[#allocation2 + $0x120] sm:$0xf] %vm690, 0
        %4026 = vst.msk [vmem:[#allocation2 + $0x130] sm:$0xf] %vm690, 0
        %4027 = vst.msk [vmem:[#allocation2 + $0x4] sm:$0xf] %vm711, 0
        %4028 = vst.msk [vmem:[#allocation2 + $0x14] sm:$0xf] %vm711, 0
        %4029 = vst.msk [vmem:[#allocation2 + $0x24] sm:$0xf] %vm711, 0
        %4030 = vst.msk [vmem:[#allocation2 + $0x34] sm:$0xf] %vm711, 0
        %4031 = vst.msk [vmem:[#allocation2 + $0x44] sm:$0xf] %vm711, 0
        %4032 = vst.msk [vmem:[#allocation2 + $0x54] sm:$0xf] %vm711, 0
        %4033 = vst.msk [vmem:[#allocation2 + $0x64] sm:$0xf] %vm711, 0
        %4034 = vst.msk [vmem:[#allocation2 + $0x74] sm:$0xf] %vm711, 0
        %4035 = vst.msk [vmem:[#allocation2 + $0x84] sm:$0xf] %vm711, 0
        %4036 = vst.msk [vmem:[#allocation2 + $0x94] sm:$0xf] %vm711, 0
        %4037 = vst.msk [vmem:[#allocation2 + $0xa4] sm:$0xf] %vm711, 0
        %4038 = vst.msk [vmem:[#allocation2 + $0xb4] sm:$0xf] %vm711, 0
        %4039 = vst.msk [vmem:[#allocation2 + $0xc4] sm:$0xf] %vm711, 0
        %4040 = vst.msk [vmem:[#allocation2 + $0xd4] sm:$0xf] %vm711, 0
        %4041 = vst.msk [vmem:[#allocation2 + $0xe4] sm:$0xf] %vm711, 0
        %4042 = vst.msk [vmem:[#allocation2 + $0xf4] sm:$0xf] %vm711, 0
        %4043 = vst.msk [vmem:[#allocation2 + $0x104] sm:$0xf] %vm711, 0
        %4044 = vst.msk [vmem:[#allocation2 + $0x114] sm:$0xf] %vm711, 0
        %4045 = vst.msk [vmem:[#allocation2 + $0x124] sm:$0xf] %vm711, 0
        %4046 = vst.msk [vmem:[#allocation2 + $0x134] sm:$0xf] %vm711, 0
        %4051 = vrot.lane.b32.xlu0 %v4003, 2
        %v4052 = vpop.permute.xlu0 %4051
        %4053 = vrot.lane.b32.xlu0 %v4004, 2
        %v4054 = vpop.permute.xlu0 %4053
        %4055 = vrot.lane.b32.xlu0 %v4005, 2
        %v4056 = vpop.permute.xlu0 %4055
        %4057 = vrot.lane.b32.xlu0 %v4006, 2
        %v4058 = vpop.permute.xlu0 %4057
        %v4059 = vrot.slane %v4052, 4
        %v4060 = vrot.slane %v4054, 4
        %v4061 = vrot.slane %v4056, 4
        %v4062 = vrot.slane %v4058, 4
        %v4063 = vsel %vm764, %v4059, %v4052
        %v4064 = vsel %vm764, %v4060, %v4054
        %v4065 = vsel %vm764, %v4061, %v4056
        %v4066 = vsel %vm764, %v4062, %v4058
        %4071 = vst.msk [vmem:[#allocation2] sm:$0xff] %vm788, %v4063
        %4072 = vst.msk [vmem:[#allocation2 + $0x10] sm:$0xff] %vm788, %v4064
        %4073 = vst.msk [vmem:[#allocation2 + $0x20] sm:$0xff] %vm788, %v4065
        %4074 = vst.msk [vmem:[#allocation2 + $0x30] sm:$0xff] %vm788, %v4066
        %4075 = vrot.lane.b32.xlu0 %v4003, 1
        %v4076 = vpop.permute.xlu0 %4075
        %4077 = vrot.lane.b32.xlu0 %v4004, 1
        %v4078 = vpop.permute.xlu0 %4077
        %4079 = vrot.lane.b32.xlu0 %v4005, 1
        %v4080 = vpop.permute.xlu0 %4079
        %4081 = vrot.lane.b32.xlu0 %v4006, 1
        %v4082 = vpop.permute.xlu0 %4081
        %v4083 = vrot.slane %v4076, 4
        %v4084 = vrot.slane %v4078, 4
        %v4085 = vrot.slane %v4080, 4
        %v4086 = vrot.slane %v4082, 4
        %v4087 = vsel %vm821, %v4083, %v4076
        %v4088 = vsel %vm821, %v4084, %v4078
        %v4089 = vsel %vm821, %v4085, %v4080
        %v4090 = vsel %vm821, %v4086, %v4082
        %4095 = vst.msk [vmem:[#allocation2 + $0x40] sm:$0xff] %vm843, %v4087
        %4096 = vst.msk [vmem:[#allocation2 + $0x50] sm:$0xff] %vm843, %v4088
        %4097 = vst.msk [vmem:[#allocation2 + $0x60] sm:$0xff] %vm843, %v4089
        %4098 = vst.msk [vmem:[#allocation2 + $0x70] sm:$0xff] %vm843, %v4090
        %4099 = vst [vmem:[#allocation2 + $0x80] sm:$0xff] %v4003
        %4100 = vst [vmem:[#allocation2 + $0x90] sm:$0xff] %v4004
        %4101 = vst [vmem:[#allocation2 + $0xa0] sm:$0xff] %v4005
        %4102 = vst [vmem:[#allocation2 + $0xb0] sm:$0xff] %v4006
        %4103 = vrot.lane.b32.xlu0 %v4003, 127
        %v4104 = vpop.permute.xlu0 %4103
        %4105 = vrot.lane.b32.xlu0 %v4004, 127
        %v4106 = vpop.permute.xlu0 %4105
        %4107 = vrot.lane.b32.xlu0 %v4005, 127
        %v4108 = vpop.permute.xlu0 %4107
        %4109 = vrot.lane.b32.xlu0 %v4006, 127
        %v4110 = vpop.permute.xlu0 %4109
        %v4111 = vrot.slane %v4104, 4
        %v4112 = vrot.slane %v4106, 4
        %v4113 = vrot.slane %v4108, 4
        %v4114 = vrot.slane %v4110, 4
        %v4115 = vsel %vm885, %v4104, %v4111
        %v4116 = vsel %vm885, %v4106, %v4112
        %v4117 = vsel %vm885, %v4108, %v4113
        %v4118 = vsel %vm885, %v4110, %v4114
        %4123 = vst.msk [vmem:[#allocation2 + $0xc0] sm:$0xff] %vm908, %v4115
        %4124 = vst.msk [vmem:[#allocation2 + $0xd0] sm:$0xff] %vm908, %v4116
        %4125 = vst.msk [vmem:[#allocation2 + $0xe0] sm:$0xff] %vm908, %v4117
        %4126 = vst.msk [vmem:[#allocation2 + $0xf0] sm:$0xff] %vm908, %v4118
        %4127 = vrot.lane.b32.xlu0 %v4003, 126
        %v4128 = vpop.permute.xlu0 %4127
        %4129 = vrot.lane.b32.xlu0 %v4004, 126
        %v4130 = vpop.permute.xlu0 %4129
        %4131 = vrot.lane.b32.xlu0 %v4005, 126
        %v4132 = vpop.permute.xlu0 %4131
        %4133 = vrot.lane.b32.xlu0 %v4006, 126
        %v4134 = vpop.permute.xlu0 %4133
        %v4135 = vrot.slane %v4128, 4
        %v4136 = vrot.slane %v4130, 4
        %v4137 = vrot.slane %v4132, 4
        %v4138 = vrot.slane %v4134, 4
        %v4139 = vsel %vm941, %v4128, %v4135
        %v4140 = vsel %vm941, %v4130, %v4136
        %v4141 = vsel %vm941, %v4132, %v4137
        %v4142 = vsel %vm941, %v4134, %v4138
        %4147 = vst.msk [vmem:[#allocation2 + $0x100] sm:$0xff] %vm963, %v4139
        %4148 = vst.msk [vmem:[#allocation2 + $0x110] sm:$0xff] %vm963, %v4140
        %4149 = vst.msk [vmem:[#allocation2 + $0x120] sm:$0xff] %vm963, %v4141
        %4150 = vst.msk [vmem:[#allocation2 + $0x130] sm:$0xff] %vm963, %v4142
        %v4151 = vld [vmem:[#allocation2] sm:$0xff]
        %v4152 = vld [vmem:[#allocation2 + $0x10] sm:$0xff]
        %v4153 = vld [vmem:[#allocation2 + $0x20] sm:$0xff]
        %v4154 = vld [vmem:[#allocation2 + $0x30] sm:$0xff]
        %v4155 = vld [vmem:[#allocation2 + $0x40] sm:$0xff]
        %v4156 = vld [vmem:[#allocation2 + $0x50] sm:$0xff]
        %v4157 = vld [vmem:[#allocation2 + $0x60] sm:$0xff]
        %v4158 = vld [vmem:[#allocation2 + $0x70] sm:$0xff]
        %v4159 = vld [vmem:[#allocation2 + $0x80] sm:$0xff]
        %v4160 = vld [vmem:[#allocation2 + $0x90] sm:$0xff]
        %v4161 = vld [vmem:[#allocation2 + $0xa0] sm:$0xff]
        %v4162 = vld [vmem:[#allocation2 + $0xb0] sm:$0xff]
        %v4163 = vld [vmem:[#allocation2 + $0xc0] sm:$0xff]
        %v4164 = vld [vmem:[#allocation2 + $0xd0] sm:$0xff]
        %v4165 = vld [vmem:[#allocation2 + $0xe0] sm:$0xff]
        %v4166 = vld [vmem:[#allocation2 + $0xf0] sm:$0xff]
        %v4167 = vld [vmem:[#allocation2 + $0x100] sm:$0xff]
        %v4168 = vld [vmem:[#allocation2 + $0x110] sm:$0xff]
        %v4169 = vld [vmem:[#allocation2 + $0x120] sm:$0xff]
        %v4170 = vld [vmem:[#allocation2 + $0x130] sm:$0xff]
        %v4191 = vunpack.c.l.b16 %v4151
        %v4192 = vunpack.c.h.b16 %v4151
        %v4193 = vunpack.c.l.b16 %v4152
        %v4194 = vunpack.c.h.b16 %v4152
        %v4195 = vunpack.c.l.b16 %v4153
        %v4196 = vunpack.c.h.b16 %v4153
        %v4197 = vunpack.c.l.b16 %v4154
        %v4198 = vunpack.c.h.b16 %v4154
        %v4199 = vunpack.c.l.b16 %v4155
        %v4200 = vunpack.c.h.b16 %v4155
        %v4201 = vunpack.c.l.b16 %v4156
        %v4202 = vunpack.c.h.b16 %v4156
        %v4203 = vunpack.c.l.b16 %v4157
        %v4204 = vunpack.c.h.b16 %v4157
        %v4205 = vunpack.c.l.b16 %v4158
        %v4206 = vunpack.c.h.b16 %v4158
        %v4207 = vunpack.c.l.b16 %v4159
        %v4208 = vunpack.c.h.b16 %v4159
        %v4209 = vunpack.c.l.b16 %v4160
        %v4210 = vunpack.c.h.b16 %v4160
        %v4211 = vunpack.c.l.b16 %v4161
        %v4212 = vunpack.c.h.b16 %v4161
        %v4213 = vunpack.c.l.b16 %v4162
        %v4214 = vunpack.c.h.b16 %v4162
        %v4215 = vunpack.c.l.b16 %v4163
        %v4216 = vunpack.c.h.b16 %v4163
        %v4217 = vunpack.c.l.b16 %v4164
        %v4218 = vunpack.c.h.b16 %v4164
        %v4219 = vunpack.c.l.b16 %v4165
        %v4220 = vunpack.c.h.b16 %v4165
        %v4221 = vunpack.c.l.b16 %v4166
        %v4222 = vunpack.c.h.b16 %v4166
        %v4223 = vunpack.c.l.b16 %v4167
        %v4224 = vunpack.c.h.b16 %v4167
        %v4225 = vunpack.c.l.b16 %v4168
        %v4226 = vunpack.c.h.b16 %v4168
        %v4227 = vunpack.c.l.b16 %v4169
        %v4228 = vunpack.c.h.b16 %v4169
        %v4229 = vunpack.c.l.b16 %v4170
        %v4230 = vunpack.c.h.b16 %v4170
        %v4231 = vpack.c.b16 %v4193, %v4191
        %v4232 = vpack.c.b16 %v4194, %v4192
        %v4233 = vpack.c.b16 %v4197, %v4195
        %v4234 = vpack.c.b16 %v4198, %v4196
        %v4235 = vpack.c.b16 %v4201, %v4199
        %v4236 = vpack.c.b16 %v4202, %v4200
        %v4237 = vpack.c.b16 %v4205, %v4203
        %v4238 = vpack.c.b16 %v4206, %v4204
        %v4239 = vpack.c.b16 %v4209, %v4207
        %v4240 = vpack.c.b16 %v4210, %v4208
        %v4241 = vpack.c.b16 %v4213, %v4211
        %v4242 = vpack.c.b16 %v4214, %v4212
        %v4243 = vpack.c.b16 %v4217, %v4215
        %v4244 = vpack.c.b16 %v4218, %v4216
        %v4245 = vpack.c.b16 %v4221, %v4219
        %v4246 = vpack.c.b16 %v4222, %v4220
        %v4247 = vpack.c.b16 %v4225, %v4223
        %v4248 = vpack.c.b16 %v4226, %v4224
        %v4249 = vpack.c.b16 %v4229, %v4227
        %v4250 = vpack.c.b16 %v4230, %v4228
        %4271 = vmatpush.bf16.msra.mxu0 %v4245
        %4272 = vmatpush.bf16.msra.mxu0 %v4243
        %4273 = vmatpush.bf16.msra.mxu0 %v4241
        %4274 = vmatpush.bf16.msra.mxu0 %v4239
        %4275 = vmatpush.bf16.msra.mxu0 %v4237
        %4276 = vmatpush.bf16.msra.mxu0 %v4235
        %4277 = vmatpush.bf16.msra.mxu0 %v4233
        %4278 = vmatpush.bf16.msra.mxu0 %v4231
        %4279 = vmatmul.bf16.gmra.mxu0 %v3794
        %v4280 = vpop.f32.mrf.mxu0
        %v4281 = vadd.f32 %v3765, %v4280
        %v4282 = vpop.f32.mrf.mxu0
        %v4283 = vadd.f32 %v3770, %v4282
        %4284 = vmatmul.bf16.gmra.mxu0 %v3796
        %v4285 = vpop.f32.mrf.mxu0
        %v4286 = vadd.f32 %v3775, %v4285
        %v4287 = vpop.f32.mrf.mxu0
        %v4288 = vadd.f32 %v3780, %v4287
        %4289 = vdwg.mxu0
        %4290 = vmatpush.bf16.msra.mxu0 0
        %4291 = vmatpush.bf16.msra.mxu0 0
        %4292 = vmatpush.bf16.msra.mxu0 0
        %4293 = vmatpush.bf16.msra.mxu0 0
        %4294 = vmatpush.bf16.msra.mxu0 0
        %4295 = vmatpush.bf16.msra.mxu0 0
        %4296 = vmatpush.bf16.msra.mxu0 %v4249
        %4297 = vmatpush.bf16.msra.mxu0 %v4247
        %4298 = vmatmul.bf16.gmra.mxu0 %v3901
        %v4299 = vpop.f32.mrf.mxu0
        %v4300 = vadd.f32 %v4281, %v4299
        %v4301 = vpop.f32.mrf.mxu0
        %v4302 = vadd.f32 %v4283, %v4301
        %4303 = vmatmul.bf16.gmra.mxu0 %v3904
        %v4304 = vpop.f32.mrf.mxu0
        %v4305 = vadd.f32 %v4286, %v4304
        %v4306 = vpop.f32.mrf.mxu0
        %v4307 = vadd.f32 %v4288, %v4306
        %4308 = vdwg.mxu0
        %4309 = vmatpush.bf16.msra.mxu0 %v4246
        %4310 = vmatpush.bf16.msra.mxu0 %v4244
        %4311 = vmatpush.bf16.msra.mxu0 %v4242
        %4312 = vmatpush.bf16.msra.mxu0 %v4240
        %4313 = vmatpush.bf16.msra.mxu0 %v4238
        %4314 = vmatpush.bf16.msra.mxu0 %v4236
        %4315 = vmatpush.bf16.msra.mxu0 %v4234
        %4316 = vmatpush.bf16.msra.mxu0 %v4232
        %4317 = vmatmul.bf16.gmra.mxu0 %v3794
        %v4318 = vpop.f32.mrf.mxu0
        %v4319 = vadd.f32 %v3765, %v4318
        %v4320 = vpop.f32.mrf.mxu0
        %v4321 = vadd.f32 %v3770, %v4320
        %4322 = vmatmul.bf16.gmra.mxu0 %v3796
        %v4323 = vpop.f32.mrf.mxu0
        %v4324 = vadd.f32 %v3775, %v4323
        %v4325 = vpop.f32.mrf.mxu0
        %v4326 = vadd.f32 %v3780, %v4325
        %4327 = vdwg.mxu0
        %4328 = vmatpush.bf16.msra.mxu0 0
        %4329 = vmatpush.bf16.msra.mxu0 0
        %4330 = vmatpush.bf16.msra.mxu0 0
        %4331 = vmatpush.bf16.msra.mxu0 0
        %4332 = vmatpush.bf16.msra.mxu0 0
        %4333 = vmatpush.bf16.msra.mxu0 0
        %4334 = vmatpush.bf16.msra.mxu0 %v4250
        %4335 = vmatpush.bf16.msra.mxu0 %v4248
        %4336 = vmatmul.bf16.gmra.mxu0 %v3901
        %v4337 = vpop.f32.mrf.mxu0
        %v4338 = vadd.f32 %v4319, %v4337
        %v4339 = vpop.f32.mrf.mxu0
        %v4340 = vadd.f32 %v4321, %v4339
        %4341 = vmatmul.bf16.gmra.mxu0 %v3904
        %v4342 = vpop.f32.mrf.mxu0
        %v4343 = vadd.f32 %v4324, %v4342
        %v4344 = vpop.f32.mrf.mxu0
        %v4345 = vadd.f32 %v4326, %v4344
        %4346 = vdwg.mxu0
        %v4347 = vadd.f32 %v4300, %v3454
        %v4348 = vadd.f32 %v4338, %v3570
        %v4349 = vadd.f32 %v4302, %v3457
        %v4350 = vadd.f32 %v4340, %v3573
        %v4351 = vadd.f32 %v4305, %v3460
        %v4352 = vadd.f32 %v4343, %v3576
        %v4353 = vadd.f32 %v4307, %v3463
        %v4354 = vadd.f32 %v4345, %v3579
        %v4355 = vmax.f32 %v4347, 0.0
        %v4356 = vmax.f32 %v4348, 0.0
        %v4357 = vmax.f32 %v4349, 0.0
        %v4358 = vmax.f32 %v4350, 0.0
        %v4359 = vmax.f32 %v4351, 0.0
        %v4360 = vmax.f32 %v4352, 0.0
        %v4361 = vmax.f32 %v4353, 0.0
        %v4362 = vmax.f32 %v4354, 0.0
        %4371 = vrot.lane.b32.xlu0 %v4355, 127
        %v4372 = vpop.permute.xlu0 %4371
        %4373 = vrot.lane.b32.xlu0 %v4356, 127
        %v4374 = vpop.permute.xlu0 %4373
        %4375 = vrot.lane.b32.xlu0 %v4357, 127
        %v4376 = vpop.permute.xlu0 %4375
        %4377 = vrot.lane.b32.xlu0 %v4358, 127
        %v4378 = vpop.permute.xlu0 %4377
        %4379 = vrot.lane.b32.xlu0 %v4359, 127
        %v4380 = vpop.permute.xlu0 %4379
        %4381 = vrot.lane.b32.xlu0 %v4360, 127
        %v4382 = vpop.permute.xlu0 %4381
        %4383 = vrot.lane.b32.xlu0 %v4361, 127
        %v4384 = vpop.permute.xlu0 %4383
        %4385 = vrot.lane.b32.xlu0 %v4362, 127
        %v4386 = vpop.permute.xlu0 %4385
        %v4387 = vsel %vm2927, %v4372, %v4374
        %v4388 = vsel %vm2927, %v4376, %v4378
        %v4389 = vsel %vm2927, %v4380, %v4382
        %v4390 = vsel %vm2927, %v4384, %v4386
        %v4399 = vmax.f32 %v4355, %v4387
        %v4400 = vmax.f32 %v4356, %v4374
        %v4401 = vmax.f32 %v4357, %v4388
        %v4402 = vmax.f32 %v4358, %v4378
        %v4403 = vmax.f32 %v4359, %v4389
        %v4404 = vmax.f32 %v4360, %v4382
        %v4405 = vmax.f32 %v4361, %v4390
        %v4406 = vmax.f32 %v4362, %v4386
        %4407 = vrot.lane.b32.xlu0 %v4355, 126
        %v4408 = vpop.permute.xlu0 %4407
        %4409 = vrot.lane.b32.xlu0 %v4356, 126
        %v4410 = vpop.permute.xlu0 %4409
        %4411 = vrot.lane.b32.xlu0 %v4357, 126
        %v4412 = vpop.permute.xlu0 %4411
        %4413 = vrot.lane.b32.xlu0 %v4358, 126
        %v4414 = vpop.permute.xlu0 %4413
        %4415 = vrot.lane.b32.xlu0 %v4359, 126
        %v4416 = vpop.permute.xlu0 %4415
        %4417 = vrot.lane.b32.xlu0 %v4360, 126
        %v4418 = vpop.permute.xlu0 %4417
        %4419 = vrot.lane.b32.xlu0 %v4361, 126
        %v4420 = vpop.permute.xlu0 %4419
        %4421 = vrot.lane.b32.xlu0 %v4362, 126
        %v4422 = vpop.permute.xlu0 %4421
        %v4423 = vsel %vm3004, %v4408, %v4410
        %v4424 = vsel %vm3004, %v4412, %v4414
        %v4425 = vsel %vm3004, %v4416, %v4418
        %v4426 = vsel %vm3004, %v4420, %v4422
        %v4435 = vmax.f32 %v4399, %v4423
        %v4436 = vmax.f32 %v4400, %v4410
        %v4437 = vmax.f32 %v4401, %v4424
        %v4438 = vmax.f32 %v4402, %v4414
        %v4439 = vmax.f32 %v4403, %v4425
        %v4440 = vmax.f32 %v4404, %v4418
        %v4441 = vmax.f32 %v4405, %v4426
        %v4442 = vmax.f32 %v4406, %v4422
        %4443 = vrot.lane.b32.xlu0 %v4355, 125
        %v4444 = vpop.permute.xlu0 %4443
        %4445 = vrot.lane.b32.xlu0 %v4356, 125
        %v4446 = vpop.permute.xlu0 %4445
        %4447 = vrot.lane.b32.xlu0 %v4357, 125
        %v4448 = vpop.permute.xlu0 %4447
        %4449 = vrot.lane.b32.xlu0 %v4358, 125
        %v4450 = vpop.permute.xlu0 %4449
        %4451 = vrot.lane.b32.xlu0 %v4359, 125
        %v4452 = vpop.permute.xlu0 %4451
        %4453 = vrot.lane.b32.xlu0 %v4360, 125
        %v4454 = vpop.permute.xlu0 %4453
        %4455 = vrot.lane.b32.xlu0 %v4361, 125
        %v4456 = vpop.permute.xlu0 %4455
        %4457 = vrot.lane.b32.xlu0 %v4362, 125
        %v4458 = vpop.permute.xlu0 %4457
        %v4459 = vsel %vm3081, %v4444, %v4446
        %v4460 = vsel %vm3081, %v4448, %v4450
        %v4461 = vsel %vm3081, %v4452, %v4454
        %v4462 = vsel %vm3081, %v4456, %v4458
        %v4471 = vmax.f32 %v4435, %v4459
        %v4472 = vmax.f32 %v4436, %v4446
        %v4473 = vmax.f32 %v4437, %v4460
        %v4474 = vmax.f32 %v4438, %v4450
        %v4475 = vmax.f32 %v4439, %v4461
        %v4476 = vmax.f32 %v4440, %v4454
        %v4477 = vmax.f32 %v4441, %v4462
        %v4478 = vmax.f32 %v4442, %v4458
        %4479 = vrot.lane.b32.xlu0 %v4355, 124
        %v4480 = vpop.permute.xlu0 %4479
        %4481 = vrot.lane.b32.xlu0 %v4356, 124
        %v4482 = vpop.permute.xlu0 %4481
        %4483 = vrot.lane.b32.xlu0 %v4357, 124
        %v4484 = vpop.permute.xlu0 %4483
        %4485 = vrot.lane.b32.xlu0 %v4358, 124
        %v4486 = vpop.permute.xlu0 %4485
        %4487 = vrot.lane.b32.xlu0 %v4359, 124
        %v4488 = vpop.permute.xlu0 %4487
        %4489 = vrot.lane.b32.xlu0 %v4360, 124
        %v4490 = vpop.permute.xlu0 %4489
        %4491 = vrot.lane.b32.xlu0 %v4361, 124
        %v4492 = vpop.permute.xlu0 %4491
        %4493 = vrot.lane.b32.xlu0 %v4362, 124
        %v4494 = vpop.permute.xlu0 %4493
        %v4495 = vsel %vm3158, %v4480, %v4482
        %v4496 = vsel %vm3158, %v4484, %v4486
        %v4497 = vsel %vm3158, %v4488, %v4490
        %v4498 = vsel %vm3158, %v4492, %v4494
        %v4507 = vmax.f32 %v4471, %v4495
        %v4508 = vmax.f32 %v4472, %v4482
        %v4509 = vmax.f32 %v4473, %v4496
        %v4510 = vmax.f32 %v4474, %v4486
        %v4511 = vmax.f32 %v4475, %v4497
        %v4512 = vmax.f32 %v4476, %v4490
        %v4513 = vmax.f32 %v4477, %v4498
        %v4514 = vmax.f32 %v4478, %v4494
        %v4515 = vld [vmem:[#allocation5] sm:$0xff]
        %v4516 = vld [vmem:[#allocation5 + $0x8] sm:$0xff]
        %v4517 = vld [vmem:[#allocation5 + $0x10] sm:$0xff]
        %v4518 = vld [vmem:[#allocation5 + $0x18] sm:$0xff]
        %v4519 = vld [vmem:[#allocation5 + $0x20] sm:$0xff]
        %v4520 = vld [vmem:[#allocation5 + $0x28] sm:$0xff]
        %v4521 = vld [vmem:[#allocation5 + $0x30] sm:$0xff]
        %v4522 = vld [vmem:[#allocation5 + $0x38] sm:$0xff]
        %v4523 = vld [vmem:[#allocation5 + $0x40] sm:$0xff]
        %v4524 = vld [vmem:[#allocation5 + $0x48] sm:$0xff]
        %v4525 = vld [vmem:[#allocation5 + $0x50] sm:$0xff]
        %v4526 = vld [vmem:[#allocation5 + $0x58] sm:$0xff]
        %v4527 = vld [vmem:[#allocation5 + $0x60] sm:$0xff]
        %v4528 = vld [vmem:[#allocation5 + $0x68] sm:$0xff]
        %v4529 = vld [vmem:[#allocation5 + $0x70] sm:$0xff]
        %v4530 = vld [vmem:[#allocation5 + $0x78] sm:$0xff]
        %v4531 = vld [vmem:[#allocation5 + $0x80] sm:$0xff]
        %v4532 = vld [vmem:[#allocation5 + $0x88] sm:$0xff]
        %v4533 = vld [vmem:[#allocation5 + $0x90] sm:$0xff]
        %v4534 = vld [vmem:[#allocation5 + $0x98] sm:$0xff]
        %v4535 = vld [vmem:[#allocation5 + $0xa0] sm:$0xff]
        %v4536 = vld [vmem:[#allocation5 + $0xa8] sm:$0xff]
        %v4537 = vld [vmem:[#allocation5 + $0xb0] sm:$0xff]
        %v4538 = vld [vmem:[#allocation5 + $0xb8] sm:$0xff]
        %v4539 = vld [vmem:[#allocation5 + $0xc0] sm:$0xff]
        %v4540 = vld [vmem:[#allocation5 + $0xc8] sm:$0xff]
        %v4541 = vld [vmem:[#allocation5 + $0xd0] sm:$0xff]
        %v4542 = vld [vmem:[#allocation5 + $0xd8] sm:$0xff]
        %v4543 = vld [vmem:[#allocation5 + $0xe0] sm:$0xff]
        %v4544 = vld [vmem:[#allocation5 + $0xe8] sm:$0xff]
        %v4545 = vld [vmem:[#allocation5 + $0xf0] sm:$0xff]
        %v4546 = vld [vmem:[#allocation5 + $0xf8] sm:$0xf]
        %v4548 = vsel %vm3158, %v4508, 0
        %v4551 = vsel %vm3158, %v4510, 0
        %v4554 = vsel %vm3158, %v4512, 0
        %v4557 = vsel %vm3158, %v4514, 0
        %v4560 = vsel %vm906, %v4546, 0
        %4562 = vmatpush.msra.mxu0 %v4530
        %4563 = vmatpush.msra.mxu0 %v4529
        %4564 = vmatpush.msra.mxu0 %v4528
        %4565 = vmatpush.msra.mxu0 %v4527
        %4566 = vmatpush.msra.mxu0 %v4526
        %4567 = vmatpush.msra.mxu0 %v4525
        %4568 = vmatpush.msra.mxu0 %v4524
        %4569 = vmatpush.msra.mxu0 %v4523
        %4570 = vmatpush.msra.mxu0 %v4522
        %4571 = vmatpush.msra.mxu0 %v4521
        %4572 = vmatpush.msra.mxu0 %v4520
        %4573 = vmatpush.msra.mxu0 %v4519
        %4574 = vmatpush.msra.mxu0 %v4518
        %4575 = vmatpush.msra.mxu0 %v4517
        %4576 = vmatpush.msra.mxu0 %v4516
        %4577 = vmatpush.msra.mxu0 %v4515
        %4578 = vmatmul.f32.gmra.mxu0 %v4507
        %v4579 = vpop.f32.mrf.mxu0
        %v4580 = vadd.f32 0.0, %v4579
        %4581 = vmatmul.f32.gmra.mxu0 %v4509
        %v4582 = vpop.f32.mrf.mxu0
        %v4583 = vadd.f32 0.0, %v4582
        %4584 = vmatmul.f32.gmra.mxu0 %v4511
        %v4585 = vpop.f32.mrf.mxu0
        %v4586 = vadd.f32 0.0, %v4585
        %4587 = vmatmul.f32.gmra.mxu0 %v4513
        %v4588 = vpop.f32.mrf.mxu0
        %v4589 = vadd.f32 0.0, %v4588
        %4590 = vdwg.mxu0
        %4591 = vmatpush.msra.mxu0 %v4560
        %4592 = vmatpush.msra.mxu0 %v4545
        %4593 = vmatpush.msra.mxu0 %v4544
        %4594 = vmatpush.msra.mxu0 %v4543
        %4595 = vmatpush.msra.mxu0 %v4542
        %4596 = vmatpush.msra.mxu0 %v4541
        %4597 = vmatpush.msra.mxu0 %v4540
        %4598 = vmatpush.msra.mxu0 %v4539
        %4599 = vmatpush.msra.mxu0 %v4538
        %4600 = vmatpush.msra.mxu0 %v4537
        %4601 = vmatpush.msra.mxu0 %v4536
        %4602 = vmatpush.msra.mxu0 %v4535
        %4603 = vmatpush.msra.mxu0 %v4534
        %4604 = vmatpush.msra.mxu0 %v4533
        %4605 = vmatpush.msra.mxu0 %v4532
        %4606 = vmatpush.msra.mxu0 %v4531
        %4607 = vmatmul.f32.gmra.mxu0 %v4548
        %v4608 = vpop.f32.mrf.mxu0
        %v4609 = vadd.f32 %v4580, %v4608
        %4610 = vmatmul.f32.gmra.mxu0 %v4551
        %v4611 = vpop.f32.mrf.mxu0
        %v4612 = vadd.f32 %v4583, %v4611
        %4613 = vmatmul.f32.gmra.mxu0 %v4554
        %v4614 = vpop.f32.mrf.mxu0
        %v4615 = vadd.f32 %v4586, %v4614
        %4616 = vmatmul.f32.gmra.mxu0 %v4557
        %v4617 = vpop.f32.mrf.mxu0
        %v4618 = vadd.f32 %v4589, %v4617
        %4619 = vdwg.mxu0
        %s4620 = scalar_lea.vmem %s3, 64
        %v4621 = vld [vmem:[%s4620] sm:$0xff]
        %v4622 = vld [vmem:[%s4620 + $0x8] sm:$0xff]
        %v4623 = vld [vmem:[%s4620 + $0x10] sm:$0xff]
        %v4624 = vld [vmem:[%s4620 + $0x18] sm:$0xff]
        %s4625 = scalar_lea.vmem %s4, 64
        %v4626 = vld [vmem:[%s4625] sm:$0xff]
        %v4627 = vld [vmem:[%s4625 + $0x8] sm:$0xff]
        %v4628 = vld [vmem:[%s4625 + $0x10] sm:$0xff]
        %v4629 = vld [vmem:[%s4625 + $0x18] sm:$0xff]
        %s4630 = scalar_lea.vmem %s5, 8
        %v4631 = vld [vmem:[%s4630] sm:$0x1]
        %vm4632 = vcmp.gt.f32.partialorder %v4631, 0.5
        %v4633 = vpack.c.bf16 %v4609, %v4609
        %v4634 = vpack.c.bf16 %v4612, %v4612
        %v4635 = vpack.c.bf16 %v4615, %v4615
        %v4636 = vpack.c.bf16 %v4618, %v4618
        %4637 = vst.msk [vmem:[#allocation2] sm:$0xf] %vm690, 0
        %4638 = vst.msk [vmem:[#allocation2 + $0x10] sm:$0xf] %vm690, 0
        %4639 = vst.msk [vmem:[#allocation2 + $0x20] sm:$0xf] %vm690, 0
        %4640 = vst.msk [vmem:[#allocation2 + $0x30] sm:$0xf] %vm690, 0
        %4641 = vst.msk [vmem:[#allocation2 + $0x40] sm:$0xf] %vm690, 0
        %4642 = vst.msk [vmem:[#allocation2 + $0x50] sm:$0xf] %vm690, 0
        %4643 = vst.msk [vmem:[#allocation2 + $0x60] sm:$0xf] %vm690, 0
        %4644 = vst.msk [vmem:[#allocation2 + $0x70] sm:$0xf] %vm690, 0
        %4645 = vst.msk [vmem:[#allocation2 + $0x80] sm:$0xf] %vm690, 0
        %4646 = vst.msk [vmem:[#allocation2 + $0x90] sm:$0xf] %vm690, 0
        %4647 = vst.msk [vmem:[#allocation2 + $0xa0] sm:$0xf] %vm690, 0
        %4648 = vst.msk [vmem:[#allocation2 + $0xb0] sm:$0xf] %vm690, 0
        %4649 = vst.msk [vmem:[#allocation2 + $0xc0] sm:$0xf] %vm690, 0
        %4650 = vst.msk [vmem:[#allocation2 + $0xd0] sm:$0xf] %vm690, 0
        %4651 = vst.msk [vmem:[#allocation2 + $0xe0] sm:$0xf] %vm690, 0
        %4652 = vst.msk [vmem:[#allocation2 + $0xf0] sm:$0xf] %vm690, 0
        %4653 = vst.msk [vmem:[#allocation2 + $0x100] sm:$0xf] %vm690, 0
        %4654 = vst.msk [vmem:[#allocation2 + $0x110] sm:$0xf] %vm690, 0
        %4655 = vst.msk [vmem:[#allocation2 + $0x120] sm:$0xf] %vm690, 0
        %4656 = vst.msk [vmem:[#allocation2 + $0x130] sm:$0xf] %vm690, 0
        %4657 = vst.msk [vmem:[#allocation2] sm:$0xf] %vm711, 0
        %4658 = vst.msk [vmem:[#allocation2 + $0x10] sm:$0xf] %vm711, 0
        %4659 = vst.msk [vmem:[#allocation2 + $0x20] sm:$0xf] %vm711, 0
        %4660 = vst.msk [vmem:[#allocation2 + $0x30] sm:$0xf] %vm711, 0
        %4661 = vst.msk [vmem:[#allocation2 + $0x40] sm:$0xf] %vm711, 0
        %4662 = vst.msk [vmem:[#allocation2 + $0x50] sm:$0xf] %vm711, 0
        %4663 = vst.msk [vmem:[#allocation2 + $0x60] sm:$0xf] %vm711, 0
        %4664 = vst.msk [vmem:[#allocation2 + $0x70] sm:$0xf] %vm711, 0
        %4665 = vst.msk [vmem:[#allocation2 + $0x80] sm:$0xf] %vm711, 0
        %4666 = vst.msk [vmem:[#allocation2 + $0x90] sm:$0xf] %vm711, 0
        %4667 = vst.msk [vmem:[#allocation2 + $0xa0] sm:$0xf] %vm711, 0
        %4668 = vst.msk [vmem:[#allocation2 + $0xb0] sm:$0xf] %vm711, 0
        %4669 = vst.msk [vmem:[#allocation2 + $0xc0] sm:$0xf] %vm711, 0
        %4670 = vst.msk [vmem:[#allocation2 + $0xd0] sm:$0xf] %vm711, 0
        %4671 = vst.msk [vmem:[#allocation2 + $0xe0] sm:$0xf] %vm711, 0
        %4672 = vst.msk [vmem:[#allocation2 + $0xf0] sm:$0xf] %vm711, 0
        %4673 = vst.msk [vmem:[#allocation2 + $0x100] sm:$0xf] %vm711, 0
        %4674 = vst.msk [vmem:[#allocation2 + $0x110] sm:$0xf] %vm711, 0
        %4675 = vst.msk [vmem:[#allocation2 + $0x120] sm:$0xf] %vm711, 0
        %4676 = vst.msk [vmem:[#allocation2 + $0x130] sm:$0xf] %vm711, 0
        %4681 = vrot.lane.b32.xlu0 %v4633, 2
        %v4682 = vpop.permute.xlu0 %4681
        %4683 = vrot.lane.b32.xlu0 %v4634, 2
        %v4684 = vpop.permute.xlu0 %4683
        %4685 = vrot.lane.b32.xlu0 %v4635, 2
        %v4686 = vpop.permute.xlu0 %4685
        %4687 = vrot.lane.b32.xlu0 %v4636, 2
        %v4688 = vpop.permute.xlu0 %4687
        %4693 = vst.msk [vmem:[#allocation2] sm:$0xf] %vm786, %v4682
        %4694 = vst.msk [vmem:[#allocation2 + $0x10] sm:$0xf] %vm786, %v4684
        %4695 = vst.msk [vmem:[#allocation2 + $0x20] sm:$0xf] %vm786, %v4686
        %4696 = vst.msk [vmem:[#allocation2 + $0x30] sm:$0xf] %vm786, %v4688
        %4697 = vrot.lane.b32.xlu0 %v4633, 1
        %v4698 = vpop.permute.xlu0 %4697
        %4699 = vrot.lane.b32.xlu0 %v4634, 1
        %v4700 = vpop.permute.xlu0 %4699
        %4701 = vrot.lane.b32.xlu0 %v4635, 1
        %v4702 = vpop.permute.xlu0 %4701
        %4703 = vrot.lane.b32.xlu0 %v4636, 1
        %v4704 = vpop.permute.xlu0 %4703
        %4709 = vst.msk [vmem:[#allocation2 + $0x40] sm:$0xf] %vm842, %v4698
        %4710 = vst.msk [vmem:[#allocation2 + $0x50] sm:$0xf] %vm842, %v4700
        %4711 = vst.msk [vmem:[#allocation2 + $0x60] sm:$0xf] %vm842, %v4702
        %4712 = vst.msk [vmem:[#allocation2 + $0x70] sm:$0xf] %vm842, %v4704
        %4713 = vst [vmem:[#allocation2 + $0x80] sm:$0xf] %v4633
        %4714 = vst [vmem:[#allocation2 + $0x90] sm:$0xf] %v4634
        %4715 = vst [vmem:[#allocation2 + $0xa0] sm:$0xf] %v4635
        %4716 = vst [vmem:[#allocation2 + $0xb0] sm:$0xf] %v4636
        %4717 = vrot.lane.b32.xlu0 %v4633, 127
        %v4718 = vpop.permute.xlu0 %4717
        %4719 = vrot.lane.b32.xlu0 %v4634, 127
        %v4720 = vpop.permute.xlu0 %4719
        %4721 = vrot.lane.b32.xlu0 %v4635, 127
        %v4722 = vpop.permute.xlu0 %4721
        %4723 = vrot.lane.b32.xlu0 %v4636, 127
        %v4724 = vpop.permute.xlu0 %4723
        %vm4729 = vcmask 1035264
        %4730 = vst.msk [vmem:[#allocation2 + $0xc0] sm:$0xf] %vm4729, %v4718
        %4731 = vst.msk [vmem:[#allocation2 + $0xd0] sm:$0xf] %vm4729, %v4720
        %4732 = vst.msk [vmem:[#allocation2 + $0xe0] sm:$0xf] %vm4729, %v4722
        %4733 = vst.msk [vmem:[#allocation2 + $0xf0] sm:$0xf] %vm4729, %v4724
        %4734 = vrot.lane.b32.xlu0 %v4633, 126
        %v4735 = vpop.permute.xlu0 %4734
        %4736 = vrot.lane.b32.xlu0 %v4634, 126
        %v4737 = vpop.permute.xlu0 %4736
        %4738 = vrot.lane.b32.xlu0 %v4635, 126
        %v4739 = vpop.permute.xlu0 %4738
        %4740 = vrot.lane.b32.xlu0 %v4636, 126
        %v4741 = vpop.permute.xlu0 %4740
        %vm4746 = vcmask 1027072
        %4747 = vst.msk [vmem:[#allocation2 + $0x100] sm:$0xf] %vm4746, %v4735
        %4748 = vst.msk [vmem:[#allocation2 + $0x110] sm:$0xf] %vm4746, %v4737
        %4749 = vst.msk [vmem:[#allocation2 + $0x120] sm:$0xf] %vm4746, %v4739
        %4750 = vst.msk [vmem:[#allocation2 + $0x130] sm:$0xf] %vm4746, %v4741
        %v4751 = vld [vmem:[#allocation2] sm:$0xf]
        %v4752 = vld [vmem:[#allocation2 + $0x10] sm:$0xf]
        %v4753 = vld [vmem:[#allocation2 + $0x20] sm:$0xf]
        %v4754 = vld [vmem:[#allocation2 + $0x30] sm:$0xf]
        %v4755 = vld [vmem:[#allocation2 + $0x40] sm:$0xf]
        %v4756 = vld [vmem:[#allocation2 + $0x50] sm:$0xf]
        %v4757 = vld [vmem:[#allocation2 + $0x60] sm:$0xf]
        %v4758 = vld [vmem:[#allocation2 + $0x70] sm:$0xf]
        %v4759 = vld [vmem:[#allocation2 + $0x80] sm:$0xf]
        %v4760 = vld [vmem:[#allocation2 + $0x90] sm:$0xf]
        %v4761 = vld [vmem:[#allocation2 + $0xa0] sm:$0xf]
        %v4762 = vld [vmem:[#allocation2 + $0xb0] sm:$0xf]
        %v4763 = vld [vmem:[#allocation2 + $0xc0] sm:$0xf]
        %v4764 = vld [vmem:[#allocation2 + $0xd0] sm:$0xf]
        %v4765 = vld [vmem:[#allocation2 + $0xe0] sm:$0xf]
        %v4766 = vld [vmem:[#allocation2 + $0xf0] sm:$0xf]
        %v4767 = vld [vmem:[#allocation2 + $0x100] sm:$0xf]
        %v4768 = vld [vmem:[#allocation2 + $0x110] sm:$0xf]
        %v4769 = vld [vmem:[#allocation2 + $0x120] sm:$0xf]
        %v4770 = vld [vmem:[#allocation2 + $0x130] sm:$0xf]
        %4772 = vset.pattern.permute.xlu0 0
        %4773 = vperm.xlu0 %4772, %v4626
        %v4774 = vpop.permute.xlu0 %4773
        %4777 = vset.pattern.permute.xlu0 0
        %4778 = vperm.xlu0 %4777, %v4627
        %v4779 = vpop.permute.xlu0 %4778
        %4782 = vset.pattern.permute.xlu0 0
        %4783 = vperm.xlu0 %4782, %v4628
        %v4784 = vpop.permute.xlu0 %4783
        %4787 = vset.pattern.permute.xlu0 0
        %4788 = vperm.xlu0 %4787, %v4629
        %v4789 = vpop.permute.xlu0 %4788
        %v4795 = vunpack.c.l.b16 %v4621
        %v4796 = vunpack.c.h.b16 %v4621
        %v4797 = vunpack.c.l.b16 %v4622
        %v4798 = vunpack.c.h.b16 %v4622
        %v4799 = vunpack.c.l.b16 %v4623
        %v4800 = vunpack.c.h.b16 %v4623
        %v4801 = vunpack.c.l.b16 %v4624
        %v4802 = vunpack.c.h.b16 %v4624
        %v4803 = vpack.c.b16 %v4797, %v4795
        %v4804 = vpack.c.b16 %v4798, %v4796
        %v4805 = vpack.c.b16 %v4801, %v4799
        %v4806 = vpack.c.b16 %v4802, %v4800
        %v4829 = vunpack.c.l.b16 %v4751
        %v4830 = vunpack.c.l.b16 %v4752
        %v4831 = vunpack.c.l.b16 %v4753
        %v4832 = vunpack.c.l.b16 %v4754
        %v4833 = vunpack.c.l.b16 %v4755
        %v4834 = vunpack.c.l.b16 %v4756
        %v4835 = vunpack.c.l.b16 %v4757
        %v4836 = vunpack.c.l.b16 %v4758
        %v4837 = vunpack.c.l.b16 %v4759
        %v4838 = vunpack.c.l.b16 %v4760
        %v4839 = vunpack.c.l.b16 %v4761
        %v4840 = vunpack.c.l.b16 %v4762
        %v4841 = vunpack.c.l.b16 %v4763
        %v4842 = vunpack.c.l.b16 %v4764
        %v4843 = vunpack.c.l.b16 %v4765
        %v4844 = vunpack.c.l.b16 %v4766
        %v4845 = vunpack.c.l.b16 %v4767
        %v4846 = vunpack.c.l.b16 %v4768
        %v4847 = vunpack.c.l.b16 %v4769
        %v4848 = vunpack.c.l.b16 %v4770
        %v4849 = vpack.c.b16 %v4830, %v4829
        %v4850 = vpack.c.b16 %v4832, %v4831
        %v4851 = vpack.c.b16 %v4834, %v4833
        %v4852 = vpack.c.b16 %v4836, %v4835
        %v4853 = vpack.c.b16 %v4838, %v4837
        %v4854 = vpack.c.b16 %v4840, %v4839
        %v4855 = vpack.c.b16 %v4842, %v4841
        %v4856 = vpack.c.b16 %v4844, %v4843
        %v4857 = vpack.c.b16 %v4846, %v4845
        %v4858 = vpack.c.b16 %v4848, %v4847
        %v4870 = vsel %vm1249, %v4804, 0
        %v4873 = vsel %vm1249, %v4806, 0
        %4875 = vmatpush.bf16.msra.mxu0 %v4856
        %4876 = vmatpush.bf16.msra.mxu0 %v4855
        %4877 = vmatpush.bf16.msra.mxu0 %v4854
        %4878 = vmatpush.bf16.msra.mxu0 %v4853
        %4879 = vmatpush.bf16.msra.mxu0 %v4852
        %4880 = vmatpush.bf16.msra.mxu0 %v4851
        %4881 = vmatpush.bf16.msra.mxu0 %v4850
        %4882 = vmatpush.bf16.msra.mxu0 %v4849
        %4883 = vmatmul.bf16.gmra.mxu0 %v4803
        %v4884 = vpop.f32.mrf.mxu0
        %v4885 = vadd.f32 %v4774, %v4884
        %v4886 = vpop.f32.mrf.mxu0
        %v4887 = vadd.f32 %v4779, %v4886
        %4888 = vmatmul.bf16.gmra.mxu0 %v4805
        %v4889 = vpop.f32.mrf.mxu0
        %v4890 = vadd.f32 %v4784, %v4889
        %v4891 = vpop.f32.mrf.mxu0
        %v4892 = vadd.f32 %v4789, %v4891
        %4893 = vdwg.mxu0
        %4894 = vmatpush.bf16.msra.mxu0 0
        %4895 = vmatpush.bf16.msra.mxu0 0
        %4896 = vmatpush.bf16.msra.mxu0 0
        %4897 = vmatpush.bf16.msra.mxu0 0
        %4898 = vmatpush.bf16.msra.mxu0 0
        %4899 = vmatpush.bf16.msra.mxu0 0
        %4900 = vmatpush.bf16.msra.mxu0 %v4858
        %4901 = vmatpush.bf16.msra.mxu0 %v4857
        %4902 = vmatmul.bf16.gmra.mxu0 %v4870
        %v4903 = vpop.f32.mrf.mxu0
        %v4904 = vadd.f32 %v4885, %v4903
        %v4905 = vpop.f32.mrf.mxu0
        %v4906 = vadd.f32 %v4887, %v4905
        %4907 = vmatmul.bf16.gmra.mxu0 %v4873
        %v4908 = vpop.f32.mrf.mxu0
        %v4909 = vadd.f32 %v4890, %v4908
        %v4910 = vpop.f32.mrf.mxu0
        %v4911 = vadd.f32 %v4892, %v4910
        %4912 = vdwg.mxu0
        %v4913 = vmax.f32 %v4904, 0.0
        %v4914 = vmax.f32 %v4906, 0.0
        %v4915 = vmax.f32 %v4909, 0.0
        %v4916 = vmax.f32 %v4911, 0.0
        %v4917 = vsel %vm4632, 1, 0
        %v4918 = vperm.slane %v4917, 0
        %vm4919 = vcmp.eq.s32.totalorder %v4918, 1
        %v4920 = vsel %vm4919, %v4913, 0.0
        %v4921 = vsel %vm4919, %v4914, 0.0
        %v4922 = vsel %vm4919, %v4915, 0.0
        %v4923 = vsel %vm4919, %v4916, 0.0
        %v4924 = vpack.c.bf16 %v4920, %v4920
        %v4925 = vpack.c.bf16 %v4921, %v4921
        %v4926 = vpack.c.bf16 %v4922, %v4922
        %v4927 = vpack.c.bf16 %v4923, %v4923
        %4928 = vst.msk [vmem:[#allocation2] sm:$0xf] %vm690, 0
        %4929 = vst.msk [vmem:[#allocation2 + $0x10] sm:$0xf] %vm690, 0
        %4930 = vst.msk [vmem:[#allocation2 + $0x20] sm:$0xf] %vm690, 0
        %4931 = vst.msk [vmem:[#allocation2 + $0x30] sm:$0xf] %vm690, 0
        %4932 = vst.msk [vmem:[#allocation2 + $0x40] sm:$0xf] %vm690, 0
        %4933 = vst.msk [vmem:[#allocation2 + $0x50] sm:$0xf] %vm690, 0
        %4934 = vst.msk [vmem:[#allocation2 + $0x60] sm:$0xf] %vm690, 0
        %4935 = vst.msk [vmem:[#allocation2 + $0x70] sm:$0xf] %vm690, 0
        %4936 = vst.msk [vmem:[#allocation2 + $0x80] sm:$0xf] %vm690, 0
        %4937 = vst.msk [vmem:[#allocation2 + $0x90] sm:$0xf] %vm690, 0
        %4938 = vst.msk [vmem:[#allocation2 + $0xa0] sm:$0xf] %vm690, 0
        %4939 = vst.msk [vmem:[#allocation2 + $0xb0] sm:$0xf] %vm690, 0
        %4940 = vst.msk [vmem:[#allocation2 + $0xc0] sm:$0xf] %vm690, 0
        %4941 = vst.msk [vmem:[#allocation2 + $0xd0] sm:$0xf] %vm690, 0
        %4942 = vst.msk [vmem:[#allocation2 + $0xe0] sm:$0xf] %vm690, 0
        %4943 = vst.msk [vmem:[#allocation2 + $0xf0] sm:$0xf] %vm690, 0
        %4944 = vst.msk [vmem:[#allocation2 + $0x100] sm:$0xf] %vm690, 0
        %4945 = vst.msk [vmem:[#allocation2 + $0x110] sm:$0xf] %vm690, 0
        %4946 = vst.msk [vmem:[#allocation2 + $0x120] sm:$0xf] %vm690, 0
        %4947 = vst.msk [vmem:[#allocation2 + $0x130] sm:$0xf] %vm690, 0
        %4948 = vst.msk [vmem:[#allocation2] sm:$0xf] %vm711, 0
        %4949 = vst.msk [vmem:[#allocation2 + $0x10] sm:$0xf] %vm711, 0
        %4950 = vst.msk [vmem:[#allocation2 + $0x20] sm:$0xf] %vm711, 0
        %4951 = vst.msk [vmem:[#allocation2 + $0x30] sm:$0xf] %vm711, 0
        %4952 = vst.msk [vmem:[#allocation2 + $0x40] sm:$0xf] %vm711, 0
        %4953 = vst.msk [vmem:[#allocation2 + $0x50] sm:$0xf] %vm711, 0
        %4954 = vst.msk [vmem:[#allocation2 + $0x60] sm:$0xf] %vm711, 0
        %4955 = vst.msk [vmem:[#allocation2 + $0x70] sm:$0xf] %vm711, 0
        %4956 = vst.msk [vmem:[#allocation2 + $0x80] sm:$0xf] %vm711, 0
        %4957 = vst.msk [vmem:[#allocation2 + $0x90] sm:$0xf] %vm711, 0
        %4958 = vst.msk [vmem:[#allocation2 + $0xa0] sm:$0xf] %vm711, 0
        %4959 = vst.msk [vmem:[#allocation2 + $0xb0] sm:$0xf] %vm711, 0
        %4960 = vst.msk [vmem:[#allocation2 + $0xc0] sm:$0xf] %vm711, 0
        %4961 = vst.msk [vmem:[#allocation2 + $0xd0] sm:$0xf] %vm711, 0
        %4962 = vst.msk [vmem:[#allocation2 + $0xe0] sm:$0xf] %vm711, 0
        %4963 = vst.msk [vmem:[#allocation2 + $0xf0] sm:$0xf] %vm711, 0
        %4964 = vst.msk [vmem:[#allocation2 + $0x100] sm:$0xf] %vm711, 0
        %4965 = vst.msk [vmem:[#allocation2 + $0x110] sm:$0xf] %vm711, 0
        %4966 = vst.msk [vmem:[#allocation2 + $0x120] sm:$0xf] %vm711, 0
        %4967 = vst.msk [vmem:[#allocation2 + $0x130] sm:$0xf] %vm711, 0
        %4972 = vrot.lane.b32.xlu0 %v4924, 2
        %v4973 = vpop.permute.xlu0 %4972
        %4974 = vrot.lane.b32.xlu0 %v4925, 2
        %v4975 = vpop.permute.xlu0 %4974
        %4976 = vrot.lane.b32.xlu0 %v4926, 2
        %v4977 = vpop.permute.xlu0 %4976
        %4978 = vrot.lane.b32.xlu0 %v4927, 2
        %v4979 = vpop.permute.xlu0 %4978
        %4984 = vst.msk [vmem:[#allocation2] sm:$0xf] %vm786, %v4973
        %4985 = vst.msk [vmem:[#allocation2 + $0x10] sm:$0xf] %vm786, %v4975
        %4986 = vst.msk [vmem:[#allocation2 + $0x20] sm:$0xf] %vm786, %v4977
        %4987 = vst.msk [vmem:[#allocation2 + $0x30] sm:$0xf] %vm786, %v4979
        %4988 = vrot.lane.b32.xlu0 %v4924, 1
        %v4989 = vpop.permute.xlu0 %4988
        %4990 = vrot.lane.b32.xlu0 %v4925, 1
        %v4991 = vpop.permute.xlu0 %4990
        %4992 = vrot.lane.b32.xlu0 %v4926, 1
        %v4993 = vpop.permute.xlu0 %4992
        %4994 = vrot.lane.b32.xlu0 %v4927, 1
        %v4995 = vpop.permute.xlu0 %4994
        %5000 = vst.msk [vmem:[#allocation2 + $0x40] sm:$0xf] %vm842, %v4989
        %5001 = vst.msk [vmem:[#allocation2 + $0x50] sm:$0xf] %vm842, %v4991
        %5002 = vst.msk [vmem:[#allocation2 + $0x60] sm:$0xf] %vm842, %v4993
        %5003 = vst.msk [vmem:[#allocation2 + $0x70] sm:$0xf] %vm842, %v4995
        %5004 = vst [vmem:[#allocation2 + $0x80] sm:$0xf] %v4924
        %5005 = vst [vmem:[#allocation2 + $0x90] sm:$0xf] %v4925
        %5006 = vst [vmem:[#allocation2 + $0xa0] sm:$0xf] %v4926
        %5007 = vst [vmem:[#allocation2 + $0xb0] sm:$0xf] %v4927
        %5008 = vrot.lane.b32.xlu0 %v4924, 127
        %v5009 = vpop.permute.xlu0 %5008
        %5010 = vrot.lane.b32.xlu0 %v4925, 127
        %v5011 = vpop.permute.xlu0 %5010
        %5012 = vrot.lane.b32.xlu0 %v4926, 127
        %v5013 = vpop.permute.xlu0 %5012
        %5014 = vrot.lane.b32.xlu0 %v4927, 127
        %v5015 = vpop.permute.xlu0 %5014
        %5020 = vst.msk [vmem:[#allocation2 + $0xc0] sm:$0xf] %vm4729, %v5009
        %5021 = vst.msk [vmem:[#allocation2 + $0xd0] sm:$0xf] %vm4729, %v5011
        %5022 = vst.msk [vmem:[#allocation2 + $0xe0] sm:$0xf] %vm4729, %v5013
        %5023 = vst.msk [vmem:[#allocation2 + $0xf0] sm:$0xf] %vm4729, %v5015
        %5024 = vrot.lane.b32.xlu0 %v4924, 126
        %v5025 = vpop.permute.xlu0 %5024
        %5026 = vrot.lane.b32.xlu0 %v4925, 126
        %v5027 = vpop.permute.xlu0 %5026
        %5028 = vrot.lane.b32.xlu0 %v4926, 126
        %v5029 = vpop.permute.xlu0 %5028
        %5030 = vrot.lane.b32.xlu0 %v4927, 126
        %v5031 = vpop.permute.xlu0 %5030
        %5036 = vst.msk [vmem:[#allocation2 + $0x100] sm:$0xf] %vm4746, %v5025
        %5037 = vst.msk [vmem:[#allocation2 + $0x110] sm:$0xf] %vm4746, %v5027
        %5038 = vst.msk [vmem:[#allocation2 + $0x120] sm:$0xf] %vm4746, %v5029
        %5039 = vst.msk [vmem:[#allocation2 + $0x130] sm:$0xf] %vm4746, %v5031
        %v5040 = vld [vmem:[#allocation2] sm:$0xf]
        %v5041 = vld [vmem:[#allocation2 + $0x10] sm:$0xf]
        %v5042 = vld [vmem:[#allocation2 + $0x20] sm:$0xf]
        %v5043 = vld [vmem:[#allocation2 + $0x30] sm:$0xf]
        %v5044 = vld [vmem:[#allocation2 + $0x40] sm:$0xf]
        %v5045 = vld [vmem:[#allocation2 + $0x50] sm:$0xf]
        %v5046 = vld [vmem:[#allocation2 + $0x60] sm:$0xf]
        %v5047 = vld [vmem:[#allocation2 + $0x70] sm:$0xf]
        %v5048 = vld [vmem:[#allocation2 + $0x80] sm:$0xf]
        %v5049 = vld [vmem:[#allocation2 + $0x90] sm:$0xf]
        %v5050 = vld [vmem:[#allocation2 + $0xa0] sm:$0xf]
        %v5051 = vld [vmem:[#allocation2 + $0xb0] sm:$0xf]
        %v5052 = vld [vmem:[#allocation2 + $0xc0] sm:$0xf]
        %v5053 = vld [vmem:[#allocation2 + $0xd0] sm:$0xf]
        %v5054 = vld [vmem:[#allocation2 + $0xe0] sm:$0xf]
        %v5055 = vld [vmem:[#allocation2 + $0xf0] sm:$0xf]
        %v5056 = vld [vmem:[#allocation2 + $0x100] sm:$0xf]
        %v5057 = vld [vmem:[#allocation2 + $0x110] sm:$0xf]
        %v5058 = vld [vmem:[#allocation2 + $0x120] sm:$0xf]
        %v5059 = vld [vmem:[#allocation2 + $0x130] sm:$0xf]
        %v5080 = vunpack.c.l.b16 %v5040
        %v5081 = vunpack.c.l.b16 %v5041
        %v5082 = vunpack.c.l.b16 %v5042
        %v5083 = vunpack.c.l.b16 %v5043
        %v5084 = vunpack.c.l.b16 %v5044
        %v5085 = vunpack.c.l.b16 %v5045
        %v5086 = vunpack.c.l.b16 %v5046
        %v5087 = vunpack.c.l.b16 %v5047
        %v5088 = vunpack.c.l.b16 %v5048
        %v5089 = vunpack.c.l.b16 %v5049
        %v5090 = vunpack.c.l.b16 %v5050
        %v5091 = vunpack.c.l.b16 %v5051
        %v5092 = vunpack.c.l.b16 %v5052
        %v5093 = vunpack.c.l.b16 %v5053
        %v5094 = vunpack.c.l.b16 %v5054
        %v5095 = vunpack.c.l.b16 %v5055
        %v5096 = vunpack.c.l.b16 %v5056
        %v5097 = vunpack.c.l.b16 %v5057
        %v5098 = vunpack.c.l.b16 %v5058
        %v5099 = vunpack.c.l.b16 %v5059
        %v5100 = vpack.c.b16 %v5081, %v5080
        %v5101 = vpack.c.b16 %v5083, %v5082
        %v5102 = vpack.c.b16 %v5085, %v5084
        %v5103 = vpack.c.b16 %v5087, %v5086
        %v5104 = vpack.c.b16 %v5089, %v5088
        %v5105 = vpack.c.b16 %v5091, %v5090
        %v5106 = vpack.c.b16 %v5093, %v5092
        %v5107 = vpack.c.b16 %v5095, %v5094
        %v5108 = vpack.c.b16 %v5097, %v5096
        %v5109 = vpack.c.b16 %v5099, %v5098
        %5120 = vmatpush.bf16.msra.mxu0 %v5107
        %5121 = vmatpush.bf16.msra.mxu0 %v5106
        %5122 = vmatpush.bf16.msra.mxu0 %v5105
        %5123 = vmatpush.bf16.msra.mxu0 %v5104
        %5124 = vmatpush.bf16.msra.mxu0 %v5103
        %5125 = vmatpush.bf16.msra.mxu0 %v5102
        %5126 = vmatpush.bf16.msra.mxu0 %v5101
        %5127 = vmatpush.bf16.msra.mxu0 %v5100
        %5128 = vmatmul.bf16.gmra.mxu0 %v4803
        %v5129 = vpop.f32.mrf.mxu0
        %v5130 = vadd.f32 %v4774, %v5129
        %v5131 = vpop.f32.mrf.mxu0
        %v5132 = vadd.f32 %v4779, %v5131
        %5133 = vmatmul.bf16.gmra.mxu0 %v4805
        %v5134 = vpop.f32.mrf.mxu0
        %v5135 = vadd.f32 %v4784, %v5134
        %v5136 = vpop.f32.mrf.mxu0
        %v5137 = vadd.f32 %v4789, %v5136
        %5138 = vdwg.mxu0
        %5139 = vmatpush.bf16.msra.mxu0 0
        %5140 = vmatpush.bf16.msra.mxu0 0
        %5141 = vmatpush.bf16.msra.mxu0 0
        %5142 = vmatpush.bf16.msra.mxu0 0
        %5143 = vmatpush.bf16.msra.mxu0 0
        %5144 = vmatpush.bf16.msra.mxu0 0
        %5145 = vmatpush.bf16.msra.mxu0 %v5109
        %5146 = vmatpush.bf16.msra.mxu0 %v5108
        %5147 = vmatmul.bf16.gmra.mxu0 %v4870
        %v5148 = vpop.f32.mrf.mxu0
        %v5149 = vadd.f32 %v5130, %v5148
        %v5150 = vpop.f32.mrf.mxu0
        %v5151 = vadd.f32 %v5132, %v5150
        %5152 = vmatmul.bf16.gmra.mxu0 %v4873
        %v5153 = vpop.f32.mrf.mxu0
        %v5154 = vadd.f32 %v5135, %v5153
        %v5155 = vpop.f32.mrf.mxu0
        %v5156 = vadd.f32 %v5137, %v5155
        %5157 = vdwg.mxu0
        %v5158 = vadd.f32 %v5149, %v4609
        %v5159 = vadd.f32 %v5151, %v4612
        %v5160 = vadd.f32 %v5154, %v4615
        %v5161 = vadd.f32 %v5156, %v4618
        %v5162 = vmax.f32 %v5158, 0.0
        %v5163 = vmax.f32 %v5159, 0.0
        %v5164 = vmax.f32 %v5160, 0.0
        %v5165 = vmax.f32 %v5161, 0.0
        %5170 = vrot.lane.b32.xlu0 %v5162, 127
        %v5171 = vpop.permute.xlu0 %5170
        %5172 = vrot.lane.b32.xlu0 %v5163, 127
        %v5173 = vpop.permute.xlu0 %5172
        %5174 = vrot.lane.b32.xlu0 %v5164, 127
        %v5175 = vpop.permute.xlu0 %5174
        %5176 = vrot.lane.b32.xlu0 %v5165, 127
        %v5177 = vpop.permute.xlu0 %5176
        %v5182 = vmax.f32 %v5162, %v5171
        %v5183 = vmax.f32 %v5163, %v5173
        %v5184 = vmax.f32 %v5164, %v5175
        %v5185 = vmax.f32 %v5165, %v5177
        %5186 = vrot.lane.b32.xlu0 %v5162, 126
        %v5187 = vpop.permute.xlu0 %5186
        %5188 = vrot.lane.b32.xlu0 %v5163, 126
        %v5189 = vpop.permute.xlu0 %5188
        %5190 = vrot.lane.b32.xlu0 %v5164, 126
        %v5191 = vpop.permute.xlu0 %5190
        %5192 = vrot.lane.b32.xlu0 %v5165, 126
        %v5193 = vpop.permute.xlu0 %5192
        %v5198 = vmax.f32 %v5182, %v5187
        %v5199 = vmax.f32 %v5183, %v5189
        %v5200 = vmax.f32 %v5184, %v5191
        %v5201 = vmax.f32 %v5185, %v5193
        %5202 = vrot.lane.b32.xlu0 %v5162, 125
        %v5203 = vpop.permute.xlu0 %5202
        %5204 = vrot.lane.b32.xlu0 %v5163, 125
        %v5205 = vpop.permute.xlu0 %5204
        %5206 = vrot.lane.b32.xlu0 %v5164, 125
        %v5207 = vpop.permute.xlu0 %5206
        %5208 = vrot.lane.b32.xlu0 %v5165, 125
        %v5209 = vpop.permute.xlu0 %5208
        %v5214 = vmax.f32 %v5198, %v5203
        %v5215 = vmax.f32 %v5199, %v5205
        %v5216 = vmax.f32 %v5200, %v5207
        %v5217 = vmax.f32 %v5201, %v5209
        %5218 = vrot.lane.b32.xlu0 %v5162, 124
        %v5219 = vpop.permute.xlu0 %5218
        %5220 = vrot.lane.b32.xlu0 %v5163, 124
        %v5221 = vpop.permute.xlu0 %5220
        %5222 = vrot.lane.b32.xlu0 %v5164, 124
        %v5223 = vpop.permute.xlu0 %5222
        %5224 = vrot.lane.b32.xlu0 %v5165, 124
        %v5225 = vpop.permute.xlu0 %5224
        %v5230 = vmax.f32 %v5214, %v5219
        %v5231 = vmax.f32 %v5215, %v5221
        %v5232 = vmax.f32 %v5216, %v5223
        %v5233 = vmax.f32 %v5217, %v5225
        %v5234 = vld [vmem:[%s8] sm:$0xff]
        %v5235 = vld [vmem:[%s8 + $0x8] sm:$0xff]
        %v5236 = vld [vmem:[%s8 + $0x10] sm:$0xff]
        %v5237 = vld [vmem:[%s8 + $0x18] sm:$0xff]
        %v5238 = vld [vmem:[%s8 + $0x20] sm:$0xff]
        %v5239 = vld [vmem:[%s8 + $0x28] sm:$0xff]
        %v5240 = vld [vmem:[%s8 + $0x30] sm:$0xff]
        %v5241 = vld [vmem:[%s8 + $0x38] sm:$0xff]
        %v5242 = vld [vmem:[%s8 + $0x40] sm:$0xff]
        %v5243 = vld [vmem:[%s8 + $0x48] sm:$0xff]
        %v5244 = vld [vmem:[%s8 + $0x50] sm:$0xff]
        %v5245 = vld [vmem:[%s8 + $0x58] sm:$0xff]
        %v5246 = vld [vmem:[%s8 + $0x60] sm:$0xff]
        %v5247 = vld [vmem:[%s8 + $0x68] sm:$0xff]
        %v5248 = vld [vmem:[%s8 + $0x70] sm:$0xff]
        %v5249 = vld [vmem:[%s8 + $0x78] sm:$0xf]
        %v5251 = vsel %vm3158, %v5230, 0
        %v5254 = vsel %vm3158, %v5231, 0
        %v5257 = vsel %vm3158, %v5232, 0
        %v5260 = vsel %vm3158, %v5233, 0
        %v5263 = vsel %vm906, %v5249, 0
        %5265 = vmatpush.msra.mxu0 %v5263
        %5266 = vmatpush.msra.mxu0 %v5248
        %5267 = vmatpush.msra.mxu0 %v5247
        %5268 = vmatpush.msra.mxu0 %v5246
        %5269 = vmatpush.msra.mxu0 %v5245
        %5270 = vmatpush.msra.mxu0 %v5244
        %5271 = vmatpush.msra.mxu0 %v5243
        %5272 = vmatpush.msra.mxu0 %v5242
        %5273 = vmatpush.msra.mxu0 %v5241
        %5274 = vmatpush.msra.mxu0 %v5240
        %5275 = vmatpush.msra.mxu0 %v5239
        %5276 = vmatpush.msra.mxu0 %v5238
        %5277 = vmatpush.msra.mxu0 %v5237
        %5278 = vmatpush.msra.mxu0 %v5236
        %5279 = vmatpush.msra.mxu0 %v5235
        %5280 = vmatpush.msra.mxu0 %v5234
        %5281 = vmatmul.f32.gmra.mxu0 %v5251
        %v5282 = vpop.f32.mrf.mxu0
        %v5283 = vadd.f32 0.0, %v5282
        %5284 = vmatmul.f32.gmra.mxu0 %v5254
        %v5285 = vpop.f32.mrf.mxu0
        %v5286 = vadd.f32 0.0, %v5285
        %5287 = vmatmul.f32.gmra.mxu0 %v5257
        %v5288 = vpop.f32.mrf.mxu0
        %v5289 = vadd.f32 0.0, %v5288
        %5290 = vmatmul.f32.gmra.mxu0 %v5260
        %v5291 = vpop.f32.mrf.mxu0
        %v5292 = vadd.f32 0.0, %v5291
        %5293 = vdwg.mxu0
        %s5294 = scalar_lea.vmem %s3, 96
        %v5295 = vld [vmem:[%s5294] sm:$0xff]
        %v5296 = vld [vmem:[%s5294 + $0x8] sm:$0xff]
        %v5297 = vld [vmem:[%s5294 + $0x10] sm:$0xff]
        %v5298 = vld [vmem:[%s5294 + $0x18] sm:$0xff]
        %s5299 = scalar_lea.vmem %s4, 96
        %v5300 = vld [vmem:[%s5299] sm:$0xff]
        %v5301 = vld [vmem:[%s5299 + $0x8] sm:$0xff]
        %v5302 = vld [vmem:[%s5299 + $0x10] sm:$0xff]
        %v5303 = vld [vmem:[%s5299 + $0x18] sm:$0xff]
        %s5304 = scalar_lea.vmem %s5, 12
        %v5305 = vld [vmem:[%s5304] sm:$0x1]
        %vm5306 = vcmp.gt.f32.partialorder %v5305, 0.5
        %v5307 = vpack.c.bf16 %v5283, %v5283
        %v5308 = vpack.c.bf16 %v5286, %v5286
        %v5309 = vpack.c.bf16 %v5289, %v5289
        %v5310 = vpack.c.bf16 %v5292, %v5292
        %5311 = vst.msk [vmem:[#allocation2] sm:$0xf] %vm690, 0
        %5312 = vst.msk [vmem:[#allocation2 + $0x10] sm:$0xf] %vm690, 0
        %5313 = vst.msk [vmem:[#allocation2 + $0x20] sm:$0xf] %vm690, 0
        %5314 = vst.msk [vmem:[#allocation2 + $0x30] sm:$0xf] %vm690, 0
        %5315 = vst.msk [vmem:[#allocation2 + $0x40] sm:$0xf] %vm690, 0
        %5316 = vst.msk [vmem:[#allocation2 + $0x50] sm:$0xf] %vm690, 0
        %5317 = vst.msk [vmem:[#allocation2 + $0x60] sm:$0xf] %vm690, 0
        %5318 = vst.msk [vmem:[#allocation2 + $0x70] sm:$0xf] %vm690, 0
        %5319 = vst.msk [vmem:[#allocation2 + $0x80] sm:$0xf] %vm690, 0
        %5320 = vst.msk [vmem:[#allocation2 + $0x90] sm:$0xf] %vm690, 0
        %5321 = vst.msk [vmem:[#allocation2 + $0xa0] sm:$0xf] %vm690, 0
        %5322 = vst.msk [vmem:[#allocation2 + $0xb0] sm:$0xf] %vm690, 0
        %5323 = vst.msk [vmem:[#allocation2 + $0xc0] sm:$0xf] %vm690, 0
        %5324 = vst.msk [vmem:[#allocation2 + $0xd0] sm:$0xf] %vm690, 0
        %5325 = vst.msk [vmem:[#allocation2 + $0xe0] sm:$0xf] %vm690, 0
        %5326 = vst.msk [vmem:[#allocation2 + $0xf0] sm:$0xf] %vm690, 0
        %5327 = vst.msk [vmem:[#allocation2 + $0x100] sm:$0xf] %vm690, 0
        %5328 = vst.msk [vmem:[#allocation2 + $0x110] sm:$0xf] %vm690, 0
        %5329 = vst.msk [vmem:[#allocation2 + $0x120] sm:$0xf] %vm690, 0
        %5330 = vst.msk [vmem:[#allocation2 + $0x130] sm:$0xf] %vm690, 0
        %vm5331 = vcmask 519664
        %5332 = vst.msk [vmem:[#allocation2] sm:$0xf] %vm5331, 0
        %5333 = vst.msk [vmem:[#allocation2 + $0x10] sm:$0xf] %vm5331, 0
        %5334 = vst.msk [vmem:[#allocation2 + $0x20] sm:$0xf] %vm5331, 0
        %5335 = vst.msk [vmem:[#allocation2 + $0x30] sm:$0xf] %vm5331, 0
        %5336 = vst.msk [vmem:[#allocation2 + $0x40] sm:$0xf] %vm5331, 0
        %5337 = vst.msk [vmem:[#allocation2 + $0x50] sm:$0xf] %vm5331, 0
        %5338 = vst.msk [vmem:[#allocation2 + $0x60] sm:$0xf] %vm5331, 0
        %5339 = vst.msk [vmem:[#allocation2 + $0x70] sm:$0xf] %vm5331, 0
        %5340 = vst.msk [vmem:[#allocation2 + $0x80] sm:$0xf] %vm5331, 0
        %5341 = vst.msk [vmem:[#allocation2 + $0x90] sm:$0xf] %vm5331, 0
        %5342 = vst.msk [vmem:[#allocation2 + $0xa0] sm:$0xf] %vm5331, 0
        %5343 = vst.msk [vmem:[#allocation2 + $0xb0] sm:$0xf] %vm5331, 0
        %5344 = vst.msk [vmem:[#allocation2 + $0xc0] sm:$0xf] %vm5331, 0
        %5345 = vst.msk [vmem:[#allocation2 + $0xd0] sm:$0xf] %vm5331, 0
        %5346 = vst.msk [vmem:[#allocation2 + $0xe0] sm:$0xf] %vm5331, 0
        %5347 = vst.msk [vmem:[#allocation2 + $0xf0] sm:$0xf] %vm5331, 0
        %5348 = vst.msk [vmem:[#allocation2 + $0x100] sm:$0xf] %vm5331, 0
        %5349 = vst.msk [vmem:[#allocation2 + $0x110] sm:$0xf] %vm5331, 0
        %5350 = vst.msk [vmem:[#allocation2 + $0x120] sm:$0xf] %vm5331, 0
        %5351 = vst.msk [vmem:[#allocation2 + $0x130] sm:$0xf] %vm5331, 0
        %5356 = vrot.lane.b32.xlu0 %v5307, 2
        %v5357 = vpop.permute.xlu0 %5356
        %5358 = vrot.lane.b32.xlu0 %v5308, 2
        %v5359 = vpop.permute.xlu0 %5358
        %5360 = vrot.lane.b32.xlu0 %v5309, 2
        %v5361 = vpop.permute.xlu0 %5360
        %5362 = vrot.lane.b32.xlu0 %v5310, 2
        %v5363 = vpop.permute.xlu0 %5362
        %vm5368 = vcmask 519184
        %5369 = vst.msk [vmem:[#allocation2] sm:$0xf] %vm5368, %v5357
        %5370 = vst.msk [vmem:[#allocation2 + $0x10] sm:$0xf] %vm5368, %v5359
        %5371 = vst.msk [vmem:[#allocation2 + $0x20] sm:$0xf] %vm5368, %v5361
        %5372 = vst.msk [vmem:[#allocation2 + $0x30] sm:$0xf] %vm5368, %v5363
        %5373 = vrot.lane.b32.xlu0 %v5307, 1
        %v5374 = vpop.permute.xlu0 %5373
        %5375 = vrot.lane.b32.xlu0 %v5308, 1
        %v5376 = vpop.permute.xlu0 %5375
        %5377 = vrot.lane.b32.xlu0 %v5309, 1
        %v5378 = vpop.permute.xlu0 %5377
        %5379 = vrot.lane.b32.xlu0 %v5310, 1
        %v5380 = vpop.permute.xlu0 %5379
        %vm5385 = vcmask 519176
        %5386 = vst.msk [vmem:[#allocation2 + $0x40] sm:$0xf] %vm5385, %v5374
        %5387 = vst.msk [vmem:[#allocation2 + $0x50] sm:$0xf] %vm5385, %v5376
        %5388 = vst.msk [vmem:[#allocation2 + $0x60] sm:$0xf] %vm5385, %v5378
        %5389 = vst.msk [vmem:[#allocation2 + $0x70] sm:$0xf] %vm5385, %v5380
        %vm5390 = vcmask 519168
        %5391 = vst.msk [vmem:[#allocation2 + $0x80] sm:$0xf] %vm5390, %v5307
        %5392 = vst.msk [vmem:[#allocation2 + $0x90] sm:$0xf] %vm5390, %v5308
        %5393 = vst.msk [vmem:[#allocation2 + $0xa0] sm:$0xf] %vm5390, %v5309
        %5394 = vst.msk [vmem:[#allocation2 + $0xb0] sm:$0xf] %vm5390, %v5310
        %5395 = vrot.lane.b32.xlu0 %v5307, 127
        %v5396 = vpop.permute.xlu0 %5395
        %5397 = vrot.lane.b32.xlu0 %v5308, 127
        %v5398 = vpop.permute.xlu0 %5397
        %5399 = vrot.lane.b32.xlu0 %v5309, 127
        %v5400 = vpop.permute.xlu0 %5399
        %5401 = vrot.lane.b32.xlu0 %v5310, 127
        %v5402 = vpop.permute.xlu0 %5401
        %vm5407 = vcmask 510976
        %5408 = vst.msk [vmem:[#allocation2 + $0xc0] sm:$0xf] %vm5407, %v5396
        %5409 = vst.msk [vmem:[#allocation2 + $0xd0] sm:$0xf] %vm5407, %v5398
        %5410 = vst.msk [vmem:[#allocation2 + $0xe0] sm:$0xf] %vm5407, %v5400
        %5411 = vst.msk [vmem:[#allocation2 + $0xf0] sm:$0xf] %vm5407, %v5402
        %5412 = vrot.lane.b32.xlu0 %v5307, 126
        %v5413 = vpop.permute.xlu0 %5412
        %5414 = vrot.lane.b32.xlu0 %v5308, 126
        %v5415 = vpop.permute.xlu0 %5414
        %5416 = vrot.lane.b32.xlu0 %v5309, 126
        %v5417 = vpop.permute.xlu0 %5416
        %5418 = vrot.lane.b32.xlu0 %v5310, 126
        %v5419 = vpop.permute.xlu0 %5418
        %vm5424 = vcmask 502784
        %5425 = vst.msk [vmem:[#allocation2 + $0x100] sm:$0xf] %vm5424, %v5413
        %5426 = vst.msk [vmem:[#allocation2 + $0x110] sm:$0xf] %vm5424, %v5415
        %5427 = vst.msk [vmem:[#allocation2 + $0x120] sm:$0xf] %vm5424, %v5417
        %5428 = vst.msk [vmem:[#allocation2 + $0x130] sm:$0xf] %vm5424, %v5419
        %v5429 = vld [vmem:[#allocation2] sm:$0xf]
        %v5430 = vld [vmem:[#allocation2 + $0x10] sm:$0xf]
        %v5431 = vld [vmem:[#allocation2 + $0x20] sm:$0xf]
        %v5432 = vld [vmem:[#allocation2 + $0x30] sm:$0xf]
        %v5433 = vld [vmem:[#allocation2 + $0x40] sm:$0xf]
        %v5434 = vld [vmem:[#allocation2 + $0x50] sm:$0xf]
        %v5435 = vld [vmem:[#allocation2 + $0x60] sm:$0xf]
        %v5436 = vld [vmem:[#allocation2 + $0x70] sm:$0xf]
        %v5437 = vld [vmem:[#allocation2 + $0x80] sm:$0xf]
        %v5438 = vld [vmem:[#allocation2 + $0x90] sm:$0xf]
        %v5439 = vld [vmem:[#allocation2 + $0xa0] sm:$0xf]
        %v5440 = vld [vmem:[#allocation2 + $0xb0] sm:$0xf]
        %v5441 = vld [vmem:[#allocation2 + $0xc0] sm:$0xf]
        %v5442 = vld [vmem:[#allocation2 + $0xd0] sm:$0xf]
        %v5443 = vld [vmem:[#allocation2 + $0xe0] sm:$0xf]
        %v5444 = vld [vmem:[#allocation2 + $0xf0] sm:$0xf]
        %v5445 = vld [vmem:[#allocation2 + $0x100] sm:$0xf]
        %v5446 = vld [vmem:[#allocation2 + $0x110] sm:$0xf]
        %v5447 = vld [vmem:[#allocation2 + $0x120] sm:$0xf]
        %v5448 = vld [vmem:[#allocation2 + $0x130] sm:$0xf]
        %5450 = vset.pattern.permute.xlu0 0
        %5451 = vperm.xlu0 %5450, %v5300
        %v5452 = vpop.permute.xlu0 %5451
        %5455 = vset.pattern.permute.xlu0 0
        %5456 = vperm.xlu0 %5455, %v5301
        %v5457 = vpop.permute.xlu0 %5456
        %5460 = vset.pattern.permute.xlu0 0
        %5461 = vperm.xlu0 %5460, %v5302
        %v5462 = vpop.permute.xlu0 %5461
        %5465 = vset.pattern.permute.xlu0 0
        %5466 = vperm.xlu0 %5465, %v5303
        %v5467 = vpop.permute.xlu0 %5466
        %v5473 = vunpack.c.l.b16 %v5295
        %v5474 = vunpack.c.h.b16 %v5295
        %v5475 = vunpack.c.l.b16 %v5296
        %v5476 = vunpack.c.h.b16 %v5296
        %v5477 = vunpack.c.l.b16 %v5297
        %v5478 = vunpack.c.h.b16 %v5297
        %v5479 = vunpack.c.l.b16 %v5298
        %v5480 = vunpack.c.h.b16 %v5298
        %v5481 = vpack.c.b16 %v5475, %v5473
        %v5482 = vpack.c.b16 %v5476, %v5474
        %v5483 = vpack.c.b16 %v5479, %v5477
        %v5484 = vpack.c.b16 %v5480, %v5478
        %v5507 = vunpack.c.l.b16 %v5429
        %v5508 = vunpack.c.l.b16 %v5430
        %v5509 = vunpack.c.l.b16 %v5431
        %v5510 = vunpack.c.l.b16 %v5432
        %v5511 = vunpack.c.l.b16 %v5433
        %v5512 = vunpack.c.l.b16 %v5434
        %v5513 = vunpack.c.l.b16 %v5435
        %v5514 = vunpack.c.l.b16 %v5436
        %v5515 = vunpack.c.l.b16 %v5437
        %v5516 = vunpack.c.l.b16 %v5438
        %v5517 = vunpack.c.l.b16 %v5439
        %v5518 = vunpack.c.l.b16 %v5440
        %v5519 = vunpack.c.l.b16 %v5441
        %v5520 = vunpack.c.l.b16 %v5442
        %v5521 = vunpack.c.l.b16 %v5443
        %v5522 = vunpack.c.l.b16 %v5444
        %v5523 = vunpack.c.l.b16 %v5445
        %v5524 = vunpack.c.l.b16 %v5446
        %v5525 = vunpack.c.l.b16 %v5447
        %v5526 = vunpack.c.l.b16 %v5448
        %v5527 = vpack.c.b16 %v5508, %v5507
        %v5528 = vpack.c.b16 %v5510, %v5509
        %v5529 = vpack.c.b16 %v5512, %v5511
        %v5530 = vpack.c.b16 %v5514, %v5513
        %v5531 = vpack.c.b16 %v5516, %v5515
        %v5532 = vpack.c.b16 %v5518, %v5517
        %v5533 = vpack.c.b16 %v5520, %v5519
        %v5534 = vpack.c.b16 %v5522, %v5521
        %v5535 = vpack.c.b16 %v5524, %v5523
        %v5536 = vpack.c.b16 %v5526, %v5525
        %v5548 = vsel %vm1249, %v5482, 0
        %v5551 = vsel %vm1249, %v5484, 0
        %5553 = vmatpush.bf16.msra.mxu0 %v5534
        %5554 = vmatpush.bf16.msra.mxu0 %v5533
        %5555 = vmatpush.bf16.msra.mxu0 %v5532
        %5556 = vmatpush.bf16.msra.mxu0 %v5531
        %5557 = vmatpush.bf16.msra.mxu0 %v5530
        %5558 = vmatpush.bf16.msra.mxu0 %v5529
        %5559 = vmatpush.bf16.msra.mxu0 %v5528
        %5560 = vmatpush.bf16.msra.mxu0 %v5527
        %5561 = vmatmul.bf16.gmra.mxu0 %v5481
        %v5562 = vpop.f32.mrf.mxu0
        %v5563 = vadd.f32 %v5452, %v5562
        %v5564 = vpop.f32.mrf.mxu0
        %v5565 = vadd.f32 %v5457, %v5564
        %5566 = vmatmul.bf16.gmra.mxu0 %v5483
        %v5567 = vpop.f32.mrf.mxu0
        %v5568 = vadd.f32 %v5462, %v5567
        %v5569 = vpop.f32.mrf.mxu0
        %v5570 = vadd.f32 %v5467, %v5569
        %5571 = vdwg.mxu0
        %5572 = vmatpush.bf16.msra.mxu0 0
        %5573 = vmatpush.bf16.msra.mxu0 0
        %5574 = vmatpush.bf16.msra.mxu0 0
        %5575 = vmatpush.bf16.msra.mxu0 0
        %5576 = vmatpush.bf16.msra.mxu0 0
        %5577 = vmatpush.bf16.msra.mxu0 0
        %5578 = vmatpush.bf16.msra.mxu0 %v5536
        %5579 = vmatpush.bf16.msra.mxu0 %v5535
        %5580 = vmatmul.bf16.gmra.mxu0 %v5548
        %v5581 = vpop.f32.mrf.mxu0
        %v5582 = vadd.f32 %v5563, %v5581
        %v5583 = vpop.f32.mrf.mxu0
        %v5584 = vadd.f32 %v5565, %v5583
        %5585 = vmatmul.bf16.gmra.mxu0 %v5551
        %v5586 = vpop.f32.mrf.mxu0
        %v5587 = vadd.f32 %v5568, %v5586
        %v5588 = vpop.f32.mrf.mxu0
        %v5589 = vadd.f32 %v5570, %v5588
        %5590 = vdwg.mxu0
        %v5591 = vmax.f32 %v5582, 0.0
        %v5592 = vmax.f32 %v5584, 0.0
        %v5593 = vmax.f32 %v5587, 0.0
        %v5594 = vmax.f32 %v5589, 0.0
        %v5595 = vsel %vm5306, 1, 0
        %v5596 = vperm.slane %v5595, 0
        %vm5597 = vcmp.eq.s32.totalorder %v5596, 1
        %v5598 = vsel %vm5597, %v5591, 0.0
        %v5599 = vsel %vm5597, %v5592, 0.0
        %v5600 = vsel %vm5597, %v5593, 0.0
        %v5601 = vsel %vm5597, %v5594, 0.0
        %v5602 = vpack.c.bf16 %v5598, %v5598
        %v5603 = vpack.c.bf16 %v5599, %v5599
        %v5604 = vpack.c.bf16 %v5600, %v5600
        %v5605 = vpack.c.bf16 %v5601, %v5601
        %5606 = vst.msk [vmem:[#allocation2] sm:$0xf] %vm690, 0
        %5607 = vst.msk [vmem:[#allocation2 + $0x10] sm:$0xf] %vm690, 0
        %5608 = vst.msk [vmem:[#allocation2 + $0x20] sm:$0xf] %vm690, 0
        %5609 = vst.msk [vmem:[#allocation2 + $0x30] sm:$0xf] %vm690, 0
        %5610 = vst.msk [vmem:[#allocation2 + $0x40] sm:$0xf] %vm690, 0
        %5611 = vst.msk [vmem:[#allocation2 + $0x50] sm:$0xf] %vm690, 0
        %5612 = vst.msk [vmem:[#allocation2 + $0x60] sm:$0xf] %vm690, 0
        %5613 = vst.msk [vmem:[#allocation2 + $0x70] sm:$0xf] %vm690, 0
        %5614 = vst.msk [vmem:[#allocation2 + $0x80] sm:$0xf] %vm690, 0
        %5615 = vst.msk [vmem:[#allocation2 + $0x90] sm:$0xf] %vm690, 0
        %5616 = vst.msk [vmem:[#allocation2 + $0xa0] sm:$0xf] %vm690, 0
        %5617 = vst.msk [vmem:[#allocation2 + $0xb0] sm:$0xf] %vm690, 0
        %5618 = vst.msk [vmem:[#allocation2 + $0xc0] sm:$0xf] %vm690, 0
        %5619 = vst.msk [vmem:[#allocation2 + $0xd0] sm:$0xf] %vm690, 0
        %5620 = vst.msk [vmem:[#allocation2 + $0xe0] sm:$0xf] %vm690, 0
        %5621 = vst.msk [vmem:[#allocation2 + $0xf0] sm:$0xf] %vm690, 0
        %5622 = vst.msk [vmem:[#allocation2 + $0x100] sm:$0xf] %vm690, 0
        %5623 = vst.msk [vmem:[#allocation2 + $0x110] sm:$0xf] %vm690, 0
        %5624 = vst.msk [vmem:[#allocation2 + $0x120] sm:$0xf] %vm690, 0
        %5625 = vst.msk [vmem:[#allocation2 + $0x130] sm:$0xf] %vm690, 0
        %5626 = vst.msk [vmem:[#allocation2] sm:$0xf] %vm5331, 0
        %5627 = vst.msk [vmem:[#allocation2 + $0x10] sm:$0xf] %vm5331, 0
        %5628 = vst.msk [vmem:[#allocation2 + $0x20] sm:$0xf] %vm5331, 0
        %5629 = vst.msk [vmem:[#allocation2 + $0x30] sm:$0xf] %vm5331, 0
        %5630 = vst.msk [vmem:[#allocation2 + $0x40] sm:$0xf] %vm5331, 0
        %5631 = vst.msk [vmem:[#allocation2 + $0x50] sm:$0xf] %vm5331, 0
        %5632 = vst.msk [vmem:[#allocation2 + $0x60] sm:$0xf] %vm5331, 0
        %5633 = vst.msk [vmem:[#allocation2 + $0x70] sm:$0xf] %vm5331, 0
        %5634 = vst.msk [vmem:[#allocation2 + $0x80] sm:$0xf] %vm5331, 0
        %5635 = vst.msk [vmem:[#allocation2 + $0x90] sm:$0xf] %vm5331, 0
        %5636 = vst.msk [vmem:[#allocation2 + $0xa0] sm:$0xf] %vm5331, 0
        %5637 = vst.msk [vmem:[#allocation2 + $0xb0] sm:$0xf] %vm5331, 0
        %5638 = vst.msk [vmem:[#allocation2 + $0xc0] sm:$0xf] %vm5331, 0
        %5639 = vst.msk [vmem:[#allocation2 + $0xd0] sm:$0xf] %vm5331, 0
        %5640 = vst.msk [vmem:[#allocation2 + $0xe0] sm:$0xf] %vm5331, 0
        %5641 = vst.msk [vmem:[#allocation2 + $0xf0] sm:$0xf] %vm5331, 0
        %5642 = vst.msk [vmem:[#allocation2 + $0x100] sm:$0xf] %vm5331, 0
        %5643 = vst.msk [vmem:[#allocation2 + $0x110] sm:$0xf] %vm5331, 0
        %5644 = vst.msk [vmem:[#allocation2 + $0x120] sm:$0xf] %vm5331, 0
        %5645 = vst.msk [vmem:[#allocation2 + $0x130] sm:$0xf] %vm5331, 0
        %5650 = vrot.lane.b32.xlu0 %v5602, 2
        %v5651 = vpop.permute.xlu0 %5650
        %5652 = vrot.lane.b32.xlu0 %v5603, 2
        %v5653 = vpop.permute.xlu0 %5652
        %5654 = vrot.lane.b32.xlu0 %v5604, 2
        %v5655 = vpop.permute.xlu0 %5654
        %5656 = vrot.lane.b32.xlu0 %v5605, 2
        %v5657 = vpop.permute.xlu0 %5656
        %5662 = vst.msk [vmem:[#allocation2] sm:$0xf] %vm5368, %v5651
        %5663 = vst.msk [vmem:[#allocation2 + $0x10] sm:$0xf] %vm5368, %v5653
        %5664 = vst.msk [vmem:[#allocation2 + $0x20] sm:$0xf] %vm5368, %v5655
        %5665 = vst.msk [vmem:[#allocation2 + $0x30] sm:$0xf] %vm5368, %v5657
        %5666 = vrot.lane.b32.xlu0 %v5602, 1
        %v5667 = vpop.permute.xlu0 %5666
        %5668 = vrot.lane.b32.xlu0 %v5603, 1
        %v5669 = vpop.permute.xlu0 %5668
        %5670 = vrot.lane.b32.xlu0 %v5604, 1
        %v5671 = vpop.permute.xlu0 %5670
        %5672 = vrot.lane.b32.xlu0 %v5605, 1
        %v5673 = vpop.permute.xlu0 %5672
        %5678 = vst.msk [vmem:[#allocation2 + $0x40] sm:$0xf] %vm5385, %v5667
        %5679 = vst.msk [vmem:[#allocation2 + $0x50] sm:$0xf] %vm5385, %v5669
        %5680 = vst.msk [vmem:[#allocation2 + $0x60] sm:$0xf] %vm5385, %v5671
        %5681 = vst.msk [vmem:[#allocation2 + $0x70] sm:$0xf] %vm5385, %v5673
        %5682 = vst.msk [vmem:[#allocation2 + $0x80] sm:$0xf] %vm5390, %v5602
        %5683 = vst.msk [vmem:[#allocation2 + $0x90] sm:$0xf] %vm5390, %v5603
        %5684 = vst.msk [vmem:[#allocation2 + $0xa0] sm:$0xf] %vm5390, %v5604
        %5685 = vst.msk [vmem:[#allocation2 + $0xb0] sm:$0xf] %vm5390, %v5605
        %5686 = vrot.lane.b32.xlu0 %v5602, 127
        %v5687 = vpop.permute.xlu0 %5686
        %5688 = vrot.lane.b32.xlu0 %v5603, 127
        %v5689 = vpop.permute.xlu0 %5688
        %5690 = vrot.lane.b32.xlu0 %v5604, 127
        %v5691 = vpop.permute.xlu0 %5690
        %5692 = vrot.lane.b32.xlu0 %v5605, 127
        %v5693 = vpop.permute.xlu0 %5692
        %5698 = vst.msk [vmem:[#allocation2 + $0xc0] sm:$0xf] %vm5407, %v5687
        %5699 = vst.msk [vmem:[#allocation2 + $0xd0] sm:$0xf] %vm5407, %v5689
        %5700 = vst.msk [vmem:[#allocation2 + $0xe0] sm:$0xf] %vm5407, %v5691
        %5701 = vst.msk [vmem:[#allocation2 + $0xf0] sm:$0xf] %vm5407, %v5693
        %5702 = vrot.lane.b32.xlu0 %v5602, 126
        %v5703 = vpop.permute.xlu0 %5702
        %5704 = vrot.lane.b32.xlu0 %v5603, 126
        %v5705 = vpop.permute.xlu0 %5704
        %5706 = vrot.lane.b32.xlu0 %v5604, 126
        %v5707 = vpop.permute.xlu0 %5706
        %5708 = vrot.lane.b32.xlu0 %v5605, 126
        %v5709 = vpop.permute.xlu0 %5708
        %5714 = vst.msk [vmem:[#allocation2 + $0x100] sm:$0xf] %vm5424, %v5703
        %5715 = vst.msk [vmem:[#allocation2 + $0x110] sm:$0xf] %vm5424, %v5705
        %5716 = vst.msk [vmem:[#allocation2 + $0x120] sm:$0xf] %vm5424, %v5707
        %5717 = vst.msk [vmem:[#allocation2 + $0x130] sm:$0xf] %vm5424, %v5709
        %v5718 = vld [vmem:[#allocation2] sm:$0xf]
        %v5719 = vld [vmem:[#allocation2 + $0x10] sm:$0xf]
        %v5720 = vld [vmem:[#allocation2 + $0x20] sm:$0xf]
        %v5721 = vld [vmem:[#allocation2 + $0x30] sm:$0xf]
        %v5722 = vld [vmem:[#allocation2 + $0x40] sm:$0xf]
        %v5723 = vld [vmem:[#allocation2 + $0x50] sm:$0xf]
        %v5724 = vld [vmem:[#allocation2 + $0x60] sm:$0xf]
        %v5725 = vld [vmem:[#allocation2 + $0x70] sm:$0xf]
        %v5726 = vld [vmem:[#allocation2 + $0x80] sm:$0xf]
        %v5727 = vld [vmem:[#allocation2 + $0x90] sm:$0xf]
        %v5728 = vld [vmem:[#allocation2 + $0xa0] sm:$0xf]
        %v5729 = vld [vmem:[#allocation2 + $0xb0] sm:$0xf]
        %v5730 = vld [vmem:[#allocation2 + $0xc0] sm:$0xf]
        %v5731 = vld [vmem:[#allocation2 + $0xd0] sm:$0xf]
        %v5732 = vld [vmem:[#allocation2 + $0xe0] sm:$0xf]
        %v5733 = vld [vmem:[#allocation2 + $0xf0] sm:$0xf]
        %v5734 = vld [vmem:[#allocation2 + $0x100] sm:$0xf]
        %v5735 = vld [vmem:[#allocation2 + $0x110] sm:$0xf]
        %v5736 = vld [vmem:[#allocation2 + $0x120] sm:$0xf]
        %v5737 = vld [vmem:[#allocation2 + $0x130] sm:$0xf]
        %v5758 = vunpack.c.l.b16 %v5718
        %v5759 = vunpack.c.l.b16 %v5719
        %v5760 = vunpack.c.l.b16 %v5720
        %v5761 = vunpack.c.l.b16 %v5721
        %v5762 = vunpack.c.l.b16 %v5722
        %v5763 = vunpack.c.l.b16 %v5723
        %v5764 = vunpack.c.l.b16 %v5724
        %v5765 = vunpack.c.l.b16 %v5725
        %v5766 = vunpack.c.l.b16 %v5726
        %v5767 = vunpack.c.l.b16 %v5727
        %v5768 = vunpack.c.l.b16 %v5728
        %v5769 = vunpack.c.l.b16 %v5729
        %v5770 = vunpack.c.l.b16 %v5730
        %v5771 = vunpack.c.l.b16 %v5731
        %v5772 = vunpack.c.l.b16 %v5732
        %v5773 = vunpack.c.l.b16 %v5733
        %v5774 = vunpack.c.l.b16 %v5734
        %v5775 = vunpack.c.l.b16 %v5735
        %v5776 = vunpack.c.l.b16 %v5736
        %v5777 = vunpack.c.l.b16 %v5737
        %v5778 = vpack.c.b16 %v5759, %v5758
        %v5779 = vpack.c.b16 %v5761, %v5760
        %v5780 = vpack.c.b16 %v5763, %v5762
        %v5781 = vpack.c.b16 %v5765, %v5764
        %v5782 = vpack.c.b16 %v5767, %v5766
        %v5783 = vpack.c.b16 %v5769, %v5768
        %v5784 = vpack.c.b16 %v5771, %v5770
        %v5785 = vpack.c.b16 %v5773, %v5772
        %v5786 = vpack.c.b16 %v5775, %v5774
        %v5787 = vpack.c.b16 %v5777, %v5776
        %5798 = vmatpush.bf16.msra.mxu0 %v5785
        %5799 = vmatpush.bf16.msra.mxu0 %v5784
        %5800 = vmatpush.bf16.msra.mxu0 %v5783
        %5801 = vmatpush.bf16.msra.mxu0 %v5782
        %5802 = vmatpush.bf16.msra.mxu0 %v5781
        %5803 = vmatpush.bf16.msra.mxu0 %v5780
        %5804 = vmatpush.bf16.msra.mxu0 %v5779
        %5805 = vmatpush.bf16.msra.mxu0 %v5778
        %5806 = vmatmul.bf16.gmra.mxu0 %v5481
        %v5807 = vpop.f32.mrf.mxu0
        %v5808 = vadd.f32 %v5452, %v5807
        %v5809 = vpop.f32.mrf.mxu0
        %v5810 = vadd.f32 %v5457, %v5809
        %5811 = vmatmul.bf16.gmra.mxu0 %v5483
        %v5812 = vpop.f32.mrf.mxu0
        %v5813 = vadd.f32 %v5462, %v5812
        %v5814 = vpop.f32.mrf.mxu0
        %v5815 = vadd.f32 %v5467, %v5814
        %5816 = vdwg.mxu0
        %5817 = vmatpush.bf16.msra.mxu0 0
        %5818 = vmatpush.bf16.msra.mxu0 0
        %5819 = vmatpush.bf16.msra.mxu0 0
        %5820 = vmatpush.bf16.msra.mxu0 0
        %5821 = vmatpush.bf16.msra.mxu0 0
        %5822 = vmatpush.bf16.msra.mxu0 0
        %5823 = vmatpush.bf16.msra.mxu0 %v5787
        %5824 = vmatpush.bf16.msra.mxu0 %v5786
        %5825 = vmatmul.bf16.gmra.mxu0 %v5548
        %v5826 = vpop.f32.mrf.mxu0
        %v5827 = vadd.f32 %v5808, %v5826
        %v5828 = vpop.f32.mrf.mxu0
        %v5829 = vadd.f32 %v5810, %v5828
        %5830 = vmatmul.bf16.gmra.mxu0 %v5551
        %v5831 = vpop.f32.mrf.mxu0
        %v5832 = vadd.f32 %v5813, %v5831
        %v5833 = vpop.f32.mrf.mxu0
        %v5834 = vadd.f32 %v5815, %v5833
        %5835 = vdwg.mxu0
        %v5836 = vadd.f32 %v5827, %v5283
        %v5837 = vadd.f32 %v5829, %v5286
        %v5838 = vadd.f32 %v5832, %v5289
        %v5839 = vadd.f32 %v5834, %v5292
        %v5840 = vmax.f32 %v5836, 0.0
        %v5841 = vmax.f32 %v5837, 0.0
        %v5842 = vmax.f32 %v5838, 0.0
        %v5843 = vmax.f32 %v5839, 0.0
        %5848 = vrot.lane.b32.xlu0 %v5840, 127
        %v5849 = vpop.permute.xlu0 %5848
        %5850 = vrot.lane.b32.xlu0 %v5841, 127
        %v5851 = vpop.permute.xlu0 %5850
        %5852 = vrot.lane.b32.xlu0 %v5842, 127
        %v5853 = vpop.permute.xlu0 %5852
        %5854 = vrot.lane.b32.xlu0 %v5843, 127
        %v5855 = vpop.permute.xlu0 %5854
        %v5860 = vmax.f32 %v5840, %v5849
        %v5861 = vmax.f32 %v5841, %v5851
        %v5862 = vmax.f32 %v5842, %v5853
        %v5863 = vmax.f32 %v5843, %v5855
        %5864 = vrot.lane.b32.xlu0 %v5840, 126
        %v5865 = vpop.permute.xlu0 %5864
        %5866 = vrot.lane.b32.xlu0 %v5841, 126
        %v5867 = vpop.permute.xlu0 %5866
        %5868 = vrot.lane.b32.xlu0 %v5842, 126
        %v5869 = vpop.permute.xlu0 %5868
        %5870 = vrot.lane.b32.xlu0 %v5843, 126
        %v5871 = vpop.permute.xlu0 %5870
        %v5876 = vmax.f32 %v5860, %v5865
        %v5877 = vmax.f32 %v5861, %v5867
        %v5878 = vmax.f32 %v5862, %v5869
        %v5879 = vmax.f32 %v5863, %v5871
        %5880 = vrot.lane.b32.xlu0 %v5840, 125
        %v5881 = vpop.permute.xlu0 %5880
        %5882 = vrot.lane.b32.xlu0 %v5841, 125
        %v5883 = vpop.permute.xlu0 %5882
        %5884 = vrot.lane.b32.xlu0 %v5842, 125
        %v5885 = vpop.permute.xlu0 %5884
        %5886 = vrot.lane.b32.xlu0 %v5843, 125
        %v5887 = vpop.permute.xlu0 %5886
        %v5892 = vmax.f32 %v5876, %v5881
        %v5893 = vmax.f32 %v5877, %v5883
        %v5894 = vmax.f32 %v5878, %v5885
        %v5895 = vmax.f32 %v5879, %v5887
        %5896 = vrot.lane.b32.xlu0 %v5840, 124
        %v5897 = vpop.permute.xlu0 %5896
        %5898 = vrot.lane.b32.xlu0 %v5841, 124
        %v5899 = vpop.permute.xlu0 %5898
        %5900 = vrot.lane.b32.xlu0 %v5842, 124
        %v5901 = vpop.permute.xlu0 %5900
        %5902 = vrot.lane.b32.xlu0 %v5843, 124
        %v5903 = vpop.permute.xlu0 %5902
        %v5908 = vmax.f32 %v5892, %v5897
        %v5909 = vmax.f32 %v5893, %v5899
        %v5910 = vmax.f32 %v5894, %v5901
        %v5911 = vmax.f32 %v5895, %v5903
        %v5912 = vld [vmem:[%s9] sm:$0xff]
        %v5913 = vld [vmem:[%s9 + $0x8] sm:$0xff]
        %v5914 = vld [vmem:[%s9 + $0x10] sm:$0xff]
        %v5915 = vld [vmem:[%s9 + $0x18] sm:$0xff]
        %v5916 = vld [vmem:[%s9 + $0x20] sm:$0xff]
        %v5917 = vld [vmem:[%s9 + $0x28] sm:$0xff]
        %v5918 = vld [vmem:[%s9 + $0x30] sm:$0xff]
        %v5919 = vld [vmem:[%s9 + $0x38] sm:$0xf]
        %vm5920 = vcmask 490496
        %v5922 = vsel %vm5920, %v5908, 0
        %v5925 = vsel %vm5920, %v5909, 0
        %v5928 = vsel %vm5920, %v5910, 0
        %v5931 = vsel %vm5920, %v5911, 0
        %v5934 = vsel %vm906, %v5919, 0
        %5936 = vmatpush.msra.mxu0 0.0
        %5937 = vmatpush.msra.mxu0 0.0
        %5938 = vmatpush.msra.mxu0 0.0
        %5939 = vmatpush.msra.mxu0 0.0
        %5940 = vmatpush.msra.mxu0 0.0
        %5941 = vmatpush.msra.mxu0 0.0
        %5942 = vmatpush.msra.mxu0 0.0
        %5943 = vmatpush.msra.mxu0 0.0
        %5944 = vmatpush.msra.mxu0 %v5934
        %5945 = vmatpush.msra.mxu0 %v5918
        %5946 = vmatpush.msra.mxu0 %v5917
        %5947 = vmatpush.msra.mxu0 %v5916
        %5948 = vmatpush.msra.mxu0 %v5915
        %5949 = vmatpush.msra.mxu0 %v5914
        %5950 = vmatpush.msra.mxu0 %v5913
        %5951 = vmatpush.msra.mxu0 %v5912
        %5952 = vmatmul.f32.gmra.mxu0 %v5922
        %v5953 = vpop.f32.mrf.mxu0
        %v5954 = vadd.f32 0.0, %v5953
        %5955 = vmatmul.f32.gmra.mxu0 %v5925
        %v5956 = vpop.f32.mrf.mxu0
        %v5957 = vadd.f32 0.0, %v5956
        %5958 = vmatmul.f32.gmra.mxu0 %v5928
        %v5959 = vpop.f32.mrf.mxu0
        %v5960 = vadd.f32 0.0, %v5959
        %5961 = vmatmul.f32.gmra.mxu0 %v5931
        %v5962 = vpop.f32.mrf.mxu0
        %v5963 = vadd.f32 0.0, %v5962
        %5964 = vdwg.mxu0
        %s5965 = scalar_lea.vmem %s3, 128
        %v5966 = vld [vmem:[%s5965] sm:$0xff]
        %v5967 = vld [vmem:[%s5965 + $0x8] sm:$0xff]
        %v5968 = vld [vmem:[%s5965 + $0x10] sm:$0xff]
        %v5969 = vld [vmem:[%s5965 + $0x18] sm:$0xff]
        %s5970 = scalar_lea.vmem %s4, 128
        %v5971 = vld [vmem:[%s5970] sm:$0xff]
        %v5972 = vld [vmem:[%s5970 + $0x8] sm:$0xff]
        %v5973 = vld [vmem:[%s5970 + $0x10] sm:$0xff]
        %v5974 = vld [vmem:[%s5970 + $0x18] sm:$0xff]
        %s5975 = scalar_lea.vmem %s5, 16
        %v5976 = vld [vmem:[%s5975] sm:$0x1]
        %vm5977 = vcmp.gt.f32.partialorder %v5976, 0.5
        %v5978 = vpack.c.bf16 %v5954, %v5954
        %v5979 = vpack.c.bf16 %v5957, %v5957
        %v5980 = vpack.c.bf16 %v5960, %v5960
        %v5981 = vpack.c.bf16 %v5963, %v5963
        %5982 = vst.msk [vmem:[#allocation2] sm:$0xf] %vm690, 0
        %5983 = vst.msk [vmem:[#allocation2 + $0x10] sm:$0xf] %vm690, 0
        %5984 = vst.msk [vmem:[#allocation2 + $0x20] sm:$0xf] %vm690, 0
        %5985 = vst.msk [vmem:[#allocation2 + $0x30] sm:$0xf] %vm690, 0
        %5986 = vst.msk [vmem:[#allocation2 + $0x40] sm:$0xf] %vm690, 0
        %5987 = vst.msk [vmem:[#allocation2 + $0x50] sm:$0xf] %vm690, 0
        %5988 = vst.msk [vmem:[#allocation2 + $0x60] sm:$0xf] %vm690, 0
        %5989 = vst.msk [vmem:[#allocation2 + $0x70] sm:$0xf] %vm690, 0
        %5990 = vst.msk [vmem:[#allocation2 + $0x80] sm:$0xf] %vm690, 0
        %5991 = vst.msk [vmem:[#allocation2 + $0x90] sm:$0xf] %vm690, 0
        %5992 = vst.msk [vmem:[#allocation2 + $0xa0] sm:$0xf] %vm690, 0
        %5993 = vst.msk [vmem:[#allocation2 + $0xb0] sm:$0xf] %vm690, 0
        %5994 = vst.msk [vmem:[#allocation2 + $0xc0] sm:$0xf] %vm690, 0
        %5995 = vst.msk [vmem:[#allocation2 + $0xd0] sm:$0xf] %vm690, 0
        %5996 = vst.msk [vmem:[#allocation2 + $0xe0] sm:$0xf] %vm690, 0
        %5997 = vst.msk [vmem:[#allocation2 + $0xf0] sm:$0xf] %vm690, 0
        %5998 = vst.msk [vmem:[#allocation2 + $0x100] sm:$0xf] %vm690, 0
        %5999 = vst.msk [vmem:[#allocation2 + $0x110] sm:$0xf] %vm690, 0
        %6000 = vst.msk [vmem:[#allocation2 + $0x120] sm:$0xf] %vm690, 0
        %6001 = vst.msk [vmem:[#allocation2 + $0x130] sm:$0xf] %vm690, 0
        %vm6002 = vcmask 257264
        %6003 = vst.msk [vmem:[#allocation2] sm:$0xf] %vm6002, 0
        %6004 = vst.msk [vmem:[#allocation2 + $0x10] sm:$0xf] %vm6002, 0
        %6005 = vst.msk [vmem:[#allocation2 + $0x20] sm:$0xf] %vm6002, 0
        %6006 = vst.msk [vmem:[#allocation2 + $0x30] sm:$0xf] %vm6002, 0
        %6007 = vst.msk [vmem:[#allocation2 + $0x40] sm:$0xf] %vm6002, 0
        %6008 = vst.msk [vmem:[#allocation2 + $0x50] sm:$0xf] %vm6002, 0
        %6009 = vst.msk [vmem:[#allocation2 + $0x60] sm:$0xf] %vm6002, 0
        %6010 = vst.msk [vmem:[#allocation2 + $0x70] sm:$0xf] %vm6002, 0
        %6011 = vst.msk [vmem:[#allocation2 + $0x80] sm:$0xf] %vm6002, 0
        %6012 = vst.msk [vmem:[#allocation2 + $0x90] sm:$0xf] %vm6002, 0
        %6013 = vst.msk [vmem:[#allocation2 + $0xa0] sm:$0xf] %vm6002, 0
        %6014 = vst.msk [vmem:[#allocation2 + $0xb0] sm:$0xf] %vm6002, 0
        %6015 = vst.msk [vmem:[#allocation2 + $0xc0] sm:$0xf] %vm6002, 0
        %6016 = vst.msk [vmem:[#allocation2 + $0xd0] sm:$0xf] %vm6002, 0
        %6017 = vst.msk [vmem:[#allocation2 + $0xe0] sm:$0xf] %vm6002, 0
        %6018 = vst.msk [vmem:[#allocation2 + $0xf0] sm:$0xf] %vm6002, 0
        %6019 = vst.msk [vmem:[#allocation2 + $0x100] sm:$0xf] %vm6002, 0
        %6020 = vst.msk [vmem:[#allocation2 + $0x110] sm:$0xf] %vm6002, 0
        %6021 = vst.msk [vmem:[#allocation2 + $0x120] sm:$0xf] %vm6002, 0
        %6022 = vst.msk [vmem:[#allocation2 + $0x130] sm:$0xf] %vm6002, 0
        %6027 = vrot.lane.b32.xlu0 %v5978, 2
        %v6028 = vpop.permute.xlu0 %6027
        %6029 = vrot.lane.b32.xlu0 %v5979, 2
        %v6030 = vpop.permute.xlu0 %6029
        %6031 = vrot.lane.b32.xlu0 %v5980, 2
        %v6032 = vpop.permute.xlu0 %6031
        %6033 = vrot.lane.b32.xlu0 %v5981, 2
        %v6034 = vpop.permute.xlu0 %6033
        %vm6039 = vcmask 257040
        %6040 = vst.msk [vmem:[#allocation2] sm:$0xf] %vm6039, %v6028
        %6041 = vst.msk [vmem:[#allocation2 + $0x10] sm:$0xf] %vm6039, %v6030
        %6042 = vst.msk [vmem:[#allocation2 + $0x20] sm:$0xf] %vm6039, %v6032
        %6043 = vst.msk [vmem:[#allocation2 + $0x30] sm:$0xf] %vm6039, %v6034
        %6044 = vrot.lane.b32.xlu0 %v5978, 1
        %v6045 = vpop.permute.xlu0 %6044
        %6046 = vrot.lane.b32.xlu0 %v5979, 1
        %v6047 = vpop.permute.xlu0 %6046
        %6048 = vrot.lane.b32.xlu0 %v5980, 1
        %v6049 = vpop.permute.xlu0 %6048
        %6050 = vrot.lane.b32.xlu0 %v5981, 1
        %v6051 = vpop.permute.xlu0 %6050
        %vm6056 = vcmask 257032
        %6057 = vst.msk [vmem:[#allocation2 + $0x40] sm:$0xf] %vm6056, %v6045
        %6058 = vst.msk [vmem:[#allocation2 + $0x50] sm:$0xf] %vm6056, %v6047
        %6059 = vst.msk [vmem:[#allocation2 + $0x60] sm:$0xf] %vm6056, %v6049
        %6060 = vst.msk [vmem:[#allocation2 + $0x70] sm:$0xf] %vm6056, %v6051
        %vm6061 = vcmask 257024
        %6062 = vst.msk [vmem:[#allocation2 + $0x80] sm:$0xf] %vm6061, %v5978
        %6063 = vst.msk [vmem:[#allocation2 + $0x90] sm:$0xf] %vm6061, %v5979
        %6064 = vst.msk [vmem:[#allocation2 + $0xa0] sm:$0xf] %vm6061, %v5980
        %6065 = vst.msk [vmem:[#allocation2 + $0xb0] sm:$0xf] %vm6061, %v5981
        %6066 = vrot.lane.b32.xlu0 %v5978, 127
        %v6067 = vpop.permute.xlu0 %6066
        %6068 = vrot.lane.b32.xlu0 %v5979, 127
        %v6069 = vpop.permute.xlu0 %6068
        %6070 = vrot.lane.b32.xlu0 %v5980, 127
        %v6071 = vpop.permute.xlu0 %6070
        %6072 = vrot.lane.b32.xlu0 %v5981, 127
        %v6073 = vpop.permute.xlu0 %6072
        %vm6078 = vcmask 248832
        %6079 = vst.msk [vmem:[#allocation2 + $0xc0] sm:$0xf] %vm6078, %v6067
        %6080 = vst.msk [vmem:[#allocation2 + $0xd0] sm:$0xf] %vm6078, %v6069
        %6081 = vst.msk [vmem:[#allocation2 + $0xe0] sm:$0xf] %vm6078, %v6071
        %6082 = vst.msk [vmem:[#allocation2 + $0xf0] sm:$0xf] %vm6078, %v6073
        %6083 = vrot.lane.b32.xlu0 %v5978, 126
        %v6084 = vpop.permute.xlu0 %6083
        %6085 = vrot.lane.b32.xlu0 %v5979, 126
        %v6086 = vpop.permute.xlu0 %6085
        %6087 = vrot.lane.b32.xlu0 %v5980, 126
        %v6088 = vpop.permute.xlu0 %6087
        %6089 = vrot.lane.b32.xlu0 %v5981, 126
        %v6090 = vpop.permute.xlu0 %6089
        %vm6095 = vcmask 240640
        %6096 = vst.msk [vmem:[#allocation2 + $0x100] sm:$0xf] %vm6095, %v6084
        %6097 = vst.msk [vmem:[#allocation2 + $0x110] sm:$0xf] %vm6095, %v6086
        %6098 = vst.msk [vmem:[#allocation2 + $0x120] sm:$0xf] %vm6095, %v6088
        %6099 = vst.msk [vmem:[#allocation2 + $0x130] sm:$0xf] %vm6095, %v6090
        %v6100 = vld [vmem:[#allocation2] sm:$0xf]
        %v6101 = vld [vmem:[#allocation2 + $0x10] sm:$0xf]
        %v6102 = vld [vmem:[#allocation2 + $0x20] sm:$0xf]
        %v6103 = vld [vmem:[#allocation2 + $0x30] sm:$0xf]
        %v6104 = vld [vmem:[#allocation2 + $0x40] sm:$0xf]
        %v6105 = vld [vmem:[#allocation2 + $0x50] sm:$0xf]
        %v6106 = vld [vmem:[#allocation2 + $0x60] sm:$0xf]
        %v6107 = vld [vmem:[#allocation2 + $0x70] sm:$0xf]
        %v6108 = vld [vmem:[#allocation2 + $0x80] sm:$0xf]
        %v6109 = vld [vmem:[#allocation2 + $0x90] sm:$0xf]
        %v6110 = vld [vmem:[#allocation2 + $0xa0] sm:$0xf]
        %v6111 = vld [vmem:[#allocation2 + $0xb0] sm:$0xf]
        %v6112 = vld [vmem:[#allocation2 + $0xc0] sm:$0xf]
        %v6113 = vld [vmem:[#allocation2 + $0xd0] sm:$0xf]
        %v6114 = vld [vmem:[#allocation2 + $0xe0] sm:$0xf]
        %v6115 = vld [vmem:[#allocation2 + $0xf0] sm:$0xf]
        %v6116 = vld [vmem:[#allocation2 + $0x100] sm:$0xf]
        %v6117 = vld [vmem:[#allocation2 + $0x110] sm:$0xf]
        %v6118 = vld [vmem:[#allocation2 + $0x120] sm:$0xf]
        %v6119 = vld [vmem:[#allocation2 + $0x130] sm:$0xf]
        %6121 = vset.pattern.permute.xlu0 0
        %6122 = vperm.xlu0 %6121, %v5971
        %v6123 = vpop.permute.xlu0 %6122
        %6126 = vset.pattern.permute.xlu0 0
        %6127 = vperm.xlu0 %6126, %v5972
        %v6128 = vpop.permute.xlu0 %6127
        %6131 = vset.pattern.permute.xlu0 0
        %6132 = vperm.xlu0 %6131, %v5973
        %v6133 = vpop.permute.xlu0 %6132
        %6136 = vset.pattern.permute.xlu0 0
        %6137 = vperm.xlu0 %6136, %v5974
        %v6138 = vpop.permute.xlu0 %6137
        %v6144 = vunpack.c.l.b16 %v5966
        %v6145 = vunpack.c.h.b16 %v5966
        %v6146 = vunpack.c.l.b16 %v5967
        %v6147 = vunpack.c.h.b16 %v5967
        %v6148 = vunpack.c.l.b16 %v5968
        %v6149 = vunpack.c.h.b16 %v5968
        %v6150 = vunpack.c.l.b16 %v5969
        %v6151 = vunpack.c.h.b16 %v5969
        %v6152 = vpack.c.b16 %v6146, %v6144
        %v6153 = vpack.c.b16 %v6147, %v6145
        %v6154 = vpack.c.b16 %v6150, %v6148
        %v6155 = vpack.c.b16 %v6151, %v6149
        %v6178 = vunpack.c.l.b16 %v6100
        %v6179 = vunpack.c.l.b16 %v6101
        %v6180 = vunpack.c.l.b16 %v6102
        %v6181 = vunpack.c.l.b16 %v6103
        %v6182 = vunpack.c.l.b16 %v6104
        %v6183 = vunpack.c.l.b16 %v6105
        %v6184 = vunpack.c.l.b16 %v6106
        %v6185 = vunpack.c.l.b16 %v6107
        %v6186 = vunpack.c.l.b16 %v6108
        %v6187 = vunpack.c.l.b16 %v6109
        %v6188 = vunpack.c.l.b16 %v6110
        %v6189 = vunpack.c.l.b16 %v6111
        %v6190 = vunpack.c.l.b16 %v6112
        %v6191 = vunpack.c.l.b16 %v6113
        %v6192 = vunpack.c.l.b16 %v6114
        %v6193 = vunpack.c.l.b16 %v6115
        %v6194 = vunpack.c.l.b16 %v6116
        %v6195 = vunpack.c.l.b16 %v6117
        %v6196 = vunpack.c.l.b16 %v6118
        %v6197 = vunpack.c.l.b16 %v6119
        %v6198 = vpack.c.b16 %v6179, %v6178
        %v6199 = vpack.c.b16 %v6181, %v6180
        %v6200 = vpack.c.b16 %v6183, %v6182
        %v6201 = vpack.c.b16 %v6185, %v6184
        %v6202 = vpack.c.b16 %v6187, %v6186
        %v6203 = vpack.c.b16 %v6189, %v6188
        %v6204 = vpack.c.b16 %v6191, %v6190
        %v6205 = vpack.c.b16 %v6193, %v6192
        %v6206 = vpack.c.b16 %v6195, %v6194
        %v6207 = vpack.c.b16 %v6197, %v6196
        %v6219 = vsel %vm1249, %v6153, 0
        %v6222 = vsel %vm1249, %v6155, 0
        %6224 = vmatpush.bf16.msra.mxu0 %v6205
        %6225 = vmatpush.bf16.msra.mxu0 %v6204
        %6226 = vmatpush.bf16.msra.mxu0 %v6203
        %6227 = vmatpush.bf16.msra.mxu0 %v6202
        %6228 = vmatpush.bf16.msra.mxu0 %v6201
        %6229 = vmatpush.bf16.msra.mxu0 %v6200
        %6230 = vmatpush.bf16.msra.mxu0 %v6199
        %6231 = vmatpush.bf16.msra.mxu0 %v6198
        %6232 = vmatmul.bf16.gmra.mxu0 %v6152
        %v6233 = vpop.f32.mrf.mxu0
        %v6234 = vadd.f32 %v6123, %v6233
        %v6235 = vpop.f32.mrf.mxu0
        %v6236 = vadd.f32 %v6128, %v6235
        %6237 = vmatmul.bf16.gmra.mxu0 %v6154
        %v6238 = vpop.f32.mrf.mxu0
        %v6239 = vadd.f32 %v6133, %v6238
        %v6240 = vpop.f32.mrf.mxu0
        %v6241 = vadd.f32 %v6138, %v6240
        %6242 = vdwg.mxu0
        %6243 = vmatpush.bf16.msra.mxu0 0
        %6244 = vmatpush.bf16.msra.mxu0 0
        %6245 = vmatpush.bf16.msra.mxu0 0
        %6246 = vmatpush.bf16.msra.mxu0 0
        %6247 = vmatpush.bf16.msra.mxu0 0
        %6248 = vmatpush.bf16.msra.mxu0 0
        %6249 = vmatpush.bf16.msra.mxu0 %v6207
        %6250 = vmatpush.bf16.msra.mxu0 %v6206
        %6251 = vmatmul.bf16.gmra.mxu0 %v6219
        %v6252 = vpop.f32.mrf.mxu0
        %v6253 = vadd.f32 %v6234, %v6252
        %v6254 = vpop.f32.mrf.mxu0
        %v6255 = vadd.f32 %v6236, %v6254
        %6256 = vmatmul.bf16.gmra.mxu0 %v6222
        %v6257 = vpop.f32.mrf.mxu0
        %v6258 = vadd.f32 %v6239, %v6257
        %v6259 = vpop.f32.mrf.mxu0
        %v6260 = vadd.f32 %v6241, %v6259
        %6261 = vdwg.mxu0
        %v6262 = vmax.f32 %v6253, 0.0
        %v6263 = vmax.f32 %v6255, 0.0
        %v6264 = vmax.f32 %v6258, 0.0
        %v6265 = vmax.f32 %v6260, 0.0
        %v6266 = vsel %vm5977, 1, 0
        %v6267 = vperm.slane %v6266, 0
        %vm6268 = vcmp.eq.s32.totalorder %v6267, 1
        %v6269 = vsel %vm6268, %v6262, 0.0
        %v6270 = vsel %vm6268, %v6263, 0.0
        %v6271 = vsel %vm6268, %v6264, 0.0
        %v6272 = vsel %vm6268, %v6265, 0.0
        %v6273 = vpack.c.bf16 %v6269, %v6269
        %v6274 = vpack.c.bf16 %v6270, %v6270
        %v6275 = vpack.c.bf16 %v6271, %v6271
        %v6276 = vpack.c.bf16 %v6272, %v6272
        %6277 = vst.msk [vmem:[#allocation2] sm:$0xf] %vm690, 0
        %6278 = vst.msk [vmem:[#allocation2 + $0x10] sm:$0xf] %vm690, 0
        %6279 = vst.msk [vmem:[#allocation2 + $0x20] sm:$0xf] %vm690, 0
        %6280 = vst.msk [vmem:[#allocation2 + $0x30] sm:$0xf] %vm690, 0
        %6281 = vst.msk [vmem:[#allocation2 + $0x40] sm:$0xf] %vm690, 0
        %6282 = vst.msk [vmem:[#allocation2 + $0x50] sm:$0xf] %vm690, 0
        %6283 = vst.msk [vmem:[#allocation2 + $0x60] sm:$0xf] %vm690, 0
        %6284 = vst.msk [vmem:[#allocation2 + $0x70] sm:$0xf] %vm690, 0
        %6285 = vst.msk [vmem:[#allocation2 + $0x80] sm:$0xf] %vm690, 0
        %6286 = vst.msk [vmem:[#allocation2 + $0x90] sm:$0xf] %vm690, 0
        %6287 = vst.msk [vmem:[#allocation2 + $0xa0] sm:$0xf] %vm690, 0
        %6288 = vst.msk [vmem:[#allocation2 + $0xb0] sm:$0xf] %vm690, 0
        %6289 = vst.msk [vmem:[#allocation2 + $0xc0] sm:$0xf] %vm690, 0
        %6290 = vst.msk [vmem:[#allocation2 + $0xd0] sm:$0xf] %vm690, 0
        %6291 = vst.msk [vmem:[#allocation2 + $0xe0] sm:$0xf] %vm690, 0
        %6292 = vst.msk [vmem:[#allocation2 + $0xf0] sm:$0xf] %vm690, 0
        %6293 = vst.msk [vmem:[#allocation2 + $0x100] sm:$0xf] %vm690, 0
        %6294 = vst.msk [vmem:[#allocation2 + $0x110] sm:$0xf] %vm690, 0
        %6295 = vst.msk [vmem:[#allocation2 + $0x120] sm:$0xf] %vm690, 0
        %6296 = vst.msk [vmem:[#allocation2 + $0x130] sm:$0xf] %vm690, 0
        %6297 = vst.msk [vmem:[#allocation2] sm:$0xf] %vm6002, 0
        %6298 = vst.msk [vmem:[#allocation2 + $0x10] sm:$0xf] %vm6002, 0
        %6299 = vst.msk [vmem:[#allocation2 + $0x20] sm:$0xf] %vm6002, 0
        %6300 = vst.msk [vmem:[#allocation2 + $0x30] sm:$0xf] %vm6002, 0
        %6301 = vst.msk [vmem:[#allocation2 + $0x40] sm:$0xf] %vm6002, 0
        %6302 = vst.msk [vmem:[#allocation2 + $0x50] sm:$0xf] %vm6002, 0
        %6303 = vst.msk [vmem:[#allocation2 + $0x60] sm:$0xf] %vm6002, 0
        %6304 = vst.msk [vmem:[#allocation2 + $0x70] sm:$0xf] %vm6002, 0
        %6305 = vst.msk [vmem:[#allocation2 + $0x80] sm:$0xf] %vm6002, 0
        %6306 = vst.msk [vmem:[#allocation2 + $0x90] sm:$0xf] %vm6002, 0
        %6307 = vst.msk [vmem:[#allocation2 + $0xa0] sm:$0xf] %vm6002, 0
        %6308 = vst.msk [vmem:[#allocation2 + $0xb0] sm:$0xf] %vm6002, 0
        %6309 = vst.msk [vmem:[#allocation2 + $0xc0] sm:$0xf] %vm6002, 0
        %6310 = vst.msk [vmem:[#allocation2 + $0xd0] sm:$0xf] %vm6002, 0
        %6311 = vst.msk [vmem:[#allocation2 + $0xe0] sm:$0xf] %vm6002, 0
        %6312 = vst.msk [vmem:[#allocation2 + $0xf0] sm:$0xf] %vm6002, 0
        %6313 = vst.msk [vmem:[#allocation2 + $0x100] sm:$0xf] %vm6002, 0
        %6314 = vst.msk [vmem:[#allocation2 + $0x110] sm:$0xf] %vm6002, 0
        %6315 = vst.msk [vmem:[#allocation2 + $0x120] sm:$0xf] %vm6002, 0
        %6316 = vst.msk [vmem:[#allocation2 + $0x130] sm:$0xf] %vm6002, 0
        %6321 = vrot.lane.b32.xlu0 %v6273, 2
        %v6322 = vpop.permute.xlu0 %6321
        %6323 = vrot.lane.b32.xlu0 %v6274, 2
        %v6324 = vpop.permute.xlu0 %6323
        %6325 = vrot.lane.b32.xlu0 %v6275, 2
        %v6326 = vpop.permute.xlu0 %6325
        %6327 = vrot.lane.b32.xlu0 %v6276, 2
        %v6328 = vpop.permute.xlu0 %6327
        %6333 = vst.msk [vmem:[#allocation2] sm:$0xf] %vm6039, %v6322
        %6334 = vst.msk [vmem:[#allocation2 + $0x10] sm:$0xf] %vm6039, %v6324
        %6335 = vst.msk [vmem:[#allocation2 + $0x20] sm:$0xf] %vm6039, %v6326
        %6336 = vst.msk [vmem:[#allocation2 + $0x30] sm:$0xf] %vm6039, %v6328
        %6337 = vrot.lane.b32.xlu0 %v6273, 1
        %v6338 = vpop.permute.xlu0 %6337
        %6339 = vrot.lane.b32.xlu0 %v6274, 1
        %v6340 = vpop.permute.xlu0 %6339
        %6341 = vrot.lane.b32.xlu0 %v6275, 1
        %v6342 = vpop.permute.xlu0 %6341
        %6343 = vrot.lane.b32.xlu0 %v6276, 1
        %v6344 = vpop.permute.xlu0 %6343
        %6349 = vst.msk [vmem:[#allocation2 + $0x40] sm:$0xf] %vm6056, %v6338
        %6350 = vst.msk [vmem:[#allocation2 + $0x50] sm:$0xf] %vm6056, %v6340
        %6351 = vst.msk [vmem:[#allocation2 + $0x60] sm:$0xf] %vm6056, %v6342
        %6352 = vst.msk [vmem:[#allocation2 + $0x70] sm:$0xf] %vm6056, %v6344
        %6353 = vst.msk [vmem:[#allocation2 + $0x80] sm:$0xf] %vm6061, %v6273
        %6354 = vst.msk [vmem:[#allocation2 + $0x90] sm:$0xf] %vm6061, %v6274
        %6355 = vst.msk [vmem:[#allocation2 + $0xa0] sm:$0xf] %vm6061, %v6275
        %6356 = vst.msk [vmem:[#allocation2 + $0xb0] sm:$0xf] %vm6061, %v6276
        %6357 = vrot.lane.b32.xlu0 %v6273, 127
        %v6358 = vpop.permute.xlu0 %6357
        %6359 = vrot.lane.b32.xlu0 %v6274, 127
        %v6360 = vpop.permute.xlu0 %6359
        %6361 = vrot.lane.b32.xlu0 %v6275, 127
        %v6362 = vpop.permute.xlu0 %6361
        %6363 = vrot.lane.b32.xlu0 %v6276, 127
        %v6364 = vpop.permute.xlu0 %6363
        %6369 = vst.msk [vmem:[#allocation2 + $0xc0] sm:$0xf] %vm6078, %v6358
        %6370 = vst.msk [vmem:[#allocation2 + $0xd0] sm:$0xf] %vm6078, %v6360
        %6371 = vst.msk [vmem:[#allocation2 + $0xe0] sm:$0xf] %vm6078, %v6362
        %6372 = vst.msk [vmem:[#allocation2 + $0xf0] sm:$0xf] %vm6078, %v6364
        %6373 = vrot.lane.b32.xlu0 %v6273, 126
        %v6374 = vpop.permute.xlu0 %6373
        %6375 = vrot.lane.b32.xlu0 %v6274, 126
        %v6376 = vpop.permute.xlu0 %6375
        %6377 = vrot.lane.b32.xlu0 %v6275, 126
        %v6378 = vpop.permute.xlu0 %6377
        %6379 = vrot.lane.b32.xlu0 %v6276, 126
        %v6380 = vpop.permute.xlu0 %6379
        %6385 = vst.msk [vmem:[#allocation2 + $0x100] sm:$0xf] %vm6095, %v6374
        %6386 = vst.msk [vmem:[#allocation2 + $0x110] sm:$0xf] %vm6095, %v6376
        %6387 = vst.msk [vmem:[#allocation2 + $0x120] sm:$0xf] %vm6095, %v6378
        %6388 = vst.msk [vmem:[#allocation2 + $0x130] sm:$0xf] %vm6095, %v6380
        %v6389 = vld [vmem:[#allocation2] sm:$0xf]
        %v6390 = vld [vmem:[#allocation2 + $0x10] sm:$0xf]
        %v6391 = vld [vmem:[#allocation2 + $0x20] sm:$0xf]
        %v6392 = vld [vmem:[#allocation2 + $0x30] sm:$0xf]
        %v6393 = vld [vmem:[#allocation2 + $0x40] sm:$0xf]
        %v6394 = vld [vmem:[#allocation2 + $0x50] sm:$0xf]
        %v6395 = vld [vmem:[#allocation2 + $0x60] sm:$0xf]
        %v6396 = vld [vmem:[#allocation2 + $0x70] sm:$0xf]
        %v6397 = vld [vmem:[#allocation2 + $0x80] sm:$0xf]
        %v6398 = vld [vmem:[#allocation2 + $0x90] sm:$0xf]
        %v6399 = vld [vmem:[#allocation2 + $0xa0] sm:$0xf]
        %v6400 = vld [vmem:[#allocation2 + $0xb0] sm:$0xf]
        %v6401 = vld [vmem:[#allocation2 + $0xc0] sm:$0xf]
        %v6402 = vld [vmem:[#allocation2 + $0xd0] sm:$0xf]
        %v6403 = vld [vmem:[#allocation2 + $0xe0] sm:$0xf]
        %v6404 = vld [vmem:[#allocation2 + $0xf0] sm:$0xf]
        %v6405 = vld [vmem:[#allocation2 + $0x100] sm:$0xf]
        %v6406 = vld [vmem:[#allocation2 + $0x110] sm:$0xf]
        %v6407 = vld [vmem:[#allocation2 + $0x120] sm:$0xf]
        %v6408 = vld [vmem:[#allocation2 + $0x130] sm:$0xf]
        %v6429 = vunpack.c.l.b16 %v6389
        %v6430 = vunpack.c.l.b16 %v6390
        %v6431 = vunpack.c.l.b16 %v6391
        %v6432 = vunpack.c.l.b16 %v6392
        %v6433 = vunpack.c.l.b16 %v6393
        %v6434 = vunpack.c.l.b16 %v6394
        %v6435 = vunpack.c.l.b16 %v6395
        %v6436 = vunpack.c.l.b16 %v6396
        %v6437 = vunpack.c.l.b16 %v6397
        %v6438 = vunpack.c.l.b16 %v6398
        %v6439 = vunpack.c.l.b16 %v6399
        %v6440 = vunpack.c.l.b16 %v6400
        %v6441 = vunpack.c.l.b16 %v6401
        %v6442 = vunpack.c.l.b16 %v6402
        %v6443 = vunpack.c.l.b16 %v6403
        %v6444 = vunpack.c.l.b16 %v6404
        %v6445 = vunpack.c.l.b16 %v6405
        %v6446 = vunpack.c.l.b16 %v6406
        %v6447 = vunpack.c.l.b16 %v6407
        %v6448 = vunpack.c.l.b16 %v6408
        %v6449 = vpack.c.b16 %v6430, %v6429
        %v6450 = vpack.c.b16 %v6432, %v6431
        %v6451 = vpack.c.b16 %v6434, %v6433
        %v6452 = vpack.c.b16 %v6436, %v6435
        %v6453 = vpack.c.b16 %v6438, %v6437
        %v6454 = vpack.c.b16 %v6440, %v6439
        %v6455 = vpack.c.b16 %v6442, %v6441
        %v6456 = vpack.c.b16 %v6444, %v6443
        %v6457 = vpack.c.b16 %v6446, %v6445
        %v6458 = vpack.c.b16 %v6448, %v6447
        %6469 = vmatpush.bf16.msra.mxu0 %v6456
        %6470 = vmatpush.bf16.msra.mxu0 %v6455
        %6471 = vmatpush.bf16.msra.mxu0 %v6454
        %6472 = vmatpush.bf16.msra.mxu0 %v6453
        %6473 = vmatpush.bf16.msra.mxu0 %v6452
        %6474 = vmatpush.bf16.msra.mxu0 %v6451
        %6475 = vmatpush.bf16.msra.mxu0 %v6450
        %6476 = vmatpush.bf16.msra.mxu0 %v6449
        %6477 = vmatmul.bf16.gmra.mxu0 %v6152
        %v6478 = vpop.f32.mrf.mxu0
        %v6479 = vadd.f32 %v6123, %v6478
        %v6480 = vpop.f32.mrf.mxu0
        %v6481 = vadd.f32 %v6128, %v6480
        %6482 = vmatmul.bf16.gmra.mxu0 %v6154
        %v6483 = vpop.f32.mrf.mxu0
        %v6484 = vadd.f32 %v6133, %v6483
        %v6485 = vpop.f32.mrf.mxu0
        %v6486 = vadd.f32 %v6138, %v6485
        %6487 = vdwg.mxu0
        %6488 = vmatpush.bf16.msra.mxu0 0
        %6489 = vmatpush.bf16.msra.mxu0 0
        %6490 = vmatpush.bf16.msra.mxu0 0
        %6491 = vmatpush.bf16.msra.mxu0 0
        %6492 = vmatpush.bf16.msra.mxu0 0
        %6493 = vmatpush.bf16.msra.mxu0 0
        %6494 = vmatpush.bf16.msra.mxu0 %v6458
        %6495 = vmatpush.bf16.msra.mxu0 %v6457
        %6496 = vmatmul.bf16.gmra.mxu0 %v6219
        %v6497 = vpop.f32.mrf.mxu0
        %v6498 = vadd.f32 %v6479, %v6497
        %v6499 = vpop.f32.mrf.mxu0
        %v6500 = vadd.f32 %v6481, %v6499
        %6501 = vmatmul.bf16.gmra.mxu0 %v6222
        %v6502 = vpop.f32.mrf.mxu0
        %v6503 = vadd.f32 %v6484, %v6502
        %v6504 = vpop.f32.mrf.mxu0
        %v6505 = vadd.f32 %v6486, %v6504
        %6506 = vdwg.mxu0
        %v6507 = vadd.f32 %v6498, %v5954
        %v6508 = vadd.f32 %v6500, %v5957
        %v6509 = vadd.f32 %v6503, %v5960
        %v6510 = vadd.f32 %v6505, %v5963
        %v6511 = vmax.f32 %v6507, 0.0
        %v6512 = vmax.f32 %v6508, 0.0
        %v6513 = vmax.f32 %v6509, 0.0
        %v6514 = vmax.f32 %v6510, 0.0
        %6519 = vrot.lane.b32.xlu0 %v6511, 127
        %v6520 = vpop.permute.xlu0 %6519
        %6521 = vrot.lane.b32.xlu0 %v6512, 127
        %v6522 = vpop.permute.xlu0 %6521
        %6523 = vrot.lane.b32.xlu0 %v6513, 127
        %v6524 = vpop.permute.xlu0 %6523
        %6525 = vrot.lane.b32.xlu0 %v6514, 127
        %v6526 = vpop.permute.xlu0 %6525
        %v6531 = vmax.f32 %v6511, %v6520
        %v6532 = vmax.f32 %v6512, %v6522
        %v6533 = vmax.f32 %v6513, %v6524
        %v6534 = vmax.f32 %v6514, %v6526
        %6535 = vrot.lane.b32.xlu0 %v6511, 126
        %v6536 = vpop.permute.xlu0 %6535
        %6537 = vrot.lane.b32.xlu0 %v6512, 126
        %v6538 = vpop.permute.xlu0 %6537
        %6539 = vrot.lane.b32.xlu0 %v6513, 126
        %v6540 = vpop.permute.xlu0 %6539
        %6541 = vrot.lane.b32.xlu0 %v6514, 126
        %v6542 = vpop.permute.xlu0 %6541
        %v6547 = vmax.f32 %v6531, %v6536
        %v6548 = vmax.f32 %v6532, %v6538
        %v6549 = vmax.f32 %v6533, %v6540
        %v6550 = vmax.f32 %v6534, %v6542
        %6551 = vrot.lane.b32.xlu0 %v6511, 125
        %v6552 = vpop.permute.xlu0 %6551
        %6553 = vrot.lane.b32.xlu0 %v6512, 125
        %v6554 = vpop.permute.xlu0 %6553
        %6555 = vrot.lane.b32.xlu0 %v6513, 125
        %v6556 = vpop.permute.xlu0 %6555
        %6557 = vrot.lane.b32.xlu0 %v6514, 125
        %v6558 = vpop.permute.xlu0 %6557
        %v6563 = vmax.f32 %v6547, %v6552
        %v6564 = vmax.f32 %v6548, %v6554
        %v6565 = vmax.f32 %v6549, %v6556
        %v6566 = vmax.f32 %v6550, %v6558
        %6567 = vrot.lane.b32.xlu0 %v6511, 124
        %v6568 = vpop.permute.xlu0 %6567
        %6569 = vrot.lane.b32.xlu0 %v6512, 124
        %v6570 = vpop.permute.xlu0 %6569
        %6571 = vrot.lane.b32.xlu0 %v6513, 124
        %v6572 = vpop.permute.xlu0 %6571
        %6573 = vrot.lane.b32.xlu0 %v6514, 124
        %v6574 = vpop.permute.xlu0 %6573
        %v6579 = vmax.f32 %v6563, %v6568
        %v6580 = vmax.f32 %v6564, %v6570
        %v6581 = vmax.f32 %v6565, %v6572
        %v6582 = vmax.f32 %v6566, %v6574
        %v6583 = vld [vmem:[%s10] sm:$0xff]
        %v6584 = vld [vmem:[%s10 + $0x8] sm:$0xff]
        %v6585 = vld [vmem:[%s10 + $0x10] sm:$0xff]
        %v6586 = vld [vmem:[%s10 + $0x18] sm:$0xf]
        %vm6587 = vcmask 228352
        %v6589 = vsel %vm6587, %v6579, 0
        %v6592 = vsel %vm6587, %v6580, 0
        %v6595 = vsel %vm6587, %v6581, 0
        %v6598 = vsel %vm6587, %v6582, 0
        %v6601 = vsel %vm906, %v6586, 0
        %6603 = vmatpush.msra.mxu0 0.0
        %6604 = vmatpush.msra.mxu0 0.0
        %6605 = vmatpush.msra.mxu0 0.0
        %6606 = vmatpush.msra.mxu0 0.0
        %6607 = vmatpush.msra.mxu0 0.0
        %6608 = vmatpush.msra.mxu0 0.0
        %6609 = vmatpush.msra.mxu0 0.0
        %6610 = vmatpush.msra.mxu0 0.0
        %6611 = vmatpush.msra.mxu0 0.0
        %6612 = vmatpush.msra.mxu0 0.0
        %6613 = vmatpush.msra.mxu0 0.0
        %6614 = vmatpush.msra.mxu0 0.0
        %6615 = vmatpush.msra.mxu0 %v6601
        %6616 = vmatpush.msra.mxu0 %v6585
        %6617 = vmatpush.msra.mxu0 %v6584
        %6618 = vmatpush.msra.mxu0 %v6583
        %6619 = vmatmul.f32.gmra.mxu0 %v6589
        %v6620 = vpop.f32.mrf.mxu0
        %v6621 = vadd.f32 0.0, %v6620
        %6622 = vmatmul.f32.gmra.mxu0 %v6592
        %v6623 = vpop.f32.mrf.mxu0
        %v6624 = vadd.f32 0.0, %v6623
        %6625 = vmatmul.f32.gmra.mxu0 %v6595
        %v6626 = vpop.f32.mrf.mxu0
        %v6627 = vadd.f32 0.0, %v6626
        %6628 = vmatmul.f32.gmra.mxu0 %v6598
        %v6629 = vpop.f32.mrf.mxu0
        %v6630 = vadd.f32 0.0, %v6629
        %6631 = vdwg.mxu0
        %v6632 = vld [vmem:[#allocation7] sm:$0xff]
        %v6633 = vld [vmem:[#allocation7 + $0x8] sm:$0xff]
        %vm6634 = vcmask 130048
        %v6636 = vsel %vm6634, %v6621, 0
        %v6639 = vsel %vm6634, %v6624, 0
        %v6642 = vsel %vm6634, %v6627, 0
        %v6645 = vsel %vm6634, %v6630, 0
        %6647 = vmatpush.msra.mxu0 0.0
        %6648 = vmatpush.msra.mxu0 0.0
        %6649 = vmatpush.msra.mxu0 0.0
        %6650 = vmatpush.msra.mxu0 0.0
        %6651 = vmatpush.msra.mxu0 0.0
        %6652 = vmatpush.msra.mxu0 0.0
        %6653 = vmatpush.msra.mxu0 0.0
        %6654 = vmatpush.msra.mxu0 0.0
        %6655 = vmatpush.msra.mxu0 0.0
        %6656 = vmatpush.msra.mxu0 0.0
        %6657 = vmatpush.msra.mxu0 0.0
        %6658 = vmatpush.msra.mxu0 0.0
        %6659 = vmatpush.msra.mxu0 0.0
        %6660 = vmatpush.msra.mxu0 0.0
        %6661 = vmatpush.msra.mxu0 %v6633
        %6662 = vmatpush.msra.mxu0 %v6632
        %6663 = vmatmul.f32.gmra.mxu0 %v6636
        %v6664 = vpop.f32.mrf.mxu0
        %v6665 = vadd.f32 0.0, %v6664
        %6666 = vmatmul.f32.gmra.mxu0 %v6639
        %v6667 = vpop.f32.mrf.mxu0
        %v6668 = vadd.f32 0.0, %v6667
        %6669 = vmatmul.f32.gmra.mxu0 %v6642
        %v6670 = vpop.f32.mrf.mxu0
        %v6671 = vadd.f32 0.0, %v6670
        %6672 = vmatmul.f32.gmra.mxu0 %v6645
        %v6673 = vpop.f32.mrf.mxu0
        %v6674 = vadd.f32 0.0, %v6673
        %6675 = vdwg.mxu0
        %v6676 = vld [vmem:[#allocation8] sm:$0xff]
        %v6677 = vld [vmem:[#allocation8 + $0x8] sm:$0xff]
        %v6678 = vld [vmem:[#allocation8 + $0x10] sm:$0xff]
        %v6679 = vld [vmem:[#allocation8 + $0x18] sm:$0xff]
        %s6680 = scalar_lea.vmem [#allocation7], 16
        %v6681 = vld [vmem:[%s6680] sm:$0xff]
        %v6682 = vld [vmem:[%s6680 + $0x8] sm:$0xff]
        %6683 = vmatpush.msra.mxu0 0.0
        %6684 = vmatpush.msra.mxu0 0.0
        %6685 = vmatpush.msra.mxu0 0.0
        %6686 = vmatpush.msra.mxu0 0.0
        %6687 = vmatpush.msra.mxu0 0.0
        %6688 = vmatpush.msra.mxu0 0.0
        %6689 = vmatpush.msra.mxu0 0.0
        %6690 = vmatpush.msra.mxu0 0.0
        %6691 = vmatpush.msra.mxu0 0.0
        %6692 = vmatpush.msra.mxu0 0.0
        %6693 = vmatpush.msra.mxu0 0.0
        %6694 = vmatpush.msra.mxu0 0.0
        %6695 = vmatpush.msra.mxu0 0.0
        %6696 = vmatpush.msra.mxu0 0.0
        %6697 = vmatpush.msra.mxu0 %v6682
        %6698 = vmatpush.msra.mxu0 %v6681
        %6699 = vmatmul.f32.gmra.mxu0 %v6636
        %v6700 = vpop.f32.mrf.mxu0
        %v6701 = vadd.f32 0.0, %v6700
        %6702 = vmatmul.f32.gmra.mxu0 %v6639
        %v6703 = vpop.f32.mrf.mxu0
        %v6704 = vadd.f32 0.0, %v6703
        %6705 = vmatmul.f32.gmra.mxu0 %v6642
        %v6706 = vpop.f32.mrf.mxu0
        %v6707 = vadd.f32 0.0, %v6706
        %6708 = vmatmul.f32.gmra.mxu0 %v6645
        %v6709 = vpop.f32.mrf.mxu0
        %v6710 = vadd.f32 0.0, %v6709
        %6711 = vdwg.mxu0
        %s6712 = scalar_lea.vmem [#allocation8], 32
        %v6713 = vld [vmem:[%s6712] sm:$0xff]
        %v6714 = vld [vmem:[%s6712 + $0x8] sm:$0xff]
        %v6715 = vld [vmem:[%s6712 + $0x10] sm:$0xff]
        %v6716 = vld [vmem:[%s6712 + $0x18] sm:$0xff]
        %v6718 = vsel %vm1249, %v6713, 0
        %v6721 = vsel %vm1249, %v6714, 0
        %v6724 = vsel %vm1249, %v6715, 0
        %v6727 = vsel %vm1249, %v6716, 0
        %6729 = vmatpush.msra.mxu0 0.0
        %6730 = vmatpush.msra.mxu0 0.0
        %6731 = vmatpush.msra.mxu0 0.0
        %6732 = vmatpush.msra.mxu0 0.0
        %6733 = vmatpush.msra.mxu0 0.0
        %6734 = vmatpush.msra.mxu0 0.0
        %6735 = vmatpush.msra.mxu0 0.0
        %6736 = vmatpush.msra.mxu0 0.0
        %6737 = vmatpush.msra.mxu0 0.0
        %6738 = vmatpush.msra.mxu0 0.0
        %6739 = vmatpush.msra.mxu0 0.0
        %6740 = vmatpush.msra.mxu0 0.0
        %6741 = vmatpush.msra.mxu0 %v6710
        %6742 = vmatpush.msra.mxu0 %v6707
        %6743 = vmatpush.msra.mxu0 %v6704
        %6744 = vmatpush.msra.mxu0 %v6701
        %6745 = vmatmul.f32.gmra.mxu0 %v6718
        %v6746 = vpop.f32.mrf.mxu0
        %v6747 = vadd.f32 0.0, %v6746
        %6748 = vmatmul.f32.gmra.mxu0 %v6721
        %v6749 = vpop.f32.mrf.mxu0
        %v6750 = vadd.f32 0.0, %v6749
        %6751 = vmatmul.f32.gmra.mxu0 %v6724
        %v6752 = vpop.f32.mrf.mxu0
        %v6753 = vadd.f32 0.0, %v6752
        %6754 = vmatmul.f32.gmra.mxu0 %v6727
        %v6755 = vpop.f32.mrf.mxu0
        %v6756 = vadd.f32 0.0, %v6755
        %6757 = vdwg.mxu0
        %v6759 = vsel %vm1249, %v6676, 0
        %v6762 = vsel %vm1249, %v6677, 0
        %v6765 = vsel %vm1249, %v6678, 0
        %v6768 = vsel %vm1249, %v6679, 0
        %6770 = vmatpush.msra.mxu0 0.0
        %6771 = vmatpush.msra.mxu0 0.0
        %6772 = vmatpush.msra.mxu0 0.0
        %6773 = vmatpush.msra.mxu0 0.0
        %6774 = vmatpush.msra.mxu0 0.0
        %6775 = vmatpush.msra.mxu0 0.0
        %6776 = vmatpush.msra.mxu0 0.0
        %6777 = vmatpush.msra.mxu0 0.0
        %6778 = vmatpush.msra.mxu0 0.0
        %6779 = vmatpush.msra.mxu0 0.0
        %6780 = vmatpush.msra.mxu0 0.0
        %6781 = vmatpush.msra.mxu0 0.0
        %6782 = vmatpush.msra.mxu0 %v6674
        %6783 = vmatpush.msra.mxu0 %v6671
        %6784 = vmatpush.msra.mxu0 %v6668
        %6785 = vmatpush.msra.mxu0 %v6665
        %6786 = vmatmul.f32.gmra.mxu0 %v6759
        %v6787 = vpop.f32.mrf.mxu0
        %v6788 = vadd.f32 %v6747, %v6787
        %6789 = vmatmul.f32.gmra.mxu0 %v6762
        %v6790 = vpop.f32.mrf.mxu0
        %v6791 = vadd.f32 %v6750, %v6790
        %6792 = vmatmul.f32.gmra.mxu0 %v6765
        %v6793 = vpop.f32.mrf.mxu0
        %v6794 = vadd.f32 %v6753, %v6793
        %6795 = vmatmul.f32.gmra.mxu0 %v6768
        %v6796 = vpop.f32.mrf.mxu0
        %v6797 = vadd.f32 %v6756, %v6796
        %6798 = vdwg.mxu0
        %s6799 = scalar_lea.vmem [#allocation7], 32
        %v6800 = vld [vmem:[%s6799] sm:$0xff]
        %v6801 = vld [vmem:[%s6799 + $0x8] sm:$0xff]
        %6802 = vmatpush.msra.mxu0 0.0
        %6803 = vmatpush.msra.mxu0 0.0
        %6804 = vmatpush.msra.mxu0 0.0
        %6805 = vmatpush.msra.mxu0 0.0
        %6806 = vmatpush.msra.mxu0 0.0
        %6807 = vmatpush.msra.mxu0 0.0
        %6808 = vmatpush.msra.mxu0 0.0
        %6809 = vmatpush.msra.mxu0 0.0
        %6810 = vmatpush.msra.mxu0 0.0
        %6811 = vmatpush.msra.mxu0 0.0
        %6812 = vmatpush.msra.mxu0 0.0
        %6813 = vmatpush.msra.mxu0 0.0
        %6814 = vmatpush.msra.mxu0 0.0
        %6815 = vmatpush.msra.mxu0 0.0
        %6816 = vmatpush.msra.mxu0 %v6801
        %6817 = vmatpush.msra.mxu0 %v6800
        %6818 = vmatmul.f32.gmra.mxu0 %v6636
        %v6819 = vpop.f32.mrf.mxu0
        %v6820 = vadd.f32 0.0, %v6819
        %6821 = vmatmul.f32.gmra.mxu0 %v6639
        %v6822 = vpop.f32.mrf.mxu0
        %v6823 = vadd.f32 0.0, %v6822
        %6824 = vmatmul.f32.gmra.mxu0 %v6642
        %v6825 = vpop.f32.mrf.mxu0
        %v6826 = vadd.f32 0.0, %v6825
        %6827 = vmatmul.f32.gmra.mxu0 %v6645
        %v6828 = vpop.f32.mrf.mxu0
        %v6829 = vadd.f32 0.0, %v6828
        %6830 = vdwg.mxu0
        %s6831 = scalar_lea.vmem [#allocation8], 64
        %v6832 = vld [vmem:[%s6831] sm:$0xff]
        %v6833 = vld [vmem:[%s6831 + $0x8] sm:$0xff]
        %v6834 = vld [vmem:[%s6831 + $0x10] sm:$0xff]
        %v6835 = vld [vmem:[%s6831 + $0x18] sm:$0xff]
        %v6837 = vsel %vm1249, %v6832, 0
        %v6840 = vsel %vm1249, %v6833, 0
        %v6843 = vsel %vm1249, %v6834, 0
        %v6846 = vsel %vm1249, %v6835, 0
        %6848 = vmatpush.msra.mxu0 0.0
        %6849 = vmatpush.msra.mxu0 0.0
        %6850 = vmatpush.msra.mxu0 0.0
        %6851 = vmatpush.msra.mxu0 0.0
        %6852 = vmatpush.msra.mxu0 0.0
        %6853 = vmatpush.msra.mxu0 0.0
        %6854 = vmatpush.msra.mxu0 0.0
        %6855 = vmatpush.msra.mxu0 0.0
        %6856 = vmatpush.msra.mxu0 0.0
        %6857 = vmatpush.msra.mxu0 0.0
        %6858 = vmatpush.msra.mxu0 0.0
        %6859 = vmatpush.msra.mxu0 0.0
        %6860 = vmatpush.msra.mxu0 %v6829
        %6861 = vmatpush.msra.mxu0 %v6826
        %6862 = vmatpush.msra.mxu0 %v6823
        %6863 = vmatpush.msra.mxu0 %v6820
        %6864 = vmatmul.f32.gmra.mxu0 %v6837
        %v6865 = vpop.f32.mrf.mxu0
        %v6866 = vadd.f32 0.0, %v6865
        %6867 = vmatmul.f32.gmra.mxu0 %v6840
        %v6868 = vpop.f32.mrf.mxu0
        %v6869 = vadd.f32 0.0, %v6868
        %6870 = vmatmul.f32.gmra.mxu0 %v6843
        %v6871 = vpop.f32.mrf.mxu0
        %v6872 = vadd.f32 0.0, %v6871
        %6873 = vmatmul.f32.gmra.mxu0 %v6846
        %v6874 = vpop.f32.mrf.mxu0
        %v6875 = vadd.f32 0.0, %v6874
        %6876 = vdwg.mxu0
        %v6877 = vadd.f32 %v6788, %v6866
        %v6878 = vadd.f32 %v6791, %v6869
        %v6879 = vadd.f32 %v6794, %v6872
        %v6880 = vadd.f32 %v6797, %v6875
        %v6881 = vld [vmem:[%s13] sm:$0xff]
        %v6882 = vld [vmem:[%s13 + $0x8] sm:$0xff]
        %v6883 = vld [vmem:[%s13 + $0x10] sm:$0xff]
        %v6884 = vld [vmem:[%s13 + $0x18] sm:$0xff]
        %6886 = vset.pattern.permute.xlu0 0
        %6887 = vperm.xlu0 %6886, %v6881
        %v6888 = vpop.permute.xlu0 %6887
        %6891 = vset.pattern.permute.xlu0 0
        %6892 = vperm.xlu0 %6891, %v6882
        %v6893 = vpop.permute.xlu0 %6892
        %6896 = vset.pattern.permute.xlu0 0
        %6897 = vperm.xlu0 %6896, %v6883
        %v6898 = vpop.permute.xlu0 %6897
        %6901 = vset.pattern.permute.xlu0 0
        %6902 = vperm.xlu0 %6901, %v6884
        %v6903 = vpop.permute.xlu0 %6902
        %v6905 = vadd.f32 %v6877, %v6888
        %v6906 = vadd.f32 %v6878, %v6893
        %v6907 = vadd.f32 %v6879, %v6898
        %v6908 = vadd.f32 %v6880, %v6903
        %v6909 = vmax.f32 %v6905, 0.0
        %v6910 = vmax.f32 %v6906, 0.0
        %v6911 = vmax.f32 %v6907, 0.0
        %v6912 = vmax.f32 %v6908, 0.0
        %v6913 = vld [vmem:[#allocation10] sm:$0xff]
        %v6914 = vld [vmem:[#allocation10 + $0x8] sm:$0xff]
        %v6915 = vld [vmem:[%s15] sm:$0xff]
        %v6916 = vld [vmem:[%s15 + $0x8] sm:$0xff]
        %6918 = vset.pattern.permute.xlu0 0
        %6919 = vperm.xlu0 %6918, %v6915
        %v6920 = vpop.permute.xlu0 %6919
        %6923 = vset.pattern.permute.xlu0 0
        %6924 = vperm.xlu0 %6923, %v6916
        %v6925 = vpop.permute.xlu0 %6924
        %v6928 = vsel %vm1249, %v6913, 0
        %v6931 = vsel %vm1249, %v6914, 0
        %6933 = vmatpush.msra.mxu0 0.0
        %6934 = vmatpush.msra.mxu0 0.0
        %6935 = vmatpush.msra.mxu0 0.0
        %6936 = vmatpush.msra.mxu0 0.0
        %6937 = vmatpush.msra.mxu0 0.0
        %6938 = vmatpush.msra.mxu0 0.0
        %6939 = vmatpush.msra.mxu0 0.0
        %6940 = vmatpush.msra.mxu0 0.0
        %6941 = vmatpush.msra.mxu0 0.0
        %6942 = vmatpush.msra.mxu0 0.0
        %6943 = vmatpush.msra.mxu0 0.0
        %6944 = vmatpush.msra.mxu0 0.0
        %6945 = vmatpush.msra.mxu0 %v6912
        %6946 = vmatpush.msra.mxu0 %v6911
        %6947 = vmatpush.msra.mxu0 %v6910
        %6948 = vmatpush.msra.mxu0 %v6909
        %6949 = vmatmul.f32.gmra.mxu0 %v6928
        %v6950 = vpop.f32.mrf.mxu0
        %v6951 = vadd.f32 %v6920, %v6950
        %6952 = vmatmul.f32.gmra.mxu0 %v6931
        %v6953 = vpop.f32.mrf.mxu0
        %v6954 = vadd.f32 %v6925, %v6953
        %6955 = vdwg.mxu0
        %v6956 = vmax.f32 %v6951, 0.0
        %v6957 = vmax.f32 %v6954, 0.0
        %v6958 = vld [vmem:[%s16] sm:$0x1f]
        %v6959 = vld [vmem:[%s17] sm:$0x1f]
        %6961 = vset.pattern.permute.xlu0 0
        %6962 = vperm.xlu0 %6961, %v6959
        %v6963 = vpop.permute.xlu0 %6962
        %v6966 = vsel %vm6634, %v6958, 0
        %6968 = vmatpush.msra.mxu0 0.0
        %6969 = vmatpush.msra.mxu0 0.0
        %6970 = vmatpush.msra.mxu0 0.0
        %6971 = vmatpush.msra.mxu0 0.0
        %6972 = vmatpush.msra.mxu0 0.0
        %6973 = vmatpush.msra.mxu0 0.0
        %6974 = vmatpush.msra.mxu0 0.0
        %6975 = vmatpush.msra.mxu0 0.0
        %6976 = vmatpush.msra.mxu0 0.0
        %6977 = vmatpush.msra.mxu0 0.0
        %6978 = vmatpush.msra.mxu0 0.0
        %6979 = vmatpush.msra.mxu0 0.0
        %6980 = vmatpush.msra.mxu0 0.0
        %6981 = vmatpush.msra.mxu0 0.0
        %6982 = vmatpush.msra.mxu0 %v6957
        %6983 = vmatpush.msra.mxu0 %v6956
        %6984 = vmatmul.f32.gmra.mxu0 %v6966
        %v6985 = vpop.f32.mrf.mxu0
        %v6986 = vadd.f32 %v6963, %v6985
        %6987 = vdwg.mxu0
        %vm6988 = vcmask 1044480
        %v6989 = vsel %vm6988, %v6986, -inf
        %v6990 = vrot.slane %v6989, 4
        %v6991 = vmax.f32 %v6989, %v6990
        %v6992 = vrot.slane %v6991, 2
        %v6993 = vmax.f32 %v6991, %v6992
        %v6994 = vrot.slane %v6993, 1
        %v6995 = vmax.f32 %v6993, %v6994
        %v6996 = vsub.f32 %v6986, %v6995
        %v6997 = vmul.f32 %v6996, 1.442695
        %v6998 = vpow.pop %v6997
        %v6999 = vsel %vm6988, %v6998, 0.0
        %v7000 = vrot.slane %v6999, 4
        %v7001 = vadd.f32 %v6999, %v7000
        %v7002 = vrot.slane %v7001, 2
        %v7003 = vadd.f32 %v7001, %v7002
        %v7004 = vrot.slane %v7003, 1
        %v7005 = vadd.f32 %v7003, %v7004
        %v7006 = vlog2.pop %v7005
        %v7007 = vmul.f32 %v7006, 0.6931472
        %v7008 = vsub.f32 %v6996, %v7007
        %7009 = vst [vmem:[%s656] sm:$0x1f] %v7008
        %p7010 = scmp.lt.s32.totalorder %s32, 1
        %s7011 = scalar_select %p7010, %s32, 1
        %s7012 = smul.addr %s7011, 8
        %s7013 = scalar_lea.vmem %s18, %s7012
        // Predicated region
        $region113: #{tpu_custom_call.1} parent=91 // pred_check
          %p7014 = pneg %p433
        $region114: #{tpu_custom_call.1} parent=91 // pred_check_branch
          %7016 = sbr.rel (%p7014) target = $region116
        $region115: #{tpu_custom_call.1} parent=91 // pred_region
          _
        $region116: #{tpu_custom_call.1} parent=91 // pred_fallthru
          _
      $region92: #{tpu_custom_call.1} parent=5 // pred_fallthru
        _
      %p7017 = scmp.le.s32.totalorder 2, %s27
      // Predicated region
      $region117: #{tpu_custom_call.1} parent=5 // pred_check
        %p7018 = pneg %p7017
      $region118: #{tpu_custom_call.1} parent=5 // pred_check_branch
        %7020 = sbr.rel (%p7018) target = $region120
      $region119: #{tpu_custom_call.1} parent=5 // pred_region
        %s7021 = ssub.s32 %s27, 2
        // Predicated region
        $region121: #{tpu_custom_call.1} parent=119 // pred_check
          %p7022 = pneg %p439
        $region122: #{tpu_custom_call.1} parent=119 // pred_check_branch
          %7024 = sbr.rel (%p7022) target = $region124
        $region123: #{tpu_custom_call.1} parent=119 // pred_region
          %p7025 = scmp.lt.s32.totalorder %s33, 1
          %s7026 = scalar_select %p7025, %s33, 1
          %s7027 = smul.addr %s7026, 8
          %s7028 = scalar_lea.vmem %s18, %s7027
        $region124: #{tpu_custom_call.1} parent=119 // pred_fallthru
          _
      $region120: #{tpu_custom_call.1} parent=5 // pred_fallthru
        _
    $region6: #{tpu_custom_call.1} parent=1 // loop_footer
      %s31 = sadd.s32 1, %s27
    $region7: #{tpu_custom_call.1} parent=1 // loop_footer_branch
      %26 = sbr.rel target = $region3
    $region8: #{tpu_custom_call.1} parent=1 // loop_exit
      _
    %7029 = vsyncpa [#allocation4], 1
    %s7030 = scalar_lea.sflag [#allocation4], 1
    %7031 = vsyncpa %s7030, 1
    %7032 = vsyncpa [#allocation6], 1
    %7033 = vsyncpa [#allocation9], 1

</llo_original>
